<compile_context>
chip_gen: v7x
topology: tpu7x:2x2x1
jax: 0.10.0
libtpu: 0.0.40
codegen_flags: <defaults>
</compile_context>

<pallas_src>
import functools

import jax
import jax.numpy as jnp
from jax.experimental import pallas as pl
from jax.experimental.pallas import tpu as pltpu

EPS = 1e-5
F32 = jnp.float32
BF16 = jnp.bfloat16


def _full_spec(shape):
    nd = len(shape)
    return pl.BlockSpec(shape, lambda i, _nd=nd: (0,) * _nd)


# ---------------------------------------------------------------------------
# BasicBlockCifar: one fused Pallas kernel
# ---------------------------------------------------------------------------
def _basic_block_kernel(planes_ref, w1_ref, g1_ref, b1_ref,
                        w2_ref, g2_ref, b2_ref, sc_ref,
                        o_ref,
                        pad_ref, im1_ref, im2_ref, *, tap_map):
    # planes_ref : (P*N, Hp, Wp, Cin)  padded input (P=1 for stride 1, P=4 parity planes
    #                                  for stride 2) -- all 9 taps are in-VMEM shifts.
    # w1_ref     : (9*Cin, Cout) bf16  fused conv1 weight
    # w2_ref     : (9*Cout, Cout) bf16 fused conv2 weight
    # g*/b*_ref  : (1, Cout) f32       BN affine params
    # sc_ref     : (M, Cout) f32       shortcut branch (flat NHWC)
    # o_ref      : (M, Cout) f32
    # pad_ref    : (N, Ho+2, Wo+2, Cout) f32  conv2 input with 1-px halo
    # im1_ref    : (M, 9*Cin)  f32     fused im2col buffer for conv1
    # im2_ref    : (M, 9*Cout) f32     fused im2col buffer for conv2
    m, cout = o_ref.shape
    cin = planes_ref.shape[3]
    n, hp2, wp2, _ = pad_ref.shape
    ho, wo = hp2 - 2, wp2 - 2
    inv_m = 1.0 / m

    # ---- conv1: gather the 9 tap patches (in-VMEM shifts) into one im2col buffer
    #      and run a single K = 9*Cin MXU matmul (bf16 operands, f32 accumulate).
    for k, (p, oy, ox) in enumerate(tap_map):
        patch = planes_ref[p * n:(p + 1) * n, oy:oy + ho, ox:ox + wo, :]
        im1_ref[:, k * cin:(k + 1) * cin] = patch.reshape(m, cin)
    acc = jnp.dot(im1_ref[...].astype(BF16), w1_ref[...],
                  preferred_element_type=F32)

    # ---- bn1 (training-mode batch stats, one pass: var = E[x^2] - E[x]^2) + relu
    s1 = jnp.sum(acc, axis=0, keepdims=True)
    q1 = jnp.sum(acc * acc, axis=0, keepdims=True)
    mean1 = s1 * inv_m
    var1 = q1 * inv_m - mean1 * mean1
    scale1 = g1_ref[...] * jax.lax.rsqrt(var1 + EPS)
    out1 = jnp.maximum(acc * scale1 + (b1_ref[...] - mean1 * scale1), 0.0)

    # ---- conv2 input: write interior of the padded scratch, zero only the 1-px halo
    pad_ref[:, 1:ho + 1, 1:wo + 1, :] = out1.reshape(n, ho, wo, cout)
    zrow = jnp.zeros((n, 1, wp2, cout), F32)
    zcol = jnp.zeros((n, hp2, 1, cout), F32)
    pad_ref[:, 0:1, :, :] = zrow
    pad_ref[:, ho + 1:ho + 2, :, :] = zrow
    pad_ref[:, :, 0:1, :] = zcol
    pad_ref[:, :, wo + 1:wo + 2, :] = zcol

    # ---- conv2: stride-1 3x3, again one fused K = 9*Cout matmul from in-VMEM shifts
    for k in range(9):
        dy, dx = k // 3, k % 3
        patch = pad_ref[:, dy:dy + ho, dx:dx + wo, :]
        im2_ref[:, k * cout:(k + 1) * cout] = patch.reshape(m, cout)
    acc2 = jnp.dot(im2_ref[...].astype(BF16), w2_ref[...],
                   preferred_element_type=F32)

    # ---- bn2 + shortcut add + relu
    s2 = jnp.sum(acc2, axis=0, keepdims=True)
    q2 = jnp.sum(acc2 * acc2, axis=0, keepdims=True)
    mean2 = s2 * inv_m
    var2 = q2 * inv_m - mean2 * mean2
    scale2 = g2_ref[...] * jax.lax.rsqrt(var2 + EPS)
    out2 = acc2 * scale2 + (b2_ref[...] - mean2 * scale2) + sc_ref[...]
    o_ref[...] = jnp.maximum(out2, 0.0)


def basic_block_nhwc(x_nhwc, params, stride=1):
    """BasicBlockCifar forward, NHWC in -> NHWC out (one fused Pallas kernel)."""
    w1, g1, b1, w2, g2, b2 = params            # w*: OIHW (PyTorch), g/b: (Cout,)
    x = x_nhwc.astype(F32)
    n, h, w, cin = x.shape
    cout = w1.shape[0]
    ho = (h - 1) // stride + 1
    wo = (w - 1) // stride + 1
    m = n * ho * wo

    xpad = jnp.pad(x, ((0, 0), (1, 1), (1, 1), (0, 0)))
    if stride == 1:
        planes = xpad                                          # (N, Ho+2, Wo+2, Cin)
        tap_map = tuple((0, dy, dx) for dy in range(3) for dx in range(3))
    elif stride == 2:
        assert h % 2 == 0 and w % 2 == 0, "option-A CIFAR block expects even H, W"
        # 4 spatial-parity planes of the padded input: tap (dy,dx) of the stride-2 conv
        # becomes a plain (unstrided) shift on plane (dy%2, dx%2).  Total bytes == xpad.
        planes = jnp.concatenate(
            [xpad[:, py::2, px::2, :] for py in (0, 1) for px in (0, 1)], axis=0)
        tap_map = tuple(((dy % 2) * 2 + (dx % 2), dy // 2, dx // 2)
                        for dy in range(3) for dx in range(3))
    else:
        raise NotImplementedError("BasicBlockCifar supports stride 1 or 2 only")

    # fused conv weights: (Cout, Cin, 3, 3) -> (ky, kx, Cin, Cout) -> (9*Cin, Cout), bf16
    w1f = jnp.transpose(w1, (2, 3, 1, 0)).reshape(9 * cin, cout).astype(BF16)
    w2f = jnp.transpose(w2, (2, 3, 1, 0)).reshape(9 * cout, cout).astype(BF16)

    # shortcut: identity, or option-A (::2 spatial subsample + zero channel pad)
    if stride != 1 or cin != cout:
        pch = cout // 4
        sc = jnp.pad(x[:, ::2, ::2, :], ((0, 0), (0, 0), (0, 0), (pch, pch)))
    else:
        sc = x
    sc_flat = sc.reshape(m, cout)

    flops = 2 * m * (9 * cin) * cout + 2 * m * (9 * cout) * cout
    bytes_accessed = ((planes.size + sc_flat.size + m * cout + 4 * cout) * 4
                      + (w1f.size + w2f.size) * 2)

    kernel = functools.partial(_basic_block_kernel, tap_map=tap_map)
    out_flat = pl.pallas_call(
        kernel,
        out_shape=jax.ShapeDtypeStruct((m, cout), F32),
        grid=(1,),
        in_specs=[_full_spec(planes.shape), _full_spec(w1f.shape),
                  _full_spec((1, cout)), _full_spec((1, cout)),
                  _full_spec(w2f.shape),
                  _full_spec((1, cout)), _full_spec((1, cout)),
                  _full_spec((m, cout))],
        out_specs=_full_spec((m, cout)),
        scratch_shapes=[pltpu.VMEM((n, ho + 2, wo + 2, cout), F32),
                        pltpu.VMEM((m, 9 * cin), F32),
                        pltpu.VMEM((m, 9 * cout), F32)],
        compiler_params=pltpu.CompilerParams(dimension_semantics=("arbitrary",)),
        cost_estimate=pl.CostEstimate(flops=flops, transcendentals=2 * cout,
                                      bytes_accessed=bytes_accessed),
    )(planes, w1f,
      g1.reshape(1, cout).astype(F32), b1.reshape(1, cout).astype(F32),
      w2f,
      g2.reshape(1, cout).astype(F32), b2.reshape(1, cout).astype(F32),
      sc_flat)

    return out_flat.reshape(n, ho, wo, cout)


# ---------------------------------------------------------------------------
# avg-pool + fc head kernel
# ---------------------------------------------------------------------------
def _head_kernel(x_ref, w_ref, b_ref, o_ref):
    # x_ref: (N, C, Ho*Wo) -- pooled over the last (lane) axis, then fc on the MXU.
    pooled = jnp.mean(x_ref[...], axis=-1)                       # (N, C)
    o_ref[...] = jnp.dot(pooled, w_ref[...], preferred_element_type=F32,
                         precision=jax.lax.Precision.HIGHEST) + b_ref[...]


def head_pallas(x_nhwc, wf, bf):
    n, ho, wo, c = x_nhwc.shape
    nc = wf.shape[0]
    xs = jnp.transpose(x_nhwc.reshape(n, ho * wo, c), (0, 2, 1)).astype(F32)  # (N,C,S)
    wt = jnp.transpose(wf).astype(F32)                                        # (C, nc)
    return pl.pallas_call(
        _head_kernel,
        out_shape=jax.ShapeDtypeStruct((n, nc), F32),
        grid=(1,),
        in_specs=[_full_spec(xs.shape), _full_spec(wt.shape), _full_spec((1, nc))],
        out_specs=_full_spec((n, nc)),
    )(xs, wt, bf.reshape(1, nc).astype(F32))


# ---------------------------------------------------------------------------
# Full ResNet8 forward
# ---------------------------------------------------------------------------
def resnet8_forward_pallas(x_nchw, params):
    blk1, blk2, blk3, (wf, bf) = params
    x = jnp.transpose(x_nchw.astype(F32), (0, 2, 3, 1))          # NCHW -> NHWC once
    x = basic_block_nhwc(x, blk1, stride=1)                      # 16 -> 16
    x = basic_block_nhwc(x, blk2, stride=2)                      # 16 -> 32
    x = basic_block_nhwc(x, blk3, stride=2)                      # 32 -> 64
    return head_pallas(x, wf, bf)                                # (N, num_classes)


# ---------------------------------------------------------------------------
# Pure-JAX references
# ---------------------------------------------------------------------------
def ref_basic_block(x, params, stride, matmul_dtype=jnp.float32):
    w1, g1, b1, w2, g2, b2 = params

    def conv(y, w, s):
        return jax.lax.conv_general_dilated(
            y.astype(matmul_dtype), w.astype(matmul_dtype), (s, s), ((1, 1), (1, 1)),
            dimension_numbers=('NCHW', 'OIHW', 'NCHW'),
            preferred_element_type=F32,
            precision=(jax.lax.Precision.HIGHEST if matmul_dtype == jnp.float32
                       else None))

    def bn(y, g, b):
        mean = jnp.mean(y, axis=(0, 2, 3), keepdims=True)
        var = jnp.mean((y - mean) ** 2, axis=(0, 2, 3), keepdims=True)
        return ((y - mean) * jax.lax.rsqrt(var + EPS) * g.reshape(1, -1, 1, 1)
                + b.reshape(1, -1, 1, 1))

    out = jax.nn.relu(bn(conv(x, w1, stride), g1, b1))
    out = bn(conv(out, w2, 1), g2, b2)
    cin, cout = x.shape[1], w1.shape[0]
    if stride != 1 or cin != cout:
        p = cout // 4
        sc = jnp.pad(x[:, :, ::2, ::2], ((0, 0), (p, p), (0, 0), (0, 0)))
    else:
        sc = x
    return jax.nn.relu(out + sc)


def ref_resnet8(x_nchw, params, matmul_dtype=jnp.float32):
    blk1, blk2, blk3, (wf, bf) = params
    x = x_nchw.astype(F32)
    x = ref_basic_block(x, blk1, 1, matmul_dtype)
    x = ref_basic_block(x, blk2, 2, matmul_dtype)
    x = ref_basic_block(x, blk3, 2, matmul_dtype)
    pooled = jnp.mean(x, axis=(2, 3))                            # (N, 64)
    return jnp.dot(pooled, wf.T, precision=jax.lax.Precision.HIGHEST) + bf


# ---------------------------------------------------------------------------
# Parameter init + self-test
# ---------------------------------------------------------------------------
def init_block_params(key, in_planes, planes):
    ks = jax.random.split(key, 6)
    w1 = 0.2 * jax.random.normal(ks[0], (planes, in_planes, 3, 3), F32)
    g1 = 1.0 + 0.1 * jax.random.normal(ks[1], (planes,), F32)
    b1 = 0.1 * jax.random.normal(ks[2], (planes,), F32)
    w2 = 0.2 * jax.random.normal(ks[3], (planes, planes, 3, 3), F32)
    g2 = 1.0 + 0.1 * jax.random.normal(ks[4], (planes,), F32)
    b2 = 0.1 * jax.random.normal(ks[5], (planes,), F32)
    return (w1, g1, b1, w2, g2, b2)


def init_resnet8_params(key, num_classes=10):
    k1, k2, k3, k4, k5 = jax.random.split(key, 5)
    blk1 = init_block_params(k1, 16, 16)
    blk2 = init_block_params(k2, 16, 32)
    blk3 = init_block_params(k3, 32, 64)
    wf = 0.1 * jax.random.normal(k4, (num_classes, 64), F32)
    bf = 0.1 * jax.random.normal(k5, (num_classes,), F32)
    return (blk1, blk2, blk3, (wf, bf))


if __name__ == "__main__":
    key = jax.random.PRNGKey(0)
    kx, kp = jax.random.split(key)

    # layer1's in_planes is 16 and ResNetCifar.forward has no stem conv, so the
    # network input must have 16 channels.  Small shapes: N=2, C=16, 16x16 spatial.
    x = jax.random.normal(kx, (2, 16, 16, 16), F32)
    params = init_resnet8_params(kp, num_classes=10)

    out = jax.block_until_ready(resnet8_forward_pallas(x, params))
    assert out.shape == (2, 10), f"unexpected output shape {out.shape}"

    # numerics-matched reference (bf16 MXU operands, f32 accumulate, batch-stat BN)
    ref_match = ref_resnet8(x, params, jnp.bfloat16)
    # full f32 reference as a loose sanity bound
    ref_f32 = ref_resnet8(x, params, jnp.float32)

    err_match = float(jnp.max(jnp.abs(out - ref_match)))
    err_f32 = float(jnp.max(jnp.abs(out - ref_f32)))
    assert err_match < 5e-3, f"mismatch vs bf16-matched reference: {err_match}"
    assert err_f32 < 0.25, f"mismatch vs f32 reference too large: {err_f32}"

    # standalone stride-2 / option-A block check (16 -> 32 channels)
    blkp = init_block_params(jax.random.PRNGKey(3), 16, 32)
    y = basic_block_nhwc(jnp.transpose(x, (0, 2, 3, 1)), blkp, stride=2)
    y_nchw = jnp.transpose(y, (0, 3, 1, 2))
    y_ref = ref_basic_block(x, blkp, 2, jnp.bfloat16)
    assert y_nchw.shape == (2, 32, 8, 8), f"unexpected block shape {y_nchw.shape}"
    err_blk = float(jnp.max(jnp.abs(y_nchw - y_ref)))
    assert err_blk < 5e-3, f"block mismatch vs bf16-matched reference: {err_blk}"

    print("KERNEL_OK")
</pallas_src>

<mosaic_0001>
module attributes {stable_mosaic.version = 11 : i64} {
  func.func @_basic_block_kernel(%arg0: i32, %arg1: memref<2x18x18x16xf32, #tpu.memory_space<vmem>>, %arg2: memref<144x16xbf16, #tpu.memory_space<vmem>>, %arg3: memref<1x16xf32, #tpu.memory_space<vmem>>, %arg4: memref<1x16xf32, #tpu.memory_space<vmem>>, %arg5: memref<144x16xbf16, #tpu.memory_space<vmem>>, %arg6: memref<1x16xf32, #tpu.memory_space<vmem>>, %arg7: memref<1x16xf32, #tpu.memory_space<vmem>>, %arg8: memref<512x16xf32, #tpu.memory_space<vmem>>, %arg9: memref<512x16xf32, #tpu.memory_space<vmem>>, %arg10: memref<2x18x18x16xf32, #tpu.memory_space<vmem>>, %arg11: memref<512x144xf32, #tpu.memory_space<vmem>>, %arg12: memref<512x144xf32, #tpu.memory_space<vmem>>) attributes {dimension_semantics = [#tpu.dimension_semantics<arbitrary>], iteration_bounds = array<i64: 1>, scalar_prefetch = 0 : i64, scratch_operands = 3 : i64, tpu.core_type = #tpu.core_type<tc>, window_params = [{pipeline_mode = #tpu.pipeline_mode<synchronous>, transform_indices = @transform_0, window_bounds = array<i64: 2, 18, 18, 16>}, {pipeline_mode = #tpu.pipeline_mode<synchronous>, transform_indices = @transform_1, window_bounds = array<i64: 144, 16>}, {pipeline_mode = #tpu.pipeline_mode<synchronous>, transform_indices = @transform_2, window_bounds = array<i64: 1, 16>}, {pipeline_mode = #tpu.pipeline_mode<synchronous>, transform_indices = @transform_3, window_bounds = array<i64: 1, 16>}, {pipeline_mode = #tpu.pipeline_mode<synchronous>, transform_indices = @transform_4, window_bounds = array<i64: 144, 16>}, {pipeline_mode = #tpu.pipeline_mode<synchronous>, transform_indices = @transform_5, window_bounds = array<i64: 1, 16>}, {pipeline_mode = #tpu.pipeline_mode<synchronous>, transform_indices = @transform_6, window_bounds = array<i64: 1, 16>}, {pipeline_mode = #tpu.pipeline_mode<synchronous>, transform_indices = @transform_7, window_bounds = array<i64: 512, 16>}, {pipeline_mode = #tpu.pipeline_mode<synchronous>, transform_indices = @transform_8, window_bounds = array<i64: 512, 16>}]} {
    %c0 = arith.constant 0 : index
    %c0_0 = arith.constant 0 : index
    %c0_1 = arith.constant 0 : index
    %c0_2 = arith.constant 0 : index
    %0 = vector.load %arg1[%c0, %c0_0, %c0_1, %c0_2] : memref<2x18x18x16xf32, #tpu.memory_space<vmem>>, vector<2x16x16x16xf32>
    %1 = vector.shape_cast %0 : vector<2x16x16x16xf32> to vector<512x16xf32>
    %c0_3 = arith.constant 0 : index
    %c0_4 = arith.constant 0 : index
    %2 = vector.load %arg11[%c0_3, %c0_4] : memref<512x144xf32, #tpu.memory_space<vmem>>, vector<512x16xf32>
    tpu.vector_store %arg11[%c0_3, %c0_4], %1 {strides = array<i32>} : memref<512x144xf32, #tpu.memory_space<vmem>>, vector<512x16xf32>,
    %c0_5 = arith.constant 0 : index
    %c0_6 = arith.constant 0 : index
    %c1 = arith.constant 1 : index
    %c0_7 = arith.constant 0 : index
    %3 = vector.load %arg1[%c0_5, %c0_6, %c1, %c0_7] : memref<2x18x18x16xf32, #tpu.memory_space<vmem>>, vector<2x16x16x16xf32>
    %4 = vector.shape_cast %3 : vector<2x16x16x16xf32> to vector<512x16xf32>
    %c0_8 = arith.constant 0 : index
    %c16 = arith.constant 16 : index
    %5 = vector.load %arg11[%c0_8, %c16] : memref<512x144xf32, #tpu.memory_space<vmem>>, vector<512x16xf32>
    tpu.vector_store %arg11[%c0_8, %c16], %4 {strides = array<i32>} : memref<512x144xf32, #tpu.memory_space<vmem>>, vector<512x16xf32>,
    %c0_9 = arith.constant 0 : index
    %c0_10 = arith.constant 0 : index
    %c2 = arith.constant 2 : index
    %c0_11 = arith.constant 0 : index
    %6 = vector.load %arg1[%c0_9, %c0_10, %c2, %c0_11] : memref<2x18x18x16xf32, #tpu.memory_space<vmem>>, vector<2x16x16x16xf32>
    %7 = vector.shape_cast %6 : vector<2x16x16x16xf32> to vector<512x16xf32>
    %c0_12 = arith.constant 0 : index
    %c32 = arith.constant 32 : index
    %8 = vector.load %arg11[%c0_12, %c32] : memref<512x144xf32, #tpu.memory_space<vmem>>, vector<512x16xf32>
    tpu.vector_store %arg11[%c0_12, %c32], %7 {strides = array<i32>} : memref<512x144xf32, #tpu.memory_space<vmem>>, vector<512x16xf32>,
    %c0_13 = arith.constant 0 : index
    %c1_14 = arith.constant 1 : index
    %c0_15 = arith.constant 0 : index
    %c0_16 = arith.constant 0 : index
    %9 = vector.load %arg1[%c0_13, %c1_14, %c0_15, %c0_16] : memref<2x18x18x16xf32, #tpu.memory_space<vmem>>, vector<2x16x16x16xf32>
    %10 = vector.shape_cast %9 : vector<2x16x16x16xf32> to vector<512x16xf32>
    %c0_17 = arith.constant 0 : index
    %c48 = arith.constant 48 : index
    %11 = vector.load %arg11[%c0_17, %c48] : memref<512x144xf32, #tpu.memory_space<vmem>>, vector<512x16xf32>
    tpu.vector_store %arg11[%c0_17, %c48], %10 {strides = array<i32>} : memref<512x144xf32, #tpu.memory_space<vmem>>, vector<512x16xf32>,
    %c0_18 = arith.constant 0 : index
    %c1_19 = arith.constant 1 : index
    %c1_20 = arith.constant 1 : index
    %c0_21 = arith.constant 0 : index
    %12 = vector.load %arg1[%c0_18, %c1_19, %c1_20, %c0_21] : memref<2x18x18x16xf32, #tpu.memory_space<vmem>>, vector<2x16x16x16xf32>
    %13 = vector.shape_cast %12 : vector<2x16x16x16xf32> to vector<512x16xf32>
    %c0_22 = arith.constant 0 : index
    %c64 = arith.constant 64 : index
    %14 = vector.load %arg11[%c0_22, %c64] : memref<512x144xf32, #tpu.memory_space<vmem>>, vector<512x16xf32>
    tpu.vector_store %arg11[%c0_22, %c64], %13 {strides = array<i32>} : memref<512x144xf32, #tpu.memory_space<vmem>>, vector<512x16xf32>,
    %c0_23 = arith.constant 0 : index
    %c1_24 = arith.constant 1 : index
    %c2_25 = arith.constant 2 : index
    %c0_26 = arith.constant 0 : index
    %15 = vector.load %arg1[%c0_23, %c1_24, %c2_25, %c0_26] : memref<2x18x18x16xf32, #tpu.memory_space<vmem>>, vector<2x16x16x16xf32>
    %16 = vector.shape_cast %15 : vector<2x16x16x16xf32> to vector<512x16xf32>
    %c0_27 = arith.constant 0 : index
    %c80 = arith.constant 80 : index
    %17 = vector.load %arg11[%c0_27, %c80] : memref<512x144xf32, #tpu.memory_space<vmem>>, vector<512x16xf32>
    tpu.vector_store %arg11[%c0_27, %c80], %16 {strides = array<i32>} : memref<512x144xf32, #tpu.memory_space<vmem>>, vector<512x16xf32>,
    %c0_28 = arith.constant 0 : index
    %c2_29 = arith.constant 2 : index
    %c0_30 = arith.constant 0 : index
    %c0_31 = arith.constant 0 : index
    %18 = vector.load %arg1[%c0_28, %c2_29, %c0_30, %c0_31] : memref<2x18x18x16xf32, #tpu.memory_space<vmem>>, vector<2x16x16x16xf32>
    %19 = vector.shape_cast %18 : vector<2x16x16x16xf32> to vector<512x16xf32>
    %c0_32 = arith.constant 0 : index
    %c96 = arith.constant 96 : index
    %20 = vector.load %arg11[%c0_32, %c96] : memref<512x144xf32, #tpu.memory_space<vmem>>, vector<512x16xf32>
    tpu.vector_store %arg11[%c0_32, %c96], %19 {strides = array<i32>} : memref<512x144xf32, #tpu.memory_space<vmem>>, vector<512x16xf32>,
    %c0_33 = arith.constant 0 : index
    %c2_34 = arith.constant 2 : index
    %c1_35 = arith.constant 1 : index
    %c0_36 = arith.constant 0 : index
    %21 = vector.load %arg1[%c0_33, %c2_34, %c1_35, %c0_36] : memref<2x18x18x16xf32, #tpu.memory_space<vmem>>, vector<2x16x16x16xf32>
    %22 = vector.shape_cast %21 : vector<2x16x16x16xf32> to vector<512x16xf32>
    %c0_37 = arith.constant 0 : index
    %c112 = arith.constant 112 : index
    %23 = vector.load %arg11[%c0_37, %c112] : memref<512x144xf32, #tpu.memory_space<vmem>>, vector<512x16xf32>
    tpu.vector_store %arg11[%c0_37, %c112], %22 {strides = array<i32>} : memref<512x144xf32, #tpu.memory_space<vmem>>, vector<512x16xf32>,
    %c0_38 = arith.constant 0 : index
    %c2_39 = arith.constant 2 : index
    %c2_40 = arith.constant 2 : index
    %c0_41 = arith.constant 0 : index
    %24 = vector.load %arg1[%c0_38, %c2_39, %c2_40, %c0_41] : memref<2x18x18x16xf32, #tpu.memory_space<vmem>>, vector<2x16x16x16xf32>
    %25 = vector.shape_cast %24 : vector<2x16x16x16xf32> to vector<512x16xf32>
    %c0_42 = arith.constant 0 : index
    %c128 = arith.constant 128 : index
    %26 = vector.load %arg11[%c0_42, %c128] : memref<512x144xf32, #tpu.memory_space<vmem>>, vector<512x16xf32>
    tpu.vector_store %arg11[%c0_42, %c128], %25 {strides = array<i32>} : memref<512x144xf32, #tpu.memory_space<vmem>>, vector<512x16xf32>,
    %c0_43 = arith.constant 0 : index
    %c0_44 = arith.constant 0 : index
    %27 = vector.load %arg11[%c0_43, %c0_44] : memref<512x144xf32, #tpu.memory_space<vmem>>, vector<512x144xf32>
    %28 = arith.truncf %27 : vector<512x144xf32> to vector<512x144xbf16>
    %c0_45 = arith.constant 0 : index
    %c0_46 = arith.constant 0 : index
    %29 = vector.load %arg2[%c0_45, %c0_46] : memref<144x16xbf16, #tpu.memory_space<vmem>>, vector<144x16xbf16>
    %cst = arith.constant dense<0.000000e+00> : vector<512x16xf32>
    %30 = tpu.matmul %28, %29, %cst {dimension_numbers = #tpu.dot_dimension_numbers<[1], [0], [0], [1], [0, 0, 1, 1], [], []>} : vector<512x144xbf16>, vector<144x16xbf16>, vector<512x16xf32> -> vector<512x16xf32>
    %cst_47 = arith.constant dense<0.000000e+00> : vector<16xf32>
    %31 = vector.multi_reduction <add>, %30, %cst_47 [0] : vector<512x16xf32> to vector<16xf32>
    %32 = vector.shape_cast %31 : vector<16xf32> to vector<1x16xf32>
    %33 = arith.mulf %30, %30 : vector<512x16xf32>
    %cst_48 = arith.constant dense<0.000000e+00> : vector<16xf32>
    %34 = vector.multi_reduction <add>, %33, %cst_48 [0] : vector<512x16xf32> to vector<16xf32>
    %35 = vector.shape_cast %34 : vector<16xf32> to vector<1x16xf32>
    %cst_49 = arith.constant 0.001953125 : f32
    %36 = vector.broadcast %cst_49 : f32 to vector<1x16xf32>
    %37 = arith.mulf %32, %36 : vector<1x16xf32>
    %cst_50 = arith.constant 0.001953125 : f32
    %38 = vector.broadcast %cst_50 : f32 to vector<1x16xf32>
    %39 = arith.mulf %35, %38 : vector<1x16xf32>
    %40 = arith.mulf %37, %37 : vector<1x16xf32>
    %41 = arith.subf %39, %40 : vector<1x16xf32>
    %c0_51 = arith.constant 0 : index
    %c0_52 = arith.constant 0 : index
    %42 = vector.load %arg3[%c0_51, %c0_52] : memref<1x16xf32, #tpu.memory_space<vmem>>, vector<1x16xf32>
    %cst_53 = arith.constant 9.99999974E-6 : f32
    %43 = vector.broadcast %cst_53 : f32 to vector<1x16xf32>
    %44 = arith.addf %41, %43 : vector<1x16xf32>
    %45 = math.rsqrt %44 : vector<1x16xf32>
    %46 = arith.mulf %42, %45 : vector<1x16xf32>
    %47 = vector.broadcast %46 : vector<1x16xf32> to vector<512x16xf32>
    %48 = arith.mulf %30, %47 : vector<512x16xf32>
    %c0_54 = arith.constant 0 : index
    %c0_55 = arith.constant 0 : index
    %49 = vector.load %arg4[%c0_54, %c0_55] : memref<1x16xf32, #tpu.memory_space<vmem>>, vector<1x16xf32>
    %50 = arith.mulf %37, %46 : vector<1x16xf32>
    %51 = arith.subf %49, %50 : vector<1x16xf32>
    %52 = vector.broadcast %51 : vector<1x16xf32> to vector<512x16xf32>
    %53 = arith.addf %48, %52 : vector<512x16xf32>
    %cst_56 = arith.constant 0.000000e+00 : f32
    %54 = vector.broadcast %cst_56 : f32 to vector<512x16xf32>
    %55 = arith.maximumf %53, %54 : vector<512x16xf32>
    %56 = vector.shape_cast %55 : vector<512x16xf32> to vector<2x16x16x16xf32>
    %c0_57 = arith.constant 0 : index
    %c1_58 = arith.constant 1 : index
    %c1_59 = arith.constant 1 : index
    %c0_60 = arith.constant 0 : index
    %57 = vector.load %arg10[%c0_57, %c1_58, %c1_59, %c0_60] : memref<2x18x18x16xf32, #tpu.memory_space<vmem>>, vector<2x16x16x16xf32>
    tpu.vector_store %arg10[%c0_57, %c1_58, %c1_59, %c0_60], %56 {strides = array<i32>} : memref<2x18x18x16xf32, #tpu.memory_space<vmem>>, vector<2x16x16x16xf32>,
    %cst_61 = arith.constant 0.000000e+00 : f32
    %58 = vector.broadcast %cst_61 : f32 to vector<2x1x18x16xf32>
    %cst_62 = arith.constant 0.000000e+00 : f32
    %59 = vector.broadcast %cst_62 : f32 to vector<2x18x1x16xf32>
    %c0_63 = arith.constant 0 : index
    %c0_64 = arith.constant 0 : index
    %c0_65 = arith.constant 0 : index
    %c0_66 = arith.constant 0 : index
    %60 = vector.load %arg10[%c0_63, %c0_64, %c0_65, %c0_66] : memref<2x18x18x16xf32, #tpu.memory_space<vmem>>, vector<2x1x18x16xf32>
    tpu.vector_store %arg10[%c0_63, %c0_64, %c0_65, %c0_66], %58 {strides = array<i32>} : memref<2x18x18x16xf32, #tpu.memory_space<vmem>>, vector<2x1x18x16xf32>,
    %c0_67 = arith.constant 0 : index
    %c17 = arith.constant 17 : index
    %c0_68 = arith.constant 0 : index
    %c0_69 = arith.constant 0 : index
    %61 = vector.load %arg10[%c0_67, %c17, %c0_68, %c0_69] : memref<2x18x18x16xf32, #tpu.memory_space<vmem>>, vector<2x1x18x16xf32>
    tpu.vector_store %arg10[%c0_67, %c17, %c0_68, %c0_69], %58 {strides = array<i32>} : memref<2x18x18x16xf32, #tpu.memory_space<vmem>>, vector<2x1x18x16xf32>,
    %c0_70 = arith.constant 0 : index
    %c0_71 = arith.constant 0 : index
    %c0_72 = arith.constant 0 : index
    %c0_73 = arith.constant 0 : index
    %62 = vector.load %arg10[%c0_70, %c0_71, %c0_72, %c0_73] : memref<2x18x18x16xf32, #tpu.memory_space<vmem>>, vector<2x18x1x16xf32>
    tpu.vector_store %arg10[%c0_70, %c0_71, %c0_72, %c0_73], %59 {strides = array<i32>} : memref<2x18x18x16xf32, #tpu.memory_space<vmem>>, vector<2x18x1x16xf32>,
    %c0_74 = arith.constant 0 : index
    %c0_75 = arith.constant 0 : index
    %c17_76 = arith.constant 17 : index
    %c0_77 = arith.constant 0 : index
    %63 = vector.load %arg10[%c0_74, %c0_75, %c17_76, %c0_77] : memref<2x18x18x16xf32, #tpu.memory_space<vmem>>, vector<2x18x1x16xf32>
    tpu.vector_store %arg10[%c0_74, %c0_75, %c17_76, %c0_77], %59 {strides = array<i32>} : memref<2x18x18x16xf32, #tpu.memory_space<vmem>>, vector<2x18x1x16xf32>,
    %c0_78 = arith.constant 0 : index
    %c0_79 = arith.constant 0 : index
    %c0_80 = arith.constant 0 : index
    %c0_81 = arith.constant 0 : index
    %64 = vector.load %arg10[%c0_78, %c0_79, %c0_80, %c0_81] : memref<2x18x18x16xf32, #tpu.memory_space<vmem>>, vector<2x16x16x16xf32>
    %65 = vector.shape_cast %64 : vector<2x16x16x16xf32> to vector<512x16xf32>
    %c0_82 = arith.constant 0 : index
    %c0_83 = arith.constant 0 : index
    %66 = vector.load %arg12[%c0_82, %c0_83] : memref<512x144xf32, #tpu.memory_space<vmem>>, vector<512x16xf32>
    tpu.vector_store %arg12[%c0_82, %c0_83], %65 {strides = array<i32>} : memref<512x144xf32, #tpu.memory_space<vmem>>, vector<512x16xf32>,
    %c0_84 = arith.constant 0 : index
    %c0_85 = arith.constant 0 : index
    %c1_86 = arith.constant 1 : index
    %c0_87 = arith.constant 0 : index
    %67 = vector.load %arg10[%c0_84, %c0_85, %c1_86, %c0_87] : memref<2x18x18x16xf32, #tpu.memory_space<vmem>>, vector<2x16x16x16xf32>
    %68 = vector.shape_cast %67 : vector<2x16x16x16xf32> to vector<512x16xf32>
    %c0_88 = arith.constant 0 : index
    %c16_89 = arith.constant 16 : index
    %69 = vector.load %arg12[%c0_88, %c16_89] : memref<512x144xf32, #tpu.memory_space<vmem>>, vector<512x16xf32>
    tpu.vector_store %arg12[%c0_88, %c16_89], %68 {strides = array<i32>} : memref<512x144xf32, #tpu.memory_space<vmem>>, vector<512x16xf32>,
    %c0_90 = arith.constant 0 : index
    %c0_91 = arith.constant 0 : index
    %c2_92 = arith.constant 2 : index
    %c0_93 = arith.constant 0 : index
    %70 = vector.load %arg10[%c0_90, %c0_91, %c2_92, %c0_93] : memref<2x18x18x16xf32, #tpu.memory_space<vmem>>, vector<2x16x16x16xf32>
    %71 = vector.shape_cast %70 : vector<2x16x16x16xf32> to vector<512x16xf32>
    %c0_94 = arith.constant 0 : index
    %c32_95 = arith.constant 32 : index
    %72 = vector.load %arg12[%c0_94, %c32_95] : memref<512x144xf32, #tpu.memory_space<vmem>>, vector<512x16xf32>
    tpu.vector_store %arg12[%c0_94, %c32_95], %71 {strides = array<i32>} : memref<512x144xf32, #tpu.memory_space<vmem>>, vector<512x16xf32>,
    %c0_96 = arith.constant 0 : index
    %c1_97 = arith.constant 1 : index
    %c0_98 = arith.constant 0 : index
    %c0_99 = arith.constant 0 : index
    %73 = vector.load %arg10[%c0_96, %c1_97, %c0_98, %c0_99] : memref<2x18x18x16xf32, #tpu.memory_space<vmem>>, vector<2x16x16x16xf32>
    %74 = vector.shape_cast %73 : vector<2x16x16x16xf32> to vector<512x16xf32>
    %c0_100 = arith.constant 0 : index
    %c48_101 = arith.constant 48 : index
    %75 = vector.load %arg12[%c0_100, %c48_101] : memref<512x144xf32, #tpu.memory_space<vmem>>, vector<512x16xf32>
    tpu.vector_store %arg12[%c0_100, %c48_101], %74 {strides = array<i32>} : memref<512x144xf32, #tpu.memory_space<vmem>>, vector<512x16xf32>,
    %c0_102 = arith.constant 0 : index
    %c1_103 = arith.constant 1 : index
    %c1_104 = arith.constant 1 : index
    %c0_105 = arith.constant 0 : index
    %76 = vector.load %arg10[%c0_102, %c1_103, %c1_104, %c0_105] : memref<2x18x18x16xf32, #tpu.memory_space<vmem>>, vector<2x16x16x16xf32>
    %77 = vector.shape_cast %76 : vector<2x16x16x16xf32> to vector<512x16xf32>
    %c0_106 = arith.constant 0 : index
    %c64_107 = arith.constant 64 : index
    %78 = vector.load %arg12[%c0_106, %c64_107] : memref<512x144xf32, #tpu.memory_space<vmem>>, vector<512x16xf32>
    tpu.vector_store %arg12[%c0_106, %c64_107], %77 {strides = array<i32>} : memref<512x144xf32, #tpu.memory_space<vmem>>, vector<512x16xf32>,
    %c0_108 = arith.constant 0 : index
    %c1_109 = arith.constant 1 : index
    %c2_110 = arith.constant 2 : index
    %c0_111 = arith.constant 0 : index
    %79 = vector.load %arg10[%c0_108, %c1_109, %c2_110, %c0_111] : memref<2x18x18x16xf32, #tpu.memory_space<vmem>>, vector<2x16x16x16xf32>
    %80 = vector.shape_cast %79 : vector<2x16x16x16xf32> to vector<512x16xf32>
    %c0_112 = arith.constant 0 : index
    %c80_113 = arith.constant 80 : index
    %81 = vector.load %arg12[%c0_112, %c80_113] : memref<512x144xf32, #tpu.memory_space<vmem>>, vector<512x16xf32>
    tpu.vector_store %arg12[%c0_112, %c80_113], %80 {strides = array<i32>} : memref<512x144xf32, #tpu.memory_space<vmem>>, vector<512x16xf32>,
    %c0_114 = arith.constant 0 : index
    %c2_115 = arith.constant 2 : index
    %c0_116 = arith.constant 0 : index
    %c0_117 = arith.constant 0 : index
    %82 = vector.load %arg10[%c0_114, %c2_115, %c0_116, %c0_117] : memref<2x18x18x16xf32, #tpu.memory_space<vmem>>, vector<2x16x16x16xf32>
    %83 = vector.shape_cast %82 : vector<2x16x16x16xf32> to vector<512x16xf32>
    %c0_118 = arith.constant 0 : index
    %c96_119 = arith.constant 96 : index
    %84 = vector.load %arg12[%c0_118, %c96_119] : memref<512x144xf32, #tpu.memory_space<vmem>>, vector<512x16xf32>
    tpu.vector_store %arg12[%c0_118, %c96_119], %83 {strides = array<i32>} : memref<512x144xf32, #tpu.memory_space<vmem>>, vector<512x16xf32>,
    %c0_120 = arith.constant 0 : index
    %c2_121 = arith.constant 2 : index
    %c1_122 = arith.constant 1 : index
    %c0_123 = arith.constant 0 : index
    %85 = vector.load %arg10[%c0_120, %c2_121, %c1_122, %c0_123] : memref<2x18x18x16xf32, #tpu.memory_space<vmem>>, vector<2x16x16x16xf32>
    %86 = vector.shape_cast %85 : vector<2x16x16x16xf32> to vector<512x16xf32>
    %c0_124 = arith.constant 0 : index
    %c112_125 = arith.constant 112 : index
    %87 = vector.load %arg12[%c0_124, %c112_125] : memref<512x144xf32, #tpu.memory_space<vmem>>, vector<512x16xf32>
    tpu.vector_store %arg12[%c0_124, %c112_125], %86 {strides = array<i32>} : memref<512x144xf32, #tpu.memory_space<vmem>>, vector<512x16xf32>,
    %c0_126 = arith.constant 0 : index
    %c2_127 = arith.constant 2 : index
    %c2_128 = arith.constant 2 : index
    %c0_129 = arith.constant 0 : index
    %88 = vector.load %arg10[%c0_126, %c2_127, %c2_128, %c0_129] : memref<2x18x18x16xf32, #tpu.memory_space<vmem>>, vector<2x16x16x16xf32>
    %89 = vector.shape_cast %88 : vector<2x16x16x16xf32> to vector<512x16xf32>
    %c0_130 = arith.constant 0 : index
    %c128_131 = arith.constant 128 : index
    %90 = vector.load %arg12[%c0_130, %c128_131] : memref<512x144xf32, #tpu.memory_space<vmem>>, vector<512x16xf32>
    tpu.vector_store %arg12[%c0_130, %c128_131], %89 {strides = array<i32>} : memref<512x144xf32, #tpu.memory_space<vmem>>, vector<512x16xf32>,
    %c0_132 = arith.constant 0 : index
    %c0_133 = arith.constant 0 : index
    %91 = vector.load %arg12[%c0_132, %c0_133] : memref<512x144xf32, #tpu.memory_space<vmem>>, vector<512x144xf32>
    %92 = arith.truncf %91 : vector<512x144xf32> to vector<512x144xbf16>
    %c0_134 = arith.constant 0 : index
    %c0_135 = arith.constant 0 : index
    %93 = vector.load %arg5[%c0_134, %c0_135] : memref<144x16xbf16, #tpu.memory_space<vmem>>, vector<144x16xbf16>
    %cst_136 = arith.constant dense<0.000000e+00> : vector<512x16xf32>
    %94 = tpu.matmul %92, %93, %cst_136 {dimension_numbers = #tpu.dot_dimension_numbers<[1], [0], [0], [1], [0, 0, 1, 1], [], []>} : vector<512x144xbf16>, vector<144x16xbf16>, vector<512x16xf32> -> vector<512x16xf32>
    %cst_137 = arith.constant dense<0.000000e+00> : vector<16xf32>
    %95 = vector.multi_reduction <add>, %94, %cst_137 [0] : vector<512x16xf32> to vector<16xf32>
    %96 = vector.shape_cast %95 : vector<16xf32> to vector<1x16xf32>
    %97 = arith.mulf %94, %94 : vector<512x16xf32>
    %cst_138 = arith.constant dense<0.000000e+00> : vector<16xf32>
    %98 = vector.multi_reduction <add>, %97, %cst_138 [0] : vector<512x16xf32> to vector<16xf32>
    %99 = vector.shape_cast %98 : vector<16xf32> to vector<1x16xf32>
    %cst_139 = arith.constant 0.001953125 : f32
    %100 = vector.broadcast %cst_139 : f32 to vector<1x16xf32>
    %101 = arith.mulf %96, %100 : vector<1x16xf32>
    %cst_140 = arith.constant 0.001953125 : f32
    %102 = vector.broadcast %cst_140 : f32 to vector<1x16xf32>
    %103 = arith.mulf %99, %102 : vector<1x16xf32>
    %104 = arith.mulf %101, %101 : vector<1x16xf32>
    %105 = arith.subf %103, %104 : vector<1x16xf32>
    %c0_141 = arith.constant 0 : index
    %c0_142 = arith.constant 0 : index
    %106 = vector.load %arg6[%c0_141, %c0_142] : memref<1x16xf32, #tpu.memory_space<vmem>>, vector<1x16xf32>
    %cst_143 = arith.constant 9.99999974E-6 : f32
    %107 = vector.broadcast %cst_143 : f32 to vector<1x16xf32>
    %108 = arith.addf %105, %107 : vector<1x16xf32>
    %109 = math.rsqrt %108 : vector<1x16xf32>
    %110 = arith.mulf %106, %109 : vector<1x16xf32>
    %111 = vector.broadcast %110 : vector<1x16xf32> to vector<512x16xf32>
    %112 = arith.mulf %94, %111 : vector<512x16xf32>
    %c0_144 = arith.constant 0 : index
    %c0_145 = arith.constant 0 : index
    %113 = vector.load %arg7[%c0_144, %c0_145] : memref<1x16xf32, #tpu.memory_space<vmem>>, vector<1x16xf32>
    %114 = arith.mulf %101, %110 : vector<1x16xf32>
    %115 = arith.subf %113, %114 : vector<1x16xf32>
    %116 = vector.broadcast %115 : vector<1x16xf32> to vector<512x16xf32>
    %117 = arith.addf %112, %116 : vector<512x16xf32>
    %c0_146 = arith.constant 0 : index
    %c0_147 = arith.constant 0 : index
    %118 = vector.load %arg8[%c0_146, %c0_147] : memref<512x16xf32, #tpu.memory_space<vmem>>, vector<512x16xf32>
    %119 = arith.addf %117, %118 : vector<512x16xf32>
    %cst_148 = arith.constant 0.000000e+00 : f32
    %120 = vector.broadcast %cst_148 : f32 to vector<512x16xf32>
    %121 = arith.maximumf %119, %120 : vector<512x16xf32>
    %c0_149 = arith.constant 0 : index
    %c0_150 = arith.constant 0 : index
    %122 = vector.load %arg9[%c0_149, %c0_150] : memref<512x16xf32, #tpu.memory_space<vmem>>, vector<512x16xf32>
    tpu.vector_store %arg9[%c0_149, %c0_150], %121 {strides = array<i32>} : memref<512x16xf32, #tpu.memory_space<vmem>>, vector<512x16xf32>,
    return
  }
  func.func @transform_0(%arg0: i32) -> (i32, i32, i32, i32) {
    %c0_i32 = arith.constant 0 : i32
    %c0_i32_0 = arith.constant 0 : i32
    %c0_i32_1 = arith.constant 0 : i32
    %c0_i32_2 = arith.constant 0 : i32
    %c0_i32_3 = arith.constant 0 : i32
    return %c0_i32, %c0_i32_0, %c0_i32_1, %c0_i32_2 : i32, i32, i32, i32
  }
  func.func @transform_1(%arg0: i32) -> (i32, i32) {
    %c0_i32 = arith.constant 0 : i32
    %c0_i32_0 = arith.constant 0 : i32
    %c0_i32_1 = arith.constant 0 : i32
    return %c0_i32, %c0_i32_0 : i32, i32
  }
  func.func @transform_2(%arg0: i32) -> (i32, i32) {
    %c0_i32 = arith.constant 0 : i32
    %c0_i32_0 = arith.constant 0 : i32
    %c0_i32_1 = arith.constant 0 : i32
    return %c0_i32, %c0_i32_0 : i32, i32
  }
  func.func @transform_3(%arg0: i32) -> (i32, i32) {
    %c0_i32 = arith.constant 0 : i32
    %c0_i32_0 = arith.constant 0 : i32
    %c0_i32_1 = arith.constant 0 : i32
    return %c0_i32, %c0_i32_0 : i32, i32
  }
  func.func @transform_4(%arg0: i32) -> (i32, i32) {
    %c0_i32 = arith.constant 0 : i32
    %c0_i32_0 = arith.constant 0 : i32
    %c0_i32_1 = arith.constant 0 : i32
    return %c0_i32, %c0_i32_0 : i32, i32
  }
  func.func @transform_5(%arg0: i32) -> (i32, i32) {
    %c0_i32 = arith.constant 0 : i32
    %c0_i32_0 = arith.constant 0 : i32
    %c0_i32_1 = arith.constant 0 : i32
    return %c0_i32, %c0_i32_0 : i32, i32
  }
  func.func @transform_6(%arg0: i32) -> (i32, i32) {
    %c0_i32 = arith.constant 0 : i32
    %c0_i32_0 = arith.constant 0 : i32
    %c0_i32_1 = arith.constant 0 : i32
    return %c0_i32, %c0_i32_0 : i32, i32
  }
  func.func @transform_7(%arg0: i32) -> (i32, i32) {
    %c0_i32 = arith.constant 0 : i32
    %c0_i32_0 = arith.constant 0 : i32
    %c0_i32_1 = arith.constant 0 : i32
    return %c0_i32, %c0_i32_0 : i32, i32
  }
  func.func @transform_8(%arg0: i32) -> (i32, i32) {
    %c0_i32 = arith.constant 0 : i32
    %c0_i32_0 = arith.constant 0 : i32
    %c0_i32_1 = arith.constant 0 : i32
    return %c0_i32, %c0_i32_0 : i32, i32
  }
}

</mosaic_0001>

<llo_original>
// kernel: tpu_custom_call.1
$region0: #{tpu_custom_call.1}
  #allocation0 [shape = 'u32[]', space=smem, size = 0x4, offset = 0x4, fixed_abs, tag = 'smem constant byte address 0x4 - core index']
  #allocation1 [shape = 'u32[144,128]{1,0:T(1,128)}', space=vmem, size = 0x12000, scoped, tag = 'internal scratch']
  #allocation2 [shape = 'f32[2,18,18,16]{3,2,1,0:T(8,128)}', space=vmem, size = 0x6c000, scoped, tag = 'scratch operand']
  #allocation3 [shape = 'f32[512,144]{1,0:T(8,128)}', space=vmem, size = 0x80000, scoped, tag = 'scratch operand']
  #allocation4 [shape = 'f32[512,144]{1,0:T(8,128)}', space=vmem, size = 0x80000, scoped, tag = 'scratch operand']
  %s0 = inlined_call_operand.vmem [shape: f32[2,18,18,16], index: 0, kind: input, shape index: {}]
  %s1 = inlined_call_operand.vmem [shape: bf16[144,16], index: 1, kind: input, shape index: {}]
  %s2 = inlined_call_operand.vmem [shape: f32[1,16], index: 2, kind: input, shape index: {}]
  %s3 = inlined_call_operand.vmem [shape: f32[1,16], index: 3, kind: input, shape index: {}]
  %s4 = inlined_call_operand.vmem [shape: bf16[144,16], index: 4, kind: input, shape index: {}]
  %s5 = inlined_call_operand.vmem [shape: f32[1,16], index: 5, kind: input, shape index: {}]
  %s6 = inlined_call_operand.vmem [shape: f32[1,16], index: 6, kind: input, shape index: {}]
  %s7 = inlined_call_operand.vmem [shape: f32[512,16], index: 7, kind: input, shape index: {}]
  %s8 = inlined_call_operand.vmem [shape: f32[512,16], index: 8, kind: output, shape index: {}]
  %s9 = sld [smem:[#allocation0]]
  $region42: #{tpu_custom_call.1} parent=0
    _
  %s11 = ssub.s32 1, %s9
  %s12 = scalar_select 0, %s11, %s9
  // Predicated region
  $region2: #{tpu_custom_call.1} parent=0 // pred_check
    _
  $region3: #{tpu_custom_call.1} parent=0 // pred_check_branch
    %14 = sbr.rel (0) target = $region5
  $region4: #{tpu_custom_call.1} parent=0 // pred_region
    _
  $region5: #{tpu_custom_call.1} parent=0 // pred_fallthru
    _
  // Predicated region
  $region6: #{tpu_custom_call.1} parent=0 // pred_check
    _
  $region7: #{tpu_custom_call.1} parent=0 // pred_check_branch
    %16 = sbr.rel (0) target = $region9
  $region8: #{tpu_custom_call.1} parent=0 // pred_region
    _
  $region9: #{tpu_custom_call.1} parent=0 // pred_fallthru
    _
  // Predicated region
  $region10: #{tpu_custom_call.1} parent=0 // pred_check
    _
  $region11: #{tpu_custom_call.1} parent=0 // pred_check_branch
    %18 = sbr.rel (0) target = $region13
  $region12: #{tpu_custom_call.1} parent=0 // pred_region
    _
  $region13: #{tpu_custom_call.1} parent=0 // pred_fallthru
    _
  // Predicated region
  $region14: #{tpu_custom_call.1} parent=0 // pred_check
    _
  $region15: #{tpu_custom_call.1} parent=0 // pred_check_branch
    %20 = sbr.rel (0) target = $region17
  $region16: #{tpu_custom_call.1} parent=0 // pred_region
    _
  $region17: #{tpu_custom_call.1} parent=0 // pred_fallthru
    _
  // Predicated region
  $region18: #{tpu_custom_call.1} parent=0 // pred_check
    _
  $region19: #{tpu_custom_call.1} parent=0 // pred_check_branch
    %22 = sbr.rel (0) target = $region21
  $region20: #{tpu_custom_call.1} parent=0 // pred_region
    _
  $region21: #{tpu_custom_call.1} parent=0 // pred_fallthru
    _
  // Predicated region
  $region22: #{tpu_custom_call.1} parent=0 // pred_check
    _
  $region23: #{tpu_custom_call.1} parent=0 // pred_check_branch
    %24 = sbr.rel (0) target = $region25
  $region24: #{tpu_custom_call.1} parent=0 // pred_region
    _
  $region25: #{tpu_custom_call.1} parent=0 // pred_fallthru
    _
  // Predicated region
  $region26: #{tpu_custom_call.1} parent=0 // pred_check
    _
  $region27: #{tpu_custom_call.1} parent=0 // pred_check_branch
    %26 = sbr.rel (0) target = $region29
  $region28: #{tpu_custom_call.1} parent=0 // pred_region
    _
  $region29: #{tpu_custom_call.1} parent=0 // pred_fallthru
    _
  // Predicated region
  $region30: #{tpu_custom_call.1} parent=0 // pred_check
    _
  $region31: #{tpu_custom_call.1} parent=0 // pred_check_branch
    %28 = sbr.rel (0) target = $region33
  $region32: #{tpu_custom_call.1} parent=0 // pred_region
    _
  $region33: #{tpu_custom_call.1} parent=0 // pred_fallthru
    _
  %v30 = vld [vmem:[%s0] sm:$0xff]
  %v31 = vld [vmem:[%s0 + $0x8] sm:$0xff]
  %v32 = vld [vmem:[%s0 + $0x18] sm:$0xff]
  %v33 = vld [vmem:[%s0 + $0x20] sm:$0xff]
  %v34 = vld [vmem:[%s0 + $0x30] sm:$0xff]
  %v35 = vld [vmem:[%s0 + $0x38] sm:$0xff]
  %v36 = vld [vmem:[%s0 + $0x48] sm:$0xff]
  %v37 = vld [vmem:[%s0 + $0x50] sm:$0xff]
  %v38 = vld [vmem:[%s0 + $0x60] sm:$0xff]
  %v39 = vld [vmem:[%s0 + $0x68] sm:$0xff]
  %v40 = vld [vmem:[%s0 + $0x78] sm:$0xff]
  %v41 = vld [vmem:[%s0 + $0x80] sm:$0xff]
  %v42 = vld [vmem:[%s0 + $0x90] sm:$0xff]
  %v43 = vld [vmem:[%s0 + $0x98] sm:$0xff]
  %v44 = vld [vmem:[%s0 + $0xa8] sm:$0xff]
  %v45 = vld [vmem:[%s0 + $0xb0] sm:$0xff]
  %v46 = vld [vmem:[%s0 + $0xc0] sm:$0xff]
  %v47 = vld [vmem:[%s0 + $0xc8] sm:$0xff]
  %v48 = vld [vmem:[%s0 + $0xd8] sm:$0xff]
  %v49 = vld [vmem:[%s0 + $0xe0] sm:$0xff]
  %v50 = vld [vmem:[%s0 + $0xf0] sm:$0xff]
  %v51 = vld [vmem:[%s0 + $0xf8] sm:$0xff]
  %v52 = vld [vmem:[%s0 + $0x108] sm:$0xff]
  %v53 = vld [vmem:[%s0 + $0x110] sm:$0xff]
  %v54 = vld [vmem:[%s0 + $0x120] sm:$0xff]
  %v55 = vld [vmem:[%s0 + $0x128] sm:$0xff]
  %v56 = vld [vmem:[%s0 + $0x138] sm:$0xff]
  %v57 = vld [vmem:[%s0 + $0x140] sm:$0xff]
  %v58 = vld [vmem:[%s0 + $0x150] sm:$0xff]
  %v59 = vld [vmem:[%s0 + $0x158] sm:$0xff]
  %v60 = vld [vmem:[%s0 + $0x168] sm:$0xff]
  %v61 = vld [vmem:[%s0 + $0x170] sm:$0xff]
  %v62 = vld [vmem:[%s0 + $0x1b0] sm:$0xff]
  %v63 = vld [vmem:[%s0 + $0x1b8] sm:$0xff]
  %v64 = vld [vmem:[%s0 + $0x1c8] sm:$0xff]
  %v65 = vld [vmem:[%s0 + $0x1d0] sm:$0xff]
  %v66 = vld [vmem:[%s0 + $0x1e0] sm:$0xff]
  %v67 = vld [vmem:[%s0 + $0x1e8] sm:$0xff]
  %v68 = vld [vmem:[%s0 + $0x1f8] sm:$0xff]
  %v69 = vld [vmem:[%s0 + $0x200] sm:$0xff]
  %v70 = vld [vmem:[%s0 + $0x210] sm:$0xff]
  %v71 = vld [vmem:[%s0 + $0x218] sm:$0xff]
  %v72 = vld [vmem:[%s0 + $0x228] sm:$0xff]
  %v73 = vld [vmem:[%s0 + $0x230] sm:$0xff]
  %v74 = vld [vmem:[%s0 + $0x240] sm:$0xff]
  %v75 = vld [vmem:[%s0 + $0x248] sm:$0xff]
  %v76 = vld [vmem:[%s0 + $0x258] sm:$0xff]
  %v77 = vld [vmem:[%s0 + $0x260] sm:$0xff]
  %v78 = vld [vmem:[%s0 + $0x270] sm:$0xff]
  %v79 = vld [vmem:[%s0 + $0x278] sm:$0xff]
  %v80 = vld [vmem:[%s0 + $0x288] sm:$0xff]
  %v81 = vld [vmem:[%s0 + $0x290] sm:$0xff]
  %v82 = vld [vmem:[%s0 + $0x2a0] sm:$0xff]
  %v83 = vld [vmem:[%s0 + $0x2a8] sm:$0xff]
  %v84 = vld [vmem:[%s0 + $0x2b8] sm:$0xff]
  %v85 = vld [vmem:[%s0 + $0x2c0] sm:$0xff]
  %v86 = vld [vmem:[%s0 + $0x2d0] sm:$0xff]
  %v87 = vld [vmem:[%s0 + $0x2d8] sm:$0xff]
  %v88 = vld [vmem:[%s0 + $0x2e8] sm:$0xff]
  %v89 = vld [vmem:[%s0 + $0x2f0] sm:$0xff]
  %v90 = vld [vmem:[%s0 + $0x300] sm:$0xff]
  %v91 = vld [vmem:[%s0 + $0x308] sm:$0xff]
  %v92 = vld [vmem:[%s0 + $0x318] sm:$0xff]
  %v93 = vld [vmem:[%s0 + $0x320] sm:$0xff]
  %vm94 = vcmask 130048
  %95 = vst.msk [vmem:[#allocation3] sm:$0xff] %vm94, %v30
  %96 = vst.msk [vmem:[#allocation3 + $0x10] sm:$0xff] %vm94, %v31
  %97 = vst.msk [vmem:[#allocation3 + $0x20] sm:$0xff] %vm94, %v32
  %98 = vst.msk [vmem:[#allocation3 + $0x30] sm:$0xff] %vm94, %v33
  %99 = vst.msk [vmem:[#allocation3 + $0x40] sm:$0xff] %vm94, %v34
  %100 = vst.msk [vmem:[#allocation3 + $0x50] sm:$0xff] %vm94, %v35
  %101 = vst.msk [vmem:[#allocation3 + $0x60] sm:$0xff] %vm94, %v36
  %102 = vst.msk [vmem:[#allocation3 + $0x70] sm:$0xff] %vm94, %v37
  %103 = vst.msk [vmem:[#allocation3 + $0x80] sm:$0xff] %vm94, %v38
  %104 = vst.msk [vmem:[#allocation3 + $0x90] sm:$0xff] %vm94, %v39
  %105 = vst.msk [vmem:[#allocation3 + $0xa0] sm:$0xff] %vm94, %v40
  %106 = vst.msk [vmem:[#allocation3 + $0xb0] sm:$0xff] %vm94, %v41
  %107 = vst.msk [vmem:[#allocation3 + $0xc0] sm:$0xff] %vm94, %v42
  %108 = vst.msk [vmem:[#allocation3 + $0xd0] sm:$0xff] %vm94, %v43
  %109 = vst.msk [vmem:[#allocation3 + $0xe0] sm:$0xff] %vm94, %v44
  %110 = vst.msk [vmem:[#allocation3 + $0xf0] sm:$0xff] %vm94, %v45
  %111 = vst.msk [vmem:[#allocation3 + $0x100] sm:$0xff] %vm94, %v46
  %112 = vst.msk [vmem:[#allocation3 + $0x110] sm:$0xff] %vm94, %v47
  %113 = vst.msk [vmem:[#allocation3 + $0x120] sm:$0xff] %vm94, %v48
  %114 = vst.msk [vmem:[#allocation3 + $0x130] sm:$0xff] %vm94, %v49
  %115 = vst.msk [vmem:[#allocation3 + $0x140] sm:$0xff] %vm94, %v50
  %116 = vst.msk [vmem:[#allocation3 + $0x150] sm:$0xff] %vm94, %v51
  %117 = vst.msk [vmem:[#allocation3 + $0x160] sm:$0xff] %vm94, %v52
  %118 = vst.msk [vmem:[#allocation3 + $0x170] sm:$0xff] %vm94, %v53
  %119 = vst.msk [vmem:[#allocation3 + $0x180] sm:$0xff] %vm94, %v54
  %120 = vst.msk [vmem:[#allocation3 + $0x190] sm:$0xff] %vm94, %v55
  %121 = vst.msk [vmem:[#allocation3 + $0x1a0] sm:$0xff] %vm94, %v56
  %122 = vst.msk [vmem:[#allocation3 + $0x1b0] sm:$0xff] %vm94, %v57
  %123 = vst.msk [vmem:[#allocation3 + $0x1c0] sm:$0xff] %vm94, %v58
  %124 = vst.msk [vmem:[#allocation3 + $0x1d0] sm:$0xff] %vm94, %v59
  %125 = vst.msk [vmem:[#allocation3 + $0x1e0] sm:$0xff] %vm94, %v60
  %126 = vst.msk [vmem:[#allocation3 + $0x1f0] sm:$0xff] %vm94, %v61
  %127 = vst.msk [vmem:[#allocation3 + $0x200] sm:$0xff] %vm94, %v62
  %128 = vst.msk [vmem:[#allocation3 + $0x210] sm:$0xff] %vm94, %v63
  %129 = vst.msk [vmem:[#allocation3 + $0x220] sm:$0xff] %vm94, %v64
  %130 = vst.msk [vmem:[#allocation3 + $0x230] sm:$0xff] %vm94, %v65
  %131 = vst.msk [vmem:[#allocation3 + $0x240] sm:$0xff] %vm94, %v66
  %132 = vst.msk [vmem:[#allocation3 + $0x250] sm:$0xff] %vm94, %v67
  %133 = vst.msk [vmem:[#allocation3 + $0x260] sm:$0xff] %vm94, %v68
  %134 = vst.msk [vmem:[#allocation3 + $0x270] sm:$0xff] %vm94, %v69
  %135 = vst.msk [vmem:[#allocation3 + $0x280] sm:$0xff] %vm94, %v70
  %136 = vst.msk [vmem:[#allocation3 + $0x290] sm:$0xff] %vm94, %v71
  %137 = vst.msk [vmem:[#allocation3 + $0x2a0] sm:$0xff] %vm94, %v72
  %138 = vst.msk [vmem:[#allocation3 + $0x2b0] sm:$0xff] %vm94, %v73
  %139 = vst.msk [vmem:[#allocation3 + $0x2c0] sm:$0xff] %vm94, %v74
  %140 = vst.msk [vmem:[#allocation3 + $0x2d0] sm:$0xff] %vm94, %v75
  %141 = vst.msk [vmem:[#allocation3 + $0x2e0] sm:$0xff] %vm94, %v76
  %142 = vst.msk [vmem:[#allocation3 + $0x2f0] sm:$0xff] %vm94, %v77
  %143 = vst.msk [vmem:[#allocation3 + $0x300] sm:$0xff] %vm94, %v78
  %144 = vst.msk [vmem:[#allocation3 + $0x310] sm:$0xff] %vm94, %v79
  %145 = vst.msk [vmem:[#allocation3 + $0x320] sm:$0xff] %vm94, %v80
  %146 = vst.msk [vmem:[#allocation3 + $0x330] sm:$0xff] %vm94, %v81
  %147 = vst.msk [vmem:[#allocation3 + $0x340] sm:$0xff] %vm94, %v82
  %148 = vst.msk [vmem:[#allocation3 + $0x350] sm:$0xff] %vm94, %v83
  %149 = vst.msk [vmem:[#allocation3 + $0x360] sm:$0xff] %vm94, %v84
  %150 = vst.msk [vmem:[#allocation3 + $0x370] sm:$0xff] %vm94, %v85
  %151 = vst.msk [vmem:[#allocation3 + $0x380] sm:$0xff] %vm94, %v86
  %152 = vst.msk [vmem:[#allocation3 + $0x390] sm:$0xff] %vm94, %v87
  %153 = vst.msk [vmem:[#allocation3 + $0x3a0] sm:$0xff] %vm94, %v88
  %154 = vst.msk [vmem:[#allocation3 + $0x3b0] sm:$0xff] %vm94, %v89
  %155 = vst.msk [vmem:[#allocation3 + $0x3c0] sm:$0xff] %vm94, %v90
  %156 = vst.msk [vmem:[#allocation3 + $0x3d0] sm:$0xff] %vm94, %v91
  %157 = vst.msk [vmem:[#allocation3 + $0x3e0] sm:$0xff] %vm94, %v92
  %158 = vst.msk [vmem:[#allocation3 + $0x3f0] sm:$0xff] %vm94, %v93
  %v159 = vld [vmem:[%s0 + $0x1] sm:$0xff]
  %v160 = vld [vmem:[%s0 + $0x9] sm:$0xff]
  %v161 = vld [vmem:[%s0 + $0x19] sm:$0xff]
  %v162 = vld [vmem:[%s0 + $0x21] sm:$0xff]
  %v163 = vld [vmem:[%s0 + $0x31] sm:$0xff]
  %v164 = vld [vmem:[%s0 + $0x39] sm:$0xff]
  %v165 = vld [vmem:[%s0 + $0x49] sm:$0xff]
  %v166 = vld [vmem:[%s0 + $0x51] sm:$0xff]
  %v167 = vld [vmem:[%s0 + $0x61] sm:$0xff]
  %v168 = vld [vmem:[%s0 + $0x69] sm:$0xff]
  %v169 = vld [vmem:[%s0 + $0x79] sm:$0xff]
  %v170 = vld [vmem:[%s0 + $0x81] sm:$0xff]
  %v171 = vld [vmem:[%s0 + $0x91] sm:$0xff]
  %v172 = vld [vmem:[%s0 + $0x99] sm:$0xff]
  %v173 = vld [vmem:[%s0 + $0xa9] sm:$0xff]
  %v174 = vld [vmem:[%s0 + $0xb1] sm:$0xff]
  %v175 = vld [vmem:[%s0 + $0xc1] sm:$0xff]
  %v176 = vld [vmem:[%s0 + $0xc9] sm:$0xff]
  %v177 = vld [vmem:[%s0 + $0xd9] sm:$0xff]
  %v178 = vld [vmem:[%s0 + $0xe1] sm:$0xff]
  %v179 = vld [vmem:[%s0 + $0xf1] sm:$0xff]
  %v180 = vld [vmem:[%s0 + $0xf9] sm:$0xff]
  %v181 = vld [vmem:[%s0 + $0x109] sm:$0xff]
  %v182 = vld [vmem:[%s0 + $0x111] sm:$0xff]
  %v183 = vld [vmem:[%s0 + $0x121] sm:$0xff]
  %v184 = vld [vmem:[%s0 + $0x129] sm:$0xff]
  %v185 = vld [vmem:[%s0 + $0x139] sm:$0xff]
  %v186 = vld [vmem:[%s0 + $0x141] sm:$0xff]
  %v187 = vld [vmem:[%s0 + $0x151] sm:$0xff]
  %v188 = vld [vmem:[%s0 + $0x159] sm:$0xff]
  %v189 = vld [vmem:[%s0 + $0x169] sm:$0xff]
  %v190 = vld [vmem:[%s0 + $0x171] sm:$0xff]
  %v191 = vld [vmem:[%s0 + $0x1b1] sm:$0xff]
  %v192 = vld [vmem:[%s0 + $0x1b9] sm:$0xff]
  %v193 = vld [vmem:[%s0 + $0x1c9] sm:$0xff]
  %v194 = vld [vmem:[%s0 + $0x1d1] sm:$0xff]
  %v195 = vld [vmem:[%s0 + $0x1e1] sm:$0xff]
  %v196 = vld [vmem:[%s0 + $0x1e9] sm:$0xff]
  %v197 = vld [vmem:[%s0 + $0x1f9] sm:$0xff]
  %v198 = vld [vmem:[%s0 + $0x201] sm:$0xff]
  %v199 = vld [vmem:[%s0 + $0x211] sm:$0xff]
  %v200 = vld [vmem:[%s0 + $0x219] sm:$0xff]
  %v201 = vld [vmem:[%s0 + $0x229] sm:$0xff]
  %v202 = vld [vmem:[%s0 + $0x231] sm:$0xff]
  %v203 = vld [vmem:[%s0 + $0x241] sm:$0xff]
  %v204 = vld [vmem:[%s0 + $0x249] sm:$0xff]
  %v205 = vld [vmem:[%s0 + $0x259] sm:$0xff]
  %v206 = vld [vmem:[%s0 + $0x261] sm:$0xff]
  %v207 = vld [vmem:[%s0 + $0x271] sm:$0xff]
  %v208 = vld [vmem:[%s0 + $0x279] sm:$0xff]
  %v209 = vld [vmem:[%s0 + $0x289] sm:$0xff]
  %v210 = vld [vmem:[%s0 + $0x291] sm:$0xff]
  %v211 = vld [vmem:[%s0 + $0x2a1] sm:$0xff]
  %v212 = vld [vmem:[%s0 + $0x2a9] sm:$0xff]
  %v213 = vld [vmem:[%s0 + $0x2b9] sm:$0xff]
  %v214 = vld [vmem:[%s0 + $0x2c1] sm:$0xff]
  %v215 = vld [vmem:[%s0 + $0x2d1] sm:$0xff]
  %v216 = vld [vmem:[%s0 + $0x2d9] sm:$0xff]
  %v217 = vld [vmem:[%s0 + $0x2e9] sm:$0xff]
  %v218 = vld [vmem:[%s0 + $0x2f1] sm:$0xff]
  %v219 = vld [vmem:[%s0 + $0x301] sm:$0xff]
  %v220 = vld [vmem:[%s0 + $0x309] sm:$0xff]
  %v221 = vld [vmem:[%s0 + $0x319] sm:$0xff]
  %v222 = vld [vmem:[%s0 + $0x321] sm:$0xff]
  %287 = vrot.lane.b32.xlu0 %v159, 16
  %v288 = vpop.permute.xlu0 %287
  %289 = vrot.lane.b32.xlu0 %v160, 16
  %v290 = vpop.permute.xlu0 %289
  %291 = vrot.lane.b32.xlu0 %v161, 16
  %v292 = vpop.permute.xlu0 %291
  %293 = vrot.lane.b32.xlu0 %v162, 16
  %v294 = vpop.permute.xlu0 %293
  %295 = vrot.lane.b32.xlu0 %v163, 16
  %v296 = vpop.permute.xlu0 %295
  %297 = vrot.lane.b32.xlu0 %v164, 16
  %v298 = vpop.permute.xlu0 %297
  %299 = vrot.lane.b32.xlu0 %v165, 16
  %v300 = vpop.permute.xlu0 %299
  %301 = vrot.lane.b32.xlu0 %v166, 16
  %v302 = vpop.permute.xlu0 %301
  %303 = vrot.lane.b32.xlu0 %v167, 16
  %v304 = vpop.permute.xlu0 %303
  %305 = vrot.lane.b32.xlu0 %v168, 16
  %v306 = vpop.permute.xlu0 %305
  %307 = vrot.lane.b32.xlu0 %v169, 16
  %v308 = vpop.permute.xlu0 %307
  %309 = vrot.lane.b32.xlu0 %v170, 16
  %v310 = vpop.permute.xlu0 %309
  %311 = vrot.lane.b32.xlu0 %v171, 16
  %v312 = vpop.permute.xlu0 %311
  %313 = vrot.lane.b32.xlu0 %v172, 16
  %v314 = vpop.permute.xlu0 %313
  %315 = vrot.lane.b32.xlu0 %v173, 16
  %v316 = vpop.permute.xlu0 %315
  %317 = vrot.lane.b32.xlu0 %v174, 16
  %v318 = vpop.permute.xlu0 %317
  %319 = vrot.lane.b32.xlu0 %v175, 16
  %v320 = vpop.permute.xlu0 %319
  %321 = vrot.lane.b32.xlu0 %v176, 16
  %v322 = vpop.permute.xlu0 %321
  %323 = vrot.lane.b32.xlu0 %v177, 16
  %v324 = vpop.permute.xlu0 %323
  %325 = vrot.lane.b32.xlu0 %v178, 16
  %v326 = vpop.permute.xlu0 %325
  %327 = vrot.lane.b32.xlu0 %v179, 16
  %v328 = vpop.permute.xlu0 %327
  %329 = vrot.lane.b32.xlu0 %v180, 16
  %v330 = vpop.permute.xlu0 %329
  %331 = vrot.lane.b32.xlu0 %v181, 16
  %v332 = vpop.permute.xlu0 %331
  %333 = vrot.lane.b32.xlu0 %v182, 16
  %v334 = vpop.permute.xlu0 %333
  %335 = vrot.lane.b32.xlu0 %v183, 16
  %v336 = vpop.permute.xlu0 %335
  %337 = vrot.lane.b32.xlu0 %v184, 16
  %v338 = vpop.permute.xlu0 %337
  %339 = vrot.lane.b32.xlu0 %v185, 16
  %v340 = vpop.permute.xlu0 %339
  %341 = vrot.lane.b32.xlu0 %v186, 16
  %v342 = vpop.permute.xlu0 %341
  %343 = vrot.lane.b32.xlu0 %v187, 16
  %v344 = vpop.permute.xlu0 %343
  %345 = vrot.lane.b32.xlu0 %v188, 16
  %v346 = vpop.permute.xlu0 %345
  %347 = vrot.lane.b32.xlu0 %v189, 16
  %v348 = vpop.permute.xlu0 %347
  %349 = vrot.lane.b32.xlu0 %v190, 16
  %v350 = vpop.permute.xlu0 %349
  %351 = vrot.lane.b32.xlu0 %v191, 16
  %v352 = vpop.permute.xlu0 %351
  %353 = vrot.lane.b32.xlu0 %v192, 16
  %v354 = vpop.permute.xlu0 %353
  %355 = vrot.lane.b32.xlu0 %v193, 16
  %v356 = vpop.permute.xlu0 %355
  %357 = vrot.lane.b32.xlu0 %v194, 16
  %v358 = vpop.permute.xlu0 %357
  %359 = vrot.lane.b32.xlu0 %v195, 16
  %v360 = vpop.permute.xlu0 %359
  %361 = vrot.lane.b32.xlu0 %v196, 16
  %v362 = vpop.permute.xlu0 %361
  %363 = vrot.lane.b32.xlu0 %v197, 16
  %v364 = vpop.permute.xlu0 %363
  %365 = vrot.lane.b32.xlu0 %v198, 16
  %v366 = vpop.permute.xlu0 %365
  %367 = vrot.lane.b32.xlu0 %v199, 16
  %v368 = vpop.permute.xlu0 %367
  %369 = vrot.lane.b32.xlu0 %v200, 16
  %v370 = vpop.permute.xlu0 %369
  %371 = vrot.lane.b32.xlu0 %v201, 16
  %v372 = vpop.permute.xlu0 %371
  %373 = vrot.lane.b32.xlu0 %v202, 16
  %v374 = vpop.permute.xlu0 %373
  %375 = vrot.lane.b32.xlu0 %v203, 16
  %v376 = vpop.permute.xlu0 %375
  %377 = vrot.lane.b32.xlu0 %v204, 16
  %v378 = vpop.permute.xlu0 %377
  %379 = vrot.lane.b32.xlu0 %v205, 16
  %v380 = vpop.permute.xlu0 %379
  %381 = vrot.lane.b32.xlu0 %v206, 16
  %v382 = vpop.permute.xlu0 %381
  %383 = vrot.lane.b32.xlu0 %v207, 16
  %v384 = vpop.permute.xlu0 %383
  %385 = vrot.lane.b32.xlu0 %v208, 16
  %v386 = vpop.permute.xlu0 %385
  %387 = vrot.lane.b32.xlu0 %v209, 16
  %v388 = vpop.permute.xlu0 %387
  %389 = vrot.lane.b32.xlu0 %v210, 16
  %v390 = vpop.permute.xlu0 %389
  %391 = vrot.lane.b32.xlu0 %v211, 16
  %v392 = vpop.permute.xlu0 %391
  %393 = vrot.lane.b32.xlu0 %v212, 16
  %v394 = vpop.permute.xlu0 %393
  %395 = vrot.lane.b32.xlu0 %v213, 16
  %v396 = vpop.permute.xlu0 %395
  %397 = vrot.lane.b32.xlu0 %v214, 16
  %v398 = vpop.permute.xlu0 %397
  %399 = vrot.lane.b32.xlu0 %v215, 16
  %v400 = vpop.permute.xlu0 %399
  %401 = vrot.lane.b32.xlu0 %v216, 16
  %v402 = vpop.permute.xlu0 %401
  %403 = vrot.lane.b32.xlu0 %v217, 16
  %v404 = vpop.permute.xlu0 %403
  %405 = vrot.lane.b32.xlu0 %v218, 16
  %v406 = vpop.permute.xlu0 %405
  %407 = vrot.lane.b32.xlu0 %v219, 16
  %v408 = vpop.permute.xlu0 %407
  %409 = vrot.lane.b32.xlu0 %v220, 16
  %v410 = vpop.permute.xlu0 %409
  %411 = vrot.lane.b32.xlu0 %v221, 16
  %v412 = vpop.permute.xlu0 %411
  %413 = vrot.lane.b32.xlu0 %v222, 16
  %v414 = vpop.permute.xlu0 %413
  %vm479 = vcmask 261248
  %480 = vst.msk [vmem:[#allocation3] sm:$0xff] %vm479, %v288
  %481 = vst.msk [vmem:[#allocation3 + $0x10] sm:$0xff] %vm479, %v290
  %482 = vst.msk [vmem:[#allocation3 + $0x20] sm:$0xff] %vm479, %v292
  %483 = vst.msk [vmem:[#allocation3 + $0x30] sm:$0xff] %vm479, %v294
  %484 = vst.msk [vmem:[#allocation3 + $0x40] sm:$0xff] %vm479, %v296
  %485 = vst.msk [vmem:[#allocation3 + $0x50] sm:$0xff] %vm479, %v298
  %486 = vst.msk [vmem:[#allocation3 + $0x60] sm:$0xff] %vm479, %v300
  %487 = vst.msk [vmem:[#allocation3 + $0x70] sm:$0xff] %vm479, %v302
  %488 = vst.msk [vmem:[#allocation3 + $0x80] sm:$0xff] %vm479, %v304
  %489 = vst.msk [vmem:[#allocation3 + $0x90] sm:$0xff] %vm479, %v306
  %490 = vst.msk [vmem:[#allocation3 + $0xa0] sm:$0xff] %vm479, %v308
  %491 = vst.msk [vmem:[#allocation3 + $0xb0] sm:$0xff] %vm479, %v310
  %492 = vst.msk [vmem:[#allocation3 + $0xc0] sm:$0xff] %vm479, %v312
  %493 = vst.msk [vmem:[#allocation3 + $0xd0] sm:$0xff] %vm479, %v314
  %494 = vst.msk [vmem:[#allocation3 + $0xe0] sm:$0xff] %vm479, %v316
  %495 = vst.msk [vmem:[#allocation3 + $0xf0] sm:$0xff] %vm479, %v318
  %496 = vst.msk [vmem:[#allocation3 + $0x100] sm:$0xff] %vm479, %v320
  %497 = vst.msk [vmem:[#allocation3 + $0x110] sm:$0xff] %vm479, %v322
  %498 = vst.msk [vmem:[#allocation3 + $0x120] sm:$0xff] %vm479, %v324
  %499 = vst.msk [vmem:[#allocation3 + $0x130] sm:$0xff] %vm479, %v326
  %500 = vst.msk [vmem:[#allocation3 + $0x140] sm:$0xff] %vm479, %v328
  %501 = vst.msk [vmem:[#allocation3 + $0x150] sm:$0xff] %vm479, %v330
  %502 = vst.msk [vmem:[#allocation3 + $0x160] sm:$0xff] %vm479, %v332
  %503 = vst.msk [vmem:[#allocation3 + $0x170] sm:$0xff] %vm479, %v334
  %504 = vst.msk [vmem:[#allocation3 + $0x180] sm:$0xff] %vm479, %v336
  %505 = vst.msk [vmem:[#allocation3 + $0x190] sm:$0xff] %vm479, %v338
  %506 = vst.msk [vmem:[#allocation3 + $0x1a0] sm:$0xff] %vm479, %v340
  %507 = vst.msk [vmem:[#allocation3 + $0x1b0] sm:$0xff] %vm479, %v342
  %508 = vst.msk [vmem:[#allocation3 + $0x1c0] sm:$0xff] %vm479, %v344
  %509 = vst.msk [vmem:[#allocation3 + $0x1d0] sm:$0xff] %vm479, %v346
  %510 = vst.msk [vmem:[#allocation3 + $0x1e0] sm:$0xff] %vm479, %v348
  %511 = vst.msk [vmem:[#allocation3 + $0x1f0] sm:$0xff] %vm479, %v350
  %512 = vst.msk [vmem:[#allocation3 + $0x200] sm:$0xff] %vm479, %v352
  %513 = vst.msk [vmem:[#allocation3 + $0x210] sm:$0xff] %vm479, %v354
  %514 = vst.msk [vmem:[#allocation3 + $0x220] sm:$0xff] %vm479, %v356
  %515 = vst.msk [vmem:[#allocation3 + $0x230] sm:$0xff] %vm479, %v358
  %516 = vst.msk [vmem:[#allocation3 + $0x240] sm:$0xff] %vm479, %v360
  %517 = vst.msk [vmem:[#allocation3 + $0x250] sm:$0xff] %vm479, %v362
  %518 = vst.msk [vmem:[#allocation3 + $0x260] sm:$0xff] %vm479, %v364
  %519 = vst.msk [vmem:[#allocation3 + $0x270] sm:$0xff] %vm479, %v366
  %520 = vst.msk [vmem:[#allocation3 + $0x280] sm:$0xff] %vm479, %v368
  %521 = vst.msk [vmem:[#allocation3 + $0x290] sm:$0xff] %vm479, %v370
  %522 = vst.msk [vmem:[#allocation3 + $0x2a0] sm:$0xff] %vm479, %v372
  %523 = vst.msk [vmem:[#allocation3 + $0x2b0] sm:$0xff] %vm479, %v374
  %524 = vst.msk [vmem:[#allocation3 + $0x2c0] sm:$0xff] %vm479, %v376
  %525 = vst.msk [vmem:[#allocation3 + $0x2d0] sm:$0xff] %vm479, %v378
  %526 = vst.msk [vmem:[#allocation3 + $0x2e0] sm:$0xff] %vm479, %v380
  %527 = vst.msk [vmem:[#allocation3 + $0x2f0] sm:$0xff] %vm479, %v382
  %528 = vst.msk [vmem:[#allocation3 + $0x300] sm:$0xff] %vm479, %v384
  %529 = vst.msk [vmem:[#allocation3 + $0x310] sm:$0xff] %vm479, %v386
  %530 = vst.msk [vmem:[#allocation3 + $0x320] sm:$0xff] %vm479, %v388
  %531 = vst.msk [vmem:[#allocation3 + $0x330] sm:$0xff] %vm479, %v390
  %532 = vst.msk [vmem:[#allocation3 + $0x340] sm:$0xff] %vm479, %v392
  %533 = vst.msk [vmem:[#allocation3 + $0x350] sm:$0xff] %vm479, %v394
  %534 = vst.msk [vmem:[#allocation3 + $0x360] sm:$0xff] %vm479, %v396
  %535 = vst.msk [vmem:[#allocation3 + $0x370] sm:$0xff] %vm479, %v398
  %536 = vst.msk [vmem:[#allocation3 + $0x380] sm:$0xff] %vm479, %v400
  %537 = vst.msk [vmem:[#allocation3 + $0x390] sm:$0xff] %vm479, %v402
  %538 = vst.msk [vmem:[#allocation3 + $0x3a0] sm:$0xff] %vm479, %v404
  %539 = vst.msk [vmem:[#allocation3 + $0x3b0] sm:$0xff] %vm479, %v406
  %540 = vst.msk [vmem:[#allocation3 + $0x3c0] sm:$0xff] %vm479, %v408
  %541 = vst.msk [vmem:[#allocation3 + $0x3d0] sm:$0xff] %vm479, %v410
  %542 = vst.msk [vmem:[#allocation3 + $0x3e0] sm:$0xff] %vm479, %v412
  %543 = vst.msk [vmem:[#allocation3 + $0x3f0] sm:$0xff] %vm479, %v414
  %v544 = vld [vmem:[%s0 + $0x2] sm:$0xff]
  %v545 = vld [vmem:[%s0 + $0xa] sm:$0xff]
  %v546 = vld [vmem:[%s0 + $0x1a] sm:$0xff]
  %v547 = vld [vmem:[%s0 + $0x22] sm:$0xff]
  %v548 = vld [vmem:[%s0 + $0x32] sm:$0xff]
  %v549 = vld [vmem:[%s0 + $0x3a] sm:$0xff]
  %v550 = vld [vmem:[%s0 + $0x4a] sm:$0xff]
  %v551 = vld [vmem:[%s0 + $0x52] sm:$0xff]
  %v552 = vld [vmem:[%s0 + $0x62] sm:$0xff]
  %v553 = vld [vmem:[%s0 + $0x6a] sm:$0xff]
  %v554 = vld [vmem:[%s0 + $0x7a] sm:$0xff]
  %v555 = vld [vmem:[%s0 + $0x82] sm:$0xff]
  %v556 = vld [vmem:[%s0 + $0x92] sm:$0xff]
  %v557 = vld [vmem:[%s0 + $0x9a] sm:$0xff]
  %v558 = vld [vmem:[%s0 + $0xaa] sm:$0xff]
  %v559 = vld [vmem:[%s0 + $0xb2] sm:$0xff]
  %v560 = vld [vmem:[%s0 + $0xc2] sm:$0xff]
  %v561 = vld [vmem:[%s0 + $0xca] sm:$0xff]
  %v562 = vld [vmem:[%s0 + $0xda] sm:$0xff]
  %v563 = vld [vmem:[%s0 + $0xe2] sm:$0xff]
  %v564 = vld [vmem:[%s0 + $0xf2] sm:$0xff]
  %v565 = vld [vmem:[%s0 + $0xfa] sm:$0xff]
  %v566 = vld [vmem:[%s0 + $0x10a] sm:$0xff]
  %v567 = vld [vmem:[%s0 + $0x112] sm:$0xff]
  %v568 = vld [vmem:[%s0 + $0x122] sm:$0xff]
  %v569 = vld [vmem:[%s0 + $0x12a] sm:$0xff]
  %v570 = vld [vmem:[%s0 + $0x13a] sm:$0xff]
  %v571 = vld [vmem:[%s0 + $0x142] sm:$0xff]
  %v572 = vld [vmem:[%s0 + $0x152] sm:$0xff]
  %v573 = vld [vmem:[%s0 + $0x15a] sm:$0xff]
  %v574 = vld [vmem:[%s0 + $0x16a] sm:$0xff]
  %v575 = vld [vmem:[%s0 + $0x172] sm:$0xff]
  %v576 = vld [vmem:[%s0 + $0x1b2] sm:$0xff]
  %v577 = vld [vmem:[%s0 + $0x1ba] sm:$0xff]
  %v578 = vld [vmem:[%s0 + $0x1ca] sm:$0xff]
  %v579 = vld [vmem:[%s0 + $0x1d2] sm:$0xff]
  %v580 = vld [vmem:[%s0 + $0x1e2] sm:$0xff]
  %v581 = vld [vmem:[%s0 + $0x1ea] sm:$0xff]
  %v582 = vld [vmem:[%s0 + $0x1fa] sm:$0xff]
  %v583 = vld [vmem:[%s0 + $0x202] sm:$0xff]
  %v584 = vld [vmem:[%s0 + $0x212] sm:$0xff]
  %v585 = vld [vmem:[%s0 + $0x21a] sm:$0xff]
  %v586 = vld [vmem:[%s0 + $0x22a] sm:$0xff]
  %v587 = vld [vmem:[%s0 + $0x232] sm:$0xff]
  %v588 = vld [vmem:[%s0 + $0x242] sm:$0xff]
  %v589 = vld [vmem:[%s0 + $0x24a] sm:$0xff]
  %v590 = vld [vmem:[%s0 + $0x25a] sm:$0xff]
  %v591 = vld [vmem:[%s0 + $0x262] sm:$0xff]
  %v592 = vld [vmem:[%s0 + $0x272] sm:$0xff]
  %v593 = vld [vmem:[%s0 + $0x27a] sm:$0xff]
  %v594 = vld [vmem:[%s0 + $0x28a] sm:$0xff]
  %v595 = vld [vmem:[%s0 + $0x292] sm:$0xff]
  %v596 = vld [vmem:[%s0 + $0x2a2] sm:$0xff]
  %v597 = vld [vmem:[%s0 + $0x2aa] sm:$0xff]
  %v598 = vld [vmem:[%s0 + $0x2ba] sm:$0xff]
  %v599 = vld [vmem:[%s0 + $0x2c2] sm:$0xff]
  %v600 = vld [vmem:[%s0 + $0x2d2] sm:$0xff]
  %v601 = vld [vmem:[%s0 + $0x2da] sm:$0xff]
  %v602 = vld [vmem:[%s0 + $0x2ea] sm:$0xff]
  %v603 = vld [vmem:[%s0 + $0x2f2] sm:$0xff]
  %v604 = vld [vmem:[%s0 + $0x302] sm:$0xff]
  %v605 = vld [vmem:[%s0 + $0x30a] sm:$0xff]
  %v606 = vld [vmem:[%s0 + $0x31a] sm:$0xff]
  %v607 = vld [vmem:[%s0 + $0x322] sm:$0xff]
  %672 = vrot.lane.b32.xlu0 %v544, 32
  %v673 = vpop.permute.xlu0 %672
  %674 = vrot.lane.b32.xlu0 %v545, 32
  %v675 = vpop.permute.xlu0 %674
  %676 = vrot.lane.b32.xlu0 %v546, 32
  %v677 = vpop.permute.xlu0 %676
  %678 = vrot.lane.b32.xlu0 %v547, 32
  %v679 = vpop.permute.xlu0 %678
  %680 = vrot.lane.b32.xlu0 %v548, 32
  %v681 = vpop.permute.xlu0 %680
  %682 = vrot.lane.b32.xlu0 %v549, 32
  %v683 = vpop.permute.xlu0 %682
  %684 = vrot.lane.b32.xlu0 %v550, 32
  %v685 = vpop.permute.xlu0 %684
  %686 = vrot.lane.b32.xlu0 %v551, 32
  %v687 = vpop.permute.xlu0 %686
  %688 = vrot.lane.b32.xlu0 %v552, 32
  %v689 = vpop.permute.xlu0 %688
  %690 = vrot.lane.b32.xlu0 %v553, 32
  %v691 = vpop.permute.xlu0 %690
  %692 = vrot.lane.b32.xlu0 %v554, 32
  %v693 = vpop.permute.xlu0 %692
  %694 = vrot.lane.b32.xlu0 %v555, 32
  %v695 = vpop.permute.xlu0 %694
  %696 = vrot.lane.b32.xlu0 %v556, 32
  %v697 = vpop.permute.xlu0 %696
  %698 = vrot.lane.b32.xlu0 %v557, 32
  %v699 = vpop.permute.xlu0 %698
  %700 = vrot.lane.b32.xlu0 %v558, 32
  %v701 = vpop.permute.xlu0 %700
  %702 = vrot.lane.b32.xlu0 %v559, 32
  %v703 = vpop.permute.xlu0 %702
  %704 = vrot.lane.b32.xlu0 %v560, 32
  %v705 = vpop.permute.xlu0 %704
  %706 = vrot.lane.b32.xlu0 %v561, 32
  %v707 = vpop.permute.xlu0 %706
  %708 = vrot.lane.b32.xlu0 %v562, 32
  %v709 = vpop.permute.xlu0 %708
  %710 = vrot.lane.b32.xlu0 %v563, 32
  %v711 = vpop.permute.xlu0 %710
  %712 = vrot.lane.b32.xlu0 %v564, 32
  %v713 = vpop.permute.xlu0 %712
  %714 = vrot.lane.b32.xlu0 %v565, 32
  %v715 = vpop.permute.xlu0 %714
  %716 = vrot.lane.b32.xlu0 %v566, 32
  %v717 = vpop.permute.xlu0 %716
  %718 = vrot.lane.b32.xlu0 %v567, 32
  %v719 = vpop.permute.xlu0 %718
  %720 = vrot.lane.b32.xlu0 %v568, 32
  %v721 = vpop.permute.xlu0 %720
  %722 = vrot.lane.b32.xlu0 %v569, 32
  %v723 = vpop.permute.xlu0 %722
  %724 = vrot.lane.b32.xlu0 %v570, 32
  %v725 = vpop.permute.xlu0 %724
  %726 = vrot.lane.b32.xlu0 %v571, 32
  %v727 = vpop.permute.xlu0 %726
  %728 = vrot.lane.b32.xlu0 %v572, 32
  %v729 = vpop.permute.xlu0 %728
  %730 = vrot.lane.b32.xlu0 %v573, 32
  %v731 = vpop.permute.xlu0 %730
  %732 = vrot.lane.b32.xlu0 %v574, 32
  %v733 = vpop.permute.xlu0 %732
  %734 = vrot.lane.b32.xlu0 %v575, 32
  %v735 = vpop.permute.xlu0 %734
  %736 = vrot.lane.b32.xlu0 %v576, 32
  %v737 = vpop.permute.xlu0 %736
  %738 = vrot.lane.b32.xlu0 %v577, 32
  %v739 = vpop.permute.xlu0 %738
  %740 = vrot.lane.b32.xlu0 %v578, 32
  %v741 = vpop.permute.xlu0 %740
  %742 = vrot.lane.b32.xlu0 %v579, 32
  %v743 = vpop.permute.xlu0 %742
  %744 = vrot.lane.b32.xlu0 %v580, 32
  %v745 = vpop.permute.xlu0 %744
  %746 = vrot.lane.b32.xlu0 %v581, 32
  %v747 = vpop.permute.xlu0 %746
  %748 = vrot.lane.b32.xlu0 %v582, 32
  %v749 = vpop.permute.xlu0 %748
  %750 = vrot.lane.b32.xlu0 %v583, 32
  %v751 = vpop.permute.xlu0 %750
  %752 = vrot.lane.b32.xlu0 %v584, 32
  %v753 = vpop.permute.xlu0 %752
  %754 = vrot.lane.b32.xlu0 %v585, 32
  %v755 = vpop.permute.xlu0 %754
  %756 = vrot.lane.b32.xlu0 %v586, 32
  %v757 = vpop.permute.xlu0 %756
  %758 = vrot.lane.b32.xlu0 %v587, 32
  %v759 = vpop.permute.xlu0 %758
  %760 = vrot.lane.b32.xlu0 %v588, 32
  %v761 = vpop.permute.xlu0 %760
  %762 = vrot.lane.b32.xlu0 %v589, 32
  %v763 = vpop.permute.xlu0 %762
  %764 = vrot.lane.b32.xlu0 %v590, 32
  %v765 = vpop.permute.xlu0 %764
  %766 = vrot.lane.b32.xlu0 %v591, 32
  %v767 = vpop.permute.xlu0 %766
  %768 = vrot.lane.b32.xlu0 %v592, 32
  %v769 = vpop.permute.xlu0 %768
  %770 = vrot.lane.b32.xlu0 %v593, 32
  %v771 = vpop.permute.xlu0 %770
  %772 = vrot.lane.b32.xlu0 %v594, 32
  %v773 = vpop.permute.xlu0 %772
  %774 = vrot.lane.b32.xlu0 %v595, 32
  %v775 = vpop.permute.xlu0 %774
  %776 = vrot.lane.b32.xlu0 %v596, 32
  %v777 = vpop.permute.xlu0 %776
  %778 = vrot.lane.b32.xlu0 %v597, 32
  %v779 = vpop.permute.xlu0 %778
  %780 = vrot.lane.b32.xlu0 %v598, 32
  %v781 = vpop.permute.xlu0 %780
  %782 = vrot.lane.b32.xlu0 %v599, 32
  %v783 = vpop.permute.xlu0 %782
  %784 = vrot.lane.b32.xlu0 %v600, 32
  %v785 = vpop.permute.xlu0 %784
  %786 = vrot.lane.b32.xlu0 %v601, 32
  %v787 = vpop.permute.xlu0 %786
  %788 = vrot.lane.b32.xlu0 %v602, 32
  %v789 = vpop.permute.xlu0 %788
  %790 = vrot.lane.b32.xlu0 %v603, 32
  %v791 = vpop.permute.xlu0 %790
  %792 = vrot.lane.b32.xlu0 %v604, 32
  %v793 = vpop.permute.xlu0 %792
  %794 = vrot.lane.b32.xlu0 %v605, 32
  %v795 = vpop.permute.xlu0 %794
  %796 = vrot.lane.b32.xlu0 %v606, 32
  %v797 = vpop.permute.xlu0 %796
  %798 = vrot.lane.b32.xlu0 %v607, 32
  %v799 = vpop.permute.xlu0 %798
  %vm864 = vcmask 392448
  %865 = vst.msk [vmem:[#allocation3] sm:$0xff] %vm864, %v673
  %866 = vst.msk [vmem:[#allocation3 + $0x10] sm:$0xff] %vm864, %v675
  %867 = vst.msk [vmem:[#allocation3 + $0x20] sm:$0xff] %vm864, %v677
  %868 = vst.msk [vmem:[#allocation3 + $0x30] sm:$0xff] %vm864, %v679
  %869 = vst.msk [vmem:[#allocation3 + $0x40] sm:$0xff] %vm864, %v681
  %870 = vst.msk [vmem:[#allocation3 + $0x50] sm:$0xff] %vm864, %v683
  %871 = vst.msk [vmem:[#allocation3 + $0x60] sm:$0xff] %vm864, %v685
  %872 = vst.msk [vmem:[#allocation3 + $0x70] sm:$0xff] %vm864, %v687
  %873 = vst.msk [vmem:[#allocation3 + $0x80] sm:$0xff] %vm864, %v689
  %874 = vst.msk [vmem:[#allocation3 + $0x90] sm:$0xff] %vm864, %v691
  %875 = vst.msk [vmem:[#allocation3 + $0xa0] sm:$0xff] %vm864, %v693
  %876 = vst.msk [vmem:[#allocation3 + $0xb0] sm:$0xff] %vm864, %v695
  %877 = vst.msk [vmem:[#allocation3 + $0xc0] sm:$0xff] %vm864, %v697
  %878 = vst.msk [vmem:[#allocation3 + $0xd0] sm:$0xff] %vm864, %v699
  %879 = vst.msk [vmem:[#allocation3 + $0xe0] sm:$0xff] %vm864, %v701
  %880 = vst.msk [vmem:[#allocation3 + $0xf0] sm:$0xff] %vm864, %v703
  %881 = vst.msk [vmem:[#allocation3 + $0x100] sm:$0xff] %vm864, %v705
  %882 = vst.msk [vmem:[#allocation3 + $0x110] sm:$0xff] %vm864, %v707
  %883 = vst.msk [vmem:[#allocation3 + $0x120] sm:$0xff] %vm864, %v709
  %884 = vst.msk [vmem:[#allocation3 + $0x130] sm:$0xff] %vm864, %v711
  %885 = vst.msk [vmem:[#allocation3 + $0x140] sm:$0xff] %vm864, %v713
  %886 = vst.msk [vmem:[#allocation3 + $0x150] sm:$0xff] %vm864, %v715
  %887 = vst.msk [vmem:[#allocation3 + $0x160] sm:$0xff] %vm864, %v717
  %888 = vst.msk [vmem:[#allocation3 + $0x170] sm:$0xff] %vm864, %v719
  %889 = vst.msk [vmem:[#allocation3 + $0x180] sm:$0xff] %vm864, %v721
  %890 = vst.msk [vmem:[#allocation3 + $0x190] sm:$0xff] %vm864, %v723
  %891 = vst.msk [vmem:[#allocation3 + $0x1a0] sm:$0xff] %vm864, %v725
  %892 = vst.msk [vmem:[#allocation3 + $0x1b0] sm:$0xff] %vm864, %v727
  %893 = vst.msk [vmem:[#allocation3 + $0x1c0] sm:$0xff] %vm864, %v729
  %894 = vst.msk [vmem:[#allocation3 + $0x1d0] sm:$0xff] %vm864, %v731
  %895 = vst.msk [vmem:[#allocation3 + $0x1e0] sm:$0xff] %vm864, %v733
  %896 = vst.msk [vmem:[#allocation3 + $0x1f0] sm:$0xff] %vm864, %v735
  %897 = vst.msk [vmem:[#allocation3 + $0x200] sm:$0xff] %vm864, %v737
  %898 = vst.msk [vmem:[#allocation3 + $0x210] sm:$0xff] %vm864, %v739
  %899 = vst.msk [vmem:[#allocation3 + $0x220] sm:$0xff] %vm864, %v741
  %900 = vst.msk [vmem:[#allocation3 + $0x230] sm:$0xff] %vm864, %v743
  %901 = vst.msk [vmem:[#allocation3 + $0x240] sm:$0xff] %vm864, %v745
  %902 = vst.msk [vmem:[#allocation3 + $0x250] sm:$0xff] %vm864, %v747
  %903 = vst.msk [vmem:[#allocation3 + $0x260] sm:$0xff] %vm864, %v749
  %904 = vst.msk [vmem:[#allocation3 + $0x270] sm:$0xff] %vm864, %v751
  %905 = vst.msk [vmem:[#allocation3 + $0x280] sm:$0xff] %vm864, %v753
  %906 = vst.msk [vmem:[#allocation3 + $0x290] sm:$0xff] %vm864, %v755
  %907 = vst.msk [vmem:[#allocation3 + $0x2a0] sm:$0xff] %vm864, %v757
  %908 = vst.msk [vmem:[#allocation3 + $0x2b0] sm:$0xff] %vm864, %v759
  %909 = vst.msk [vmem:[#allocation3 + $0x2c0] sm:$0xff] %vm864, %v761
  %910 = vst.msk [vmem:[#allocation3 + $0x2d0] sm:$0xff] %vm864, %v763
  %911 = vst.msk [vmem:[#allocation3 + $0x2e0] sm:$0xff] %vm864, %v765
  %912 = vst.msk [vmem:[#allocation3 + $0x2f0] sm:$0xff] %vm864, %v767
  %913 = vst.msk [vmem:[#allocation3 + $0x300] sm:$0xff] %vm864, %v769
  %914 = vst.msk [vmem:[#allocation3 + $0x310] sm:$0xff] %vm864, %v771
  %915 = vst.msk [vmem:[#allocation3 + $0x320] sm:$0xff] %vm864, %v773
  %916 = vst.msk [vmem:[#allocation3 + $0x330] sm:$0xff] %vm864, %v775
  %917 = vst.msk [vmem:[#allocation3 + $0x340] sm:$0xff] %vm864, %v777
  %918 = vst.msk [vmem:[#allocation3 + $0x350] sm:$0xff] %vm864, %v779
  %919 = vst.msk [vmem:[#allocation3 + $0x360] sm:$0xff] %vm864, %v781
  %920 = vst.msk [vmem:[#allocation3 + $0x370] sm:$0xff] %vm864, %v783
  %921 = vst.msk [vmem:[#allocation3 + $0x380] sm:$0xff] %vm864, %v785
  %922 = vst.msk [vmem:[#allocation3 + $0x390] sm:$0xff] %vm864, %v787
  %923 = vst.msk [vmem:[#allocation3 + $0x3a0] sm:$0xff] %vm864, %v789
  %924 = vst.msk [vmem:[#allocation3 + $0x3b0] sm:$0xff] %vm864, %v791
  %925 = vst.msk [vmem:[#allocation3 + $0x3c0] sm:$0xff] %vm864, %v793
  %926 = vst.msk [vmem:[#allocation3 + $0x3d0] sm:$0xff] %vm864, %v795
  %927 = vst.msk [vmem:[#allocation3 + $0x3e0] sm:$0xff] %vm864, %v797
  %928 = vst.msk [vmem:[#allocation3 + $0x3f0] sm:$0xff] %vm864, %v799
  %s929 = scalar_lea.vmem %s0, 24
  %v930 = vld [vmem:[%s929] sm:$0xff]
  %v931 = vld [vmem:[%s929 + $0x8] sm:$0xff]
  %v932 = vld [vmem:[%s929 + $0x18] sm:$0xff]
  %v933 = vld [vmem:[%s929 + $0x20] sm:$0xff]
  %v934 = vld [vmem:[%s929 + $0x30] sm:$0xff]
  %v935 = vld [vmem:[%s929 + $0x38] sm:$0xff]
  %v936 = vld [vmem:[%s929 + $0x48] sm:$0xff]
  %v937 = vld [vmem:[%s929 + $0x50] sm:$0xff]
  %v938 = vld [vmem:[%s929 + $0x60] sm:$0xff]
  %v939 = vld [vmem:[%s929 + $0x68] sm:$0xff]
  %v940 = vld [vmem:[%s929 + $0x78] sm:$0xff]
  %v941 = vld [vmem:[%s929 + $0x80] sm:$0xff]
  %v942 = vld [vmem:[%s929 + $0x90] sm:$0xff]
  %v943 = vld [vmem:[%s929 + $0x98] sm:$0xff]
  %v944 = vld [vmem:[%s929 + $0xa8] sm:$0xff]
  %v945 = vld [vmem:[%s929 + $0xb0] sm:$0xff]
  %v946 = vld [vmem:[%s929 + $0xc0] sm:$0xff]
  %v947 = vld [vmem:[%s929 + $0xc8] sm:$0xff]
  %v948 = vld [vmem:[%s929 + $0xd8] sm:$0xff]
  %v949 = vld [vmem:[%s929 + $0xe0] sm:$0xff]
  %v950 = vld [vmem:[%s929 + $0xf0] sm:$0xff]
  %v951 = vld [vmem:[%s929 + $0xf8] sm:$0xff]
  %v952 = vld [vmem:[%s929 + $0x108] sm:$0xff]
  %v953 = vld [vmem:[%s929 + $0x110] sm:$0xff]
  %v954 = vld [vmem:[%s929 + $0x120] sm:$0xff]
  %v955 = vld [vmem:[%s929 + $0x128] sm:$0xff]
  %v956 = vld [vmem:[%s929 + $0x138] sm:$0xff]
  %v957 = vld [vmem:[%s929 + $0x140] sm:$0xff]
  %v958 = vld [vmem:[%s929 + $0x150] sm:$0xff]
  %v959 = vld [vmem:[%s929 + $0x158] sm:$0xff]
  %v960 = vld [vmem:[%s929 + $0x168] sm:$0xff]
  %v961 = vld [vmem:[%s929 + $0x170] sm:$0xff]
  %v962 = vld [vmem:[%s929 + $0x1b0] sm:$0xff]
  %v963 = vld [vmem:[%s929 + $0x1b8] sm:$0xff]
  %v964 = vld [vmem:[%s929 + $0x1c8] sm:$0xff]
  %v965 = vld [vmem:[%s929 + $0x1d0] sm:$0xff]
  %v966 = vld [vmem:[%s929 + $0x1e0] sm:$0xff]
  %v967 = vld [vmem:[%s929 + $0x1e8] sm:$0xff]
  %v968 = vld [vmem:[%s929 + $0x1f8] sm:$0xff]
  %v969 = vld [vmem:[%s929 + $0x200] sm:$0xff]
  %v970 = vld [vmem:[%s929 + $0x210] sm:$0xff]
  %v971 = vld [vmem:[%s929 + $0x218] sm:$0xff]
  %v972 = vld [vmem:[%s929 + $0x228] sm:$0xff]
  %v973 = vld [vmem:[%s929 + $0x230] sm:$0xff]
  %v974 = vld [vmem:[%s929 + $0x240] sm:$0xff]
  %v975 = vld [vmem:[%s929 + $0x248] sm:$0xff]
  %v976 = vld [vmem:[%s929 + $0x258] sm:$0xff]
  %v977 = vld [vmem:[%s929 + $0x260] sm:$0xff]
  %v978 = vld [vmem:[%s929 + $0x270] sm:$0xff]
  %v979 = vld [vmem:[%s929 + $0x278] sm:$0xff]
  %v980 = vld [vmem:[%s929 + $0x288] sm:$0xff]
  %v981 = vld [vmem:[%s929 + $0x290] sm:$0xff]
  %v982 = vld [vmem:[%s929 + $0x2a0] sm:$0xff]
  %v983 = vld [vmem:[%s929 + $0x2a8] sm:$0xff]
  %v984 = vld [vmem:[%s929 + $0x2b8] sm:$0xff]
  %v985 = vld [vmem:[%s929 + $0x2c0] sm:$0xff]
  %v986 = vld [vmem:[%s929 + $0x2d0] sm:$0xff]
  %v987 = vld [vmem:[%s929 + $0x2d8] sm:$0xff]
  %v988 = vld [vmem:[%s929 + $0x2e8] sm:$0xff]
  %v989 = vld [vmem:[%s929 + $0x2f0] sm:$0xff]
  %v990 = vld [vmem:[%s929 + $0x300] sm:$0xff]
  %v991 = vld [vmem:[%s929 + $0x308] sm:$0xff]
  %v992 = vld [vmem:[%s929 + $0x318] sm:$0xff]
  %v993 = vld [vmem:[%s929 + $0x320] sm:$0xff]
  %1058 = vrot.lane.b32.xlu0 %v930, 48
  %v1059 = vpop.permute.xlu0 %1058
  %1060 = vrot.lane.b32.xlu0 %v931, 48
  %v1061 = vpop.permute.xlu0 %1060
  %1062 = vrot.lane.b32.xlu0 %v932, 48
  %v1063 = vpop.permute.xlu0 %1062
  %1064 = vrot.lane.b32.xlu0 %v933, 48
  %v1065 = vpop.permute.xlu0 %1064
  %1066 = vrot.lane.b32.xlu0 %v934, 48
  %v1067 = vpop.permute.xlu0 %1066
  %1068 = vrot.lane.b32.xlu0 %v935, 48
  %v1069 = vpop.permute.xlu0 %1068
  %1070 = vrot.lane.b32.xlu0 %v936, 48
  %v1071 = vpop.permute.xlu0 %1070
  %1072 = vrot.lane.b32.xlu0 %v937, 48
  %v1073 = vpop.permute.xlu0 %1072
  %1074 = vrot.lane.b32.xlu0 %v938, 48
  %v1075 = vpop.permute.xlu0 %1074
  %1076 = vrot.lane.b32.xlu0 %v939, 48
  %v1077 = vpop.permute.xlu0 %1076
  %1078 = vrot.lane.b32.xlu0 %v940, 48
  %v1079 = vpop.permute.xlu0 %1078
  %1080 = vrot.lane.b32.xlu0 %v941, 48
  %v1081 = vpop.permute.xlu0 %1080
  %1082 = vrot.lane.b32.xlu0 %v942, 48
  %v1083 = vpop.permute.xlu0 %1082
  %1084 = vrot.lane.b32.xlu0 %v943, 48
  %v1085 = vpop.permute.xlu0 %1084
  %1086 = vrot.lane.b32.xlu0 %v944, 48
  %v1087 = vpop.permute.xlu0 %1086
  %1088 = vrot.lane.b32.xlu0 %v945, 48
  %v1089 = vpop.permute.xlu0 %1088
  %1090 = vrot.lane.b32.xlu0 %v946, 48
  %v1091 = vpop.permute.xlu0 %1090
  %1092 = vrot.lane.b32.xlu0 %v947, 48
  %v1093 = vpop.permute.xlu0 %1092
  %1094 = vrot.lane.b32.xlu0 %v948, 48
  %v1095 = vpop.permute.xlu0 %1094
  %1096 = vrot.lane.b32.xlu0 %v949, 48
  %v1097 = vpop.permute.xlu0 %1096
  %1098 = vrot.lane.b32.xlu0 %v950, 48
  %v1099 = vpop.permute.xlu0 %1098
  %1100 = vrot.lane.b32.xlu0 %v951, 48
  %v1101 = vpop.permute.xlu0 %1100
  %1102 = vrot.lane.b32.xlu0 %v952, 48
  %v1103 = vpop.permute.xlu0 %1102
  %1104 = vrot.lane.b32.xlu0 %v953, 48
  %v1105 = vpop.permute.xlu0 %1104
  %1106 = vrot.lane.b32.xlu0 %v954, 48
  %v1107 = vpop.permute.xlu0 %1106
  %1108 = vrot.lane.b32.xlu0 %v955, 48
  %v1109 = vpop.permute.xlu0 %1108
  %1110 = vrot.lane.b32.xlu0 %v956, 48
  %v1111 = vpop.permute.xlu0 %1110
  %1112 = vrot.lane.b32.xlu0 %v957, 48
  %v1113 = vpop.permute.xlu0 %1112
  %1114 = vrot.lane.b32.xlu0 %v958, 48
  %v1115 = vpop.permute.xlu0 %1114
  %1116 = vrot.lane.b32.xlu0 %v959, 48
  %v1117 = vpop.permute.xlu0 %1116
  %1118 = vrot.lane.b32.xlu0 %v960, 48
  %v1119 = vpop.permute.xlu0 %1118
  %1120 = vrot.lane.b32.xlu0 %v961, 48
  %v1121 = vpop.permute.xlu0 %1120
  %1122 = vrot.lane.b32.xlu0 %v962, 48
  %v1123 = vpop.permute.xlu0 %1122
  %1124 = vrot.lane.b32.xlu0 %v963, 48
  %v1125 = vpop.permute.xlu0 %1124
  %1126 = vrot.lane.b32.xlu0 %v964, 48
  %v1127 = vpop.permute.xlu0 %1126
  %1128 = vrot.lane.b32.xlu0 %v965, 48
  %v1129 = vpop.permute.xlu0 %1128
  %1130 = vrot.lane.b32.xlu0 %v966, 48
  %v1131 = vpop.permute.xlu0 %1130
  %1132 = vrot.lane.b32.xlu0 %v967, 48
  %v1133 = vpop.permute.xlu0 %1132
  %1134 = vrot.lane.b32.xlu0 %v968, 48
  %v1135 = vpop.permute.xlu0 %1134
  %1136 = vrot.lane.b32.xlu0 %v969, 48
  %v1137 = vpop.permute.xlu0 %1136
  %1138 = vrot.lane.b32.xlu0 %v970, 48
  %v1139 = vpop.permute.xlu0 %1138
  %1140 = vrot.lane.b32.xlu0 %v971, 48
  %v1141 = vpop.permute.xlu0 %1140
  %1142 = vrot.lane.b32.xlu0 %v972, 48
  %v1143 = vpop.permute.xlu0 %1142
  %1144 = vrot.lane.b32.xlu0 %v973, 48
  %v1145 = vpop.permute.xlu0 %1144
  %1146 = vrot.lane.b32.xlu0 %v974, 48
  %v1147 = vpop.permute.xlu0 %1146
  %1148 = vrot.lane.b32.xlu0 %v975, 48
  %v1149 = vpop.permute.xlu0 %1148
  %1150 = vrot.lane.b32.xlu0 %v976, 48
  %v1151 = vpop.permute.xlu0 %1150
  %1152 = vrot.lane.b32.xlu0 %v977, 48
  %v1153 = vpop.permute.xlu0 %1152
  %1154 = vrot.lane.b32.xlu0 %v978, 48
  %v1155 = vpop.permute.xlu0 %1154
  %1156 = vrot.lane.b32.xlu0 %v979, 48
  %v1157 = vpop.permute.xlu0 %1156
  %1158 = vrot.lane.b32.xlu0 %v980, 48
  %v1159 = vpop.permute.xlu0 %1158
  %1160 = vrot.lane.b32.xlu0 %v981, 48
  %v1161 = vpop.permute.xlu0 %1160
  %1162 = vrot.lane.b32.xlu0 %v982, 48
  %v1163 = vpop.permute.xlu0 %1162
  %1164 = vrot.lane.b32.xlu0 %v983, 48
  %v1165 = vpop.permute.xlu0 %1164
  %1166 = vrot.lane.b32.xlu0 %v984, 48
  %v1167 = vpop.permute.xlu0 %1166
  %1168 = vrot.lane.b32.xlu0 %v985, 48
  %v1169 = vpop.permute.xlu0 %1168
  %1170 = vrot.lane.b32.xlu0 %v986, 48
  %v1171 = vpop.permute.xlu0 %1170
  %1172 = vrot.lane.b32.xlu0 %v987, 48
  %v1173 = vpop.permute.xlu0 %1172
  %1174 = vrot.lane.b32.xlu0 %v988, 48
  %v1175 = vpop.permute.xlu0 %1174
  %1176 = vrot.lane.b32.xlu0 %v989, 48
  %v1177 = vpop.permute.xlu0 %1176
  %1178 = vrot.lane.b32.xlu0 %v990, 48
  %v1179 = vpop.permute.xlu0 %1178
  %1180 = vrot.lane.b32.xlu0 %v991, 48
  %v1181 = vpop.permute.xlu0 %1180
  %1182 = vrot.lane.b32.xlu0 %v992, 48
  %v1183 = vpop.permute.xlu0 %1182
  %1184 = vrot.lane.b32.xlu0 %v993, 48
  %v1185 = vpop.permute.xlu0 %1184
  %vm1250 = vcmask 523648
  %1251 = vst.msk [vmem:[#allocation3] sm:$0xff] %vm1250, %v1059
  %1252 = vst.msk [vmem:[#allocation3 + $0x10] sm:$0xff] %vm1250, %v1061
  %1253 = vst.msk [vmem:[#allocation3 + $0x20] sm:$0xff] %vm1250, %v1063
  %1254 = vst.msk [vmem:[#allocation3 + $0x30] sm:$0xff] %vm1250, %v1065
  %1255 = vst.msk [vmem:[#allocation3 + $0x40] sm:$0xff] %vm1250, %v1067
  %1256 = vst.msk [vmem:[#allocation3 + $0x50] sm:$0xff] %vm1250, %v1069
  %1257 = vst.msk [vmem:[#allocation3 + $0x60] sm:$0xff] %vm1250, %v1071
  %1258 = vst.msk [vmem:[#allocation3 + $0x70] sm:$0xff] %vm1250, %v1073
  %1259 = vst.msk [vmem:[#allocation3 + $0x80] sm:$0xff] %vm1250, %v1075
  %1260 = vst.msk [vmem:[#allocation3 + $0x90] sm:$0xff] %vm1250, %v1077
  %1261 = vst.msk [vmem:[#allocation3 + $0xa0] sm:$0xff] %vm1250, %v1079
  %1262 = vst.msk [vmem:[#allocation3 + $0xb0] sm:$0xff] %vm1250, %v1081
  %1263 = vst.msk [vmem:[#allocation3 + $0xc0] sm:$0xff] %vm1250, %v1083
  %1264 = vst.msk [vmem:[#allocation3 + $0xd0] sm:$0xff] %vm1250, %v1085
  %1265 = vst.msk [vmem:[#allocation3 + $0xe0] sm:$0xff] %vm1250, %v1087
  %1266 = vst.msk [vmem:[#allocation3 + $0xf0] sm:$0xff] %vm1250, %v1089
  %1267 = vst.msk [vmem:[#allocation3 + $0x100] sm:$0xff] %vm1250, %v1091
  %1268 = vst.msk [vmem:[#allocation3 + $0x110] sm:$0xff] %vm1250, %v1093
  %1269 = vst.msk [vmem:[#allocation3 + $0x120] sm:$0xff] %vm1250, %v1095
  %1270 = vst.msk [vmem:[#allocation3 + $0x130] sm:$0xff] %vm1250, %v1097
  %1271 = vst.msk [vmem:[#allocation3 + $0x140] sm:$0xff] %vm1250, %v1099
  %1272 = vst.msk [vmem:[#allocation3 + $0x150] sm:$0xff] %vm1250, %v1101
  %1273 = vst.msk [vmem:[#allocation3 + $0x160] sm:$0xff] %vm1250, %v1103
  %1274 = vst.msk [vmem:[#allocation3 + $0x170] sm:$0xff] %vm1250, %v1105
  %1275 = vst.msk [vmem:[#allocation3 + $0x180] sm:$0xff] %vm1250, %v1107
  %1276 = vst.msk [vmem:[#allocation3 + $0x190] sm:$0xff] %vm1250, %v1109
  %1277 = vst.msk [vmem:[#allocation3 + $0x1a0] sm:$0xff] %vm1250, %v1111
  %1278 = vst.msk [vmem:[#allocation3 + $0x1b0] sm:$0xff] %vm1250, %v1113
  %1279 = vst.msk [vmem:[#allocation3 + $0x1c0] sm:$0xff] %vm1250, %v1115
  %1280 = vst.msk [vmem:[#allocation3 + $0x1d0] sm:$0xff] %vm1250, %v1117
  %1281 = vst.msk [vmem:[#allocation3 + $0x1e0] sm:$0xff] %vm1250, %v1119
  %1282 = vst.msk [vmem:[#allocation3 + $0x1f0] sm:$0xff] %vm1250, %v1121
  %1283 = vst.msk [vmem:[#allocation3 + $0x200] sm:$0xff] %vm1250, %v1123
  %1284 = vst.msk [vmem:[#allocation3 + $0x210] sm:$0xff] %vm1250, %v1125
  %1285 = vst.msk [vmem:[#allocation3 + $0x220] sm:$0xff] %vm1250, %v1127
  %1286 = vst.msk [vmem:[#allocation3 + $0x230] sm:$0xff] %vm1250, %v1129
  %1287 = vst.msk [vmem:[#allocation3 + $0x240] sm:$0xff] %vm1250, %v1131
  %1288 = vst.msk [vmem:[#allocation3 + $0x250] sm:$0xff] %vm1250, %v1133
  %1289 = vst.msk [vmem:[#allocation3 + $0x260] sm:$0xff] %vm1250, %v1135
  %1290 = vst.msk [vmem:[#allocation3 + $0x270] sm:$0xff] %vm1250, %v1137
  %1291 = vst.msk [vmem:[#allocation3 + $0x280] sm:$0xff] %vm1250, %v1139
  %1292 = vst.msk [vmem:[#allocation3 + $0x290] sm:$0xff] %vm1250, %v1141
  %1293 = vst.msk [vmem:[#allocation3 + $0x2a0] sm:$0xff] %vm1250, %v1143
  %1294 = vst.msk [vmem:[#allocation3 + $0x2b0] sm:$0xff] %vm1250, %v1145
  %1295 = vst.msk [vmem:[#allocation3 + $0x2c0] sm:$0xff] %vm1250, %v1147
  %1296 = vst.msk [vmem:[#allocation3 + $0x2d0] sm:$0xff] %vm1250, %v1149
  %1297 = vst.msk [vmem:[#allocation3 + $0x2e0] sm:$0xff] %vm1250, %v1151
  %1298 = vst.msk [vmem:[#allocation3 + $0x2f0] sm:$0xff] %vm1250, %v1153
  %1299 = vst.msk [vmem:[#allocation3 + $0x300] sm:$0xff] %vm1250, %v1155
  %1300 = vst.msk [vmem:[#allocation3 + $0x310] sm:$0xff] %vm1250, %v1157
  %1301 = vst.msk [vmem:[#allocation3 + $0x320] sm:$0xff] %vm1250, %v1159
  %1302 = vst.msk [vmem:[#allocation3 + $0x330] sm:$0xff] %vm1250, %v1161
  %1303 = vst.msk [vmem:[#allocation3 + $0x340] sm:$0xff] %vm1250, %v1163
  %1304 = vst.msk [vmem:[#allocation3 + $0x350] sm:$0xff] %vm1250, %v1165
  %1305 = vst.msk [vmem:[#allocation3 + $0x360] sm:$0xff] %vm1250, %v1167
  %1306 = vst.msk [vmem:[#allocation3 + $0x370] sm:$0xff] %vm1250, %v1169
  %1307 = vst.msk [vmem:[#allocation3 + $0x380] sm:$0xff] %vm1250, %v1171
  %1308 = vst.msk [vmem:[#allocation3 + $0x390] sm:$0xff] %vm1250, %v1173
  %1309 = vst.msk [vmem:[#allocation3 + $0x3a0] sm:$0xff] %vm1250, %v1175
  %1310 = vst.msk [vmem:[#allocation3 + $0x3b0] sm:$0xff] %vm1250, %v1177
  %1311 = vst.msk [vmem:[#allocation3 + $0x3c0] sm:$0xff] %vm1250, %v1179
  %1312 = vst.msk [vmem:[#allocation3 + $0x3d0] sm:$0xff] %vm1250, %v1181
  %1313 = vst.msk [vmem:[#allocation3 + $0x3e0] sm:$0xff] %vm1250, %v1183
  %1314 = vst.msk [vmem:[#allocation3 + $0x3f0] sm:$0xff] %vm1250, %v1185
  %v1315 = vld [vmem:[%s929 + $0x1] sm:$0xff]
  %v1316 = vld [vmem:[%s929 + $0x9] sm:$0xff]
  %v1317 = vld [vmem:[%s929 + $0x19] sm:$0xff]
  %v1318 = vld [vmem:[%s929 + $0x21] sm:$0xff]
  %v1319 = vld [vmem:[%s929 + $0x31] sm:$0xff]
  %v1320 = vld [vmem:[%s929 + $0x39] sm:$0xff]
  %v1321 = vld [vmem:[%s929 + $0x49] sm:$0xff]
  %v1322 = vld [vmem:[%s929 + $0x51] sm:$0xff]
  %v1323 = vld [vmem:[%s929 + $0x61] sm:$0xff]
  %v1324 = vld [vmem:[%s929 + $0x69] sm:$0xff]
  %v1325 = vld [vmem:[%s929 + $0x79] sm:$0xff]
  %v1326 = vld [vmem:[%s929 + $0x81] sm:$0xff]
  %v1327 = vld [vmem:[%s929 + $0x91] sm:$0xff]
  %v1328 = vld [vmem:[%s929 + $0x99] sm:$0xff]
  %v1329 = vld [vmem:[%s929 + $0xa9] sm:$0xff]
  %v1330 = vld [vmem:[%s929 + $0xb1] sm:$0xff]
  %v1331 = vld [vmem:[%s929 + $0xc1] sm:$0xff]
  %v1332 = vld [vmem:[%s929 + $0xc9] sm:$0xff]
  %v1333 = vld [vmem:[%s929 + $0xd9] sm:$0xff]
  %v1334 = vld [vmem:[%s929 + $0xe1] sm:$0xff]
  %v1335 = vld [vmem:[%s929 + $0xf1] sm:$0xff]
  %v1336 = vld [vmem:[%s929 + $0xf9] sm:$0xff]
  %v1337 = vld [vmem:[%s929 + $0x109] sm:$0xff]
  %v1338 = vld [vmem:[%s929 + $0x111] sm:$0xff]
  %v1339 = vld [vmem:[%s929 + $0x121] sm:$0xff]
  %v1340 = vld [vmem:[%s929 + $0x129] sm:$0xff]
  %v1341 = vld [vmem:[%s929 + $0x139] sm:$0xff]
  %v1342 = vld [vmem:[%s929 + $0x141] sm:$0xff]
  %v1343 = vld [vmem:[%s929 + $0x151] sm:$0xff]
  %v1344 = vld [vmem:[%s929 + $0x159] sm:$0xff]
  %v1345 = vld [vmem:[%s929 + $0x169] sm:$0xff]
  %v1346 = vld [vmem:[%s929 + $0x171] sm:$0xff]
  %v1347 = vld [vmem:[%s929 + $0x1b1] sm:$0xff]
  %v1348 = vld [vmem:[%s929 + $0x1b9] sm:$0xff]
  %v1349 = vld [vmem:[%s929 + $0x1c9] sm:$0xff]
  %v1350 = vld [vmem:[%s929 + $0x1d1] sm:$0xff]
  %v1351 = vld [vmem:[%s929 + $0x1e1] sm:$0xff]
  %v1352 = vld [vmem:[%s929 + $0x1e9] sm:$0xff]
  %v1353 = vld [vmem:[%s929 + $0x1f9] sm:$0xff]
  %v1354 = vld [vmem:[%s929 + $0x201] sm:$0xff]
  %v1355 = vld [vmem:[%s929 + $0x211] sm:$0xff]
  %v1356 = vld [vmem:[%s929 + $0x219] sm:$0xff]
  %v1357 = vld [vmem:[%s929 + $0x229] sm:$0xff]
  %v1358 = vld [vmem:[%s929 + $0x231] sm:$0xff]
  %v1359 = vld [vmem:[%s929 + $0x241] sm:$0xff]
  %v1360 = vld [vmem:[%s929 + $0x249] sm:$0xff]
  %v1361 = vld [vmem:[%s929 + $0x259] sm:$0xff]
  %v1362 = vld [vmem:[%s929 + $0x261] sm:$0xff]
  %v1363 = vld [vmem:[%s929 + $0x271] sm:$0xff]
  %v1364 = vld [vmem:[%s929 + $0x279] sm:$0xff]
  %v1365 = vld [vmem:[%s929 + $0x289] sm:$0xff]
  %v1366 = vld [vmem:[%s929 + $0x291] sm:$0xff]
  %v1367 = vld [vmem:[%s929 + $0x2a1] sm:$0xff]
  %v1368 = vld [vmem:[%s929 + $0x2a9] sm:$0xff]
  %v1369 = vld [vmem:[%s929 + $0x2b9] sm:$0xff]
  %v1370 = vld [vmem:[%s929 + $0x2c1] sm:$0xff]
  %v1371 = vld [vmem:[%s929 + $0x2d1] sm:$0xff]
  %v1372 = vld [vmem:[%s929 + $0x2d9] sm:$0xff]
  %v1373 = vld [vmem:[%s929 + $0x2e9] sm:$0xff]
  %v1374 = vld [vmem:[%s929 + $0x2f1] sm:$0xff]
  %v1375 = vld [vmem:[%s929 + $0x301] sm:$0xff]
  %v1376 = vld [vmem:[%s929 + $0x309] sm:$0xff]
  %v1377 = vld [vmem:[%s929 + $0x319] sm:$0xff]
  %v1378 = vld [vmem:[%s929 + $0x321] sm:$0xff]
  %1443 = vrot.lane.b32.xlu0 %v1315, 64
  %v1444 = vpop.permute.xlu0 %1443
  %1445 = vrot.lane.b32.xlu0 %v1316, 64
  %v1446 = vpop.permute.xlu0 %1445
  %1447 = vrot.lane.b32.xlu0 %v1317, 64
  %v1448 = vpop.permute.xlu0 %1447
  %1449 = vrot.lane.b32.xlu0 %v1318, 64
  %v1450 = vpop.permute.xlu0 %1449
  %1451 = vrot.lane.b32.xlu0 %v1319, 64
  %v1452 = vpop.permute.xlu0 %1451
  %1453 = vrot.lane.b32.xlu0 %v1320, 64
  %v1454 = vpop.permute.xlu0 %1453
  %1455 = vrot.lane.b32.xlu0 %v1321, 64
  %v1456 = vpop.permute.xlu0 %1455
  %1457 = vrot.lane.b32.xlu0 %v1322, 64
  %v1458 = vpop.permute.xlu0 %1457
  %1459 = vrot.lane.b32.xlu0 %v1323, 64
  %v1460 = vpop.permute.xlu0 %1459
  %1461 = vrot.lane.b32.xlu0 %v1324, 64
  %v1462 = vpop.permute.xlu0 %1461
  %1463 = vrot.lane.b32.xlu0 %v1325, 64
  %v1464 = vpop.permute.xlu0 %1463
  %1465 = vrot.lane.b32.xlu0 %v1326, 64
  %v1466 = vpop.permute.xlu0 %1465
  %1467 = vrot.lane.b32.xlu0 %v1327, 64
  %v1468 = vpop.permute.xlu0 %1467
  %1469 = vrot.lane.b32.xlu0 %v1328, 64
  %v1470 = vpop.permute.xlu0 %1469
  %1471 = vrot.lane.b32.xlu0 %v1329, 64
  %v1472 = vpop.permute.xlu0 %1471
  %1473 = vrot.lane.b32.xlu0 %v1330, 64
  %v1474 = vpop.permute.xlu0 %1473
  %1475 = vrot.lane.b32.xlu0 %v1331, 64
  %v1476 = vpop.permute.xlu0 %1475
  %1477 = vrot.lane.b32.xlu0 %v1332, 64
  %v1478 = vpop.permute.xlu0 %1477
  %1479 = vrot.lane.b32.xlu0 %v1333, 64
  %v1480 = vpop.permute.xlu0 %1479
  %1481 = vrot.lane.b32.xlu0 %v1334, 64
  %v1482 = vpop.permute.xlu0 %1481
  %1483 = vrot.lane.b32.xlu0 %v1335, 64
  %v1484 = vpop.permute.xlu0 %1483
  %1485 = vrot.lane.b32.xlu0 %v1336, 64
  %v1486 = vpop.permute.xlu0 %1485
  %1487 = vrot.lane.b32.xlu0 %v1337, 64
  %v1488 = vpop.permute.xlu0 %1487
  %1489 = vrot.lane.b32.xlu0 %v1338, 64
  %v1490 = vpop.permute.xlu0 %1489
  %1491 = vrot.lane.b32.xlu0 %v1339, 64
  %v1492 = vpop.permute.xlu0 %1491
  %1493 = vrot.lane.b32.xlu0 %v1340, 64
  %v1494 = vpop.permute.xlu0 %1493
  %1495 = vrot.lane.b32.xlu0 %v1341, 64
  %v1496 = vpop.permute.xlu0 %1495
  %1497 = vrot.lane.b32.xlu0 %v1342, 64
  %v1498 = vpop.permute.xlu0 %1497
  %1499 = vrot.lane.b32.xlu0 %v1343, 64
  %v1500 = vpop.permute.xlu0 %1499
  %1501 = vrot.lane.b32.xlu0 %v1344, 64
  %v1502 = vpop.permute.xlu0 %1501
  %1503 = vrot.lane.b32.xlu0 %v1345, 64
  %v1504 = vpop.permute.xlu0 %1503
  %1505 = vrot.lane.b32.xlu0 %v1346, 64
  %v1506 = vpop.permute.xlu0 %1505
  %1507 = vrot.lane.b32.xlu0 %v1347, 64
  %v1508 = vpop.permute.xlu0 %1507
  %1509 = vrot.lane.b32.xlu0 %v1348, 64
  %v1510 = vpop.permute.xlu0 %1509
  %1511 = vrot.lane.b32.xlu0 %v1349, 64
  %v1512 = vpop.permute.xlu0 %1511
  %1513 = vrot.lane.b32.xlu0 %v1350, 64
  %v1514 = vpop.permute.xlu0 %1513
  %1515 = vrot.lane.b32.xlu0 %v1351, 64
  %v1516 = vpop.permute.xlu0 %1515
  %1517 = vrot.lane.b32.xlu0 %v1352, 64
  %v1518 = vpop.permute.xlu0 %1517
  %1519 = vrot.lane.b32.xlu0 %v1353, 64
  %v1520 = vpop.permute.xlu0 %1519
  %1521 = vrot.lane.b32.xlu0 %v1354, 64
  %v1522 = vpop.permute.xlu0 %1521
  %1523 = vrot.lane.b32.xlu0 %v1355, 64
  %v1524 = vpop.permute.xlu0 %1523
  %1525 = vrot.lane.b32.xlu0 %v1356, 64
  %v1526 = vpop.permute.xlu0 %1525
  %1527 = vrot.lane.b32.xlu0 %v1357, 64
  %v1528 = vpop.permute.xlu0 %1527
  %1529 = vrot.lane.b32.xlu0 %v1358, 64
  %v1530 = vpop.permute.xlu0 %1529
  %1531 = vrot.lane.b32.xlu0 %v1359, 64
  %v1532 = vpop.permute.xlu0 %1531
  %1533 = vrot.lane.b32.xlu0 %v1360, 64
  %v1534 = vpop.permute.xlu0 %1533
  %1535 = vrot.lane.b32.xlu0 %v1361, 64
  %v1536 = vpop.permute.xlu0 %1535
  %1537 = vrot.lane.b32.xlu0 %v1362, 64
  %v1538 = vpop.permute.xlu0 %1537
  %1539 = vrot.lane.b32.xlu0 %v1363, 64
  %v1540 = vpop.permute.xlu0 %1539
  %1541 = vrot.lane.b32.xlu0 %v1364, 64
  %v1542 = vpop.permute.xlu0 %1541
  %1543 = vrot.lane.b32.xlu0 %v1365, 64
  %v1544 = vpop.permute.xlu0 %1543
  %1545 = vrot.lane.b32.xlu0 %v1366, 64
  %v1546 = vpop.permute.xlu0 %1545
  %1547 = vrot.lane.b32.xlu0 %v1367, 64
  %v1548 = vpop.permute.xlu0 %1547
  %1549 = vrot.lane.b32.xlu0 %v1368, 64
  %v1550 = vpop.permute.xlu0 %1549
  %1551 = vrot.lane.b32.xlu0 %v1369, 64
  %v1552 = vpop.permute.xlu0 %1551
  %1553 = vrot.lane.b32.xlu0 %v1370, 64
  %v1554 = vpop.permute.xlu0 %1553
  %1555 = vrot.lane.b32.xlu0 %v1371, 64
  %v1556 = vpop.permute.xlu0 %1555
  %1557 = vrot.lane.b32.xlu0 %v1372, 64
  %v1558 = vpop.permute.xlu0 %1557
  %1559 = vrot.lane.b32.xlu0 %v1373, 64
  %v1560 = vpop.permute.xlu0 %1559
  %1561 = vrot.lane.b32.xlu0 %v1374, 64
  %v1562 = vpop.permute.xlu0 %1561
  %1563 = vrot.lane.b32.xlu0 %v1375, 64
  %v1564 = vpop.permute.xlu0 %1563
  %1565 = vrot.lane.b32.xlu0 %v1376, 64
  %v1566 = vpop.permute.xlu0 %1565
  %1567 = vrot.lane.b32.xlu0 %v1377, 64
  %v1568 = vpop.permute.xlu0 %1567
  %1569 = vrot.lane.b32.xlu0 %v1378, 64
  %v1570 = vpop.permute.xlu0 %1569
  %vm1635 = vcmask 654848
  %1636 = vst.msk [vmem:[#allocation3] sm:$0xff] %vm1635, %v1444
  %1637 = vst.msk [vmem:[#allocation3 + $0x10] sm:$0xff] %vm1635, %v1446
  %1638 = vst.msk [vmem:[#allocation3 + $0x20] sm:$0xff] %vm1635, %v1448
  %1639 = vst.msk [vmem:[#allocation3 + $0x30] sm:$0xff] %vm1635, %v1450
  %1640 = vst.msk [vmem:[#allocation3 + $0x40] sm:$0xff] %vm1635, %v1452
  %1641 = vst.msk [vmem:[#allocation3 + $0x50] sm:$0xff] %vm1635, %v1454
  %1642 = vst.msk [vmem:[#allocation3 + $0x60] sm:$0xff] %vm1635, %v1456
  %1643 = vst.msk [vmem:[#allocation3 + $0x70] sm:$0xff] %vm1635, %v1458
  %1644 = vst.msk [vmem:[#allocation3 + $0x80] sm:$0xff] %vm1635, %v1460
  %1645 = vst.msk [vmem:[#allocation3 + $0x90] sm:$0xff] %vm1635, %v1462
  %1646 = vst.msk [vmem:[#allocation3 + $0xa0] sm:$0xff] %vm1635, %v1464
  %1647 = vst.msk [vmem:[#allocation3 + $0xb0] sm:$0xff] %vm1635, %v1466
  %1648 = vst.msk [vmem:[#allocation3 + $0xc0] sm:$0xff] %vm1635, %v1468
  %1649 = vst.msk [vmem:[#allocation3 + $0xd0] sm:$0xff] %vm1635, %v1470
  %1650 = vst.msk [vmem:[#allocation3 + $0xe0] sm:$0xff] %vm1635, %v1472
  %1651 = vst.msk [vmem:[#allocation3 + $0xf0] sm:$0xff] %vm1635, %v1474
  %1652 = vst.msk [vmem:[#allocation3 + $0x100] sm:$0xff] %vm1635, %v1476
  %1653 = vst.msk [vmem:[#allocation3 + $0x110] sm:$0xff] %vm1635, %v1478
  %1654 = vst.msk [vmem:[#allocation3 + $0x120] sm:$0xff] %vm1635, %v1480
  %1655 = vst.msk [vmem:[#allocation3 + $0x130] sm:$0xff] %vm1635, %v1482
  %1656 = vst.msk [vmem:[#allocation3 + $0x140] sm:$0xff] %vm1635, %v1484
  %1657 = vst.msk [vmem:[#allocation3 + $0x150] sm:$0xff] %vm1635, %v1486
  %1658 = vst.msk [vmem:[#allocation3 + $0x160] sm:$0xff] %vm1635, %v1488
  %1659 = vst.msk [vmem:[#allocation3 + $0x170] sm:$0xff] %vm1635, %v1490
  %1660 = vst.msk [vmem:[#allocation3 + $0x180] sm:$0xff] %vm1635, %v1492
  %1661 = vst.msk [vmem:[#allocation3 + $0x190] sm:$0xff] %vm1635, %v1494
  %1662 = vst.msk [vmem:[#allocation3 + $0x1a0] sm:$0xff] %vm1635, %v1496
  %1663 = vst.msk [vmem:[#allocation3 + $0x1b0] sm:$0xff] %vm1635, %v1498
  %1664 = vst.msk [vmem:[#allocation3 + $0x1c0] sm:$0xff] %vm1635, %v1500
  %1665 = vst.msk [vmem:[#allocation3 + $0x1d0] sm:$0xff] %vm1635, %v1502
  %1666 = vst.msk [vmem:[#allocation3 + $0x1e0] sm:$0xff] %vm1635, %v1504
  %1667 = vst.msk [vmem:[#allocation3 + $0x1f0] sm:$0xff] %vm1635, %v1506
  %1668 = vst.msk [vmem:[#allocation3 + $0x200] sm:$0xff] %vm1635, %v1508
  %1669 = vst.msk [vmem:[#allocation3 + $0x210] sm:$0xff] %vm1635, %v1510
  %1670 = vst.msk [vmem:[#allocation3 + $0x220] sm:$0xff] %vm1635, %v1512
  %1671 = vst.msk [vmem:[#allocation3 + $0x230] sm:$0xff] %vm1635, %v1514
  %1672 = vst.msk [vmem:[#allocation3 + $0x240] sm:$0xff] %vm1635, %v1516
  %1673 = vst.msk [vmem:[#allocation3 + $0x250] sm:$0xff] %vm1635, %v1518
  %1674 = vst.msk [vmem:[#allocation3 + $0x260] sm:$0xff] %vm1635, %v1520
  %1675 = vst.msk [vmem:[#allocation3 + $0x270] sm:$0xff] %vm1635, %v1522
  %1676 = vst.msk [vmem:[#allocation3 + $0x280] sm:$0xff] %vm1635, %v1524
  %1677 = vst.msk [vmem:[#allocation3 + $0x290] sm:$0xff] %vm1635, %v1526
  %1678 = vst.msk [vmem:[#allocation3 + $0x2a0] sm:$0xff] %vm1635, %v1528
  %1679 = vst.msk [vmem:[#allocation3 + $0x2b0] sm:$0xff] %vm1635, %v1530
  %1680 = vst.msk [vmem:[#allocation3 + $0x2c0] sm:$0xff] %vm1635, %v1532
  %1681 = vst.msk [vmem:[#allocation3 + $0x2d0] sm:$0xff] %vm1635, %v1534
  %1682 = vst.msk [vmem:[#allocation3 + $0x2e0] sm:$0xff] %vm1635, %v1536
  %1683 = vst.msk [vmem:[#allocation3 + $0x2f0] sm:$0xff] %vm1635, %v1538
  %1684 = vst.msk [vmem:[#allocation3 + $0x300] sm:$0xff] %vm1635, %v1540
  %1685 = vst.msk [vmem:[#allocation3 + $0x310] sm:$0xff] %vm1635, %v1542
  %1686 = vst.msk [vmem:[#allocation3 + $0x320] sm:$0xff] %vm1635, %v1544
  %1687 = vst.msk [vmem:[#allocation3 + $0x330] sm:$0xff] %vm1635, %v1546
  %1688 = vst.msk [vmem:[#allocation3 + $0x340] sm:$0xff] %vm1635, %v1548
  %1689 = vst.msk [vmem:[#allocation3 + $0x350] sm:$0xff] %vm1635, %v1550
  %1690 = vst.msk [vmem:[#allocation3 + $0x360] sm:$0xff] %vm1635, %v1552
  %1691 = vst.msk [vmem:[#allocation3 + $0x370] sm:$0xff] %vm1635, %v1554
  %1692 = vst.msk [vmem:[#allocation3 + $0x380] sm:$0xff] %vm1635, %v1556
  %1693 = vst.msk [vmem:[#allocation3 + $0x390] sm:$0xff] %vm1635, %v1558
  %1694 = vst.msk [vmem:[#allocation3 + $0x3a0] sm:$0xff] %vm1635, %v1560
  %1695 = vst.msk [vmem:[#allocation3 + $0x3b0] sm:$0xff] %vm1635, %v1562
  %1696 = vst.msk [vmem:[#allocation3 + $0x3c0] sm:$0xff] %vm1635, %v1564
  %1697 = vst.msk [vmem:[#allocation3 + $0x3d0] sm:$0xff] %vm1635, %v1566
  %1698 = vst.msk [vmem:[#allocation3 + $0x3e0] sm:$0xff] %vm1635, %v1568
  %1699 = vst.msk [vmem:[#allocation3 + $0x3f0] sm:$0xff] %vm1635, %v1570
  %v1700 = vld [vmem:[%s929 + $0x2] sm:$0xff]
  %v1701 = vld [vmem:[%s929 + $0xa] sm:$0xff]
  %v1702 = vld [vmem:[%s929 + $0x1a] sm:$0xff]
  %v1703 = vld [vmem:[%s929 + $0x22] sm:$0xff]
  %v1704 = vld [vmem:[%s929 + $0x32] sm:$0xff]
  %v1705 = vld [vmem:[%s929 + $0x3a] sm:$0xff]
  %v1706 = vld [vmem:[%s929 + $0x4a] sm:$0xff]
  %v1707 = vld [vmem:[%s929 + $0x52] sm:$0xff]
  %v1708 = vld [vmem:[%s929 + $0x62] sm:$0xff]
  %v1709 = vld [vmem:[%s929 + $0x6a] sm:$0xff]
  %v1710 = vld [vmem:[%s929 + $0x7a] sm:$0xff]
  %v1711 = vld [vmem:[%s929 + $0x82] sm:$0xff]
  %v1712 = vld [vmem:[%s929 + $0x92] sm:$0xff]
  %v1713 = vld [vmem:[%s929 + $0x9a] sm:$0xff]
  %v1714 = vld [vmem:[%s929 + $0xaa] sm:$0xff]
  %v1715 = vld [vmem:[%s929 + $0xb2] sm:$0xff]
  %v1716 = vld [vmem:[%s929 + $0xc2] sm:$0xff]
  %v1717 = vld [vmem:[%s929 + $0xca] sm:$0xff]
  %v1718 = vld [vmem:[%s929 + $0xda] sm:$0xff]
  %v1719 = vld [vmem:[%s929 + $0xe2] sm:$0xff]
  %v1720 = vld [vmem:[%s929 + $0xf2] sm:$0xff]
  %v1721 = vld [vmem:[%s929 + $0xfa] sm:$0xff]
  %v1722 = vld [vmem:[%s929 + $0x10a] sm:$0xff]
  %v1723 = vld [vmem:[%s929 + $0x112] sm:$0xff]
  %v1724 = vld [vmem:[%s929 + $0x122] sm:$0xff]
  %v1725 = vld [vmem:[%s929 + $0x12a] sm:$0xff]
  %v1726 = vld [vmem:[%s929 + $0x13a] sm:$0xff]
  %v1727 = vld [vmem:[%s929 + $0x142] sm:$0xff]
  %v1728 = vld [vmem:[%s929 + $0x152] sm:$0xff]
  %v1729 = vld [vmem:[%s929 + $0x15a] sm:$0xff]
  %v1730 = vld [vmem:[%s929 + $0x16a] sm:$0xff]
  %v1731 = vld [vmem:[%s929 + $0x172] sm:$0xff]
  %v1732 = vld [vmem:[%s929 + $0x1b2] sm:$0xff]
  %v1733 = vld [vmem:[%s929 + $0x1ba] sm:$0xff]
  %v1734 = vld [vmem:[%s929 + $0x1ca] sm:$0xff]
  %v1735 = vld [vmem:[%s929 + $0x1d2] sm:$0xff]
  %v1736 = vld [vmem:[%s929 + $0x1e2] sm:$0xff]
  %v1737 = vld [vmem:[%s929 + $0x1ea] sm:$0xff]
  %v1738 = vld [vmem:[%s929 + $0x1fa] sm:$0xff]
  %v1739 = vld [vmem:[%s929 + $0x202] sm:$0xff]
  %v1740 = vld [vmem:[%s929 + $0x212] sm:$0xff]
  %v1741 = vld [vmem:[%s929 + $0x21a] sm:$0xff]
  %v1742 = vld [vmem:[%s929 + $0x22a] sm:$0xff]
  %v1743 = vld [vmem:[%s929 + $0x232] sm:$0xff]
  %v1744 = vld [vmem:[%s929 + $0x242] sm:$0xff]
  %v1745 = vld [vmem:[%s929 + $0x24a] sm:$0xff]
  %v1746 = vld [vmem:[%s929 + $0x25a] sm:$0xff]
  %v1747 = vld [vmem:[%s929 + $0x262] sm:$0xff]
  %v1748 = vld [vmem:[%s929 + $0x272] sm:$0xff]
  %v1749 = vld [vmem:[%s929 + $0x27a] sm:$0xff]
  %v1750 = vld [vmem:[%s929 + $0x28a] sm:$0xff]
  %v1751 = vld [vmem:[%s929 + $0x292] sm:$0xff]
  %v1752 = vld [vmem:[%s929 + $0x2a2] sm:$0xff]
  %v1753 = vld [vmem:[%s929 + $0x2aa] sm:$0xff]
  %v1754 = vld [vmem:[%s929 + $0x2ba] sm:$0xff]
  %v1755 = vld [vmem:[%s929 + $0x2c2] sm:$0xff]
  %v1756 = vld [vmem:[%s929 + $0x2d2] sm:$0xff]
  %v1757 = vld [vmem:[%s929 + $0x2da] sm:$0xff]
  %v1758 = vld [vmem:[%s929 + $0x2ea] sm:$0xff]
  %v1759 = vld [vmem:[%s929 + $0x2f2] sm:$0xff]
  %v1760 = vld [vmem:[%s929 + $0x302] sm:$0xff]
  %v1761 = vld [vmem:[%s929 + $0x30a] sm:$0xff]
  %v1762 = vld [vmem:[%s929 + $0x31a] sm:$0xff]
  %v1763 = vld [vmem:[%s929 + $0x322] sm:$0xff]
  %1828 = vrot.lane.b32.xlu0 %v1700, 80
  %v1829 = vpop.permute.xlu0 %1828
  %1830 = vrot.lane.b32.xlu0 %v1701, 80
  %v1831 = vpop.permute.xlu0 %1830
  %1832 = vrot.lane.b32.xlu0 %v1702, 80
  %v1833 = vpop.permute.xlu0 %1832
  %1834 = vrot.lane.b32.xlu0 %v1703, 80
  %v1835 = vpop.permute.xlu0 %1834
  %1836 = vrot.lane.b32.xlu0 %v1704, 80
  %v1837 = vpop.permute.xlu0 %1836
  %1838 = vrot.lane.b32.xlu0 %v1705, 80
  %v1839 = vpop.permute.xlu0 %1838
  %1840 = vrot.lane.b32.xlu0 %v1706, 80
  %v1841 = vpop.permute.xlu0 %1840
  %1842 = vrot.lane.b32.xlu0 %v1707, 80
  %v1843 = vpop.permute.xlu0 %1842
  %1844 = vrot.lane.b32.xlu0 %v1708, 80
  %v1845 = vpop.permute.xlu0 %1844
  %1846 = vrot.lane.b32.xlu0 %v1709, 80
  %v1847 = vpop.permute.xlu0 %1846
  %1848 = vrot.lane.b32.xlu0 %v1710, 80
  %v1849 = vpop.permute.xlu0 %1848
  %1850 = vrot.lane.b32.xlu0 %v1711, 80
  %v1851 = vpop.permute.xlu0 %1850
  %1852 = vrot.lane.b32.xlu0 %v1712, 80
  %v1853 = vpop.permute.xlu0 %1852
  %1854 = vrot.lane.b32.xlu0 %v1713, 80
  %v1855 = vpop.permute.xlu0 %1854
  %1856 = vrot.lane.b32.xlu0 %v1714, 80
  %v1857 = vpop.permute.xlu0 %1856
  %1858 = vrot.lane.b32.xlu0 %v1715, 80
  %v1859 = vpop.permute.xlu0 %1858
  %1860 = vrot.lane.b32.xlu0 %v1716, 80
  %v1861 = vpop.permute.xlu0 %1860
  %1862 = vrot.lane.b32.xlu0 %v1717, 80
  %v1863 = vpop.permute.xlu0 %1862
  %1864 = vrot.lane.b32.xlu0 %v1718, 80
  %v1865 = vpop.permute.xlu0 %1864
  %1866 = vrot.lane.b32.xlu0 %v1719, 80
  %v1867 = vpop.permute.xlu0 %1866
  %1868 = vrot.lane.b32.xlu0 %v1720, 80
  %v1869 = vpop.permute.xlu0 %1868
  %1870 = vrot.lane.b32.xlu0 %v1721, 80
  %v1871 = vpop.permute.xlu0 %1870
  %1872 = vrot.lane.b32.xlu0 %v1722, 80
  %v1873 = vpop.permute.xlu0 %1872
  %1874 = vrot.lane.b32.xlu0 %v1723, 80
  %v1875 = vpop.permute.xlu0 %1874
  %1876 = vrot.lane.b32.xlu0 %v1724, 80
  %v1877 = vpop.permute.xlu0 %1876
  %1878 = vrot.lane.b32.xlu0 %v1725, 80
  %v1879 = vpop.permute.xlu0 %1878
  %1880 = vrot.lane.b32.xlu0 %v1726, 80
  %v1881 = vpop.permute.xlu0 %1880
  %1882 = vrot.lane.b32.xlu0 %v1727, 80
  %v1883 = vpop.permute.xlu0 %1882
  %1884 = vrot.lane.b32.xlu0 %v1728, 80
  %v1885 = vpop.permute.xlu0 %1884
  %1886 = vrot.lane.b32.xlu0 %v1729, 80
  %v1887 = vpop.permute.xlu0 %1886
  %1888 = vrot.lane.b32.xlu0 %v1730, 80
  %v1889 = vpop.permute.xlu0 %1888
  %1890 = vrot.lane.b32.xlu0 %v1731, 80
  %v1891 = vpop.permute.xlu0 %1890
  %1892 = vrot.lane.b32.xlu0 %v1732, 80
  %v1893 = vpop.permute.xlu0 %1892
  %1894 = vrot.lane.b32.xlu0 %v1733, 80
  %v1895 = vpop.permute.xlu0 %1894
  %1896 = vrot.lane.b32.xlu0 %v1734, 80
  %v1897 = vpop.permute.xlu0 %1896
  %1898 = vrot.lane.b32.xlu0 %v1735, 80
  %v1899 = vpop.permute.xlu0 %1898
  %1900 = vrot.lane.b32.xlu0 %v1736, 80
  %v1901 = vpop.permute.xlu0 %1900
  %1902 = vrot.lane.b32.xlu0 %v1737, 80
  %v1903 = vpop.permute.xlu0 %1902
  %1904 = vrot.lane.b32.xlu0 %v1738, 80
  %v1905 = vpop.permute.xlu0 %1904
  %1906 = vrot.lane.b32.xlu0 %v1739, 80
  %v1907 = vpop.permute.xlu0 %1906
  %1908 = vrot.lane.b32.xlu0 %v1740, 80
  %v1909 = vpop.permute.xlu0 %1908
  %1910 = vrot.lane.b32.xlu0 %v1741, 80
  %v1911 = vpop.permute.xlu0 %1910
  %1912 = vrot.lane.b32.xlu0 %v1742, 80
  %v1913 = vpop.permute.xlu0 %1912
  %1914 = vrot.lane.b32.xlu0 %v1743, 80
  %v1915 = vpop.permute.xlu0 %1914
  %1916 = vrot.lane.b32.xlu0 %v1744, 80
  %v1917 = vpop.permute.xlu0 %1916
  %1918 = vrot.lane.b32.xlu0 %v1745, 80
  %v1919 = vpop.permute.xlu0 %1918
  %1920 = vrot.lane.b32.xlu0 %v1746, 80
  %v1921 = vpop.permute.xlu0 %1920
  %1922 = vrot.lane.b32.xlu0 %v1747, 80
  %v1923 = vpop.permute.xlu0 %1922
  %1924 = vrot.lane.b32.xlu0 %v1748, 80
  %v1925 = vpop.permute.xlu0 %1924
  %1926 = vrot.lane.b32.xlu0 %v1749, 80
  %v1927 = vpop.permute.xlu0 %1926
  %1928 = vrot.lane.b32.xlu0 %v1750, 80
  %v1929 = vpop.permute.xlu0 %1928
  %1930 = vrot.lane.b32.xlu0 %v1751, 80
  %v1931 = vpop.permute.xlu0 %1930
  %1932 = vrot.lane.b32.xlu0 %v1752, 80
  %v1933 = vpop.permute.xlu0 %1932
  %1934 = vrot.lane.b32.xlu0 %v1753, 80
  %v1935 = vpop.permute.xlu0 %1934
  %1936 = vrot.lane.b32.xlu0 %v1754, 80
  %v1937 = vpop.permute.xlu0 %1936
  %1938 = vrot.lane.b32.xlu0 %v1755, 80
  %v1939 = vpop.permute.xlu0 %1938
  %1940 = vrot.lane.b32.xlu0 %v1756, 80
  %v1941 = vpop.permute.xlu0 %1940
  %1942 = vrot.lane.b32.xlu0 %v1757, 80
  %v1943 = vpop.permute.xlu0 %1942
  %1944 = vrot.lane.b32.xlu0 %v1758, 80
  %v1945 = vpop.permute.xlu0 %1944
  %1946 = vrot.lane.b32.xlu0 %v1759, 80
  %v1947 = vpop.permute.xlu0 %1946
  %1948 = vrot.lane.b32.xlu0 %v1760, 80
  %v1949 = vpop.permute.xlu0 %1948
  %1950 = vrot.lane.b32.xlu0 %v1761, 80
  %v1951 = vpop.permute.xlu0 %1950
  %1952 = vrot.lane.b32.xlu0 %v1762, 80
  %v1953 = vpop.permute.xlu0 %1952
  %1954 = vrot.lane.b32.xlu0 %v1763, 80
  %v1955 = vpop.permute.xlu0 %1954
  %vm2020 = vcmask 786048
  %2021 = vst.msk [vmem:[#allocation3] sm:$0xff] %vm2020, %v1829
  %2022 = vst.msk [vmem:[#allocation3 + $0x10] sm:$0xff] %vm2020, %v1831
  %2023 = vst.msk [vmem:[#allocation3 + $0x20] sm:$0xff] %vm2020, %v1833
  %2024 = vst.msk [vmem:[#allocation3 + $0x30] sm:$0xff] %vm2020, %v1835
  %2025 = vst.msk [vmem:[#allocation3 + $0x40] sm:$0xff] %vm2020, %v1837
  %2026 = vst.msk [vmem:[#allocation3 + $0x50] sm:$0xff] %vm2020, %v1839
  %2027 = vst.msk [vmem:[#allocation3 + $0x60] sm:$0xff] %vm2020, %v1841
  %2028 = vst.msk [vmem:[#allocation3 + $0x70] sm:$0xff] %vm2020, %v1843
  %2029 = vst.msk [vmem:[#allocation3 + $0x80] sm:$0xff] %vm2020, %v1845
  %2030 = vst.msk [vmem:[#allocation3 + $0x90] sm:$0xff] %vm2020, %v1847
  %2031 = vst.msk [vmem:[#allocation3 + $0xa0] sm:$0xff] %vm2020, %v1849
  %2032 = vst.msk [vmem:[#allocation3 + $0xb0] sm:$0xff] %vm2020, %v1851
  %2033 = vst.msk [vmem:[#allocation3 + $0xc0] sm:$0xff] %vm2020, %v1853
  %2034 = vst.msk [vmem:[#allocation3 + $0xd0] sm:$0xff] %vm2020, %v1855
  %2035 = vst.msk [vmem:[#allocation3 + $0xe0] sm:$0xff] %vm2020, %v1857
  %2036 = vst.msk [vmem:[#allocation3 + $0xf0] sm:$0xff] %vm2020, %v1859
  %2037 = vst.msk [vmem:[#allocation3 + $0x100] sm:$0xff] %vm2020, %v1861
  %2038 = vst.msk [vmem:[#allocation3 + $0x110] sm:$0xff] %vm2020, %v1863
  %2039 = vst.msk [vmem:[#allocation3 + $0x120] sm:$0xff] %vm2020, %v1865
  %2040 = vst.msk [vmem:[#allocation3 + $0x130] sm:$0xff] %vm2020, %v1867
  %2041 = vst.msk [vmem:[#allocation3 + $0x140] sm:$0xff] %vm2020, %v1869
  %2042 = vst.msk [vmem:[#allocation3 + $0x150] sm:$0xff] %vm2020, %v1871
  %2043 = vst.msk [vmem:[#allocation3 + $0x160] sm:$0xff] %vm2020, %v1873
  %2044 = vst.msk [vmem:[#allocation3 + $0x170] sm:$0xff] %vm2020, %v1875
  %2045 = vst.msk [vmem:[#allocation3 + $0x180] sm:$0xff] %vm2020, %v1877
  %2046 = vst.msk [vmem:[#allocation3 + $0x190] sm:$0xff] %vm2020, %v1879
  %2047 = vst.msk [vmem:[#allocation3 + $0x1a0] sm:$0xff] %vm2020, %v1881
  %2048 = vst.msk [vmem:[#allocation3 + $0x1b0] sm:$0xff] %vm2020, %v1883
  %2049 = vst.msk [vmem:[#allocation3 + $0x1c0] sm:$0xff] %vm2020, %v1885
  %2050 = vst.msk [vmem:[#allocation3 + $0x1d0] sm:$0xff] %vm2020, %v1887
  %2051 = vst.msk [vmem:[#allocation3 + $0x1e0] sm:$0xff] %vm2020, %v1889
  %2052 = vst.msk [vmem:[#allocation3 + $0x1f0] sm:$0xff] %vm2020, %v1891
  %2053 = vst.msk [vmem:[#allocation3 + $0x200] sm:$0xff] %vm2020, %v1893
  %2054 = vst.msk [vmem:[#allocation3 + $0x210] sm:$0xff] %vm2020, %v1895
  %2055 = vst.msk [vmem:[#allocation3 + $0x220] sm:$0xff] %vm2020, %v1897
  %2056 = vst.msk [vmem:[#allocation3 + $0x230] sm:$0xff] %vm2020, %v1899
  %2057 = vst.msk [vmem:[#allocation3 + $0x240] sm:$0xff] %vm2020, %v1901
  %2058 = vst.msk [vmem:[#allocation3 + $0x250] sm:$0xff] %vm2020, %v1903
  %2059 = vst.msk [vmem:[#allocation3 + $0x260] sm:$0xff] %vm2020, %v1905
  %2060 = vst.msk [vmem:[#allocation3 + $0x270] sm:$0xff] %vm2020, %v1907
  %2061 = vst.msk [vmem:[#allocation3 + $0x280] sm:$0xff] %vm2020, %v1909
  %2062 = vst.msk [vmem:[#allocation3 + $0x290] sm:$0xff] %vm2020, %v1911
  %2063 = vst.msk [vmem:[#allocation3 + $0x2a0] sm:$0xff] %vm2020, %v1913
  %2064 = vst.msk [vmem:[#allocation3 + $0x2b0] sm:$0xff] %vm2020, %v1915
  %2065 = vst.msk [vmem:[#allocation3 + $0x2c0] sm:$0xff] %vm2020, %v1917
  %2066 = vst.msk [vmem:[#allocation3 + $0x2d0] sm:$0xff] %vm2020, %v1919
  %2067 = vst.msk [vmem:[#allocation3 + $0x2e0] sm:$0xff] %vm2020, %v1921
  %2068 = vst.msk [vmem:[#allocation3 + $0x2f0] sm:$0xff] %vm2020, %v1923
  %2069 = vst.msk [vmem:[#allocation3 + $0x300] sm:$0xff] %vm2020, %v1925
  %2070 = vst.msk [vmem:[#allocation3 + $0x310] sm:$0xff] %vm2020, %v1927
  %2071 = vst.msk [vmem:[#allocation3 + $0x320] sm:$0xff] %vm2020, %v1929
  %2072 = vst.msk [vmem:[#allocation3 + $0x330] sm:$0xff] %vm2020, %v1931
  %2073 = vst.msk [vmem:[#allocation3 + $0x340] sm:$0xff] %vm2020, %v1933
  %2074 = vst.msk [vmem:[#allocation3 + $0x350] sm:$0xff] %vm2020, %v1935
  %2075 = vst.msk [vmem:[#allocation3 + $0x360] sm:$0xff] %vm2020, %v1937
  %2076 = vst.msk [vmem:[#allocation3 + $0x370] sm:$0xff] %vm2020, %v1939
  %2077 = vst.msk [vmem:[#allocation3 + $0x380] sm:$0xff] %vm2020, %v1941
  %2078 = vst.msk [vmem:[#allocation3 + $0x390] sm:$0xff] %vm2020, %v1943
  %2079 = vst.msk [vmem:[#allocation3 + $0x3a0] sm:$0xff] %vm2020, %v1945
  %2080 = vst.msk [vmem:[#allocation3 + $0x3b0] sm:$0xff] %vm2020, %v1947
  %2081 = vst.msk [vmem:[#allocation3 + $0x3c0] sm:$0xff] %vm2020, %v1949
  %2082 = vst.msk [vmem:[#allocation3 + $0x3d0] sm:$0xff] %vm2020, %v1951
  %2083 = vst.msk [vmem:[#allocation3 + $0x3e0] sm:$0xff] %vm2020, %v1953
  %2084 = vst.msk [vmem:[#allocation3 + $0x3f0] sm:$0xff] %vm2020, %v1955
  %s2085 = scalar_lea.vmem %s0, 48
  %v2086 = vld [vmem:[%s2085] sm:$0xff]
  %v2087 = vld [vmem:[%s2085 + $0x8] sm:$0xff]
  %v2088 = vld [vmem:[%s2085 + $0x18] sm:$0xff]
  %v2089 = vld [vmem:[%s2085 + $0x20] sm:$0xff]
  %v2090 = vld [vmem:[%s2085 + $0x30] sm:$0xff]
  %v2091 = vld [vmem:[%s2085 + $0x38] sm:$0xff]
  %v2092 = vld [vmem:[%s2085 + $0x48] sm:$0xff]
  %v2093 = vld [vmem:[%s2085 + $0x50] sm:$0xff]
  %v2094 = vld [vmem:[%s2085 + $0x60] sm:$0xff]
  %v2095 = vld [vmem:[%s2085 + $0x68] sm:$0xff]
  %v2096 = vld [vmem:[%s2085 + $0x78] sm:$0xff]
  %v2097 = vld [vmem:[%s2085 + $0x80] sm:$0xff]
  %v2098 = vld [vmem:[%s2085 + $0x90] sm:$0xff]
  %v2099 = vld [vmem:[%s2085 + $0x98] sm:$0xff]
  %v2100 = vld [vmem:[%s2085 + $0xa8] sm:$0xff]
  %v2101 = vld [vmem:[%s2085 + $0xb0] sm:$0xff]
  %v2102 = vld [vmem:[%s2085 + $0xc0] sm:$0xff]
  %v2103 = vld [vmem:[%s2085 + $0xc8] sm:$0xff]
  %v2104 = vld [vmem:[%s2085 + $0xd8] sm:$0xff]
  %v2105 = vld [vmem:[%s2085 + $0xe0] sm:$0xff]
  %v2106 = vld [vmem:[%s2085 + $0xf0] sm:$0xff]
  %v2107 = vld [vmem:[%s2085 + $0xf8] sm:$0xff]
  %v2108 = vld [vmem:[%s2085 + $0x108] sm:$0xff]
  %v2109 = vld [vmem:[%s2085 + $0x110] sm:$0xff]
  %v2110 = vld [vmem:[%s2085 + $0x120] sm:$0xff]
  %v2111 = vld [vmem:[%s2085 + $0x128] sm:$0xff]
  %v2112 = vld [vmem:[%s2085 + $0x138] sm:$0xff]
  %v2113 = vld [vmem:[%s2085 + $0x140] sm:$0xff]
  %v2114 = vld [vmem:[%s2085 + $0x150] sm:$0xff]
  %v2115 = vld [vmem:[%s2085 + $0x158] sm:$0xff]
  %v2116 = vld [vmem:[%s2085 + $0x168] sm:$0xff]
  %v2117 = vld [vmem:[%s2085 + $0x170] sm:$0xff]
  %v2118 = vld [vmem:[%s2085 + $0x1b0] sm:$0xff]
  %v2119 = vld [vmem:[%s2085 + $0x1b8] sm:$0xff]
  %v2120 = vld [vmem:[%s2085 + $0x1c8] sm:$0xff]
  %v2121 = vld [vmem:[%s2085 + $0x1d0] sm:$0xff]
  %v2122 = vld [vmem:[%s2085 + $0x1e0] sm:$0xff]
  %v2123 = vld [vmem:[%s2085 + $0x1e8] sm:$0xff]
  %v2124 = vld [vmem:[%s2085 + $0x1f8] sm:$0xff]
  %v2125 = vld [vmem:[%s2085 + $0x200] sm:$0xff]
  %v2126 = vld [vmem:[%s2085 + $0x210] sm:$0xff]
  %v2127 = vld [vmem:[%s2085 + $0x218] sm:$0xff]
  %v2128 = vld [vmem:[%s2085 + $0x228] sm:$0xff]
  %v2129 = vld [vmem:[%s2085 + $0x230] sm:$0xff]
  %v2130 = vld [vmem:[%s2085 + $0x240] sm:$0xff]
  %v2131 = vld [vmem:[%s2085 + $0x248] sm:$0xff]
  %v2132 = vld [vmem:[%s2085 + $0x258] sm:$0xff]
  %v2133 = vld [vmem:[%s2085 + $0x260] sm:$0xff]
  %v2134 = vld [vmem:[%s2085 + $0x270] sm:$0xff]
  %v2135 = vld [vmem:[%s2085 + $0x278] sm:$0xff]
  %v2136 = vld [vmem:[%s2085 + $0x288] sm:$0xff]
  %v2137 = vld [vmem:[%s2085 + $0x290] sm:$0xff]
  %v2138 = vld [vmem:[%s2085 + $0x2a0] sm:$0xff]
  %v2139 = vld [vmem:[%s2085 + $0x2a8] sm:$0xff]
  %v2140 = vld [vmem:[%s2085 + $0x2b8] sm:$0xff]
  %v2141 = vld [vmem:[%s2085 + $0x2c0] sm:$0xff]
  %v2142 = vld [vmem:[%s2085 + $0x2d0] sm:$0xff]
  %v2143 = vld [vmem:[%s2085 + $0x2d8] sm:$0xff]
  %v2144 = vld [vmem:[%s2085 + $0x2e8] sm:$0xff]
  %v2145 = vld [vmem:[%s2085 + $0x2f0] sm:$0xff]
  %v2146 = vld [vmem:[%s2085 + $0x300] sm:$0xff]
  %v2147 = vld [vmem:[%s2085 + $0x308] sm:$0xff]
  %v2148 = vld [vmem:[%s2085 + $0x318] sm:$0xff]
  %v2149 = vld [vmem:[%s2085 + $0x320] sm:$0xff]
  %2214 = vrot.lane.b32.xlu0 %v2086, 96
  %v2215 = vpop.permute.xlu0 %2214
  %2216 = vrot.lane.b32.xlu0 %v2087, 96
  %v2217 = vpop.permute.xlu0 %2216
  %2218 = vrot.lane.b32.xlu0 %v2088, 96
  %v2219 = vpop.permute.xlu0 %2218
  %2220 = vrot.lane.b32.xlu0 %v2089, 96
  %v2221 = vpop.permute.xlu0 %2220
  %2222 = vrot.lane.b32.xlu0 %v2090, 96
  %v2223 = vpop.permute.xlu0 %2222
  %2224 = vrot.lane.b32.xlu0 %v2091, 96
  %v2225 = vpop.permute.xlu0 %2224
  %2226 = vrot.lane.b32.xlu0 %v2092, 96
  %v2227 = vpop.permute.xlu0 %2226
  %2228 = vrot.lane.b32.xlu0 %v2093, 96
  %v2229 = vpop.permute.xlu0 %2228
  %2230 = vrot.lane.b32.xlu0 %v2094, 96
  %v2231 = vpop.permute.xlu0 %2230
  %2232 = vrot.lane.b32.xlu0 %v2095, 96
  %v2233 = vpop.permute.xlu0 %2232
  %2234 = vrot.lane.b32.xlu0 %v2096, 96
  %v2235 = vpop.permute.xlu0 %2234
  %2236 = vrot.lane.b32.xlu0 %v2097, 96
  %v2237 = vpop.permute.xlu0 %2236
  %2238 = vrot.lane.b32.xlu0 %v2098, 96
  %v2239 = vpop.permute.xlu0 %2238
  %2240 = vrot.lane.b32.xlu0 %v2099, 96
  %v2241 = vpop.permute.xlu0 %2240
  %2242 = vrot.lane.b32.xlu0 %v2100, 96
  %v2243 = vpop.permute.xlu0 %2242
  %2244 = vrot.lane.b32.xlu0 %v2101, 96
  %v2245 = vpop.permute.xlu0 %2244
  %2246 = vrot.lane.b32.xlu0 %v2102, 96
  %v2247 = vpop.permute.xlu0 %2246
  %2248 = vrot.lane.b32.xlu0 %v2103, 96
  %v2249 = vpop.permute.xlu0 %2248
  %2250 = vrot.lane.b32.xlu0 %v2104, 96
  %v2251 = vpop.permute.xlu0 %2250
  %2252 = vrot.lane.b32.xlu0 %v2105, 96
  %v2253 = vpop.permute.xlu0 %2252
  %2254 = vrot.lane.b32.xlu0 %v2106, 96
  %v2255 = vpop.permute.xlu0 %2254
  %2256 = vrot.lane.b32.xlu0 %v2107, 96
  %v2257 = vpop.permute.xlu0 %2256
  %2258 = vrot.lane.b32.xlu0 %v2108, 96
  %v2259 = vpop.permute.xlu0 %2258
  %2260 = vrot.lane.b32.xlu0 %v2109, 96
  %v2261 = vpop.permute.xlu0 %2260
  %2262 = vrot.lane.b32.xlu0 %v2110, 96
  %v2263 = vpop.permute.xlu0 %2262
  %2264 = vrot.lane.b32.xlu0 %v2111, 96
  %v2265 = vpop.permute.xlu0 %2264
  %2266 = vrot.lane.b32.xlu0 %v2112, 96
  %v2267 = vpop.permute.xlu0 %2266
  %2268 = vrot.lane.b32.xlu0 %v2113, 96
  %v2269 = vpop.permute.xlu0 %2268
  %2270 = vrot.lane.b32.xlu0 %v2114, 96
  %v2271 = vpop.permute.xlu0 %2270
  %2272 = vrot.lane.b32.xlu0 %v2115, 96
  %v2273 = vpop.permute.xlu0 %2272
  %2274 = vrot.lane.b32.xlu0 %v2116, 96
  %v2275 = vpop.permute.xlu0 %2274
  %2276 = vrot.lane.b32.xlu0 %v2117, 96
  %v2277 = vpop.permute.xlu0 %2276
  %2278 = vrot.lane.b32.xlu0 %v2118, 96
  %v2279 = vpop.permute.xlu0 %2278
  %2280 = vrot.lane.b32.xlu0 %v2119, 96
  %v2281 = vpop.permute.xlu0 %2280
  %2282 = vrot.lane.b32.xlu0 %v2120, 96
  %v2283 = vpop.permute.xlu0 %2282
  %2284 = vrot.lane.b32.xlu0 %v2121, 96
  %v2285 = vpop.permute.xlu0 %2284
  %2286 = vrot.lane.b32.xlu0 %v2122, 96
  %v2287 = vpop.permute.xlu0 %2286
  %2288 = vrot.lane.b32.xlu0 %v2123, 96
  %v2289 = vpop.permute.xlu0 %2288
  %2290 = vrot.lane.b32.xlu0 %v2124, 96
  %v2291 = vpop.permute.xlu0 %2290
  %2292 = vrot.lane.b32.xlu0 %v2125, 96
  %v2293 = vpop.permute.xlu0 %2292
  %2294 = vrot.lane.b32.xlu0 %v2126, 96
  %v2295 = vpop.permute.xlu0 %2294
  %2296 = vrot.lane.b32.xlu0 %v2127, 96
  %v2297 = vpop.permute.xlu0 %2296
  %2298 = vrot.lane.b32.xlu0 %v2128, 96
  %v2299 = vpop.permute.xlu0 %2298
  %2300 = vrot.lane.b32.xlu0 %v2129, 96
  %v2301 = vpop.permute.xlu0 %2300
  %2302 = vrot.lane.b32.xlu0 %v2130, 96
  %v2303 = vpop.permute.xlu0 %2302
  %2304 = vrot.lane.b32.xlu0 %v2131, 96
  %v2305 = vpop.permute.xlu0 %2304
  %2306 = vrot.lane.b32.xlu0 %v2132, 96
  %v2307 = vpop.permute.xlu0 %2306
  %2308 = vrot.lane.b32.xlu0 %v2133, 96
  %v2309 = vpop.permute.xlu0 %2308
  %2310 = vrot.lane.b32.xlu0 %v2134, 96
  %v2311 = vpop.permute.xlu0 %2310
  %2312 = vrot.lane.b32.xlu0 %v2135, 96
  %v2313 = vpop.permute.xlu0 %2312
  %2314 = vrot.lane.b32.xlu0 %v2136, 96
  %v2315 = vpop.permute.xlu0 %2314
  %2316 = vrot.lane.b32.xlu0 %v2137, 96
  %v2317 = vpop.permute.xlu0 %2316
  %2318 = vrot.lane.b32.xlu0 %v2138, 96
  %v2319 = vpop.permute.xlu0 %2318
  %2320 = vrot.lane.b32.xlu0 %v2139, 96
  %v2321 = vpop.permute.xlu0 %2320
  %2322 = vrot.lane.b32.xlu0 %v2140, 96
  %v2323 = vpop.permute.xlu0 %2322
  %2324 = vrot.lane.b32.xlu0 %v2141, 96
  %v2325 = vpop.permute.xlu0 %2324
  %2326 = vrot.lane.b32.xlu0 %v2142, 96
  %v2327 = vpop.permute.xlu0 %2326
  %2328 = vrot.lane.b32.xlu0 %v2143, 96
  %v2329 = vpop.permute.xlu0 %2328
  %2330 = vrot.lane.b32.xlu0 %v2144, 96
  %v2331 = vpop.permute.xlu0 %2330
  %2332 = vrot.lane.b32.xlu0 %v2145, 96
  %v2333 = vpop.permute.xlu0 %2332
  %2334 = vrot.lane.b32.xlu0 %v2146, 96
  %v2335 = vpop.permute.xlu0 %2334
  %2336 = vrot.lane.b32.xlu0 %v2147, 96
  %v2337 = vpop.permute.xlu0 %2336
  %2338 = vrot.lane.b32.xlu0 %v2148, 96
  %v2339 = vpop.permute.xlu0 %2338
  %2340 = vrot.lane.b32.xlu0 %v2149, 96
  %v2341 = vpop.permute.xlu0 %2340
  %vm2406 = vcmask 917248
  %2407 = vst.msk [vmem:[#allocation3] sm:$0xff] %vm2406, %v2215
  %2408 = vst.msk [vmem:[#allocation3 + $0x10] sm:$0xff] %vm2406, %v2217
  %2409 = vst.msk [vmem:[#allocation3 + $0x20] sm:$0xff] %vm2406, %v2219
  %2410 = vst.msk [vmem:[#allocation3 + $0x30] sm:$0xff] %vm2406, %v2221
  %2411 = vst.msk [vmem:[#allocation3 + $0x40] sm:$0xff] %vm2406, %v2223
  %2412 = vst.msk [vmem:[#allocation3 + $0x50] sm:$0xff] %vm2406, %v2225
  %2413 = vst.msk [vmem:[#allocation3 + $0x60] sm:$0xff] %vm2406, %v2227
  %2414 = vst.msk [vmem:[#allocation3 + $0x70] sm:$0xff] %vm2406, %v2229
  %2415 = vst.msk [vmem:[#allocation3 + $0x80] sm:$0xff] %vm2406, %v2231
  %2416 = vst.msk [vmem:[#allocation3 + $0x90] sm:$0xff] %vm2406, %v2233
  %2417 = vst.msk [vmem:[#allocation3 + $0xa0] sm:$0xff] %vm2406, %v2235
  %2418 = vst.msk [vmem:[#allocation3 + $0xb0] sm:$0xff] %vm2406, %v2237
  %2419 = vst.msk [vmem:[#allocation3 + $0xc0] sm:$0xff] %vm2406, %v2239
  %2420 = vst.msk [vmem:[#allocation3 + $0xd0] sm:$0xff] %vm2406, %v2241
  %2421 = vst.msk [vmem:[#allocation3 + $0xe0] sm:$0xff] %vm2406, %v2243
  %2422 = vst.msk [vmem:[#allocation3 + $0xf0] sm:$0xff] %vm2406, %v2245
  %2423 = vst.msk [vmem:[#allocation3 + $0x100] sm:$0xff] %vm2406, %v2247
  %2424 = vst.msk [vmem:[#allocation3 + $0x110] sm:$0xff] %vm2406, %v2249
  %2425 = vst.msk [vmem:[#allocation3 + $0x120] sm:$0xff] %vm2406, %v2251
  %2426 = vst.msk [vmem:[#allocation3 + $0x130] sm:$0xff] %vm2406, %v2253
  %2427 = vst.msk [vmem:[#allocation3 + $0x140] sm:$0xff] %vm2406, %v2255
  %2428 = vst.msk [vmem:[#allocation3 + $0x150] sm:$0xff] %vm2406, %v2257
  %2429 = vst.msk [vmem:[#allocation3 + $0x160] sm:$0xff] %vm2406, %v2259
  %2430 = vst.msk [vmem:[#allocation3 + $0x170] sm:$0xff] %vm2406, %v2261
  %2431 = vst.msk [vmem:[#allocation3 + $0x180] sm:$0xff] %vm2406, %v2263
  %2432 = vst.msk [vmem:[#allocation3 + $0x190] sm:$0xff] %vm2406, %v2265
  %2433 = vst.msk [vmem:[#allocation3 + $0x1a0] sm:$0xff] %vm2406, %v2267
  %2434 = vst.msk [vmem:[#allocation3 + $0x1b0] sm:$0xff] %vm2406, %v2269
  %2435 = vst.msk [vmem:[#allocation3 + $0x1c0] sm:$0xff] %vm2406, %v2271
  %2436 = vst.msk [vmem:[#allocation3 + $0x1d0] sm:$0xff] %vm2406, %v2273
  %2437 = vst.msk [vmem:[#allocation3 + $0x1e0] sm:$0xff] %vm2406, %v2275
  %2438 = vst.msk [vmem:[#allocation3 + $0x1f0] sm:$0xff] %vm2406, %v2277
  %2439 = vst.msk [vmem:[#allocation3 + $0x200] sm:$0xff] %vm2406, %v2279
  %2440 = vst.msk [vmem:[#allocation3 + $0x210] sm:$0xff] %vm2406, %v2281
  %2441 = vst.msk [vmem:[#allocation3 + $0x220] sm:$0xff] %vm2406, %v2283
  %2442 = vst.msk [vmem:[#allocation3 + $0x230] sm:$0xff] %vm2406, %v2285
  %2443 = vst.msk [vmem:[#allocation3 + $0x240] sm:$0xff] %vm2406, %v2287
  %2444 = vst.msk [vmem:[#allocation3 + $0x250] sm:$0xff] %vm2406, %v2289
  %2445 = vst.msk [vmem:[#allocation3 + $0x260] sm:$0xff] %vm2406, %v2291
  %2446 = vst.msk [vmem:[#allocation3 + $0x270] sm:$0xff] %vm2406, %v2293
  %2447 = vst.msk [vmem:[#allocation3 + $0x280] sm:$0xff] %vm2406, %v2295
  %2448 = vst.msk [vmem:[#allocation3 + $0x290] sm:$0xff] %vm2406, %v2297
  %2449 = vst.msk [vmem:[#allocation3 + $0x2a0] sm:$0xff] %vm2406, %v2299
  %2450 = vst.msk [vmem:[#allocation3 + $0x2b0] sm:$0xff] %vm2406, %v2301
  %2451 = vst.msk [vmem:[#allocation3 + $0x2c0] sm:$0xff] %vm2406, %v2303
  %2452 = vst.msk [vmem:[#allocation3 + $0x2d0] sm:$0xff] %vm2406, %v2305
  %2453 = vst.msk [vmem:[#allocation3 + $0x2e0] sm:$0xff] %vm2406, %v2307
  %2454 = vst.msk [vmem:[#allocation3 + $0x2f0] sm:$0xff] %vm2406, %v2309
  %2455 = vst.msk [vmem:[#allocation3 + $0x300] sm:$0xff] %vm2406, %v2311
  %2456 = vst.msk [vmem:[#allocation3 + $0x310] sm:$0xff] %vm2406, %v2313
  %2457 = vst.msk [vmem:[#allocation3 + $0x320] sm:$0xff] %vm2406, %v2315
  %2458 = vst.msk [vmem:[#allocation3 + $0x330] sm:$0xff] %vm2406, %v2317
  %2459 = vst.msk [vmem:[#allocation3 + $0x340] sm:$0xff] %vm2406, %v2319
  %2460 = vst.msk [vmem:[#allocation3 + $0x350] sm:$0xff] %vm2406, %v2321
  %2461 = vst.msk [vmem:[#allocation3 + $0x360] sm:$0xff] %vm2406, %v2323
  %2462 = vst.msk [vmem:[#allocation3 + $0x370] sm:$0xff] %vm2406, %v2325
  %2463 = vst.msk [vmem:[#allocation3 + $0x380] sm:$0xff] %vm2406, %v2327
  %2464 = vst.msk [vmem:[#allocation3 + $0x390] sm:$0xff] %vm2406, %v2329
  %2465 = vst.msk [vmem:[#allocation3 + $0x3a0] sm:$0xff] %vm2406, %v2331
  %2466 = vst.msk [vmem:[#allocation3 + $0x3b0] sm:$0xff] %vm2406, %v2333
  %2467 = vst.msk [vmem:[#allocation3 + $0x3c0] sm:$0xff] %vm2406, %v2335
  %2468 = vst.msk [vmem:[#allocation3 + $0x3d0] sm:$0xff] %vm2406, %v2337
  %2469 = vst.msk [vmem:[#allocation3 + $0x3e0] sm:$0xff] %vm2406, %v2339
  %2470 = vst.msk [vmem:[#allocation3 + $0x3f0] sm:$0xff] %vm2406, %v2341
  %v2471 = vld [vmem:[%s2085 + $0x1] sm:$0xff]
  %v2472 = vld [vmem:[%s2085 + $0x9] sm:$0xff]
  %v2473 = vld [vmem:[%s2085 + $0x19] sm:$0xff]
  %v2474 = vld [vmem:[%s2085 + $0x21] sm:$0xff]
  %v2475 = vld [vmem:[%s2085 + $0x31] sm:$0xff]
  %v2476 = vld [vmem:[%s2085 + $0x39] sm:$0xff]
  %v2477 = vld [vmem:[%s2085 + $0x49] sm:$0xff]
  %v2478 = vld [vmem:[%s2085 + $0x51] sm:$0xff]
  %v2479 = vld [vmem:[%s2085 + $0x61] sm:$0xff]
  %v2480 = vld [vmem:[%s2085 + $0x69] sm:$0xff]
  %v2481 = vld [vmem:[%s2085 + $0x79] sm:$0xff]
  %v2482 = vld [vmem:[%s2085 + $0x81] sm:$0xff]
  %v2483 = vld [vmem:[%s2085 + $0x91] sm:$0xff]
  %v2484 = vld [vmem:[%s2085 + $0x99] sm:$0xff]
  %v2485 = vld [vmem:[%s2085 + $0xa9] sm:$0xff]
  %v2486 = vld [vmem:[%s2085 + $0xb1] sm:$0xff]
  %v2487 = vld [vmem:[%s2085 + $0xc1] sm:$0xff]
  %v2488 = vld [vmem:[%s2085 + $0xc9] sm:$0xff]
  %v2489 = vld [vmem:[%s2085 + $0xd9] sm:$0xff]
  %v2490 = vld [vmem:[%s2085 + $0xe1] sm:$0xff]
  %v2491 = vld [vmem:[%s2085 + $0xf1] sm:$0xff]
  %v2492 = vld [vmem:[%s2085 + $0xf9] sm:$0xff]
  %v2493 = vld [vmem:[%s2085 + $0x109] sm:$0xff]
  %v2494 = vld [vmem:[%s2085 + $0x111] sm:$0xff]
  %v2495 = vld [vmem:[%s2085 + $0x121] sm:$0xff]
  %v2496 = vld [vmem:[%s2085 + $0x129] sm:$0xff]
  %v2497 = vld [vmem:[%s2085 + $0x139] sm:$0xff]
  %v2498 = vld [vmem:[%s2085 + $0x141] sm:$0xff]
  %v2499 = vld [vmem:[%s2085 + $0x151] sm:$0xff]
  %v2500 = vld [vmem:[%s2085 + $0x159] sm:$0xff]
  %v2501 = vld [vmem:[%s2085 + $0x169] sm:$0xff]
  %v2502 = vld [vmem:[%s2085 + $0x171] sm:$0xff]
  %v2503 = vld [vmem:[%s2085 + $0x1b1] sm:$0xff]
  %v2504 = vld [vmem:[%s2085 + $0x1b9] sm:$0xff]
  %v2505 = vld [vmem:[%s2085 + $0x1c9] sm:$0xff]
  %v2506 = vld [vmem:[%s2085 + $0x1d1] sm:$0xff]
  %v2507 = vld [vmem:[%s2085 + $0x1e1] sm:$0xff]
  %v2508 = vld [vmem:[%s2085 + $0x1e9] sm:$0xff]
  %v2509 = vld [vmem:[%s2085 + $0x1f9] sm:$0xff]
  %v2510 = vld [vmem:[%s2085 + $0x201] sm:$0xff]
  %v2511 = vld [vmem:[%s2085 + $0x211] sm:$0xff]
  %v2512 = vld [vmem:[%s2085 + $0x219] sm:$0xff]
  %v2513 = vld [vmem:[%s2085 + $0x229] sm:$0xff]
  %v2514 = vld [vmem:[%s2085 + $0x231] sm:$0xff]
  %v2515 = vld [vmem:[%s2085 + $0x241] sm:$0xff]
  %v2516 = vld [vmem:[%s2085 + $0x249] sm:$0xff]
  %v2517 = vld [vmem:[%s2085 + $0x259] sm:$0xff]
  %v2518 = vld [vmem:[%s2085 + $0x261] sm:$0xff]
  %v2519 = vld [vmem:[%s2085 + $0x271] sm:$0xff]
  %v2520 = vld [vmem:[%s2085 + $0x279] sm:$0xff]
  %v2521 = vld [vmem:[%s2085 + $0x289] sm:$0xff]
  %v2522 = vld [vmem:[%s2085 + $0x291] sm:$0xff]
  %v2523 = vld [vmem:[%s2085 + $0x2a1] sm:$0xff]
  %v2524 = vld [vmem:[%s2085 + $0x2a9] sm:$0xff]
  %v2525 = vld [vmem:[%s2085 + $0x2b9] sm:$0xff]
  %v2526 = vld [vmem:[%s2085 + $0x2c1] sm:$0xff]
  %v2527 = vld [vmem:[%s2085 + $0x2d1] sm:$0xff]
  %v2528 = vld [vmem:[%s2085 + $0x2d9] sm:$0xff]
  %v2529 = vld [vmem:[%s2085 + $0x2e9] sm:$0xff]
  %v2530 = vld [vmem:[%s2085 + $0x2f1] sm:$0xff]
  %v2531 = vld [vmem:[%s2085 + $0x301] sm:$0xff]
  %v2532 = vld [vmem:[%s2085 + $0x309] sm:$0xff]
  %v2533 = vld [vmem:[%s2085 + $0x319] sm:$0xff]
  %v2534 = vld [vmem:[%s2085 + $0x321] sm:$0xff]
  %2599 = vrot.lane.b32.xlu0 %v2471, 112
  %v2600 = vpop.permute.xlu0 %2599
  %2601 = vrot.lane.b32.xlu0 %v2472, 112
  %v2602 = vpop.permute.xlu0 %2601
  %2603 = vrot.lane.b32.xlu0 %v2473, 112
  %v2604 = vpop.permute.xlu0 %2603
  %2605 = vrot.lane.b32.xlu0 %v2474, 112
  %v2606 = vpop.permute.xlu0 %2605
  %2607 = vrot.lane.b32.xlu0 %v2475, 112
  %v2608 = vpop.permute.xlu0 %2607
  %2609 = vrot.lane.b32.xlu0 %v2476, 112
  %v2610 = vpop.permute.xlu0 %2609
  %2611 = vrot.lane.b32.xlu0 %v2477, 112
  %v2612 = vpop.permute.xlu0 %2611
  %2613 = vrot.lane.b32.xlu0 %v2478, 112
  %v2614 = vpop.permute.xlu0 %2613
  %2615 = vrot.lane.b32.xlu0 %v2479, 112
  %v2616 = vpop.permute.xlu0 %2615
  %2617 = vrot.lane.b32.xlu0 %v2480, 112
  %v2618 = vpop.permute.xlu0 %2617
  %2619 = vrot.lane.b32.xlu0 %v2481, 112
  %v2620 = vpop.permute.xlu0 %2619
  %2621 = vrot.lane.b32.xlu0 %v2482, 112
  %v2622 = vpop.permute.xlu0 %2621
  %2623 = vrot.lane.b32.xlu0 %v2483, 112
  %v2624 = vpop.permute.xlu0 %2623
  %2625 = vrot.lane.b32.xlu0 %v2484, 112
  %v2626 = vpop.permute.xlu0 %2625
  %2627 = vrot.lane.b32.xlu0 %v2485, 112
  %v2628 = vpop.permute.xlu0 %2627
  %2629 = vrot.lane.b32.xlu0 %v2486, 112
  %v2630 = vpop.permute.xlu0 %2629
  %2631 = vrot.lane.b32.xlu0 %v2487, 112
  %v2632 = vpop.permute.xlu0 %2631
  %2633 = vrot.lane.b32.xlu0 %v2488, 112
  %v2634 = vpop.permute.xlu0 %2633
  %2635 = vrot.lane.b32.xlu0 %v2489, 112
  %v2636 = vpop.permute.xlu0 %2635
  %2637 = vrot.lane.b32.xlu0 %v2490, 112
  %v2638 = vpop.permute.xlu0 %2637
  %2639 = vrot.lane.b32.xlu0 %v2491, 112
  %v2640 = vpop.permute.xlu0 %2639
  %2641 = vrot.lane.b32.xlu0 %v2492, 112
  %v2642 = vpop.permute.xlu0 %2641
  %2643 = vrot.lane.b32.xlu0 %v2493, 112
  %v2644 = vpop.permute.xlu0 %2643
  %2645 = vrot.lane.b32.xlu0 %v2494, 112
  %v2646 = vpop.permute.xlu0 %2645
  %2647 = vrot.lane.b32.xlu0 %v2495, 112
  %v2648 = vpop.permute.xlu0 %2647
  %2649 = vrot.lane.b32.xlu0 %v2496, 112
  %v2650 = vpop.permute.xlu0 %2649
  %2651 = vrot.lane.b32.xlu0 %v2497, 112
  %v2652 = vpop.permute.xlu0 %2651
  %2653 = vrot.lane.b32.xlu0 %v2498, 112
  %v2654 = vpop.permute.xlu0 %2653
  %2655 = vrot.lane.b32.xlu0 %v2499, 112
  %v2656 = vpop.permute.xlu0 %2655
  %2657 = vrot.lane.b32.xlu0 %v2500, 112
  %v2658 = vpop.permute.xlu0 %2657
  %2659 = vrot.lane.b32.xlu0 %v2501, 112
  %v2660 = vpop.permute.xlu0 %2659
  %2661 = vrot.lane.b32.xlu0 %v2502, 112
  %v2662 = vpop.permute.xlu0 %2661
  %2663 = vrot.lane.b32.xlu0 %v2503, 112
  %v2664 = vpop.permute.xlu0 %2663
  %2665 = vrot.lane.b32.xlu0 %v2504, 112
  %v2666 = vpop.permute.xlu0 %2665
  %2667 = vrot.lane.b32.xlu0 %v2505, 112
  %v2668 = vpop.permute.xlu0 %2667
  %2669 = vrot.lane.b32.xlu0 %v2506, 112
  %v2670 = vpop.permute.xlu0 %2669
  %2671 = vrot.lane.b32.xlu0 %v2507, 112
  %v2672 = vpop.permute.xlu0 %2671
  %2673 = vrot.lane.b32.xlu0 %v2508, 112
  %v2674 = vpop.permute.xlu0 %2673
  %2675 = vrot.lane.b32.xlu0 %v2509, 112
  %v2676 = vpop.permute.xlu0 %2675
  %2677 = vrot.lane.b32.xlu0 %v2510, 112
  %v2678 = vpop.permute.xlu0 %2677
  %2679 = vrot.lane.b32.xlu0 %v2511, 112
  %v2680 = vpop.permute.xlu0 %2679
  %2681 = vrot.lane.b32.xlu0 %v2512, 112
  %v2682 = vpop.permute.xlu0 %2681
  %2683 = vrot.lane.b32.xlu0 %v2513, 112
  %v2684 = vpop.permute.xlu0 %2683
  %2685 = vrot.lane.b32.xlu0 %v2514, 112
  %v2686 = vpop.permute.xlu0 %2685
  %2687 = vrot.lane.b32.xlu0 %v2515, 112
  %v2688 = vpop.permute.xlu0 %2687
  %2689 = vrot.lane.b32.xlu0 %v2516, 112
  %v2690 = vpop.permute.xlu0 %2689
  %2691 = vrot.lane.b32.xlu0 %v2517, 112
  %v2692 = vpop.permute.xlu0 %2691
  %2693 = vrot.lane.b32.xlu0 %v2518, 112
  %v2694 = vpop.permute.xlu0 %2693
  %2695 = vrot.lane.b32.xlu0 %v2519, 112
  %v2696 = vpop.permute.xlu0 %2695
  %2697 = vrot.lane.b32.xlu0 %v2520, 112
  %v2698 = vpop.permute.xlu0 %2697
  %2699 = vrot.lane.b32.xlu0 %v2521, 112
  %v2700 = vpop.permute.xlu0 %2699
  %2701 = vrot.lane.b32.xlu0 %v2522, 112
  %v2702 = vpop.permute.xlu0 %2701
  %2703 = vrot.lane.b32.xlu0 %v2523, 112
  %v2704 = vpop.permute.xlu0 %2703
  %2705 = vrot.lane.b32.xlu0 %v2524, 112
  %v2706 = vpop.permute.xlu0 %2705
  %2707 = vrot.lane.b32.xlu0 %v2525, 112
  %v2708 = vpop.permute.xlu0 %2707
  %2709 = vrot.lane.b32.xlu0 %v2526, 112
  %v2710 = vpop.permute.xlu0 %2709
  %2711 = vrot.lane.b32.xlu0 %v2527, 112
  %v2712 = vpop.permute.xlu0 %2711
  %2713 = vrot.lane.b32.xlu0 %v2528, 112
  %v2714 = vpop.permute.xlu0 %2713
  %2715 = vrot.lane.b32.xlu0 %v2529, 112
  %v2716 = vpop.permute.xlu0 %2715
  %2717 = vrot.lane.b32.xlu0 %v2530, 112
  %v2718 = vpop.permute.xlu0 %2717
  %2719 = vrot.lane.b32.xlu0 %v2531, 112
  %v2720 = vpop.permute.xlu0 %2719
  %2721 = vrot.lane.b32.xlu0 %v2532, 112
  %v2722 = vpop.permute.xlu0 %2721
  %2723 = vrot.lane.b32.xlu0 %v2533, 112
  %v2724 = vpop.permute.xlu0 %2723
  %2725 = vrot.lane.b32.xlu0 %v2534, 112
  %v2726 = vpop.permute.xlu0 %2725
  %vm2791 = vcmask 1048448
  %2792 = vst.msk [vmem:[#allocation3] sm:$0xff] %vm2791, %v2600
  %2793 = vst.msk [vmem:[#allocation3 + $0x10] sm:$0xff] %vm2791, %v2602
  %2794 = vst.msk [vmem:[#allocation3 + $0x20] sm:$0xff] %vm2791, %v2604
  %2795 = vst.msk [vmem:[#allocation3 + $0x30] sm:$0xff] %vm2791, %v2606
  %2796 = vst.msk [vmem:[#allocation3 + $0x40] sm:$0xff] %vm2791, %v2608
  %2797 = vst.msk [vmem:[#allocation3 + $0x50] sm:$0xff] %vm2791, %v2610
  %2798 = vst.msk [vmem:[#allocation3 + $0x60] sm:$0xff] %vm2791, %v2612
  %2799 = vst.msk [vmem:[#allocation3 + $0x70] sm:$0xff] %vm2791, %v2614
  %2800 = vst.msk [vmem:[#allocation3 + $0x80] sm:$0xff] %vm2791, %v2616
  %2801 = vst.msk [vmem:[#allocation3 + $0x90] sm:$0xff] %vm2791, %v2618
  %2802 = vst.msk [vmem:[#allocation3 + $0xa0] sm:$0xff] %vm2791, %v2620
  %2803 = vst.msk [vmem:[#allocation3 + $0xb0] sm:$0xff] %vm2791, %v2622
  %2804 = vst.msk [vmem:[#allocation3 + $0xc0] sm:$0xff] %vm2791, %v2624
  %2805 = vst.msk [vmem:[#allocation3 + $0xd0] sm:$0xff] %vm2791, %v2626
  %2806 = vst.msk [vmem:[#allocation3 + $0xe0] sm:$0xff] %vm2791, %v2628
  %2807 = vst.msk [vmem:[#allocation3 + $0xf0] sm:$0xff] %vm2791, %v2630
  %2808 = vst.msk [vmem:[#allocation3 + $0x100] sm:$0xff] %vm2791, %v2632
  %2809 = vst.msk [vmem:[#allocation3 + $0x110] sm:$0xff] %vm2791, %v2634
  %2810 = vst.msk [vmem:[#allocation3 + $0x120] sm:$0xff] %vm2791, %v2636
  %2811 = vst.msk [vmem:[#allocation3 + $0x130] sm:$0xff] %vm2791, %v2638
  %2812 = vst.msk [vmem:[#allocation3 + $0x140] sm:$0xff] %vm2791, %v2640
  %2813 = vst.msk [vmem:[#allocation3 + $0x150] sm:$0xff] %vm2791, %v2642
  %2814 = vst.msk [vmem:[#allocation3 + $0x160] sm:$0xff] %vm2791, %v2644
  %2815 = vst.msk [vmem:[#allocation3 + $0x170] sm:$0xff] %vm2791, %v2646
  %2816 = vst.msk [vmem:[#allocation3 + $0x180] sm:$0xff] %vm2791, %v2648
  %2817 = vst.msk [vmem:[#allocation3 + $0x190] sm:$0xff] %vm2791, %v2650
  %2818 = vst.msk [vmem:[#allocation3 + $0x1a0] sm:$0xff] %vm2791, %v2652
  %2819 = vst.msk [vmem:[#allocation3 + $0x1b0] sm:$0xff] %vm2791, %v2654
  %2820 = vst.msk [vmem:[#allocation3 + $0x1c0] sm:$0xff] %vm2791, %v2656
  %2821 = vst.msk [vmem:[#allocation3 + $0x1d0] sm:$0xff] %vm2791, %v2658
  %2822 = vst.msk [vmem:[#allocation3 + $0x1e0] sm:$0xff] %vm2791, %v2660
  %2823 = vst.msk [vmem:[#allocation3 + $0x1f0] sm:$0xff] %vm2791, %v2662
  %2824 = vst.msk [vmem:[#allocation3 + $0x200] sm:$0xff] %vm2791, %v2664
  %2825 = vst.msk [vmem:[#allocation3 + $0x210] sm:$0xff] %vm2791, %v2666
  %2826 = vst.msk [vmem:[#allocation3 + $0x220] sm:$0xff] %vm2791, %v2668
  %2827 = vst.msk [vmem:[#allocation3 + $0x230] sm:$0xff] %vm2791, %v2670
  %2828 = vst.msk [vmem:[#allocation3 + $0x240] sm:$0xff] %vm2791, %v2672
  %2829 = vst.msk [vmem:[#allocation3 + $0x250] sm:$0xff] %vm2791, %v2674
  %2830 = vst.msk [vmem:[#allocation3 + $0x260] sm:$0xff] %vm2791, %v2676
  %2831 = vst.msk [vmem:[#allocation3 + $0x270] sm:$0xff] %vm2791, %v2678
  %2832 = vst.msk [vmem:[#allocation3 + $0x280] sm:$0xff] %vm2791, %v2680
  %2833 = vst.msk [vmem:[#allocation3 + $0x290] sm:$0xff] %vm2791, %v2682
  %2834 = vst.msk [vmem:[#allocation3 + $0x2a0] sm:$0xff] %vm2791, %v2684
  %2835 = vst.msk [vmem:[#allocation3 + $0x2b0] sm:$0xff] %vm2791, %v2686
  %2836 = vst.msk [vmem:[#allocation3 + $0x2c0] sm:$0xff] %vm2791, %v2688
  %2837 = vst.msk [vmem:[#allocation3 + $0x2d0] sm:$0xff] %vm2791, %v2690
  %2838 = vst.msk [vmem:[#allocation3 + $0x2e0] sm:$0xff] %vm2791, %v2692
  %2839 = vst.msk [vmem:[#allocation3 + $0x2f0] sm:$0xff] %vm2791, %v2694
  %2840 = vst.msk [vmem:[#allocation3 + $0x300] sm:$0xff] %vm2791, %v2696
  %2841 = vst.msk [vmem:[#allocation3 + $0x310] sm:$0xff] %vm2791, %v2698
  %2842 = vst.msk [vmem:[#allocation3 + $0x320] sm:$0xff] %vm2791, %v2700
  %2843 = vst.msk [vmem:[#allocation3 + $0x330] sm:$0xff] %vm2791, %v2702
  %2844 = vst.msk [vmem:[#allocation3 + $0x340] sm:$0xff] %vm2791, %v2704
  %2845 = vst.msk [vmem:[#allocation3 + $0x350] sm:$0xff] %vm2791, %v2706
  %2846 = vst.msk [vmem:[#allocation3 + $0x360] sm:$0xff] %vm2791, %v2708
  %2847 = vst.msk [vmem:[#allocation3 + $0x370] sm:$0xff] %vm2791, %v2710
  %2848 = vst.msk [vmem:[#allocation3 + $0x380] sm:$0xff] %vm2791, %v2712
  %2849 = vst.msk [vmem:[#allocation3 + $0x390] sm:$0xff] %vm2791, %v2714
  %2850 = vst.msk [vmem:[#allocation3 + $0x3a0] sm:$0xff] %vm2791, %v2716
  %2851 = vst.msk [vmem:[#allocation3 + $0x3b0] sm:$0xff] %vm2791, %v2718
  %2852 = vst.msk [vmem:[#allocation3 + $0x3c0] sm:$0xff] %vm2791, %v2720
  %2853 = vst.msk [vmem:[#allocation3 + $0x3d0] sm:$0xff] %vm2791, %v2722
  %2854 = vst.msk [vmem:[#allocation3 + $0x3e0] sm:$0xff] %vm2791, %v2724
  %2855 = vst.msk [vmem:[#allocation3 + $0x3f0] sm:$0xff] %vm2791, %v2726
  %v2856 = vld [vmem:[%s2085 + $0x2] sm:$0xff]
  %v2857 = vld [vmem:[%s2085 + $0xa] sm:$0xff]
  %v2858 = vld [vmem:[%s2085 + $0x1a] sm:$0xff]
  %v2859 = vld [vmem:[%s2085 + $0x22] sm:$0xff]
  %v2860 = vld [vmem:[%s2085 + $0x32] sm:$0xff]
  %v2861 = vld [vmem:[%s2085 + $0x3a] sm:$0xff]
  %v2862 = vld [vmem:[%s2085 + $0x4a] sm:$0xff]
  %v2863 = vld [vmem:[%s2085 + $0x52] sm:$0xff]
  %v2864 = vld [vmem:[%s2085 + $0x62] sm:$0xff]
  %v2865 = vld [vmem:[%s2085 + $0x6a] sm:$0xff]
  %v2866 = vld [vmem:[%s2085 + $0x7a] sm:$0xff]
  %v2867 = vld [vmem:[%s2085 + $0x82] sm:$0xff]
  %v2868 = vld [vmem:[%s2085 + $0x92] sm:$0xff]
  %v2869 = vld [vmem:[%s2085 + $0x9a] sm:$0xff]
  %v2870 = vld [vmem:[%s2085 + $0xaa] sm:$0xff]
  %v2871 = vld [vmem:[%s2085 + $0xb2] sm:$0xff]
  %v2872 = vld [vmem:[%s2085 + $0xc2] sm:$0xff]
  %v2873 = vld [vmem:[%s2085 + $0xca] sm:$0xff]
  %v2874 = vld [vmem:[%s2085 + $0xda] sm:$0xff]
  %v2875 = vld [vmem:[%s2085 + $0xe2] sm:$0xff]
  %v2876 = vld [vmem:[%s2085 + $0xf2] sm:$0xff]
  %v2877 = vld [vmem:[%s2085 + $0xfa] sm:$0xff]
  %v2878 = vld [vmem:[%s2085 + $0x10a] sm:$0xff]
  %v2879 = vld [vmem:[%s2085 + $0x112] sm:$0xff]
  %v2880 = vld [vmem:[%s2085 + $0x122] sm:$0xff]
  %v2881 = vld [vmem:[%s2085 + $0x12a] sm:$0xff]
  %v2882 = vld [vmem:[%s2085 + $0x13a] sm:$0xff]
  %v2883 = vld [vmem:[%s2085 + $0x142] sm:$0xff]
  %v2884 = vld [vmem:[%s2085 + $0x152] sm:$0xff]
  %v2885 = vld [vmem:[%s2085 + $0x15a] sm:$0xff]
  %v2886 = vld [vmem:[%s2085 + $0x16a] sm:$0xff]
  %v2887 = vld [vmem:[%s2085 + $0x172] sm:$0xff]
  %v2888 = vld [vmem:[%s2085 + $0x1b2] sm:$0xff]
  %v2889 = vld [vmem:[%s2085 + $0x1ba] sm:$0xff]
  %v2890 = vld [vmem:[%s2085 + $0x1ca] sm:$0xff]
  %v2891 = vld [vmem:[%s2085 + $0x1d2] sm:$0xff]
  %v2892 = vld [vmem:[%s2085 + $0x1e2] sm:$0xff]
  %v2893 = vld [vmem:[%s2085 + $0x1ea] sm:$0xff]
  %v2894 = vld [vmem:[%s2085 + $0x1fa] sm:$0xff]
  %v2895 = vld [vmem:[%s2085 + $0x202] sm:$0xff]
  %v2896 = vld [vmem:[%s2085 + $0x212] sm:$0xff]
  %v2897 = vld [vmem:[%s2085 + $0x21a] sm:$0xff]
  %v2898 = vld [vmem:[%s2085 + $0x22a] sm:$0xff]
  %v2899 = vld [vmem:[%s2085 + $0x232] sm:$0xff]
  %v2900 = vld [vmem:[%s2085 + $0x242] sm:$0xff]
  %v2901 = vld [vmem:[%s2085 + $0x24a] sm:$0xff]
  %v2902 = vld [vmem:[%s2085 + $0x25a] sm:$0xff]
  %v2903 = vld [vmem:[%s2085 + $0x262] sm:$0xff]
  %v2904 = vld [vmem:[%s2085 + $0x272] sm:$0xff]
  %v2905 = vld [vmem:[%s2085 + $0x27a] sm:$0xff]
  %v2906 = vld [vmem:[%s2085 + $0x28a] sm:$0xff]
  %v2907 = vld [vmem:[%s2085 + $0x292] sm:$0xff]
  %v2908 = vld [vmem:[%s2085 + $0x2a2] sm:$0xff]
  %v2909 = vld [vmem:[%s2085 + $0x2aa] sm:$0xff]
  %v2910 = vld [vmem:[%s2085 + $0x2ba] sm:$0xff]
  %v2911 = vld [vmem:[%s2085 + $0x2c2] sm:$0xff]
  %v2912 = vld [vmem:[%s2085 + $0x2d2] sm:$0xff]
  %v2913 = vld [vmem:[%s2085 + $0x2da] sm:$0xff]
  %v2914 = vld [vmem:[%s2085 + $0x2ea] sm:$0xff]
  %v2915 = vld [vmem:[%s2085 + $0x2f2] sm:$0xff]
  %v2916 = vld [vmem:[%s2085 + $0x302] sm:$0xff]
  %v2917 = vld [vmem:[%s2085 + $0x30a] sm:$0xff]
  %v2918 = vld [vmem:[%s2085 + $0x31a] sm:$0xff]
  %v2919 = vld [vmem:[%s2085 + $0x322] sm:$0xff]
  %2920 = vst.msk [vmem:[#allocation3 + $0x8] sm:$0xff] %vm94, %v2856
  %2921 = vst.msk [vmem:[#allocation3 + $0x18] sm:$0xff] %vm94, %v2857
  %2922 = vst.msk [vmem:[#allocation3 + $0x28] sm:$0xff] %vm94, %v2858
  %2923 = vst.msk [vmem:[#allocation3 + $0x38] sm:$0xff] %vm94, %v2859
  %2924 = vst.msk [vmem:[#allocation3 + $0x48] sm:$0xff] %vm94, %v2860
  %2925 = vst.msk [vmem:[#allocation3 + $0x58] sm:$0xff] %vm94, %v2861
  %2926 = vst.msk [vmem:[#allocation3 + $0x68] sm:$0xff] %vm94, %v2862
  %2927 = vst.msk [vmem:[#allocation3 + $0x78] sm:$0xff] %vm94, %v2863
  %2928 = vst.msk [vmem:[#allocation3 + $0x88] sm:$0xff] %vm94, %v2864
  %2929 = vst.msk [vmem:[#allocation3 + $0x98] sm:$0xff] %vm94, %v2865
  %2930 = vst.msk [vmem:[#allocation3 + $0xa8] sm:$0xff] %vm94, %v2866
  %2931 = vst.msk [vmem:[#allocation3 + $0xb8] sm:$0xff] %vm94, %v2867
  %2932 = vst.msk [vmem:[#allocation3 + $0xc8] sm:$0xff] %vm94, %v2868
  %2933 = vst.msk [vmem:[#allocation3 + $0xd8] sm:$0xff] %vm94, %v2869
  %2934 = vst.msk [vmem:[#allocation3 + $0xe8] sm:$0xff] %vm94, %v2870
  %2935 = vst.msk [vmem:[#allocation3 + $0xf8] sm:$0xff] %vm94, %v2871
  %2936 = vst.msk [vmem:[#allocation3 + $0x108] sm:$0xff] %vm94, %v2872
  %2937 = vst.msk [vmem:[#allocation3 + $0x118] sm:$0xff] %vm94, %v2873
  %2938 = vst.msk [vmem:[#allocation3 + $0x128] sm:$0xff] %vm94, %v2874
  %2939 = vst.msk [vmem:[#allocation3 + $0x138] sm:$0xff] %vm94, %v2875
  %2940 = vst.msk [vmem:[#allocation3 + $0x148] sm:$0xff] %vm94, %v2876
  %2941 = vst.msk [vmem:[#allocation3 + $0x158] sm:$0xff] %vm94, %v2877
  %2942 = vst.msk [vmem:[#allocation3 + $0x168] sm:$0xff] %vm94, %v2878
  %2943 = vst.msk [vmem:[#allocation3 + $0x178] sm:$0xff] %vm94, %v2879
  %2944 = vst.msk [vmem:[#allocation3 + $0x188] sm:$0xff] %vm94, %v2880
  %2945 = vst.msk [vmem:[#allocation3 + $0x198] sm:$0xff] %vm94, %v2881
  %2946 = vst.msk [vmem:[#allocation3 + $0x1a8] sm:$0xff] %vm94, %v2882
  %2947 = vst.msk [vmem:[#allocation3 + $0x1b8] sm:$0xff] %vm94, %v2883
  %2948 = vst.msk [vmem:[#allocation3 + $0x1c8] sm:$0xff] %vm94, %v2884
  %2949 = vst.msk [vmem:[#allocation3 + $0x1d8] sm:$0xff] %vm94, %v2885
  %2950 = vst.msk [vmem:[#allocation3 + $0x1e8] sm:$0xff] %vm94, %v2886
  %2951 = vst.msk [vmem:[#allocation3 + $0x1f8] sm:$0xff] %vm94, %v2887
  %2952 = vst.msk [vmem:[#allocation3 + $0x208] sm:$0xff] %vm94, %v2888
  %2953 = vst.msk [vmem:[#allocation3 + $0x218] sm:$0xff] %vm94, %v2889
  %2954 = vst.msk [vmem:[#allocation3 + $0x228] sm:$0xff] %vm94, %v2890
  %2955 = vst.msk [vmem:[#allocation3 + $0x238] sm:$0xff] %vm94, %v2891
  %2956 = vst.msk [vmem:[#allocation3 + $0x248] sm:$0xff] %vm94, %v2892
  %2957 = vst.msk [vmem:[#allocation3 + $0x258] sm:$0xff] %vm94, %v2893
  %2958 = vst.msk [vmem:[#allocation3 + $0x268] sm:$0xff] %vm94, %v2894
  %2959 = vst.msk [vmem:[#allocation3 + $0x278] sm:$0xff] %vm94, %v2895
  %2960 = vst.msk [vmem:[#allocation3 + $0x288] sm:$0xff] %vm94, %v2896
  %2961 = vst.msk [vmem:[#allocation3 + $0x298] sm:$0xff] %vm94, %v2897
  %2962 = vst.msk [vmem:[#allocation3 + $0x2a8] sm:$0xff] %vm94, %v2898
  %2963 = vst.msk [vmem:[#allocation3 + $0x2b8] sm:$0xff] %vm94, %v2899
  %2964 = vst.msk [vmem:[#allocation3 + $0x2c8] sm:$0xff] %vm94, %v2900
  %2965 = vst.msk [vmem:[#allocation3 + $0x2d8] sm:$0xff] %vm94, %v2901
  %2966 = vst.msk [vmem:[#allocation3 + $0x2e8] sm:$0xff] %vm94, %v2902
  %2967 = vst.msk [vmem:[#allocation3 + $0x2f8] sm:$0xff] %vm94, %v2903
  %2968 = vst.msk [vmem:[#allocation3 + $0x308] sm:$0xff] %vm94, %v2904
  %2969 = vst.msk [vmem:[#allocation3 + $0x318] sm:$0xff] %vm94, %v2905
  %2970 = vst.msk [vmem:[#allocation3 + $0x328] sm:$0xff] %vm94, %v2906
  %2971 = vst.msk [vmem:[#allocation3 + $0x338] sm:$0xff] %vm94, %v2907
  %2972 = vst.msk [vmem:[#allocation3 + $0x348] sm:$0xff] %vm94, %v2908
  %2973 = vst.msk [vmem:[#allocation3 + $0x358] sm:$0xff] %vm94, %v2909
  %2974 = vst.msk [vmem:[#allocation3 + $0x368] sm:$0xff] %vm94, %v2910
  %2975 = vst.msk [vmem:[#allocation3 + $0x378] sm:$0xff] %vm94, %v2911
  %2976 = vst.msk [vmem:[#allocation3 + $0x388] sm:$0xff] %vm94, %v2912
  %2977 = vst.msk [vmem:[#allocation3 + $0x398] sm:$0xff] %vm94, %v2913
  %2978 = vst.msk [vmem:[#allocation3 + $0x3a8] sm:$0xff] %vm94, %v2914
  %2979 = vst.msk [vmem:[#allocation3 + $0x3b8] sm:$0xff] %vm94, %v2915
  %2980 = vst.msk [vmem:[#allocation3 + $0x3c8] sm:$0xff] %vm94, %v2916
  %2981 = vst.msk [vmem:[#allocation3 + $0x3d8] sm:$0xff] %vm94, %v2917
  %2982 = vst.msk [vmem:[#allocation3 + $0x3e8] sm:$0xff] %vm94, %v2918
  %2983 = vst.msk [vmem:[#allocation3 + $0x3f8] sm:$0xff] %vm94, %v2919
  %v2984 = vld [vmem:[#allocation3] sm:$0xff]
  %v2985 = vld [vmem:[#allocation3 + $0x8] sm:$0xff]
  %v2986 = vld [vmem:[#allocation3 + $0x10] sm:$0xff]
  %v2987 = vld [vmem:[#allocation3 + $0x18] sm:$0xff]
  %v2988 = vld [vmem:[#allocation3 + $0x20] sm:$0xff]
  %v2989 = vld [vmem:[#allocation3 + $0x28] sm:$0xff]
  %v2990 = vld [vmem:[#allocation3 + $0x30] sm:$0xff]
  %v2991 = vld [vmem:[#allocation3 + $0x38] sm:$0xff]
  %v2992 = vld [vmem:[#allocation3 + $0x40] sm:$0xff]
  %v2993 = vld [vmem:[#allocation3 + $0x48] sm:$0xff]
  %v2994 = vld [vmem:[#allocation3 + $0x50] sm:$0xff]
  %v2995 = vld [vmem:[#allocation3 + $0x58] sm:$0xff]
  %v2996 = vld [vmem:[#allocation3 + $0x60] sm:$0xff]
  %v2997 = vld [vmem:[#allocation3 + $0x68] sm:$0xff]
  %v2998 = vld [vmem:[#allocation3 + $0x70] sm:$0xff]
  %v2999 = vld [vmem:[#allocation3 + $0x78] sm:$0xff]
  %v3000 = vld [vmem:[#allocation3 + $0x80] sm:$0xff]
  %v3001 = vld [vmem:[#allocation3 + $0x88] sm:$0xff]
  %v3002 = vld [vmem:[#allocation3 + $0x90] sm:$0xff]
  %v3003 = vld [vmem:[#allocation3 + $0x98] sm:$0xff]
  %v3004 = vld [vmem:[#allocation3 + $0xa0] sm:$0xff]
  %v3005 = vld [vmem:[#allocation3 + $0xa8] sm:$0xff]
  %v3006 = vld [vmem:[#allocation3 + $0xb0] sm:$0xff]
  %v3007 = vld [vmem:[#allocation3 + $0xb8] sm:$0xff]
  %v3008 = vld [vmem:[#allocation3 + $0xc0] sm:$0xff]
  %v3009 = vld [vmem:[#allocation3 + $0xc8] sm:$0xff]
  %v3010 = vld [vmem:[#allocation3 + $0xd0] sm:$0xff]
  %v3011 = vld [vmem:[#allocation3 + $0xd8] sm:$0xff]
  %v3012 = vld [vmem:[#allocation3 + $0xe0] sm:$0xff]
  %v3013 = vld [vmem:[#allocation3 + $0xe8] sm:$0xff]
  %v3014 = vld [vmem:[#allocation3 + $0xf0] sm:$0xff]
  %v3015 = vld [vmem:[#allocation3 + $0xf8] sm:$0xff]
  %v3016 = vld [vmem:[#allocation3 + $0x100] sm:$0xff]
  %v3017 = vld [vmem:[#allocation3 + $0x108] sm:$0xff]
  %v3018 = vld [vmem:[#allocation3 + $0x110] sm:$0xff]
  %v3019 = vld [vmem:[#allocation3 + $0x118] sm:$0xff]
  %v3020 = vld [vmem:[#allocation3 + $0x120] sm:$0xff]
  %v3021 = vld [vmem:[#allocation3 + $0x128] sm:$0xff]
  %v3022 = vld [vmem:[#allocation3 + $0x130] sm:$0xff]
  %v3023 = vld [vmem:[#allocation3 + $0x138] sm:$0xff]
  %v3024 = vld [vmem:[#allocation3 + $0x140] sm:$0xff]
  %v3025 = vld [vmem:[#allocation3 + $0x148] sm:$0xff]
  %v3026 = vld [vmem:[#allocation3 + $0x150] sm:$0xff]
  %v3027 = vld [vmem:[#allocation3 + $0x158] sm:$0xff]
  %v3028 = vld [vmem:[#allocation3 + $0x160] sm:$0xff]
  %v3029 = vld [vmem:[#allocation3 + $0x168] sm:$0xff]
  %v3030 = vld [vmem:[#allocation3 + $0x170] sm:$0xff]
  %v3031 = vld [vmem:[#allocation3 + $0x178] sm:$0xff]
  %v3032 = vld [vmem:[#allocation3 + $0x180] sm:$0xff]
  %v3033 = vld [vmem:[#allocation3 + $0x188] sm:$0xff]
  %v3034 = vld [vmem:[#allocation3 + $0x190] sm:$0xff]
  %v3035 = vld [vmem:[#allocation3 + $0x198] sm:$0xff]
  %v3036 = vld [vmem:[#allocation3 + $0x1a0] sm:$0xff]
  %v3037 = vld [vmem:[#allocation3 + $0x1a8] sm:$0xff]
  %v3038 = vld [vmem:[#allocation3 + $0x1b0] sm:$0xff]
  %v3039 = vld [vmem:[#allocation3 + $0x1b8] sm:$0xff]
  %v3040 = vld [vmem:[#allocation3 + $0x1c0] sm:$0xff]
  %v3041 = vld [vmem:[#allocation3 + $0x1c8] sm:$0xff]
  %v3042 = vld [vmem:[#allocation3 + $0x1d0] sm:$0xff]
  %v3043 = vld [vmem:[#allocation3 + $0x1d8] sm:$0xff]
  %v3044 = vld [vmem:[#allocation3 + $0x1e0] sm:$0xff]
  %v3045 = vld [vmem:[#allocation3 + $0x1e8] sm:$0xff]
  %v3046 = vld [vmem:[#allocation3 + $0x1f0] sm:$0xff]
  %v3047 = vld [vmem:[#allocation3 + $0x1f8] sm:$0xff]
  %v3048 = vld [vmem:[#allocation3 + $0x200] sm:$0xff]
  %v3049 = vld [vmem:[#allocation3 + $0x208] sm:$0xff]
  %v3050 = vld [vmem:[#allocation3 + $0x210] sm:$0xff]
  %v3051 = vld [vmem:[#allocation3 + $0x218] sm:$0xff]
  %v3052 = vld [vmem:[#allocation3 + $0x220] sm:$0xff]
  %v3053 = vld [vmem:[#allocation3 + $0x228] sm:$0xff]
  %v3054 = vld [vmem:[#allocation3 + $0x230] sm:$0xff]
  %v3055 = vld [vmem:[#allocation3 + $0x238] sm:$0xff]
  %v3056 = vld [vmem:[#allocation3 + $0x240] sm:$0xff]
  %v3057 = vld [vmem:[#allocation3 + $0x248] sm:$0xff]
  %v3058 = vld [vmem:[#allocation3 + $0x250] sm:$0xff]
  %v3059 = vld [vmem:[#allocation3 + $0x258] sm:$0xff]
  %v3060 = vld [vmem:[#allocation3 + $0x260] sm:$0xff]
  %v3061 = vld [vmem:[#allocation3 + $0x268] sm:$0xff]
  %v3062 = vld [vmem:[#allocation3 + $0x270] sm:$0xff]
  %v3063 = vld [vmem:[#allocation3 + $0x278] sm:$0xff]
  %v3064 = vld [vmem:[#allocation3 + $0x280] sm:$0xff]
  %v3065 = vld [vmem:[#allocation3 + $0x288] sm:$0xff]
  %v3066 = vld [vmem:[#allocation3 + $0x290] sm:$0xff]
  %v3067 = vld [vmem:[#allocation3 + $0x298] sm:$0xff]
  %v3068 = vld [vmem:[#allocation3 + $0x2a0] sm:$0xff]
  %v3069 = vld [vmem:[#allocation3 + $0x2a8] sm:$0xff]
  %v3070 = vld [vmem:[#allocation3 + $0x2b0] sm:$0xff]
  %v3071 = vld [vmem:[#allocation3 + $0x2b8] sm:$0xff]
  %v3072 = vld [vmem:[#allocation3 + $0x2c0] sm:$0xff]
  %v3073 = vld [vmem:[#allocation3 + $0x2c8] sm:$0xff]
  %v3074 = vld [vmem:[#allocation3 + $0x2d0] sm:$0xff]
  %v3075 = vld [vmem:[#allocation3 + $0x2d8] sm:$0xff]
  %v3076 = vld [vmem:[#allocation3 + $0x2e0] sm:$0xff]
  %v3077 = vld [vmem:[#allocation3 + $0x2e8] sm:$0xff]
  %v3078 = vld [vmem:[#allocation3 + $0x2f0] sm:$0xff]
  %v3079 = vld [vmem:[#allocation3 + $0x2f8] sm:$0xff]
  %v3080 = vld [vmem:[#allocation3 + $0x300] sm:$0xff]
  %v3081 = vld [vmem:[#allocation3 + $0x308] sm:$0xff]
  %v3082 = vld [vmem:[#allocation3 + $0x310] sm:$0xff]
  %v3083 = vld [vmem:[#allocation3 + $0x318] sm:$0xff]
  %v3084 = vld [vmem:[#allocation3 + $0x320] sm:$0xff]
  %v3085 = vld [vmem:[#allocation3 + $0x328] sm:$0xff]
  %v3086 = vld [vmem:[#allocation3 + $0x330] sm:$0xff]
  %v3087 = vld [vmem:[#allocation3 + $0x338] sm:$0xff]
  %v3088 = vld [vmem:[#allocation3 + $0x340] sm:$0xff]
  %v3089 = vld [vmem:[#allocation3 + $0x348] sm:$0xff]
  %v3090 = vld [vmem:[#allocation3 + $0x350] sm:$0xff]
  %v3091 = vld [vmem:[#allocation3 + $0x358] sm:$0xff]
  %v3092 = vld [vmem:[#allocation3 + $0x360] sm:$0xff]
  %v3093 = vld [vmem:[#allocation3 + $0x368] sm:$0xff]
  %v3094 = vld [vmem:[#allocation3 + $0x370] sm:$0xff]
  %v3095 = vld [vmem:[#allocation3 + $0x378] sm:$0xff]
  %v3096 = vld [vmem:[#allocation3 + $0x380] sm:$0xff]
  %v3097 = vld [vmem:[#allocation3 + $0x388] sm:$0xff]
  %v3098 = vld [vmem:[#allocation3 + $0x390] sm:$0xff]
  %v3099 = vld [vmem:[#allocation3 + $0x398] sm:$0xff]
  %v3100 = vld [vmem:[#allocation3 + $0x3a0] sm:$0xff]
  %v3101 = vld [vmem:[#allocation3 + $0x3a8] sm:$0xff]
  %v3102 = vld [vmem:[#allocation3 + $0x3b0] sm:$0xff]
  %v3103 = vld [vmem:[#allocation3 + $0x3b8] sm:$0xff]
  %v3104 = vld [vmem:[#allocation3 + $0x3c0] sm:$0xff]
  %v3105 = vld [vmem:[#allocation3 + $0x3c8] sm:$0xff]
  %v3106 = vld [vmem:[#allocation3 + $0x3d0] sm:$0xff]
  %v3107 = vld [vmem:[#allocation3 + $0x3d8] sm:$0xff]
  %v3108 = vld [vmem:[#allocation3 + $0x3e0] sm:$0xff]
  %v3109 = vld [vmem:[#allocation3 + $0x3e8] sm:$0xff]
  %v3110 = vld [vmem:[#allocation3 + $0x3f0] sm:$0xff]
  %v3111 = vld [vmem:[#allocation3 + $0x3f8] sm:$0xff]
  %v3112 = vpack.c.bf16 %v2986, %v2984
  %v3113 = vpack.c.bf16 %v2987, %v2985
  %v3114 = vpack.c.bf16 %v2990, %v2988
  %v3115 = vpack.c.bf16 %v2991, %v2989
  %v3116 = vpack.c.bf16 %v2994, %v2992
  %v3117 = vpack.c.bf16 %v2995, %v2993
  %v3118 = vpack.c.bf16 %v2998, %v2996
  %v3119 = vpack.c.bf16 %v2999, %v2997
  %v3120 = vpack.c.bf16 %v3002, %v3000
  %v3121 = vpack.c.bf16 %v3003, %v3001
  %v3122 = vpack.c.bf16 %v3006, %v3004
  %v3123 = vpack.c.bf16 %v3007, %v3005
  %v3124 = vpack.c.bf16 %v3010, %v3008
  %v3125 = vpack.c.bf16 %v3011, %v3009
  %v3126 = vpack.c.bf16 %v3014, %v3012
  %v3127 = vpack.c.bf16 %v3015, %v3013
  %v3128 = vpack.c.bf16 %v3018, %v3016
  %v3129 = vpack.c.bf16 %v3019, %v3017
  %v3130 = vpack.c.bf16 %v3022, %v3020
  %v3131 = vpack.c.bf16 %v3023, %v3021
  %v3132 = vpack.c.bf16 %v3026, %v3024
  %v3133 = vpack.c.bf16 %v3027, %v3025
  %v3134 = vpack.c.bf16 %v3030, %v3028
  %v3135 = vpack.c.bf16 %v3031, %v3029
  %v3136 = vpack.c.bf16 %v3034, %v3032
  %v3137 = vpack.c.bf16 %v3035, %v3033
  %v3138 = vpack.c.bf16 %v3038, %v3036
  %v3139 = vpack.c.bf16 %v3039, %v3037
  %v3140 = vpack.c.bf16 %v3042, %v3040
  %v3141 = vpack.c.bf16 %v3043, %v3041
  %v3142 = vpack.c.bf16 %v3046, %v3044
  %v3143 = vpack.c.bf16 %v3047, %v3045
  %v3144 = vpack.c.bf16 %v3050, %v3048
  %v3145 = vpack.c.bf16 %v3051, %v3049
  %v3146 = vpack.c.bf16 %v3054, %v3052
  %v3147 = vpack.c.bf16 %v3055, %v3053
  %v3148 = vpack.c.bf16 %v3058, %v3056
  %v3149 = vpack.c.bf16 %v3059, %v3057
  %v3150 = vpack.c.bf16 %v3062, %v3060
  %v3151 = vpack.c.bf16 %v3063, %v3061
  %v3152 = vpack.c.bf16 %v3066, %v3064
  %v3153 = vpack.c.bf16 %v3067, %v3065
  %v3154 = vpack.c.bf16 %v3070, %v3068
  %v3155 = vpack.c.bf16 %v3071, %v3069
  %v3156 = vpack.c.bf16 %v3074, %v3072
  %v3157 = vpack.c.bf16 %v3075, %v3073
  %v3158 = vpack.c.bf16 %v3078, %v3076
  %v3159 = vpack.c.bf16 %v3079, %v3077
  %v3160 = vpack.c.bf16 %v3082, %v3080
  %v3161 = vpack.c.bf16 %v3083, %v3081
  %v3162 = vpack.c.bf16 %v3086, %v3084
  %v3163 = vpack.c.bf16 %v3087, %v3085
  %v3164 = vpack.c.bf16 %v3090, %v3088
  %v3165 = vpack.c.bf16 %v3091, %v3089
  %v3166 = vpack.c.bf16 %v3094, %v3092
  %v3167 = vpack.c.bf16 %v3095, %v3093
  %v3168 = vpack.c.bf16 %v3098, %v3096
  %v3169 = vpack.c.bf16 %v3099, %v3097
  %v3170 = vpack.c.bf16 %v3102, %v3100
  %v3171 = vpack.c.bf16 %v3103, %v3101
  %v3172 = vpack.c.bf16 %v3106, %v3104
  %v3173 = vpack.c.bf16 %v3107, %v3105
  %v3174 = vpack.c.bf16 %v3110, %v3108
  %v3175 = vpack.c.bf16 %v3111, %v3109
  %v3176 = vld [vmem:[%s1] sm:$0xf]
  %v3177 = vld [vmem:[%s1 + $0x4] sm:$0xf]
  %v3178 = vld [vmem:[%s1 + $0x8] sm:$0xf]
  %v3179 = vld [vmem:[%s1 + $0xc] sm:$0xf]
  %v3180 = vld [vmem:[%s1 + $0x10] sm:$0xf]
  %v3181 = vld [vmem:[%s1 + $0x14] sm:$0xf]
  %v3182 = vld [vmem:[%s1 + $0x18] sm:$0xf]
  %v3183 = vld [vmem:[%s1 + $0x1c] sm:$0xf]
  %v3184 = vld [vmem:[%s1 + $0x20] sm:$0xf]
  %v3185 = vld [vmem:[%s1 + $0x24] sm:$0xf]
  %v3186 = vld [vmem:[%s1 + $0x28] sm:$0xf]
  %v3187 = vld [vmem:[%s1 + $0x2c] sm:$0xf]
  %v3188 = vld [vmem:[%s1 + $0x30] sm:$0xf]
  %v3189 = vld [vmem:[%s1 + $0x34] sm:$0xf]
  %v3190 = vld [vmem:[%s1 + $0x38] sm:$0xf]
  %v3191 = vld [vmem:[%s1 + $0x3c] sm:$0xf]
  %v3192 = vld [vmem:[%s1 + $0x40] sm:$0xf]
  %v3193 = vld [vmem:[%s1 + $0x44] sm:$0xf]
  %v3212 = vunpack.c.l.b16 %v3176
  %v3213 = vunpack.c.l.b16 %v3177
  %v3214 = vunpack.c.l.b16 %v3178
  %v3215 = vunpack.c.l.b16 %v3179
  %v3216 = vunpack.c.l.b16 %v3180
  %v3217 = vunpack.c.l.b16 %v3181
  %v3218 = vunpack.c.l.b16 %v3182
  %v3219 = vunpack.c.l.b16 %v3183
  %v3220 = vunpack.c.l.b16 %v3184
  %v3221 = vunpack.c.l.b16 %v3185
  %v3222 = vunpack.c.l.b16 %v3186
  %v3223 = vunpack.c.l.b16 %v3187
  %v3224 = vunpack.c.l.b16 %v3188
  %v3225 = vunpack.c.l.b16 %v3189
  %v3226 = vunpack.c.l.b16 %v3190
  %v3227 = vunpack.c.l.b16 %v3191
  %v3228 = vunpack.c.l.b16 %v3192
  %v3229 = vunpack.c.l.b16 %v3193
  %v3230 = vpack.c.b16 %v3213, %v3212
  %v3231 = vpack.c.b16 %v3215, %v3214
  %v3232 = vpack.c.b16 %v3217, %v3216
  %v3233 = vpack.c.b16 %v3219, %v3218
  %v3234 = vpack.c.b16 %v3221, %v3220
  %v3235 = vpack.c.b16 %v3223, %v3222
  %v3236 = vpack.c.b16 %v3225, %v3224
  %v3237 = vpack.c.b16 %v3227, %v3226
  %v3238 = vpack.c.b16 %v3229, %v3228
  %v3249 = vsel %vm94, %v3113, 0
  %v3252 = vsel %vm94, %v3115, 0
  %v3255 = vsel %vm94, %v3117, 0
  %v3258 = vsel %vm94, %v3119, 0
  %v3261 = vsel %vm94, %v3121, 0
  %v3264 = vsel %vm94, %v3123, 0
  %v3267 = vsel %vm94, %v3125, 0
  %v3270 = vsel %vm94, %v3127, 0
  %v3273 = vsel %vm94, %v3129, 0
  %v3276 = vsel %vm94, %v3131, 0
  %v3279 = vsel %vm94, %v3133, 0
  %v3282 = vsel %vm94, %v3135, 0
  %v3285 = vsel %vm94, %v3137, 0
  %v3288 = vsel %vm94, %v3139, 0
  %v3291 = vsel %vm94, %v3141, 0
  %v3294 = vsel %vm94, %v3143, 0
  %v3297 = vsel %vm94, %v3145, 0
  %v3300 = vsel %vm94, %v3147, 0
  %v3303 = vsel %vm94, %v3149, 0
  %v3306 = vsel %vm94, %v3151, 0
  %v3309 = vsel %vm94, %v3153, 0
  %v3312 = vsel %vm94, %v3155, 0
  %v3315 = vsel %vm94, %v3157, 0
  %v3318 = vsel %vm94, %v3159, 0
  %v3321 = vsel %vm94, %v3161, 0
  %v3324 = vsel %vm94, %v3163, 0
  %v3327 = vsel %vm94, %v3165, 0
  %v3330 = vsel %vm94, %v3167, 0
  %v3333 = vsel %vm94, %v3169, 0
  %v3336 = vsel %vm94, %v3171, 0
  %v3339 = vsel %vm94, %v3173, 0
  %v3342 = vsel %vm94, %v3175, 0
  %3344 = vmatprep.subr.bf16.mxu0 0
  %3345 = vmatpush1.bf16.msra.mxu0 %v3230
  %3346 = vmatprep.subr.bf16.mxu0 0
  %3347 = vmatpush1.bf16.msra.mxu0 %v3231
  %3348 = vmatprep.subr.bf16.mxu0 0
  %3349 = vmatpush1.bf16.msra.mxu0 %v3232
  %3350 = vmatprep.subr.bf16.mxu0 0
  %3351 = vmatpush1.bf16.msra.mxu0 %v3233
  %3352 = vmatprep.subr.bf16.mxu0 0
  %3353 = vmatpush1.bf16.msra.mxu0 %v3234
  %3354 = vmatprep.subr.bf16.mxu0 0
  %3355 = vmatpush1.bf16.msra.mxu0 %v3235
  %3356 = vmatprep.subr.bf16.mxu0 0
  %3357 = vmatpush1.bf16.msra.mxu0 %v3236
  %3358 = vmatprep.subr.bf16.mxu0 0
  %3359 = vmatpush1.bf16.msra.mxu0 %v3237
  %3360 = vmatprep.subr.bf16.mxu0 0
  %3361 = vmatpush1.bf16.msra.mxu0 %v3238
  %3362 = vmatprep.subr.bf16.mxu0 0
  %3363 = vmatpush1.bf16.msra.mxu0 0
  %3364 = vmatprep.subr.bf16.mxu0 0
  %3365 = vmatpush1.bf16.msra.mxu0 0
  %3366 = vmatprep.subr.bf16.mxu0 0
  %3367 = vmatpush1.bf16.msra.mxu0 0
  %3368 = vmatprep.subr.bf16.mxu0 0
  %3369 = vmatpush1.bf16.msra.mxu0 0
  %3370 = vmatprep.subr.bf16.mxu0 0
  %3371 = vmatpush1.bf16.msra.mxu0 0
  %3372 = vmatprep.subr.bf16.mxu0 0
  %3373 = vmatpush1.bf16.msra.mxu0 0
  %3374 = vmatprep.subr.bf16.mxu0 0
  %3375 = vmatpush1.bf16.msra.mxu0 0
  %3376 = vmatprep.mubr.bf16.mxu0 %v3249
  %3377 = vmatmul.mubr.bf16.gmra.mrb[0].mxu0 %v3112
  %v3378 = vpop.f32.mrb[0].mxu0
  %v3379 = vadd.f32 0.0, %v3378
  %v3380 = vpop.f32.mrb[0].mxu0
  %v3381 = vpop.f32.mrb[0].mxu0
  %v3382 = vadd.f32 0.0, %v3381
  %v3383 = vpop.f32.mrb[0].mxu0
  %3384 = vmatprep.mubr.bf16.mxu0 %v3252
  %3385 = vmatmul.mubr.bf16.gmra.mrb[0].mxu0 %v3114
  %v3386 = vpop.f32.mrb[0].mxu0
  %v3387 = vadd.f32 0.0, %v3386
  %v3388 = vpop.f32.mrb[0].mxu0
  %v3389 = vpop.f32.mrb[0].mxu0
  %v3390 = vadd.f32 0.0, %v3389
  %v3391 = vpop.f32.mrb[0].mxu0
  %3392 = vmatprep.mubr.bf16.mxu0 %v3255
  %3393 = vmatmul.mubr.bf16.gmra.mrb[0].mxu0 %v3116
  %v3394 = vpop.f32.mrb[0].mxu0
  %v3395 = vadd.f32 0.0, %v3394
  %v3396 = vpop.f32.mrb[0].mxu0
  %v3397 = vpop.f32.mrb[0].mxu0
  %v3398 = vadd.f32 0.0, %v3397
  %v3399 = vpop.f32.mrb[0].mxu0
  %3400 = vmatprep.mubr.bf16.mxu0 %v3258
  %3401 = vmatmul.mubr.bf16.gmra.mrb[0].mxu0 %v3118
  %v3402 = vpop.f32.mrb[0].mxu0
  %v3403 = vadd.f32 0.0, %v3402
  %v3404 = vpop.f32.mrb[0].mxu0
  %v3405 = vpop.f32.mrb[0].mxu0
  %v3406 = vadd.f32 0.0, %v3405
  %v3407 = vpop.f32.mrb[0].mxu0
  %3408 = vmatprep.mubr.bf16.mxu0 %v3261
  %3409 = vmatmul.mubr.bf16.gmra.mrb[0].mxu0 %v3120
  %v3410 = vpop.f32.mrb[0].mxu0
  %v3411 = vadd.f32 0.0, %v3410
  %v3412 = vpop.f32.mrb[0].mxu0
  %v3413 = vpop.f32.mrb[0].mxu0
  %v3414 = vadd.f32 0.0, %v3413
  %v3415 = vpop.f32.mrb[0].mxu0
  %3416 = vmatprep.mubr.bf16.mxu0 %v3264
  %3417 = vmatmul.mubr.bf16.gmra.mrb[0].mxu0 %v3122
  %v3418 = vpop.f32.mrb[0].mxu0
  %v3419 = vadd.f32 0.0, %v3418
  %v3420 = vpop.f32.mrb[0].mxu0
  %v3421 = vpop.f32.mrb[0].mxu0
  %v3422 = vadd.f32 0.0, %v3421
  %v3423 = vpop.f32.mrb[0].mxu0
  %3424 = vmatprep.mubr.bf16.mxu0 %v3267
  %3425 = vmatmul.mubr.bf16.gmra.mrb[0].mxu0 %v3124
  %v3426 = vpop.f32.mrb[0].mxu0
  %v3427 = vadd.f32 0.0, %v3426
  %v3428 = vpop.f32.mrb[0].mxu0
  %v3429 = vpop.f32.mrb[0].mxu0
  %v3430 = vadd.f32 0.0, %v3429
  %v3431 = vpop.f32.mrb[0].mxu0
  %3432 = vmatprep.mubr.bf16.mxu0 %v3270
  %3433 = vmatmul.mubr.bf16.gmra.mrb[0].mxu0 %v3126
  %v3434 = vpop.f32.mrb[0].mxu0
  %v3435 = vadd.f32 0.0, %v3434
  %v3436 = vpop.f32.mrb[0].mxu0
  %v3437 = vpop.f32.mrb[0].mxu0
  %v3438 = vadd.f32 0.0, %v3437
  %v3439 = vpop.f32.mrb[0].mxu0
  %3440 = vmatprep.mubr.bf16.mxu0 %v3273
  %3441 = vmatmul.mubr.bf16.gmra.mrb[0].mxu0 %v3128
  %v3442 = vpop.f32.mrb[0].mxu0
  %v3443 = vadd.f32 0.0, %v3442
  %v3444 = vpop.f32.mrb[0].mxu0
  %v3445 = vpop.f32.mrb[0].mxu0
  %v3446 = vadd.f32 0.0, %v3445
  %v3447 = vpop.f32.mrb[0].mxu0
  %3448 = vmatprep.mubr.bf16.mxu0 %v3276
  %3449 = vmatmul.mubr.bf16.gmra.mrb[0].mxu0 %v3130
  %v3450 = vpop.f32.mrb[0].mxu0
  %v3451 = vadd.f32 0.0, %v3450
  %v3452 = vpop.f32.mrb[0].mxu0
  %v3453 = vpop.f32.mrb[0].mxu0
  %v3454 = vadd.f32 0.0, %v3453
  %v3455 = vpop.f32.mrb[0].mxu0
  %3456 = vmatprep.mubr.bf16.mxu0 %v3279
  %3457 = vmatmul.mubr.bf16.gmra.mrb[0].mxu0 %v3132
  %v3458 = vpop.f32.mrb[0].mxu0
  %v3459 = vadd.f32 0.0, %v3458
  %v3460 = vpop.f32.mrb[0].mxu0
  %v3461 = vpop.f32.mrb[0].mxu0
  %v3462 = vadd.f32 0.0, %v3461
  %v3463 = vpop.f32.mrb[0].mxu0
  %3464 = vmatprep.mubr.bf16.mxu0 %v3282
  %3465 = vmatmul.mubr.bf16.gmra.mrb[0].mxu0 %v3134
  %v3466 = vpop.f32.mrb[0].mxu0
  %v3467 = vadd.f32 0.0, %v3466
  %v3468 = vpop.f32.mrb[0].mxu0
  %v3469 = vpop.f32.mrb[0].mxu0
  %v3470 = vadd.f32 0.0, %v3469
  %v3471 = vpop.f32.mrb[0].mxu0
  %3472 = vmatprep.mubr.bf16.mxu0 %v3285
  %3473 = vmatmul.mubr.bf16.gmra.mrb[0].mxu0 %v3136
  %v3474 = vpop.f32.mrb[0].mxu0
  %v3475 = vadd.f32 0.0, %v3474
  %v3476 = vpop.f32.mrb[0].mxu0
  %v3477 = vpop.f32.mrb[0].mxu0
  %v3478 = vadd.f32 0.0, %v3477
  %v3479 = vpop.f32.mrb[0].mxu0
  %3480 = vmatprep.mubr.bf16.mxu0 %v3288
  %3481 = vmatmul.mubr.bf16.gmra.mrb[0].mxu0 %v3138
  %v3482 = vpop.f32.mrb[0].mxu0
  %v3483 = vadd.f32 0.0, %v3482
  %v3484 = vpop.f32.mrb[0].mxu0
  %v3485 = vpop.f32.mrb[0].mxu0
  %v3486 = vadd.f32 0.0, %v3485
  %v3487 = vpop.f32.mrb[0].mxu0
  %3488 = vmatprep.mubr.bf16.mxu0 %v3291
  %3489 = vmatmul.mubr.bf16.gmra.mrb[0].mxu0 %v3140
  %v3490 = vpop.f32.mrb[0].mxu0
  %v3491 = vadd.f32 0.0, %v3490
  %v3492 = vpop.f32.mrb[0].mxu0
  %v3493 = vpop.f32.mrb[0].mxu0
  %v3494 = vadd.f32 0.0, %v3493
  %v3495 = vpop.f32.mrb[0].mxu0
  %3496 = vmatprep.mubr.bf16.mxu0 %v3294
  %3497 = vmatmul.mubr.bf16.gmra.mrb[0].mxu0 %v3142
  %v3498 = vpop.f32.mrb[0].mxu0
  %v3499 = vadd.f32 0.0, %v3498
  %v3500 = vpop.f32.mrb[0].mxu0
  %v3501 = vpop.f32.mrb[0].mxu0
  %v3502 = vadd.f32 0.0, %v3501
  %v3503 = vpop.f32.mrb[0].mxu0
  %3504 = vmatprep.mubr.bf16.mxu0 %v3297
  %3505 = vmatmul.mubr.bf16.gmra.mrb[0].mxu0 %v3144
  %v3506 = vpop.f32.mrb[0].mxu0
  %v3507 = vadd.f32 0.0, %v3506
  %v3508 = vpop.f32.mrb[0].mxu0
  %v3509 = vpop.f32.mrb[0].mxu0
  %v3510 = vadd.f32 0.0, %v3509
  %v3511 = vpop.f32.mrb[0].mxu0
  %3512 = vmatprep.mubr.bf16.mxu0 %v3300
  %3513 = vmatmul.mubr.bf16.gmra.mrb[0].mxu0 %v3146
  %v3514 = vpop.f32.mrb[0].mxu0
  %v3515 = vadd.f32 0.0, %v3514
  %v3516 = vpop.f32.mrb[0].mxu0
  %v3517 = vpop.f32.mrb[0].mxu0
  %v3518 = vadd.f32 0.0, %v3517
  %v3519 = vpop.f32.mrb[0].mxu0
  %3520 = vmatprep.mubr.bf16.mxu0 %v3303
  %3521 = vmatmul.mubr.bf16.gmra.mrb[0].mxu0 %v3148
  %v3522 = vpop.f32.mrb[0].mxu0
  %v3523 = vadd.f32 0.0, %v3522
  %v3524 = vpop.f32.mrb[0].mxu0
  %v3525 = vpop.f32.mrb[0].mxu0
  %v3526 = vadd.f32 0.0, %v3525
  %v3527 = vpop.f32.mrb[0].mxu0
  %3528 = vmatprep.mubr.bf16.mxu0 %v3306
  %3529 = vmatmul.mubr.bf16.gmra.mrb[0].mxu0 %v3150
  %v3530 = vpop.f32.mrb[0].mxu0
  %v3531 = vadd.f32 0.0, %v3530
  %v3532 = vpop.f32.mrb[0].mxu0
  %v3533 = vpop.f32.mrb[0].mxu0
  %v3534 = vadd.f32 0.0, %v3533
  %v3535 = vpop.f32.mrb[0].mxu0
  %3536 = vmatprep.mubr.bf16.mxu0 %v3309
  %3537 = vmatmul.mubr.bf16.gmra.mrb[0].mxu0 %v3152
  %v3538 = vpop.f32.mrb[0].mxu0
  %v3539 = vadd.f32 0.0, %v3538
  %v3540 = vpop.f32.mrb[0].mxu0
  %v3541 = vpop.f32.mrb[0].mxu0
  %v3542 = vadd.f32 0.0, %v3541
  %v3543 = vpop.f32.mrb[0].mxu0
  %3544 = vmatprep.mubr.bf16.mxu0 %v3312
  %3545 = vmatmul.mubr.bf16.gmra.mrb[0].mxu0 %v3154
  %v3546 = vpop.f32.mrb[0].mxu0
  %v3547 = vadd.f32 0.0, %v3546
  %v3548 = vpop.f32.mrb[0].mxu0
  %v3549 = vpop.f32.mrb[0].mxu0
  %v3550 = vadd.f32 0.0, %v3549
  %v3551 = vpop.f32.mrb[0].mxu0
  %3552 = vmatprep.mubr.bf16.mxu0 %v3315
  %3553 = vmatmul.mubr.bf16.gmra.mrb[0].mxu0 %v3156
  %v3554 = vpop.f32.mrb[0].mxu0
  %v3555 = vadd.f32 0.0, %v3554
  %v3556 = vpop.f32.mrb[0].mxu0
  %v3557 = vpop.f32.mrb[0].mxu0
  %v3558 = vadd.f32 0.0, %v3557
  %v3559 = vpop.f32.mrb[0].mxu0
  %3560 = vmatprep.mubr.bf16.mxu0 %v3318
  %3561 = vmatmul.mubr.bf16.gmra.mrb[0].mxu0 %v3158
  %v3562 = vpop.f32.mrb[0].mxu0
  %v3563 = vadd.f32 0.0, %v3562
  %v3564 = vpop.f32.mrb[0].mxu0
  %v3565 = vpop.f32.mrb[0].mxu0
  %v3566 = vadd.f32 0.0, %v3565
  %v3567 = vpop.f32.mrb[0].mxu0
  %3568 = vmatprep.mubr.bf16.mxu0 %v3321
  %3569 = vmatmul.mubr.bf16.gmra.mrb[0].mxu0 %v3160
  %v3570 = vpop.f32.mrb[0].mxu0
  %v3571 = vadd.f32 0.0, %v3570
  %v3572 = vpop.f32.mrb[0].mxu0
  %v3573 = vpop.f32.mrb[0].mxu0
  %v3574 = vadd.f32 0.0, %v3573
  %v3575 = vpop.f32.mrb[0].mxu0
  %3576 = vmatprep.mubr.bf16.mxu0 %v3324
  %3577 = vmatmul.mubr.bf16.gmra.mrb[0].mxu0 %v3162
  %v3578 = vpop.f32.mrb[0].mxu0
  %v3579 = vadd.f32 0.0, %v3578
  %v3580 = vpop.f32.mrb[0].mxu0
  %v3581 = vpop.f32.mrb[0].mxu0
  %v3582 = vadd.f32 0.0, %v3581
  %v3583 = vpop.f32.mrb[0].mxu0
  %3584 = vmatprep.mubr.bf16.mxu0 %v3327
  %3585 = vmatmul.mubr.bf16.gmra.mrb[0].mxu0 %v3164
  %v3586 = vpop.f32.mrb[0].mxu0
  %v3587 = vadd.f32 0.0, %v3586
  %v3588 = vpop.f32.mrb[0].mxu0
  %v3589 = vpop.f32.mrb[0].mxu0
  %v3590 = vadd.f32 0.0, %v3589
  %v3591 = vpop.f32.mrb[0].mxu0
  %3592 = vmatprep.mubr.bf16.mxu0 %v3330
  %3593 = vmatmul.mubr.bf16.gmra.mrb[0].mxu0 %v3166
  %v3594 = vpop.f32.mrb[0].mxu0
  %v3595 = vadd.f32 0.0, %v3594
  %v3596 = vpop.f32.mrb[0].mxu0
  %v3597 = vpop.f32.mrb[0].mxu0
  %v3598 = vadd.f32 0.0, %v3597
  %v3599 = vpop.f32.mrb[0].mxu0
  %3600 = vmatprep.mubr.bf16.mxu0 %v3333
  %3601 = vmatmul.mubr.bf16.gmra.mrb[0].mxu0 %v3168
  %v3602 = vpop.f32.mrb[0].mxu0
  %v3603 = vadd.f32 0.0, %v3602
  %v3604 = vpop.f32.mrb[0].mxu0
  %v3605 = vpop.f32.mrb[0].mxu0
  %v3606 = vadd.f32 0.0, %v3605
  %v3607 = vpop.f32.mrb[0].mxu0
  %3608 = vmatprep.mubr.bf16.mxu0 %v3336
  %3609 = vmatmul.mubr.bf16.gmra.mrb[0].mxu0 %v3170
  %v3610 = vpop.f32.mrb[0].mxu0
  %v3611 = vadd.f32 0.0, %v3610
  %v3612 = vpop.f32.mrb[0].mxu0
  %v3613 = vpop.f32.mrb[0].mxu0
  %v3614 = vadd.f32 0.0, %v3613
  %v3615 = vpop.f32.mrb[0].mxu0
  %3616 = vmatprep.mubr.bf16.mxu0 %v3339
  %3617 = vmatmul.mubr.bf16.gmra.mrb[0].mxu0 %v3172
  %v3618 = vpop.f32.mrb[0].mxu0
  %v3619 = vadd.f32 0.0, %v3618
  %v3620 = vpop.f32.mrb[0].mxu0
  %v3621 = vpop.f32.mrb[0].mxu0
  %v3622 = vadd.f32 0.0, %v3621
  %v3623 = vpop.f32.mrb[0].mxu0
  %3624 = vmatprep.mubr.bf16.mxu0 %v3342
  %3625 = vmatmul.mubr.bf16.gmra.mrb[0].mxu0 %v3174
  %v3626 = vpop.f32.mrb[0].mxu0
  %v3627 = vadd.f32 0.0, %v3626
  %v3628 = vpop.f32.mrb[0].mxu0
  %v3629 = vpop.f32.mrb[0].mxu0
  %v3630 = vadd.f32 0.0, %v3629
  %v3631 = vpop.f32.mrb[0].mxu0
  %3632 = vdwg.mxu0
  %v3633 = vsel %vm94, %v3379, 0.0
  %v3634 = vsel %vm94, %v3382, 0.0
  %v3635 = vadd.f32 %v3633, %v3634
  %v3636 = vsel %vm94, %v3387, 0.0
  %v3637 = vadd.f32 %v3635, %v3636
  %v3638 = vsel %vm94, %v3390, 0.0
  %v3639 = vadd.f32 %v3637, %v3638
  %v3640 = vsel %vm94, %v3395, 0.0
  %v3641 = vadd.f32 %v3639, %v3640
  %v3642 = vsel %vm94, %v3398, 0.0
  %v3643 = vadd.f32 %v3641, %v3642
  %v3644 = vsel %vm94, %v3403, 0.0
  %v3645 = vadd.f32 %v3643, %v3644
  %v3646 = vsel %vm94, %v3406, 0.0
  %v3647 = vadd.f32 %v3645, %v3646
  %v3648 = vsel %vm94, %v3411, 0.0
  %v3649 = vadd.f32 %v3647, %v3648
  %v3650 = vsel %vm94, %v3414, 0.0
  %v3651 = vadd.f32 %v3649, %v3650
  %v3652 = vsel %vm94, %v3419, 0.0
  %v3653 = vadd.f32 %v3651, %v3652
  %v3654 = vsel %vm94, %v3422, 0.0
  %v3655 = vadd.f32 %v3653, %v3654
  %v3656 = vsel %vm94, %v3427, 0.0
  %v3657 = vadd.f32 %v3655, %v3656
  %v3658 = vsel %vm94, %v3430, 0.0
  %v3659 = vadd.f32 %v3657, %v3658
  %v3660 = vsel %vm94, %v3435, 0.0
  %v3661 = vadd.f32 %v3659, %v3660
  %v3662 = vsel %vm94, %v3438, 0.0
  %v3663 = vadd.f32 %v3661, %v3662
  %v3664 = vsel %vm94, %v3443, 0.0
  %v3665 = vadd.f32 %v3663, %v3664
  %v3666 = vsel %vm94, %v3446, 0.0
  %v3667 = vadd.f32 %v3665, %v3666
  %v3668 = vsel %vm94, %v3451, 0.0
  %v3669 = vadd.f32 %v3667, %v3668
  %v3670 = vsel %vm94, %v3454, 0.0
  %v3671 = vadd.f32 %v3669, %v3670
  %v3672 = vsel %vm94, %v3459, 0.0
  %v3673 = vadd.f32 %v3671, %v3672
  %v3674 = vsel %vm94, %v3462, 0.0
  %v3675 = vadd.f32 %v3673, %v3674
  %v3676 = vsel %vm94, %v3467, 0.0
  %v3677 = vadd.f32 %v3675, %v3676
  %v3678 = vsel %vm94, %v3470, 0.0
  %v3679 = vadd.f32 %v3677, %v3678
  %v3680 = vsel %vm94, %v3475, 0.0
  %v3681 = vadd.f32 %v3679, %v3680
  %v3682 = vsel %vm94, %v3478, 0.0
  %v3683 = vadd.f32 %v3681, %v3682
  %v3684 = vsel %vm94, %v3483, 0.0
  %v3685 = vadd.f32 %v3683, %v3684
  %v3686 = vsel %vm94, %v3486, 0.0
  %v3687 = vadd.f32 %v3685, %v3686
  %v3688 = vsel %vm94, %v3491, 0.0
  %v3689 = vadd.f32 %v3687, %v3688
  %v3690 = vsel %vm94, %v3494, 0.0
  %v3691 = vadd.f32 %v3689, %v3690
  %v3692 = vsel %vm94, %v3499, 0.0
  %v3693 = vadd.f32 %v3691, %v3692
  %v3694 = vsel %vm94, %v3502, 0.0
  %v3695 = vadd.f32 %v3693, %v3694
  %v3696 = vsel %vm94, %v3507, 0.0
  %v3697 = vadd.f32 %v3695, %v3696
  %v3698 = vsel %vm94, %v3510, 0.0
  %v3699 = vadd.f32 %v3697, %v3698
  %v3700 = vsel %vm94, %v3515, 0.0
  %v3701 = vadd.f32 %v3699, %v3700
  %v3702 = vsel %vm94, %v3518, 0.0
  %v3703 = vadd.f32 %v3701, %v3702
  %v3704 = vsel %vm94, %v3523, 0.0
  %v3705 = vadd.f32 %v3703, %v3704
  %v3706 = vsel %vm94, %v3526, 0.0
  %v3707 = vadd.f32 %v3705, %v3706
  %v3708 = vsel %vm94, %v3531, 0.0
  %v3709 = vadd.f32 %v3707, %v3708
  %v3710 = vsel %vm94, %v3534, 0.0
  %v3711 = vadd.f32 %v3709, %v3710
  %v3712 = vsel %vm94, %v3539, 0.0
  %v3713 = vadd.f32 %v3711, %v3712
  %v3714 = vsel %vm94, %v3542, 0.0
  %v3715 = vadd.f32 %v3713, %v3714
  %v3716 = vsel %vm94, %v3547, 0.0
  %v3717 = vadd.f32 %v3715, %v3716
  %v3718 = vsel %vm94, %v3550, 0.0
  %v3719 = vadd.f32 %v3717, %v3718
  %v3720 = vsel %vm94, %v3555, 0.0
  %v3721 = vadd.f32 %v3719, %v3720
  %v3722 = vsel %vm94, %v3558, 0.0
  %v3723 = vadd.f32 %v3721, %v3722
  %v3724 = vsel %vm94, %v3563, 0.0
  %v3725 = vadd.f32 %v3723, %v3724
  %v3726 = vsel %vm94, %v3566, 0.0
  %v3727 = vadd.f32 %v3725, %v3726
  %v3728 = vsel %vm94, %v3571, 0.0
  %v3729 = vadd.f32 %v3727, %v3728
  %v3730 = vsel %vm94, %v3574, 0.0
  %v3731 = vadd.f32 %v3729, %v3730
  %v3732 = vsel %vm94, %v3579, 0.0
  %v3733 = vadd.f32 %v3731, %v3732
  %v3734 = vsel %vm94, %v3582, 0.0
  %v3735 = vadd.f32 %v3733, %v3734
  %v3736 = vsel %vm94, %v3587, 0.0
  %v3737 = vadd.f32 %v3735, %v3736
  %v3738 = vsel %vm94, %v3590, 0.0
  %v3739 = vadd.f32 %v3737, %v3738
  %v3740 = vsel %vm94, %v3595, 0.0
  %v3741 = vadd.f32 %v3739, %v3740
  %v3742 = vsel %vm94, %v3598, 0.0
  %v3743 = vadd.f32 %v3741, %v3742
  %v3744 = vsel %vm94, %v3603, 0.0
  %v3745 = vadd.f32 %v3743, %v3744
  %v3746 = vsel %vm94, %v3606, 0.0
  %v3747 = vadd.f32 %v3745, %v3746
  %v3748 = vsel %vm94, %v3611, 0.0
  %v3749 = vadd.f32 %v3747, %v3748
  %v3750 = vsel %vm94, %v3614, 0.0
  %v3751 = vadd.f32 %v3749, %v3750
  %v3752 = vsel %vm94, %v3619, 0.0
  %v3753 = vadd.f32 %v3751, %v3752
  %v3754 = vsel %vm94, %v3622, 0.0
  %v3755 = vadd.f32 %v3753, %v3754
  %v3756 = vsel %vm94, %v3627, 0.0
  %v3757 = vadd.f32 %v3755, %v3756
  %v3758 = vsel %vm94, %v3630, 0.0
  %v3759 = vadd.f32 %v3757, %v3758
  %v3760 = vrot.slane %v3759, 4
  %v3761 = vadd.f32 %v3759, %v3760
  %v3762 = vrot.slane %v3761, 2
  %v3763 = vadd.f32 %v3761, %v3762
  %v3764 = vrot.slane %v3763, 1
  %v3765 = vadd.f32 %v3763, %v3764
  %v3766 = vmul.f32 %v3379, %v3379
  %v3767 = vmul.f32 %v3382, %v3382
  %v3768 = vmul.f32 %v3387, %v3387
  %v3769 = vmul.f32 %v3390, %v3390
  %v3770 = vmul.f32 %v3395, %v3395
  %v3771 = vmul.f32 %v3398, %v3398
  %v3772 = vmul.f32 %v3403, %v3403
  %v3773 = vmul.f32 %v3406, %v3406
  %v3774 = vmul.f32 %v3411, %v3411
  %v3775 = vmul.f32 %v3414, %v3414
  %v3776 = vmul.f32 %v3419, %v3419
  %v3777 = vmul.f32 %v3422, %v3422
  %v3778 = vmul.f32 %v3427, %v3427
  %v3779 = vmul.f32 %v3430, %v3430
  %v3780 = vmul.f32 %v3435, %v3435
  %v3781 = vmul.f32 %v3438, %v3438
  %v3782 = vmul.f32 %v3443, %v3443
  %v3783 = vmul.f32 %v3446, %v3446
  %v3784 = vmul.f32 %v3451, %v3451
  %v3785 = vmul.f32 %v3454, %v3454
  %v3786 = vmul.f32 %v3459, %v3459
  %v3787 = vmul.f32 %v3462, %v3462
  %v3788 = vmul.f32 %v3467, %v3467
  %v3789 = vmul.f32 %v3470, %v3470
  %v3790 = vmul.f32 %v3475, %v3475
  %v3791 = vmul.f32 %v3478, %v3478
  %v3792 = vmul.f32 %v3483, %v3483
  %v3793 = vmul.f32 %v3486, %v3486
  %v3794 = vmul.f32 %v3491, %v3491
  %v3795 = vmul.f32 %v3494, %v3494
  %v3796 = vmul.f32 %v3499, %v3499
  %v3797 = vmul.f32 %v3502, %v3502
  %v3798 = vmul.f32 %v3507, %v3507
  %v3799 = vmul.f32 %v3510, %v3510
  %v3800 = vmul.f32 %v3515, %v3515
  %v3801 = vmul.f32 %v3518, %v3518
  %v3802 = vmul.f32 %v3523, %v3523
  %v3803 = vmul.f32 %v3526, %v3526
  %v3804 = vmul.f32 %v3531, %v3531
  %v3805 = vmul.f32 %v3534, %v3534
  %v3806 = vmul.f32 %v3539, %v3539
  %v3807 = vmul.f32 %v3542, %v3542
  %v3808 = vmul.f32 %v3547, %v3547
  %v3809 = vmul.f32 %v3550, %v3550
  %v3810 = vmul.f32 %v3555, %v3555
  %v3811 = vmul.f32 %v3558, %v3558
  %v3812 = vmul.f32 %v3563, %v3563
  %v3813 = vmul.f32 %v3566, %v3566
  %v3814 = vmul.f32 %v3571, %v3571
  %v3815 = vmul.f32 %v3574, %v3574
  %v3816 = vmul.f32 %v3579, %v3579
  %v3817 = vmul.f32 %v3582, %v3582
  %v3818 = vmul.f32 %v3587, %v3587
  %v3819 = vmul.f32 %v3590, %v3590
  %v3820 = vmul.f32 %v3595, %v3595
  %v3821 = vmul.f32 %v3598, %v3598
  %v3822 = vmul.f32 %v3603, %v3603
  %v3823 = vmul.f32 %v3606, %v3606
  %v3824 = vmul.f32 %v3611, %v3611
  %v3825 = vmul.f32 %v3614, %v3614
  %v3826 = vmul.f32 %v3619, %v3619
  %v3827 = vmul.f32 %v3622, %v3622
  %v3828 = vmul.f32 %v3627, %v3627
  %v3829 = vmul.f32 %v3630, %v3630
  %v3830 = vsel %vm94, %v3766, 0.0
  %v3831 = vsel %vm94, %v3767, 0.0
  %v3832 = vadd.f32 %v3830, %v3831
  %v3833 = vsel %vm94, %v3768, 0.0
  %v3834 = vadd.f32 %v3832, %v3833
  %v3835 = vsel %vm94, %v3769, 0.0
  %v3836 = vadd.f32 %v3834, %v3835
  %v3837 = vsel %vm94, %v3770, 0.0
  %v3838 = vadd.f32 %v3836, %v3837
  %v3839 = vsel %vm94, %v3771, 0.0
  %v3840 = vadd.f32 %v3838, %v3839
  %v3841 = vsel %vm94, %v3772, 0.0
  %v3842 = vadd.f32 %v3840, %v3841
  %v3843 = vsel %vm94, %v3773, 0.0
  %v3844 = vadd.f32 %v3842, %v3843
  %v3845 = vsel %vm94, %v3774, 0.0
  %v3846 = vadd.f32 %v3844, %v3845
  %v3847 = vsel %vm94, %v3775, 0.0
  %v3848 = vadd.f32 %v3846, %v3847
  %v3849 = vsel %vm94, %v3776, 0.0
  %v3850 = vadd.f32 %v3848, %v3849
  %v3851 = vsel %vm94, %v3777, 0.0
  %v3852 = vadd.f32 %v3850, %v3851
  %v3853 = vsel %vm94, %v3778, 0.0
  %v3854 = vadd.f32 %v3852, %v3853
  %v3855 = vsel %vm94, %v3779, 0.0
  %v3856 = vadd.f32 %v3854, %v3855
  %v3857 = vsel %vm94, %v3780, 0.0
  %v3858 = vadd.f32 %v3856, %v3857
  %v3859 = vsel %vm94, %v3781, 0.0
  %v3860 = vadd.f32 %v3858, %v3859
  %v3861 = vsel %vm94, %v3782, 0.0
  %v3862 = vadd.f32 %v3860, %v3861
  %v3863 = vsel %vm94, %v3783, 0.0
  %v3864 = vadd.f32 %v3862, %v3863
  %v3865 = vsel %vm94, %v3784, 0.0
  %v3866 = vadd.f32 %v3864, %v3865
  %v3867 = vsel %vm94, %v3785, 0.0
  %v3868 = vadd.f32 %v3866, %v3867
  %v3869 = vsel %vm94, %v3786, 0.0
  %v3870 = vadd.f32 %v3868, %v3869
  %v3871 = vsel %vm94, %v3787, 0.0
  %v3872 = vadd.f32 %v3870, %v3871
  %v3873 = vsel %vm94, %v3788, 0.0
  %v3874 = vadd.f32 %v3872, %v3873
  %v3875 = vsel %vm94, %v3789, 0.0
  %v3876 = vadd.f32 %v3874, %v3875
  %v3877 = vsel %vm94, %v3790, 0.0
  %v3878 = vadd.f32 %v3876, %v3877
  %v3879 = vsel %vm94, %v3791, 0.0
  %v3880 = vadd.f32 %v3878, %v3879
  %v3881 = vsel %vm94, %v3792, 0.0
  %v3882 = vadd.f32 %v3880, %v3881
  %v3883 = vsel %vm94, %v3793, 0.0
  %v3884 = vadd.f32 %v3882, %v3883
  %v3885 = vsel %vm94, %v3794, 0.0
  %v3886 = vadd.f32 %v3884, %v3885
  %v3887 = vsel %vm94, %v3795, 0.0
  %v3888 = vadd.f32 %v3886, %v3887
  %v3889 = vsel %vm94, %v3796, 0.0
  %v3890 = vadd.f32 %v3888, %v3889
  %v3891 = vsel %vm94, %v3797, 0.0
  %v3892 = vadd.f32 %v3890, %v3891
  %v3893 = vsel %vm94, %v3798, 0.0
  %v3894 = vadd.f32 %v3892, %v3893
  %v3895 = vsel %vm94, %v3799, 0.0
  %v3896 = vadd.f32 %v3894, %v3895
  %v3897 = vsel %vm94, %v3800, 0.0
  %v3898 = vadd.f32 %v3896, %v3897
  %v3899 = vsel %vm94, %v3801, 0.0
  %v3900 = vadd.f32 %v3898, %v3899
  %v3901 = vsel %vm94, %v3802, 0.0
  %v3902 = vadd.f32 %v3900, %v3901
  %v3903 = vsel %vm94, %v3803, 0.0
  %v3904 = vadd.f32 %v3902, %v3903
  %v3905 = vsel %vm94, %v3804, 0.0
  %v3906 = vadd.f32 %v3904, %v3905
  %v3907 = vsel %vm94, %v3805, 0.0
  %v3908 = vadd.f32 %v3906, %v3907
  %v3909 = vsel %vm94, %v3806, 0.0
  %v3910 = vadd.f32 %v3908, %v3909
  %v3911 = vsel %vm94, %v3807, 0.0
  %v3912 = vadd.f32 %v3910, %v3911
  %v3913 = vsel %vm94, %v3808, 0.0
  %v3914 = vadd.f32 %v3912, %v3913
  %v3915 = vsel %vm94, %v3809, 0.0
  %v3916 = vadd.f32 %v3914, %v3915
  %v3917 = vsel %vm94, %v3810, 0.0
  %v3918 = vadd.f32 %v3916, %v3917
  %v3919 = vsel %vm94, %v3811, 0.0
  %v3920 = vadd.f32 %v3918, %v3919
  %v3921 = vsel %vm94, %v3812, 0.0
  %v3922 = vadd.f32 %v3920, %v3921
  %v3923 = vsel %vm94, %v3813, 0.0
  %v3924 = vadd.f32 %v3922, %v3923
  %v3925 = vsel %vm94, %v3814, 0.0
  %v3926 = vadd.f32 %v3924, %v3925
  %v3927 = vsel %vm94, %v3815, 0.0
  %v3928 = vadd.f32 %v3926, %v3927
  %v3929 = vsel %vm94, %v3816, 0.0
  %v3930 = vadd.f32 %v3928, %v3929
  %v3931 = vsel %vm94, %v3817, 0.0
  %v3932 = vadd.f32 %v3930, %v3931
  %v3933 = vsel %vm94, %v3818, 0.0
  %v3934 = vadd.f32 %v3932, %v3933
  %v3935 = vsel %vm94, %v3819, 0.0
  %v3936 = vadd.f32 %v3934, %v3935
  %v3937 = vsel %vm94, %v3820, 0.0
  %v3938 = vadd.f32 %v3936, %v3937
  %v3939 = vsel %vm94, %v3821, 0.0
  %v3940 = vadd.f32 %v3938, %v3939
  %v3941 = vsel %vm94, %v3822, 0.0
  %v3942 = vadd.f32 %v3940, %v3941
  %v3943 = vsel %vm94, %v3823, 0.0
  %v3944 = vadd.f32 %v3942, %v3943
  %v3945 = vsel %vm94, %v3824, 0.0
  %v3946 = vadd.f32 %v3944, %v3945
  %v3947 = vsel %vm94, %v3825, 0.0
  %v3948 = vadd.f32 %v3946, %v3947
  %v3949 = vsel %vm94, %v3826, 0.0
  %v3950 = vadd.f32 %v3948, %v3949
  %v3951 = vsel %vm94, %v3827, 0.0
  %v3952 = vadd.f32 %v3950, %v3951
  %v3953 = vsel %vm94, %v3828, 0.0
  %v3954 = vadd.f32 %v3952, %v3953
  %v3955 = vsel %vm94, %v3829, 0.0
  %v3956 = vadd.f32 %v3954, %v3955
  %v3957 = vrot.slane %v3956, 4
  %v3958 = vadd.f32 %v3956, %v3957
  %v3959 = vrot.slane %v3958, 2
  %v3960 = vadd.f32 %v3958, %v3959
  %v3961 = vrot.slane %v3960, 1
  %v3962 = vadd.f32 %v3960, %v3961
  %v3963 = vmul.f32 %v3765, 0.001953125
  %v3964 = vmul.f32 %v3962, 0.001953125
  %v3965 = vmul.f32 %v3963, %v3963
  %v3966 = vsub.f32 %v3964, %v3965
  %v3967 = vld [vmem:[%s2] sm:$0x1]
  %v3968 = vadd.f32 %v3966, 1e-05
  %v3969 = vrsqrt.pop %v3968
  %v3970 = vmul.f32 %v3967, %v3969
  %v3972 = vlaneseq
  %v3973 = vshrl.u32 %v3972, 7
  %v3974 = vsub.s32 0, %v3973
  %v3975 = vrot.slane %v3970, %v3974
  %v3977 = vmul.f32 %v3379, %v3975
  %v3978 = vmul.f32 %v3382, %v3975
  %v3979 = vmul.f32 %v3387, %v3975
  %v3980 = vmul.f32 %v3390, %v3975
  %v3981 = vmul.f32 %v3395, %v3975
  %v3982 = vmul.f32 %v3398, %v3975
  %v3983 = vmul.f32 %v3403, %v3975
  %v3984 = vmul.f32 %v3406, %v3975
  %v3985 = vmul.f32 %v3411, %v3975
  %v3986 = vmul.f32 %v3414, %v3975
  %v3987 = vmul.f32 %v3419, %v3975
  %v3988 = vmul.f32 %v3422, %v3975
  %v3989 = vmul.f32 %v3427, %v3975
  %v3990 = vmul.f32 %v3430, %v3975
  %v3991 = vmul.f32 %v3435, %v3975
  %v3992 = vmul.f32 %v3438, %v3975
  %v3993 = vmul.f32 %v3443, %v3975
  %v3994 = vmul.f32 %v3446, %v3975
  %v3995 = vmul.f32 %v3451, %v3975
  %v3996 = vmul.f32 %v3454, %v3975
  %v3997 = vmul.f32 %v3459, %v3975
  %v3998 = vmul.f32 %v3462, %v3975
  %v3999 = vmul.f32 %v3467, %v3975
  %v4000 = vmul.f32 %v3470, %v3975
  %v4001 = vmul.f32 %v3475, %v3975
  %v4002 = vmul.f32 %v3478, %v3975
  %v4003 = vmul.f32 %v3483, %v3975
  %v4004 = vmul.f32 %v3486, %v3975
  %v4005 = vmul.f32 %v3491, %v3975
  %v4006 = vmul.f32 %v3494, %v3975
  %v4007 = vmul.f32 %v3499, %v3975
  %v4008 = vmul.f32 %v3502, %v3975
  %v4009 = vmul.f32 %v3507, %v3975
  %v4010 = vmul.f32 %v3510, %v3975
  %v4011 = vmul.f32 %v3515, %v3975
  %v4012 = vmul.f32 %v3518, %v3975
  %v4013 = vmul.f32 %v3523, %v3975
  %v4014 = vmul.f32 %v3526, %v3975
  %v4015 = vmul.f32 %v3531, %v3975
  %v4016 = vmul.f32 %v3534, %v3975
  %v4017 = vmul.f32 %v3539, %v3975
  %v4018 = vmul.f32 %v3542, %v3975
  %v4019 = vmul.f32 %v3547, %v3975
  %v4020 = vmul.f32 %v3550, %v3975
  %v4021 = vmul.f32 %v3555, %v3975
  %v4022 = vmul.f32 %v3558, %v3975
  %v4023 = vmul.f32 %v3563, %v3975
  %v4024 = vmul.f32 %v3566, %v3975
  %v4025 = vmul.f32 %v3571, %v3975
  %v4026 = vmul.f32 %v3574, %v3975
  %v4027 = vmul.f32 %v3579, %v3975
  %v4028 = vmul.f32 %v3582, %v3975
  %v4029 = vmul.f32 %v3587, %v3975
  %v4030 = vmul.f32 %v3590, %v3975
  %v4031 = vmul.f32 %v3595, %v3975
  %v4032 = vmul.f32 %v3598, %v3975
  %v4033 = vmul.f32 %v3603, %v3975
  %v4034 = vmul.f32 %v3606, %v3975
  %v4035 = vmul.f32 %v3611, %v3975
  %v4036 = vmul.f32 %v3614, %v3975
  %v4037 = vmul.f32 %v3619, %v3975
  %v4038 = vmul.f32 %v3622, %v3975
  %v4039 = vmul.f32 %v3627, %v3975
  %v4040 = vmul.f32 %v3630, %v3975
  %v4041 = vld [vmem:[%s3] sm:$0x1]
  %v4042 = vmul.f32 %v3963, %v3970
  %v4043 = vsub.f32 %v4041, %v4042
  %v4045 = vlaneseq
  %v4046 = vshrl.u32 %v4045, 7
  %v4047 = vsub.s32 0, %v4046
  %v4048 = vrot.slane %v4043, %v4047
  %v4050 = vadd.f32 %v3977, %v4048
  %v4051 = vadd.f32 %v3978, %v4048
  %v4052 = vadd.f32 %v3979, %v4048
  %v4053 = vadd.f32 %v3980, %v4048
  %v4054 = vadd.f32 %v3981, %v4048
  %v4055 = vadd.f32 %v3982, %v4048
  %v4056 = vadd.f32 %v3983, %v4048
  %v4057 = vadd.f32 %v3984, %v4048
  %v4058 = vadd.f32 %v3985, %v4048
  %v4059 = vadd.f32 %v3986, %v4048
  %v4060 = vadd.f32 %v3987, %v4048
  %v4061 = vadd.f32 %v3988, %v4048
  %v4062 = vadd.f32 %v3989, %v4048
  %v4063 = vadd.f32 %v3990, %v4048
  %v4064 = vadd.f32 %v3991, %v4048
  %v4065 = vadd.f32 %v3992, %v4048
  %v4066 = vadd.f32 %v3993, %v4048
  %v4067 = vadd.f32 %v3994, %v4048
  %v4068 = vadd.f32 %v3995, %v4048
  %v4069 = vadd.f32 %v3996, %v4048
  %v4070 = vadd.f32 %v3997, %v4048
  %v4071 = vadd.f32 %v3998, %v4048
  %v4072 = vadd.f32 %v3999, %v4048
  %v4073 = vadd.f32 %v4000, %v4048
  %v4074 = vadd.f32 %v4001, %v4048
  %v4075 = vadd.f32 %v4002, %v4048
  %v4076 = vadd.f32 %v4003, %v4048
  %v4077 = vadd.f32 %v4004, %v4048
  %v4078 = vadd.f32 %v4005, %v4048
  %v4079 = vadd.f32 %v4006, %v4048
  %v4080 = vadd.f32 %v4007, %v4048
  %v4081 = vadd.f32 %v4008, %v4048
  %v4082 = vadd.f32 %v4009, %v4048
  %v4083 = vadd.f32 %v4010, %v4048
  %v4084 = vadd.f32 %v4011, %v4048
  %v4085 = vadd.f32 %v4012, %v4048
  %v4086 = vadd.f32 %v4013, %v4048
  %v4087 = vadd.f32 %v4014, %v4048
  %v4088 = vadd.f32 %v4015, %v4048
  %v4089 = vadd.f32 %v4016, %v4048
  %v4090 = vadd.f32 %v4017, %v4048
  %v4091 = vadd.f32 %v4018, %v4048
  %v4092 = vadd.f32 %v4019, %v4048
  %v4093 = vadd.f32 %v4020, %v4048
  %v4094 = vadd.f32 %v4021, %v4048
  %v4095 = vadd.f32 %v4022, %v4048
  %v4096 = vadd.f32 %v4023, %v4048
  %v4097 = vadd.f32 %v4024, %v4048
  %v4098 = vadd.f32 %v4025, %v4048
  %v4099 = vadd.f32 %v4026, %v4048
  %v4100 = vadd.f32 %v4027, %v4048
  %v4101 = vadd.f32 %v4028, %v4048
  %v4102 = vadd.f32 %v4029, %v4048
  %v4103 = vadd.f32 %v4030, %v4048
  %v4104 = vadd.f32 %v4031, %v4048
  %v4105 = vadd.f32 %v4032, %v4048
  %v4106 = vadd.f32 %v4033, %v4048
  %v4107 = vadd.f32 %v4034, %v4048
  %v4108 = vadd.f32 %v4035, %v4048
  %v4109 = vadd.f32 %v4036, %v4048
  %v4110 = vadd.f32 %v4037, %v4048
  %v4111 = vadd.f32 %v4038, %v4048
  %v4112 = vadd.f32 %v4039, %v4048
  %v4113 = vadd.f32 %v4040, %v4048
  %v4114 = vmax.f32 %v4050, 0.0
  %v4115 = vmax.f32 %v4051, 0.0
  %v4116 = vmax.f32 %v4052, 0.0
  %v4117 = vmax.f32 %v4053, 0.0
  %v4118 = vmax.f32 %v4054, 0.0
  %v4119 = vmax.f32 %v4055, 0.0
  %v4120 = vmax.f32 %v4056, 0.0
  %v4121 = vmax.f32 %v4057, 0.0
  %v4122 = vmax.f32 %v4058, 0.0
  %v4123 = vmax.f32 %v4059, 0.0
  %v4124 = vmax.f32 %v4060, 0.0
  %v4125 = vmax.f32 %v4061, 0.0
  %v4126 = vmax.f32 %v4062, 0.0
  %v4127 = vmax.f32 %v4063, 0.0
  %v4128 = vmax.f32 %v4064, 0.0
  %v4129 = vmax.f32 %v4065, 0.0
  %v4130 = vmax.f32 %v4066, 0.0
  %v4131 = vmax.f32 %v4067, 0.0
  %v4132 = vmax.f32 %v4068, 0.0
  %v4133 = vmax.f32 %v4069, 0.0
  %v4134 = vmax.f32 %v4070, 0.0
  %v4135 = vmax.f32 %v4071, 0.0
  %v4136 = vmax.f32 %v4072, 0.0
  %v4137 = vmax.f32 %v4073, 0.0
  %v4138 = vmax.f32 %v4074, 0.0
  %v4139 = vmax.f32 %v4075, 0.0
  %v4140 = vmax.f32 %v4076, 0.0
  %v4141 = vmax.f32 %v4077, 0.0
  %v4142 = vmax.f32 %v4078, 0.0
  %v4143 = vmax.f32 %v4079, 0.0
  %v4144 = vmax.f32 %v4080, 0.0
  %v4145 = vmax.f32 %v4081, 0.0
  %v4146 = vmax.f32 %v4082, 0.0
  %v4147 = vmax.f32 %v4083, 0.0
  %v4148 = vmax.f32 %v4084, 0.0
  %v4149 = vmax.f32 %v4085, 0.0
  %v4150 = vmax.f32 %v4086, 0.0
  %v4151 = vmax.f32 %v4087, 0.0
  %v4152 = vmax.f32 %v4088, 0.0
  %v4153 = vmax.f32 %v4089, 0.0
  %v4154 = vmax.f32 %v4090, 0.0
  %v4155 = vmax.f32 %v4091, 0.0
  %v4156 = vmax.f32 %v4092, 0.0
  %v4157 = vmax.f32 %v4093, 0.0
  %v4158 = vmax.f32 %v4094, 0.0
  %v4159 = vmax.f32 %v4095, 0.0
  %v4160 = vmax.f32 %v4096, 0.0
  %v4161 = vmax.f32 %v4097, 0.0
  %v4162 = vmax.f32 %v4098, 0.0
  %v4163 = vmax.f32 %v4099, 0.0
  %v4164 = vmax.f32 %v4100, 0.0
  %v4165 = vmax.f32 %v4101, 0.0
  %v4166 = vmax.f32 %v4102, 0.0
  %v4167 = vmax.f32 %v4103, 0.0
  %v4168 = vmax.f32 %v4104, 0.0
  %v4169 = vmax.f32 %v4105, 0.0
  %v4170 = vmax.f32 %v4106, 0.0
  %v4171 = vmax.f32 %v4107, 0.0
  %v4172 = vmax.f32 %v4108, 0.0
  %v4173 = vmax.f32 %v4109, 0.0
  %v4174 = vmax.f32 %v4110, 0.0
  %v4175 = vmax.f32 %v4111, 0.0
  %v4176 = vmax.f32 %v4112, 0.0
  %v4177 = vmax.f32 %v4113, 0.0
  %s4178 = scalar_lea.vmem [#allocation2], 24
  %4179 = vst.msk [vmem:[%s4178 + $0x1] sm:$0xff] %vm94, %v4114
  %4180 = vst.msk [vmem:[%s4178 + $0x9] sm:$0xff] %vm94, %v4115
  %4181 = vst.msk [vmem:[%s4178 + $0x19] sm:$0xff] %vm94, %v4116
  %4182 = vst.msk [vmem:[%s4178 + $0x21] sm:$0xff] %vm94, %v4117
  %4183 = vst.msk [vmem:[%s4178 + $0x31] sm:$0xff] %vm94, %v4118
  %4184 = vst.msk [vmem:[%s4178 + $0x39] sm:$0xff] %vm94, %v4119
  %4185 = vst.msk [vmem:[%s4178 + $0x49] sm:$0xff] %vm94, %v4120
  %4186 = vst.msk [vmem:[%s4178 + $0x51] sm:$0xff] %vm94, %v4121
  %4187 = vst.msk [vmem:[%s4178 + $0x61] sm:$0xff] %vm94, %v4122
  %4188 = vst.msk [vmem:[%s4178 + $0x69] sm:$0xff] %vm94, %v4123
  %4189 = vst.msk [vmem:[%s4178 + $0x79] sm:$0xff] %vm94, %v4124
  %4190 = vst.msk [vmem:[%s4178 + $0x81] sm:$0xff] %vm94, %v4125
  %4191 = vst.msk [vmem:[%s4178 + $0x91] sm:$0xff] %vm94, %v4126
  %4192 = vst.msk [vmem:[%s4178 + $0x99] sm:$0xff] %vm94, %v4127
  %4193 = vst.msk [vmem:[%s4178 + $0xa9] sm:$0xff] %vm94, %v4128
  %4194 = vst.msk [vmem:[%s4178 + $0xb1] sm:$0xff] %vm94, %v4129
  %4195 = vst.msk [vmem:[%s4178 + $0xc1] sm:$0xff] %vm94, %v4130
  %4196 = vst.msk [vmem:[%s4178 + $0xc9] sm:$0xff] %vm94, %v4131
  %4197 = vst.msk [vmem:[%s4178 + $0xd9] sm:$0xff] %vm94, %v4132
  %4198 = vst.msk [vmem:[%s4178 + $0xe1] sm:$0xff] %vm94, %v4133
  %4199 = vst.msk [vmem:[%s4178 + $0xf1] sm:$0xff] %vm94, %v4134
  %4200 = vst.msk [vmem:[%s4178 + $0xf9] sm:$0xff] %vm94, %v4135
  %4201 = vst.msk [vmem:[%s4178 + $0x109] sm:$0xff] %vm94, %v4136
  %4202 = vst.msk [vmem:[%s4178 + $0x111] sm:$0xff] %vm94, %v4137
  %4203 = vst.msk [vmem:[%s4178 + $0x121] sm:$0xff] %vm94, %v4138
  %4204 = vst.msk [vmem:[%s4178 + $0x129] sm:$0xff] %vm94, %v4139
  %4205 = vst.msk [vmem:[%s4178 + $0x139] sm:$0xff] %vm94, %v4140
  %4206 = vst.msk [vmem:[%s4178 + $0x141] sm:$0xff] %vm94, %v4141
  %4207 = vst.msk [vmem:[%s4178 + $0x151] sm:$0xff] %vm94, %v4142
  %4208 = vst.msk [vmem:[%s4178 + $0x159] sm:$0xff] %vm94, %v4143
  %4209 = vst.msk [vmem:[%s4178 + $0x169] sm:$0xff] %vm94, %v4144
  %4210 = vst.msk [vmem:[%s4178 + $0x171] sm:$0xff] %vm94, %v4145
  %4211 = vst.msk [vmem:[%s4178 + $0x1b1] sm:$0xff] %vm94, %v4146
  %4212 = vst.msk [vmem:[%s4178 + $0x1b9] sm:$0xff] %vm94, %v4147
  %4213 = vst.msk [vmem:[%s4178 + $0x1c9] sm:$0xff] %vm94, %v4148
  %4214 = vst.msk [vmem:[%s4178 + $0x1d1] sm:$0xff] %vm94, %v4149
  %4215 = vst.msk [vmem:[%s4178 + $0x1e1] sm:$0xff] %vm94, %v4150
  %4216 = vst.msk [vmem:[%s4178 + $0x1e9] sm:$0xff] %vm94, %v4151
  %4217 = vst.msk [vmem:[%s4178 + $0x1f9] sm:$0xff] %vm94, %v4152
  %4218 = vst.msk [vmem:[%s4178 + $0x201] sm:$0xff] %vm94, %v4153
  %4219 = vst.msk [vmem:[%s4178 + $0x211] sm:$0xff] %vm94, %v4154
  %4220 = vst.msk [vmem:[%s4178 + $0x219] sm:$0xff] %vm94, %v4155
  %4221 = vst.msk [vmem:[%s4178 + $0x229] sm:$0xff] %vm94, %v4156
  %4222 = vst.msk [vmem:[%s4178 + $0x231] sm:$0xff] %vm94, %v4157
  %4223 = vst.msk [vmem:[%s4178 + $0x241] sm:$0xff] %vm94, %v4158
  %4224 = vst.msk [vmem:[%s4178 + $0x249] sm:$0xff] %vm94, %v4159
  %4225 = vst.msk [vmem:[%s4178 + $0x259] sm:$0xff] %vm94, %v4160
  %4226 = vst.msk [vmem:[%s4178 + $0x261] sm:$0xff] %vm94, %v4161
  %4227 = vst.msk [vmem:[%s4178 + $0x271] sm:$0xff] %vm94, %v4162
  %4228 = vst.msk [vmem:[%s4178 + $0x279] sm:$0xff] %vm94, %v4163
  %4229 = vst.msk [vmem:[%s4178 + $0x289] sm:$0xff] %vm94, %v4164
  %4230 = vst.msk [vmem:[%s4178 + $0x291] sm:$0xff] %vm94, %v4165
  %4231 = vst.msk [vmem:[%s4178 + $0x2a1] sm:$0xff] %vm94, %v4166
  %4232 = vst.msk [vmem:[%s4178 + $0x2a9] sm:$0xff] %vm94, %v4167
  %4233 = vst.msk [vmem:[%s4178 + $0x2b9] sm:$0xff] %vm94, %v4168
  %4234 = vst.msk [vmem:[%s4178 + $0x2c1] sm:$0xff] %vm94, %v4169
  %4235 = vst.msk [vmem:[%s4178 + $0x2d1] sm:$0xff] %vm94, %v4170
  %4236 = vst.msk [vmem:[%s4178 + $0x2d9] sm:$0xff] %vm94, %v4171
  %4237 = vst.msk [vmem:[%s4178 + $0x2e9] sm:$0xff] %vm94, %v4172
  %4238 = vst.msk [vmem:[%s4178 + $0x2f1] sm:$0xff] %vm94, %v4173
  %4239 = vst.msk [vmem:[%s4178 + $0x301] sm:$0xff] %vm94, %v4174
  %4240 = vst.msk [vmem:[%s4178 + $0x309] sm:$0xff] %vm94, %v4175
  %4241 = vst.msk [vmem:[%s4178 + $0x319] sm:$0xff] %vm94, %v4176
  %4242 = vst.msk [vmem:[%s4178 + $0x321] sm:$0xff] %vm94, %v4177
  %4243 = vst.msk [vmem:[#allocation2] sm:$0xff] %vm94, 0.0
  %4244 = vst.msk [vmem:[#allocation2 + $0x8] sm:$0xff] %vm94, 0.0
  %vm4245 = vcmask 123904
  %4246 = vst.msk [vmem:[#allocation2 + $0x10] sm:$0x3] %vm4245, 0.0
  %4247 = vst.msk [vmem:[#allocation2 + $0x1b0] sm:$0xff] %vm94, 0.0
  %4248 = vst.msk [vmem:[#allocation2 + $0x1b8] sm:$0xff] %vm94, 0.0
  %4249 = vst.msk [vmem:[#allocation2 + $0x1c0] sm:$0x3] %vm4245, 0.0
  %s4250 = scalar_lea.vmem [#allocation2], 408
  %4251 = vst.msk [vmem:[%s4250] sm:$0xff] %vm94, 0.0
  %4252 = vst.msk [vmem:[%s4250 + $0x8] sm:$0xff] %vm94, 0.0
  %4253 = vst.msk [vmem:[%s4250 + $0x10] sm:$0x3] %vm4245, 0.0
  %4254 = vst.msk [vmem:[%s4250 + $0x1b0] sm:$0xff] %vm94, 0.0
  %4255 = vst.msk [vmem:[%s4250 + $0x1b8] sm:$0xff] %vm94, 0.0
  %4256 = vst.msk [vmem:[%s4250 + $0x1c0] sm:$0x3] %vm4245, 0.0
  %vm4257 = vcmask 122880
  %4258 = vst.msk [vmem:[#allocation2] sm:$0x1] %vm4257, 0.0
  %4259 = vst.msk [vmem:[#allocation2 + $0x18] sm:$0x1] %vm4257, 0.0
  %4260 = vst.msk [vmem:[#allocation2 + $0x30] sm:$0x1] %vm4257, 0.0
  %4261 = vst.msk [vmem:[#allocation2 + $0x48] sm:$0x1] %vm4257, 0.0
  %4262 = vst.msk [vmem:[#allocation2 + $0x60] sm:$0x1] %vm4257, 0.0
  %4263 = vst.msk [vmem:[#allocation2 + $0x78] sm:$0x1] %vm4257, 0.0
  %4264 = vst.msk [vmem:[#allocation2 + $0x90] sm:$0x1] %vm4257, 0.0
  %4265 = vst.msk [vmem:[#allocation2 + $0xa8] sm:$0x1] %vm4257, 0.0
  %4266 = vst.msk [vmem:[#allocation2 + $0xc0] sm:$0x1] %vm4257, 0.0
  %4267 = vst.msk [vmem:[#allocation2 + $0xd8] sm:$0x1] %vm4257, 0.0
  %4268 = vst.msk [vmem:[#allocation2 + $0xf0] sm:$0x1] %vm4257, 0.0
  %4269 = vst.msk [vmem:[#allocation2 + $0x108] sm:$0x1] %vm4257, 0.0
  %4270 = vst.msk [vmem:[#allocation2 + $0x120] sm:$0x1] %vm4257, 0.0
  %4271 = vst.msk [vmem:[#allocation2 + $0x138] sm:$0x1] %vm4257, 0.0
  %4272 = vst.msk [vmem:[#allocation2 + $0x150] sm:$0x1] %vm4257, 0.0
  %4273 = vst.msk [vmem:[#allocation2 + $0x168] sm:$0x1] %vm4257, 0.0
  %4274 = vst.msk [vmem:[#allocation2 + $0x180] sm:$0x1] %vm4257, 0.0
  %4275 = vst.msk [vmem:[#allocation2 + $0x198] sm:$0x1] %vm4257, 0.0
  %4276 = vst.msk [vmem:[#allocation2 + $0x1b0] sm:$0x1] %vm4257, 0.0
  %4277 = vst.msk [vmem:[#allocation2 + $0x1c8] sm:$0x1] %vm4257, 0.0
  %4278 = vst.msk [vmem:[#allocation2 + $0x1e0] sm:$0x1] %vm4257, 0.0
  %4279 = vst.msk [vmem:[#allocation2 + $0x1f8] sm:$0x1] %vm4257, 0.0
  %4280 = vst.msk [vmem:[#allocation2 + $0x210] sm:$0x1] %vm4257, 0.0
  %4281 = vst.msk [vmem:[#allocation2 + $0x228] sm:$0x1] %vm4257, 0.0
  %4282 = vst.msk [vmem:[#allocation2 + $0x240] sm:$0x1] %vm4257, 0.0
  %4283 = vst.msk [vmem:[#allocation2 + $0x258] sm:$0x1] %vm4257, 0.0
  %4284 = vst.msk [vmem:[#allocation2 + $0x270] sm:$0x1] %vm4257, 0.0
  %4285 = vst.msk [vmem:[#allocation2 + $0x288] sm:$0x1] %vm4257, 0.0
  %4286 = vst.msk [vmem:[#allocation2 + $0x2a0] sm:$0x1] %vm4257, 0.0
  %4287 = vst.msk [vmem:[#allocation2 + $0x2b8] sm:$0x1] %vm4257, 0.0
  %4288 = vst.msk [vmem:[#allocation2 + $0x2d0] sm:$0x1] %vm4257, 0.0
  %4289 = vst.msk [vmem:[#allocation2 + $0x2e8] sm:$0x1] %vm4257, 0.0
  %4290 = vst.msk [vmem:[#allocation2 + $0x300] sm:$0x1] %vm4257, 0.0
  %4291 = vst.msk [vmem:[#allocation2 + $0x318] sm:$0x1] %vm4257, 0.0
  %4292 = vst.msk [vmem:[#allocation2 + $0x330] sm:$0x1] %vm4257, 0.0
  %4293 = vst.msk [vmem:[#allocation2 + $0x348] sm:$0x1] %vm4257, 0.0
  %4294 = vst.msk [vmem:[#allocation2 + $0x11] sm:$0x1] %vm4257, 0.0
  %4295 = vst.msk [vmem:[#allocation2 + $0x29] sm:$0x1] %vm4257, 0.0
  %4296 = vst.msk [vmem:[#allocation2 + $0x41] sm:$0x1] %vm4257, 0.0
  %4297 = vst.msk [vmem:[#allocation2 + $0x59] sm:$0x1] %vm4257, 0.0
  %4298 = vst.msk [vmem:[#allocation2 + $0x71] sm:$0x1] %vm4257, 0.0
  %4299 = vst.msk [vmem:[#allocation2 + $0x89] sm:$0x1] %vm4257, 0.0
  %4300 = vst.msk [vmem:[#allocation2 + $0xa1] sm:$0x1] %vm4257, 0.0
  %4301 = vst.msk [vmem:[#allocation2 + $0xb9] sm:$0x1] %vm4257, 0.0
  %4302 = vst.msk [vmem:[#allocation2 + $0xd1] sm:$0x1] %vm4257, 0.0
  %4303 = vst.msk [vmem:[#allocation2 + $0xe9] sm:$0x1] %vm4257, 0.0
  %4304 = vst.msk [vmem:[#allocation2 + $0x101] sm:$0x1] %vm4257, 0.0
  %4305 = vst.msk [vmem:[#allocation2 + $0x119] sm:$0x1] %vm4257, 0.0
  %4306 = vst.msk [vmem:[#allocation2 + $0x131] sm:$0x1] %vm4257, 0.0
  %4307 = vst.msk [vmem:[#allocation2 + $0x149] sm:$0x1] %vm4257, 0.0
  %4308 = vst.msk [vmem:[#allocation2 + $0x161] sm:$0x1] %vm4257, 0.0
  %4309 = vst.msk [vmem:[#allocation2 + $0x179] sm:$0x1] %vm4257, 0.0
  %4310 = vst.msk [vmem:[#allocation2 + $0x191] sm:$0x1] %vm4257, 0.0
  %4311 = vst.msk [vmem:[#allocation2 + $0x1a9] sm:$0x1] %vm4257, 0.0
  %4312 = vst.msk [vmem:[#allocation2 + $0x1c1] sm:$0x1] %vm4257, 0.0
  %4313 = vst.msk [vmem:[#allocation2 + $0x1d9] sm:$0x1] %vm4257, 0.0
  %4314 = vst.msk [vmem:[#allocation2 + $0x1f1] sm:$0x1] %vm4257, 0.0
  %4315 = vst.msk [vmem:[#allocation2 + $0x209] sm:$0x1] %vm4257, 0.0
  %4316 = vst.msk [vmem:[#allocation2 + $0x221] sm:$0x1] %vm4257, 0.0
  %4317 = vst.msk [vmem:[#allocation2 + $0x239] sm:$0x1] %vm4257, 0.0
  %4318 = vst.msk [vmem:[#allocation2 + $0x251] sm:$0x1] %vm4257, 0.0
  %4319 = vst.msk [vmem:[#allocation2 + $0x269] sm:$0x1] %vm4257, 0.0
  %4320 = vst.msk [vmem:[#allocation2 + $0x281] sm:$0x1] %vm4257, 0.0
  %4321 = vst.msk [vmem:[#allocation2 + $0x299] sm:$0x1] %vm4257, 0.0
  %4322 = vst.msk [vmem:[#allocation2 + $0x2b1] sm:$0x1] %vm4257, 0.0
  %4323 = vst.msk [vmem:[#allocation2 + $0x2c9] sm:$0x1] %vm4257, 0.0
  %4324 = vst.msk [vmem:[#allocation2 + $0x2e1] sm:$0x1] %vm4257, 0.0
  %4325 = vst.msk [vmem:[#allocation2 + $0x2f9] sm:$0x1] %vm4257, 0.0
  %4326 = vst.msk [vmem:[#allocation2 + $0x311] sm:$0x1] %vm4257, 0.0
  %4327 = vst.msk [vmem:[#allocation2 + $0x329] sm:$0x1] %vm4257, 0.0
  %4328 = vst.msk [vmem:[#allocation2 + $0x341] sm:$0x1] %vm4257, 0.0
  %4329 = vst.msk [vmem:[#allocation2 + $0x359] sm:$0x1] %vm4257, 0.0
  %v4330 = vld [vmem:[#allocation2] sm:$0xff]
  %v4331 = vld [vmem:[#allocation2 + $0x8] sm:$0xff]
  %v4332 = vld [vmem:[#allocation2 + $0x18] sm:$0xff]
  %v4333 = vld [vmem:[#allocation2 + $0x20] sm:$0xff]
  %v4334 = vld [vmem:[#allocation2 + $0x30] sm:$0xff]
  %v4335 = vld [vmem:[#allocation2 + $0x38] sm:$0xff]
  %v4336 = vld [vmem:[#allocation2 + $0x48] sm:$0xff]
  %v4337 = vld [vmem:[#allocation2 + $0x50] sm:$0xff]
  %v4338 = vld [vmem:[#allocation2 + $0x60] sm:$0xff]
  %v4339 = vld [vmem:[#allocation2 + $0x68] sm:$0xff]
  %v4340 = vld [vmem:[#allocation2 + $0x78] sm:$0xff]
  %v4341 = vld [vmem:[#allocation2 + $0x80] sm:$0xff]
  %v4342 = vld [vmem:[#allocation2 + $0x90] sm:$0xff]
  %v4343 = vld [vmem:[#allocation2 + $0x98] sm:$0xff]
  %v4344 = vld [vmem:[#allocation2 + $0xa8] sm:$0xff]
  %v4345 = vld [vmem:[#allocation2 + $0xb0] sm:$0xff]
  %v4346 = vld [vmem:[#allocation2 + $0xc0] sm:$0xff]
  %v4347 = vld [vmem:[#allocation2 + $0xc8] sm:$0xff]
  %v4348 = vld [vmem:[#allocation2 + $0xd8] sm:$0xff]
  %v4349 = vld [vmem:[#allocation2 + $0xe0] sm:$0xff]
  %v4350 = vld [vmem:[#allocation2 + $0xf0] sm:$0xff]
  %v4351 = vld [vmem:[#allocation2 + $0xf8] sm:$0xff]
  %v4352 = vld [vmem:[#allocation2 + $0x108] sm:$0xff]
  %v4353 = vld [vmem:[#allocation2 + $0x110] sm:$0xff]
  %v4354 = vld [vmem:[#allocation2 + $0x120] sm:$0xff]
  %v4355 = vld [vmem:[#allocation2 + $0x128] sm:$0xff]
  %v4356 = vld [vmem:[#allocation2 + $0x138] sm:$0xff]
  %v4357 = vld [vmem:[#allocation2 + $0x140] sm:$0xff]
  %v4358 = vld [vmem:[#allocation2 + $0x150] sm:$0xff]
  %v4359 = vld [vmem:[#allocation2 + $0x158] sm:$0xff]
  %v4360 = vld [vmem:[#allocation2 + $0x168] sm:$0xff]
  %v4361 = vld [vmem:[#allocation2 + $0x170] sm:$0xff]
  %v4362 = vld [vmem:[#allocation2 + $0x1b0] sm:$0xff]
  %v4363 = vld [vmem:[#allocation2 + $0x1b8] sm:$0xff]
  %v4364 = vld [vmem:[#allocation2 + $0x1c8] sm:$0xff]
  %v4365 = vld [vmem:[#allocation2 + $0x1d0] sm:$0xff]
  %v4366 = vld [vmem:[#allocation2 + $0x1e0] sm:$0xff]
  %v4367 = vld [vmem:[#allocation2 + $0x1e8] sm:$0xff]
  %v4368 = vld [vmem:[#allocation2 + $0x1f8] sm:$0xff]
  %v4369 = vld [vmem:[#allocation2 + $0x200] sm:$0xff]
  %v4370 = vld [vmem:[#allocation2 + $0x210] sm:$0xff]
  %v4371 = vld [vmem:[#allocation2 + $0x218] sm:$0xff]
  %v4372 = vld [vmem:[#allocation2 + $0x228] sm:$0xff]
  %v4373 = vld [vmem:[#allocation2 + $0x230] sm:$0xff]
  %v4374 = vld [vmem:[#allocation2 + $0x240] sm:$0xff]
  %v4375 = vld [vmem:[#allocation2 + $0x248] sm:$0xff]
  %v4376 = vld [vmem:[#allocation2 + $0x258] sm:$0xff]
  %v4377 = vld [vmem:[#allocation2 + $0x260] sm:$0xff]
  %v4378 = vld [vmem:[#allocation2 + $0x270] sm:$0xff]
  %v4379 = vld [vmem:[#allocation2 + $0x278] sm:$0xff]
  %v4380 = vld [vmem:[#allocation2 + $0x288] sm:$0xff]
  %v4381 = vld [vmem:[#allocation2 + $0x290] sm:$0xff]
  %v4382 = vld [vmem:[#allocation2 + $0x2a0] sm:$0xff]
  %v4383 = vld [vmem:[#allocation2 + $0x2a8] sm:$0xff]
  %v4384 = vld [vmem:[#allocation2 + $0x2b8] sm:$0xff]
  %v4385 = vld [vmem:[#allocation2 + $0x2c0] sm:$0xff]
  %v4386 = vld [vmem:[#allocation2 + $0x2d0] sm:$0xff]
  %v4387 = vld [vmem:[#allocation2 + $0x2d8] sm:$0xff]
  %v4388 = vld [vmem:[#allocation2 + $0x2e8] sm:$0xff]
  %v4389 = vld [vmem:[#allocation2 + $0x2f0] sm:$0xff]
  %v4390 = vld [vmem:[#allocation2 + $0x300] sm:$0xff]
  %v4391 = vld [vmem:[#allocation2 + $0x308] sm:$0xff]
  %v4392 = vld [vmem:[#allocation2 + $0x318] sm:$0xff]
  %v4393 = vld [vmem:[#allocation2 + $0x320] sm:$0xff]
  %4394 = vst.msk [vmem:[#allocation4] sm:$0xff] %vm94, %v4330
  %4395 = vst.msk [vmem:[#allocation4 + $0x10] sm:$0xff] %vm94, %v4331
  %4396 = vst.msk [vmem:[#allocation4 + $0x20] sm:$0xff] %vm94, %v4332
  %4397 = vst.msk [vmem:[#allocation4 + $0x30] sm:$0xff] %vm94, %v4333
  %4398 = vst.msk [vmem:[#allocation4 + $0x40] sm:$0xff] %vm94, %v4334
  %4399 = vst.msk [vmem:[#allocation4 + $0x50] sm:$0xff] %vm94, %v4335
  %4400 = vst.msk [vmem:[#allocation4 + $0x60] sm:$0xff] %vm94, %v4336
  %4401 = vst.msk [vmem:[#allocation4 + $0x70] sm:$0xff] %vm94, %v4337
  %4402 = vst.msk [vmem:[#allocation4 + $0x80] sm:$0xff] %vm94, %v4338
  %4403 = vst.msk [vmem:[#allocation4 + $0x90] sm:$0xff] %vm94, %v4339
  %4404 = vst.msk [vmem:[#allocation4 + $0xa0] sm:$0xff] %vm94, %v4340
  %4405 = vst.msk [vmem:[#allocation4 + $0xb0] sm:$0xff] %vm94, %v4341
  %4406 = vst.msk [vmem:[#allocation4 + $0xc0] sm:$0xff] %vm94, %v4342
  %4407 = vst.msk [vmem:[#allocation4 + $0xd0] sm:$0xff] %vm94, %v4343
  %4408 = vst.msk [vmem:[#allocation4 + $0xe0] sm:$0xff] %vm94, %v4344
  %4409 = vst.msk [vmem:[#allocation4 + $0xf0] sm:$0xff] %vm94, %v4345
  %4410 = vst.msk [vmem:[#allocation4 + $0x100] sm:$0xff] %vm94, %v4346
  %4411 = vst.msk [vmem:[#allocation4 + $0x110] sm:$0xff] %vm94, %v4347
  %4412 = vst.msk [vmem:[#allocation4 + $0x120] sm:$0xff] %vm94, %v4348
  %4413 = vst.msk [vmem:[#allocation4 + $0x130] sm:$0xff] %vm94, %v4349
  %4414 = vst.msk [vmem:[#allocation4 + $0x140] sm:$0xff] %vm94, %v4350
  %4415 = vst.msk [vmem:[#allocation4 + $0x150] sm:$0xff] %vm94, %v4351
  %4416 = vst.msk [vmem:[#allocation4 + $0x160] sm:$0xff] %vm94, %v4352
  %4417 = vst.msk [vmem:[#allocation4 + $0x170] sm:$0xff] %vm94, %v4353
  %4418 = vst.msk [vmem:[#allocation4 + $0x180] sm:$0xff] %vm94, %v4354
  %4419 = vst.msk [vmem:[#allocation4 + $0x190] sm:$0xff] %vm94, %v4355
  %4420 = vst.msk [vmem:[#allocation4 + $0x1a0] sm:$0xff] %vm94, %v4356
  %4421 = vst.msk [vmem:[#allocation4 + $0x1b0] sm:$0xff] %vm94, %v4357
  %4422 = vst.msk [vmem:[#allocation4 + $0x1c0] sm:$0xff] %vm94, %v4358
  %4423 = vst.msk [vmem:[#allocation4 + $0x1d0] sm:$0xff] %vm94, %v4359
  %4424 = vst.msk [vmem:[#allocation4 + $0x1e0] sm:$0xff] %vm94, %v4360
  %4425 = vst.msk [vmem:[#allocation4 + $0x1f0] sm:$0xff] %vm94, %v4361
  %4426 = vst.msk [vmem:[#allocation4 + $0x200] sm:$0xff] %vm94, %v4362
  %4427 = vst.msk [vmem:[#allocation4 + $0x210] sm:$0xff] %vm94, %v4363
  %4428 = vst.msk [vmem:[#allocation4 + $0x220] sm:$0xff] %vm94, %v4364
  %4429 = vst.msk [vmem:[#allocation4 + $0x230] sm:$0xff] %vm94, %v4365
  %4430 = vst.msk [vmem:[#allocation4 + $0x240] sm:$0xff] %vm94, %v4366
  %4431 = vst.msk [vmem:[#allocation4 + $0x250] sm:$0xff] %vm94, %v4367
  %4432 = vst.msk [vmem:[#allocation4 + $0x260] sm:$0xff] %vm94, %v4368
  %4433 = vst.msk [vmem:[#allocation4 + $0x270] sm:$0xff] %vm94, %v4369
  %4434 = vst.msk [vmem:[#allocation4 + $0x280] sm:$0xff] %vm94, %v4370
  %4435 = vst.msk [vmem:[#allocation4 + $0x290] sm:$0xff] %vm94, %v4371
  %4436 = vst.msk [vmem:[#allocation4 + $0x2a0] sm:$0xff] %vm94, %v4372
  %4437 = vst.msk [vmem:[#allocation4 + $0x2b0] sm:$0xff] %vm94, %v4373
  %4438 = vst.msk [vmem:[#allocation4 + $0x2c0] sm:$0xff] %vm94, %v4374
  %4439 = vst.msk [vmem:[#allocation4 + $0x2d0] sm:$0xff] %vm94, %v4375
  %4440 = vst.msk [vmem:[#allocation4 + $0x2e0] sm:$0xff] %vm94, %v4376
  %4441 = vst.msk [vmem:[#allocation4 + $0x2f0] sm:$0xff] %vm94, %v4377
  %4442 = vst.msk [vmem:[#allocation4 + $0x300] sm:$0xff] %vm94, %v4378
  %4443 = vst.msk [vmem:[#allocation4 + $0x310] sm:$0xff] %vm94, %v4379
  %4444 = vst.msk [vmem:[#allocation4 + $0x320] sm:$0xff] %vm94, %v4380
  %4445 = vst.msk [vmem:[#allocation4 + $0x330] sm:$0xff] %vm94, %v4381
  %4446 = vst.msk [vmem:[#allocation4 + $0x340] sm:$0xff] %vm94, %v4382
  %4447 = vst.msk [vmem:[#allocation4 + $0x350] sm:$0xff] %vm94, %v4383
  %4448 = vst.msk [vmem:[#allocation4 + $0x360] sm:$0xff] %vm94, %v4384
  %4449 = vst.msk [vmem:[#allocation4 + $0x370] sm:$0xff] %vm94, %v4385
  %4450 = vst.msk [vmem:[#allocation4 + $0x380] sm:$0xff] %vm94, %v4386
  %4451 = vst.msk [vmem:[#allocation4 + $0x390] sm:$0xff] %vm94, %v4387
  %4452 = vst.msk [vmem:[#allocation4 + $0x3a0] sm:$0xff] %vm94, %v4388
  %4453 = vst.msk [vmem:[#allocation4 + $0x3b0] sm:$0xff] %vm94, %v4389
  %4454 = vst.msk [vmem:[#allocation4 + $0x3c0] sm:$0xff] %vm94, %v4390
  %4455 = vst.msk [vmem:[#allocation4 + $0x3d0] sm:$0xff] %vm94, %v4391
  %4456 = vst.msk [vmem:[#allocation4 + $0x3e0] sm:$0xff] %vm94, %v4392
  %4457 = vst.msk [vmem:[#allocation4 + $0x3f0] sm:$0xff] %vm94, %v4393
  %v4458 = vld [vmem:[#allocation2 + $0x1] sm:$0xff]
  %v4459 = vld [vmem:[#allocation2 + $0x9] sm:$0xff]
  %v4460 = vld [vmem:[#allocation2 + $0x19] sm:$0xff]
  %v4461 = vld [vmem:[#allocation2 + $0x21] sm:$0xff]
  %v4462 = vld [vmem:[#allocation2 + $0x31] sm:$0xff]
  %v4463 = vld [vmem:[#allocation2 + $0x39] sm:$0xff]
  %v4464 = vld [vmem:[#allocation2 + $0x49] sm:$0xff]
  %v4465 = vld [vmem:[#allocation2 + $0x51] sm:$0xff]
  %v4466 = vld [vmem:[#allocation2 + $0x61] sm:$0xff]
  %v4467 = vld [vmem:[#allocation2 + $0x69] sm:$0xff]
  %v4468 = vld [vmem:[#allocation2 + $0x79] sm:$0xff]
  %v4469 = vld [vmem:[#allocation2 + $0x81] sm:$0xff]
  %v4470 = vld [vmem:[#allocation2 + $0x91] sm:$0xff]
  %v4471 = vld [vmem:[#allocation2 + $0x99] sm:$0xff]
  %v4472 = vld [vmem:[#allocation2 + $0xa9] sm:$0xff]
  %v4473 = vld [vmem:[#allocation2 + $0xb1] sm:$0xff]
  %v4474 = vld [vmem:[#allocation2 + $0xc1] sm:$0xff]
  %v4475 = vld [vmem:[#allocation2 + $0xc9] sm:$0xff]
  %v4476 = vld [vmem:[#allocation2 + $0xd9] sm:$0xff]
  %v4477 = vld [vmem:[#allocation2 + $0xe1] sm:$0xff]
  %v4478 = vld [vmem:[#allocation2 + $0xf1] sm:$0xff]
  %v4479 = vld [vmem:[#allocation2 + $0xf9] sm:$0xff]
  %v4480 = vld [vmem:[#allocation2 + $0x109] sm:$0xff]
  %v4481 = vld [vmem:[#allocation2 + $0x111] sm:$0xff]
  %v4482 = vld [vmem:[#allocation2 + $0x121] sm:$0xff]
  %v4483 = vld [vmem:[#allocation2 + $0x129] sm:$0xff]
  %v4484 = vld [vmem:[#allocation2 + $0x139] sm:$0xff]
  %v4485 = vld [vmem:[#allocation2 + $0x141] sm:$0xff]
  %v4486 = vld [vmem:[#allocation2 + $0x151] sm:$0xff]
  %v4487 = vld [vmem:[#allocation2 + $0x159] sm:$0xff]
  %v4488 = vld [vmem:[#allocation2 + $0x169] sm:$0xff]
  %v4489 = vld [vmem:[#allocation2 + $0x171] sm:$0xff]
  %v4490 = vld [vmem:[#allocation2 + $0x1b1] sm:$0xff]
  %v4491 = vld [vmem:[#allocation2 + $0x1b9] sm:$0xff]
  %v4492 = vld [vmem:[#allocation2 + $0x1c9] sm:$0xff]
  %v4493 = vld [vmem:[#allocation2 + $0x1d1] sm:$0xff]
  %v4494 = vld [vmem:[#allocation2 + $0x1e1] sm:$0xff]
  %v4495 = vld [vmem:[#allocation2 + $0x1e9] sm:$0xff]
  %v4496 = vld [vmem:[#allocation2 + $0x1f9] sm:$0xff]
  %v4497 = vld [vmem:[#allocation2 + $0x201] sm:$0xff]
  %v4498 = vld [vmem:[#allocation2 + $0x211] sm:$0xff]
  %v4499 = vld [vmem:[#allocation2 + $0x219] sm:$0xff]
  %v4500 = vld [vmem:[#allocation2 + $0x229] sm:$0xff]
  %v4501 = vld [vmem:[#allocation2 + $0x231] sm:$0xff]
  %v4502 = vld [vmem:[#allocation2 + $0x241] sm:$0xff]
  %v4503 = vld [vmem:[#allocation2 + $0x249] sm:$0xff]
  %v4504 = vld [vmem:[#allocation2 + $0x259] sm:$0xff]
  %v4505 = vld [vmem:[#allocation2 + $0x261] sm:$0xff]
  %v4506 = vld [vmem:[#allocation2 + $0x271] sm:$0xff]
  %v4507 = vld [vmem:[#allocation2 + $0x279] sm:$0xff]
  %v4508 = vld [vmem:[#allocation2 + $0x289] sm:$0xff]
  %v4509 = vld [vmem:[#allocation2 + $0x291] sm:$0xff]
  %v4510 = vld [vmem:[#allocation2 + $0x2a1] sm:$0xff]
  %v4511 = vld [vmem:[#allocation2 + $0x2a9] sm:$0xff]
  %v4512 = vld [vmem:[#allocation2 + $0x2b9] sm:$0xff]
  %v4513 = vld [vmem:[#allocation2 + $0x2c1] sm:$0xff]
  %v4514 = vld [vmem:[#allocation2 + $0x2d1] sm:$0xff]
  %v4515 = vld [vmem:[#allocation2 + $0x2d9] sm:$0xff]
  %v4516 = vld [vmem:[#allocation2 + $0x2e9] sm:$0xff]
  %v4517 = vld [vmem:[#allocation2 + $0x2f1] sm:$0xff]
  %v4518 = vld [vmem:[#allocation2 + $0x301] sm:$0xff]
  %v4519 = vld [vmem:[#allocation2 + $0x309] sm:$0xff]
  %v4520 = vld [vmem:[#allocation2 + $0x319] sm:$0xff]
  %v4521 = vld [vmem:[#allocation2 + $0x321] sm:$0xff]
  %4586 = vrot.lane.b32.xlu0 %v4458, 16
  %v4587 = vpop.permute.xlu0 %4586
  %4588 = vrot.lane.b32.xlu0 %v4459, 16
  %v4589 = vpop.permute.xlu0 %4588
  %4590 = vrot.lane.b32.xlu0 %v4460, 16
  %v4591 = vpop.permute.xlu0 %4590
  %4592 = vrot.lane.b32.xlu0 %v4461, 16
  %v4593 = vpop.permute.xlu0 %4592
  %4594 = vrot.lane.b32.xlu0 %v4462, 16
  %v4595 = vpop.permute.xlu0 %4594
  %4596 = vrot.lane.b32.xlu0 %v4463, 16
  %v4597 = vpop.permute.xlu0 %4596
  %4598 = vrot.lane.b32.xlu0 %v4464, 16
  %v4599 = vpop.permute.xlu0 %4598
  %4600 = vrot.lane.b32.xlu0 %v4465, 16
  %v4601 = vpop.permute.xlu0 %4600
  %4602 = vrot.lane.b32.xlu0 %v4466, 16
  %v4603 = vpop.permute.xlu0 %4602
  %4604 = vrot.lane.b32.xlu0 %v4467, 16
  %v4605 = vpop.permute.xlu0 %4604
  %4606 = vrot.lane.b32.xlu0 %v4468, 16
  %v4607 = vpop.permute.xlu0 %4606
  %4608 = vrot.lane.b32.xlu0 %v4469, 16
  %v4609 = vpop.permute.xlu0 %4608
  %4610 = vrot.lane.b32.xlu0 %v4470, 16
  %v4611 = vpop.permute.xlu0 %4610
  %4612 = vrot.lane.b32.xlu0 %v4471, 16
  %v4613 = vpop.permute.xlu0 %4612
  %4614 = vrot.lane.b32.xlu0 %v4472, 16
  %v4615 = vpop.permute.xlu0 %4614
  %4616 = vrot.lane.b32.xlu0 %v4473, 16
  %v4617 = vpop.permute.xlu0 %4616
  %4618 = vrot.lane.b32.xlu0 %v4474, 16
  %v4619 = vpop.permute.xlu0 %4618
  %4620 = vrot.lane.b32.xlu0 %v4475, 16
  %v4621 = vpop.permute.xlu0 %4620
  %4622 = vrot.lane.b32.xlu0 %v4476, 16
  %v4623 = vpop.permute.xlu0 %4622
  %4624 = vrot.lane.b32.xlu0 %v4477, 16
  %v4625 = vpop.permute.xlu0 %4624
  %4626 = vrot.lane.b32.xlu0 %v4478, 16
  %v4627 = vpop.permute.xlu0 %4626
  %4628 = vrot.lane.b32.xlu0 %v4479, 16
  %v4629 = vpop.permute.xlu0 %4628
  %4630 = vrot.lane.b32.xlu0 %v4480, 16
  %v4631 = vpop.permute.xlu0 %4630
  %4632 = vrot.lane.b32.xlu0 %v4481, 16
  %v4633 = vpop.permute.xlu0 %4632
  %4634 = vrot.lane.b32.xlu0 %v4482, 16
  %v4635 = vpop.permute.xlu0 %4634
  %4636 = vrot.lane.b32.xlu0 %v4483, 16
  %v4637 = vpop.permute.xlu0 %4636
  %4638 = vrot.lane.b32.xlu0 %v4484, 16
  %v4639 = vpop.permute.xlu0 %4638
  %4640 = vrot.lane.b32.xlu0 %v4485, 16
  %v4641 = vpop.permute.xlu0 %4640
  %4642 = vrot.lane.b32.xlu0 %v4486, 16
  %v4643 = vpop.permute.xlu0 %4642
  %4644 = vrot.lane.b32.xlu0 %v4487, 16
  %v4645 = vpop.permute.xlu0 %4644
  %4646 = vrot.lane.b32.xlu0 %v4488, 16
  %v4647 = vpop.permute.xlu0 %4646
  %4648 = vrot.lane.b32.xlu0 %v4489, 16
  %v4649 = vpop.permute.xlu0 %4648
  %4650 = vrot.lane.b32.xlu0 %v4490, 16
  %v4651 = vpop.permute.xlu0 %4650
  %4652 = vrot.lane.b32.xlu0 %v4491, 16
  %v4653 = vpop.permute.xlu0 %4652
  %4654 = vrot.lane.b32.xlu0 %v4492, 16
  %v4655 = vpop.permute.xlu0 %4654
  %4656 = vrot.lane.b32.xlu0 %v4493, 16
  %v4657 = vpop.permute.xlu0 %4656
  %4658 = vrot.lane.b32.xlu0 %v4494, 16
  %v4659 = vpop.permute.xlu0 %4658
  %4660 = vrot.lane.b32.xlu0 %v4495, 16
  %v4661 = vpop.permute.xlu0 %4660
  %4662 = vrot.lane.b32.xlu0 %v4496, 16
  %v4663 = vpop.permute.xlu0 %4662
  %4664 = vrot.lane.b32.xlu0 %v4497, 16
  %v4665 = vpop.permute.xlu0 %4664
  %4666 = vrot.lane.b32.xlu0 %v4498, 16
  %v4667 = vpop.permute.xlu0 %4666
  %4668 = vrot.lane.b32.xlu0 %v4499, 16
  %v4669 = vpop.permute.xlu0 %4668
  %4670 = vrot.lane.b32.xlu0 %v4500, 16
  %v4671 = vpop.permute.xlu0 %4670
  %4672 = vrot.lane.b32.xlu0 %v4501, 16
  %v4673 = vpop.permute.xlu0 %4672
  %4674 = vrot.lane.b32.xlu0 %v4502, 16
  %v4675 = vpop.permute.xlu0 %4674
  %4676 = vrot.lane.b32.xlu0 %v4503, 16
  %v4677 = vpop.permute.xlu0 %4676
  %4678 = vrot.lane.b32.xlu0 %v4504, 16
  %v4679 = vpop.permute.xlu0 %4678
  %4680 = vrot.lane.b32.xlu0 %v4505, 16
  %v4681 = vpop.permute.xlu0 %4680
  %4682 = vrot.lane.b32.xlu0 %v4506, 16
  %v4683 = vpop.permute.xlu0 %4682
  %4684 = vrot.lane.b32.xlu0 %v4507, 16
  %v4685 = vpop.permute.xlu0 %4684
  %4686 = vrot.lane.b32.xlu0 %v4508, 16
  %v4687 = vpop.permute.xlu0 %4686
  %4688 = vrot.lane.b32.xlu0 %v4509, 16
  %v4689 = vpop.permute.xlu0 %4688
  %4690 = vrot.lane.b32.xlu0 %v4510, 16
  %v4691 = vpop.permute.xlu0 %4690
  %4692 = vrot.lane.b32.xlu0 %v4511, 16
  %v4693 = vpop.permute.xlu0 %4692
  %4694 = vrot.lane.b32.xlu0 %v4512, 16
  %v4695 = vpop.permute.xlu0 %4694
  %4696 = vrot.lane.b32.xlu0 %v4513, 16
  %v4697 = vpop.permute.xlu0 %4696
  %4698 = vrot.lane.b32.xlu0 %v4514, 16
  %v4699 = vpop.permute.xlu0 %4698
  %4700 = vrot.lane.b32.xlu0 %v4515, 16
  %v4701 = vpop.permute.xlu0 %4700
  %4702 = vrot.lane.b32.xlu0 %v4516, 16
  %v4703 = vpop.permute.xlu0 %4702
  %4704 = vrot.lane.b32.xlu0 %v4517, 16
  %v4705 = vpop.permute.xlu0 %4704
  %4706 = vrot.lane.b32.xlu0 %v4518, 16
  %v4707 = vpop.permute.xlu0 %4706
  %4708 = vrot.lane.b32.xlu0 %v4519, 16
  %v4709 = vpop.permute.xlu0 %4708
  %4710 = vrot.lane.b32.xlu0 %v4520, 16
  %v4711 = vpop.permute.xlu0 %4710
  %4712 = vrot.lane.b32.xlu0 %v4521, 16
  %v4713 = vpop.permute.xlu0 %4712
  %4778 = vst.msk [vmem:[#allocation4] sm:$0xff] %vm479, %v4587
  %4779 = vst.msk [vmem:[#allocation4 + $0x10] sm:$0xff] %vm479, %v4589
  %4780 = vst.msk [vmem:[#allocation4 + $0x20] sm:$0xff] %vm479, %v4591
  %4781 = vst.msk [vmem:[#allocation4 + $0x30] sm:$0xff] %vm479, %v4593
  %4782 = vst.msk [vmem:[#allocation4 + $0x40] sm:$0xff] %vm479, %v4595
  %4783 = vst.msk [vmem:[#allocation4 + $0x50] sm:$0xff] %vm479, %v4597
  %4784 = vst.msk [vmem:[#allocation4 + $0x60] sm:$0xff] %vm479, %v4599
  %4785 = vst.msk [vmem:[#allocation4 + $0x70] sm:$0xff] %vm479, %v4601
  %4786 = vst.msk [vmem:[#allocation4 + $0x80] sm:$0xff] %vm479, %v4603
  %4787 = vst.msk [vmem:[#allocation4 + $0x90] sm:$0xff] %vm479, %v4605
  %4788 = vst.msk [vmem:[#allocation4 + $0xa0] sm:$0xff] %vm479, %v4607
  %4789 = vst.msk [vmem:[#allocation4 + $0xb0] sm:$0xff] %vm479, %v4609
  %4790 = vst.msk [vmem:[#allocation4 + $0xc0] sm:$0xff] %vm479, %v4611
  %4791 = vst.msk [vmem:[#allocation4 + $0xd0] sm:$0xff] %vm479, %v4613
  %4792 = vst.msk [vmem:[#allocation4 + $0xe0] sm:$0xff] %vm479, %v4615
  %4793 = vst.msk [vmem:[#allocation4 + $0xf0] sm:$0xff] %vm479, %v4617
  %4794 = vst.msk [vmem:[#allocation4 + $0x100] sm:$0xff] %vm479, %v4619
  %4795 = vst.msk [vmem:[#allocation4 + $0x110] sm:$0xff] %vm479, %v4621
  %4796 = vst.msk [vmem:[#allocation4 + $0x120] sm:$0xff] %vm479, %v4623
  %4797 = vst.msk [vmem:[#allocation4 + $0x130] sm:$0xff] %vm479, %v4625
  %4798 = vst.msk [vmem:[#allocation4 + $0x140] sm:$0xff] %vm479, %v4627
  %4799 = vst.msk [vmem:[#allocation4 + $0x150] sm:$0xff] %vm479, %v4629
  %4800 = vst.msk [vmem:[#allocation4 + $0x160] sm:$0xff] %vm479, %v4631
  %4801 = vst.msk [vmem:[#allocation4 + $0x170] sm:$0xff] %vm479, %v4633
  %4802 = vst.msk [vmem:[#allocation4 + $0x180] sm:$0xff] %vm479, %v4635
  %4803 = vst.msk [vmem:[#allocation4 + $0x190] sm:$0xff] %vm479, %v4637
  %4804 = vst.msk [vmem:[#allocation4 + $0x1a0] sm:$0xff] %vm479, %v4639
  %4805 = vst.msk [vmem:[#allocation4 + $0x1b0] sm:$0xff] %vm479, %v4641
  %4806 = vst.msk [vmem:[#allocation4 + $0x1c0] sm:$0xff] %vm479, %v4643
  %4807 = vst.msk [vmem:[#allocation4 + $0x1d0] sm:$0xff] %vm479, %v4645
  %4808 = vst.msk [vmem:[#allocation4 + $0x1e0] sm:$0xff] %vm479, %v4647
  %4809 = vst.msk [vmem:[#allocation4 + $0x1f0] sm:$0xff] %vm479, %v4649
  %4810 = vst.msk [vmem:[#allocation4 + $0x200] sm:$0xff] %vm479, %v4651
  %4811 = vst.msk [vmem:[#allocation4 + $0x210] sm:$0xff] %vm479, %v4653
  %4812 = vst.msk [vmem:[#allocation4 + $0x220] sm:$0xff] %vm479, %v4655
  %4813 = vst.msk [vmem:[#allocation4 + $0x230] sm:$0xff] %vm479, %v4657
  %4814 = vst.msk [vmem:[#allocation4 + $0x240] sm:$0xff] %vm479, %v4659
  %4815 = vst.msk [vmem:[#allocation4 + $0x250] sm:$0xff] %vm479, %v4661
  %4816 = vst.msk [vmem:[#allocation4 + $0x260] sm:$0xff] %vm479, %v4663
  %4817 = vst.msk [vmem:[#allocation4 + $0x270] sm:$0xff] %vm479, %v4665
  %4818 = vst.msk [vmem:[#allocation4 + $0x280] sm:$0xff] %vm479, %v4667
  %4819 = vst.msk [vmem:[#allocation4 + $0x290] sm:$0xff] %vm479, %v4669
  %4820 = vst.msk [vmem:[#allocation4 + $0x2a0] sm:$0xff] %vm479, %v4671
  %4821 = vst.msk [vmem:[#allocation4 + $0x2b0] sm:$0xff] %vm479, %v4673
  %4822 = vst.msk [vmem:[#allocation4 + $0x2c0] sm:$0xff] %vm479, %v4675
  %4823 = vst.msk [vmem:[#allocation4 + $0x2d0] sm:$0xff] %vm479, %v4677
  %4824 = vst.msk [vmem:[#allocation4 + $0x2e0] sm:$0xff] %vm479, %v4679
  %4825 = vst.msk [vmem:[#allocation4 + $0x2f0] sm:$0xff] %vm479, %v4681
  %4826 = vst.msk [vmem:[#allocation4 + $0x300] sm:$0xff] %vm479, %v4683
  %4827 = vst.msk [vmem:[#allocation4 + $0x310] sm:$0xff] %vm479, %v4685
  %4828 = vst.msk [vmem:[#allocation4 + $0x320] sm:$0xff] %vm479, %v4687
  %4829 = vst.msk [vmem:[#allocation4 + $0x330] sm:$0xff] %vm479, %v4689
  %4830 = vst.msk [vmem:[#allocation4 + $0x340] sm:$0xff] %vm479, %v4691
  %4831 = vst.msk [vmem:[#allocation4 + $0x350] sm:$0xff] %vm479, %v4693
  %4832 = vst.msk [vmem:[#allocation4 + $0x360] sm:$0xff] %vm479, %v4695
  %4833 = vst.msk [vmem:[#allocation4 + $0x370] sm:$0xff] %vm479, %v4697
  %4834 = vst.msk [vmem:[#allocation4 + $0x380] sm:$0xff] %vm479, %v4699
  %4835 = vst.msk [vmem:[#allocation4 + $0x390] sm:$0xff] %vm479, %v4701
  %4836 = vst.msk [vmem:[#allocation4 + $0x3a0] sm:$0xff] %vm479, %v4703
  %4837 = vst.msk [vmem:[#allocation4 + $0x3b0] sm:$0xff] %vm479, %v4705
  %4838 = vst.msk [vmem:[#allocation4 + $0x3c0] sm:$0xff] %vm479, %v4707
  %4839 = vst.msk [vmem:[#allocation4 + $0x3d0] sm:$0xff] %vm479, %v4709
  %4840 = vst.msk [vmem:[#allocation4 + $0x3e0] sm:$0xff] %vm479, %v4711
  %4841 = vst.msk [vmem:[#allocation4 + $0x3f0] sm:$0xff] %vm479, %v4713
  %v4842 = vld [vmem:[#allocation2 + $0x2] sm:$0xff]
  %v4843 = vld [vmem:[#allocation2 + $0xa] sm:$0xff]
  %v4844 = vld [vmem:[#allocation2 + $0x1a] sm:$0xff]
  %v4845 = vld [vmem:[#allocation2 + $0x22] sm:$0xff]
  %v4846 = vld [vmem:[#allocation2 + $0x32] sm:$0xff]
  %v4847 = vld [vmem:[#allocation2 + $0x3a] sm:$0xff]
  %v4848 = vld [vmem:[#allocation2 + $0x4a] sm:$0xff]
  %v4849 = vld [vmem:[#allocation2 + $0x52] sm:$0xff]
  %v4850 = vld [vmem:[#allocation2 + $0x62] sm:$0xff]
  %v4851 = vld [vmem:[#allocation2 + $0x6a] sm:$0xff]
  %v4852 = vld [vmem:[#allocation2 + $0x7a] sm:$0xff]
  %v4853 = vld [vmem:[#allocation2 + $0x82] sm:$0xff]
  %v4854 = vld [vmem:[#allocation2 + $0x92] sm:$0xff]
  %v4855 = vld [vmem:[#allocation2 + $0x9a] sm:$0xff]
  %v4856 = vld [vmem:[#allocation2 + $0xaa] sm:$0xff]
  %v4857 = vld [vmem:[#allocation2 + $0xb2] sm:$0xff]
  %v4858 = vld [vmem:[#allocation2 + $0xc2] sm:$0xff]
  %v4859 = vld [vmem:[#allocation2 + $0xca] sm:$0xff]
  %v4860 = vld [vmem:[#allocation2 + $0xda] sm:$0xff]
  %v4861 = vld [vmem:[#allocation2 + $0xe2] sm:$0xff]
  %v4862 = vld [vmem:[#allocation2 + $0xf2] sm:$0xff]
  %v4863 = vld [vmem:[#allocation2 + $0xfa] sm:$0xff]
  %v4864 = vld [vmem:[#allocation2 + $0x10a] sm:$0xff]
  %v4865 = vld [vmem:[#allocation2 + $0x112] sm:$0xff]
  %v4866 = vld [vmem:[#allocation2 + $0x122] sm:$0xff]
  %v4867 = vld [vmem:[#allocation2 + $0x12a] sm:$0xff]
  %v4868 = vld [vmem:[#allocation2 + $0x13a] sm:$0xff]
  %v4869 = vld [vmem:[#allocation2 + $0x142] sm:$0xff]
  %v4870 = vld [vmem:[#allocation2 + $0x152] sm:$0xff]
  %v4871 = vld [vmem:[#allocation2 + $0x15a] sm:$0xff]
  %v4872 = vld [vmem:[#allocation2 + $0x16a] sm:$0xff]
  %v4873 = vld [vmem:[#allocation2 + $0x172] sm:$0xff]
  %v4874 = vld [vmem:[#allocation2 + $0x1b2] sm:$0xff]
  %v4875 = vld [vmem:[#allocation2 + $0x1ba] sm:$0xff]
  %v4876 = vld [vmem:[#allocation2 + $0x1ca] sm:$0xff]
  %v4877 = vld [vmem:[#allocation2 + $0x1d2] sm:$0xff]
  %v4878 = vld [vmem:[#allocation2 + $0x1e2] sm:$0xff]
  %v4879 = vld [vmem:[#allocation2 + $0x1ea] sm:$0xff]
  %v4880 = vld [vmem:[#allocation2 + $0x1fa] sm:$0xff]
  %v4881 = vld [vmem:[#allocation2 + $0x202] sm:$0xff]
  %v4882 = vld [vmem:[#allocation2 + $0x212] sm:$0xff]
  %v4883 = vld [vmem:[#allocation2 + $0x21a] sm:$0xff]
  %v4884 = vld [vmem:[#allocation2 + $0x22a] sm:$0xff]
  %v4885 = vld [vmem:[#allocation2 + $0x232] sm:$0xff]
  %v4886 = vld [vmem:[#allocation2 + $0x242] sm:$0xff]
  %v4887 = vld [vmem:[#allocation2 + $0x24a] sm:$0xff]
  %v4888 = vld [vmem:[#allocation2 + $0x25a] sm:$0xff]
  %v4889 = vld [vmem:[#allocation2 + $0x262] sm:$0xff]
  %v4890 = vld [vmem:[#allocation2 + $0x272] sm:$0xff]
  %v4891 = vld [vmem:[#allocation2 + $0x27a] sm:$0xff]
  %v4892 = vld [vmem:[#allocation2 + $0x28a] sm:$0xff]
  %v4893 = vld [vmem:[#allocation2 + $0x292] sm:$0xff]
  %v4894 = vld [vmem:[#allocation2 + $0x2a2] sm:$0xff]
  %v4895 = vld [vmem:[#allocation2 + $0x2aa] sm:$0xff]
  %v4896 = vld [vmem:[#allocation2 + $0x2ba] sm:$0xff]
  %v4897 = vld [vmem:[#allocation2 + $0x2c2] sm:$0xff]
  %v4898 = vld [vmem:[#allocation2 + $0x2d2] sm:$0xff]
  %v4899 = vld [vmem:[#allocation2 + $0x2da] sm:$0xff]
  %v4900 = vld [vmem:[#allocation2 + $0x2ea] sm:$0xff]
  %v4901 = vld [vmem:[#allocation2 + $0x2f2] sm:$0xff]
  %v4902 = vld [vmem:[#allocation2 + $0x302] sm:$0xff]
  %v4903 = vld [vmem:[#allocation2 + $0x30a] sm:$0xff]
  %v4904 = vld [vmem:[#allocation2 + $0x31a] sm:$0xff]
  %v4905 = vld [vmem:[#allocation2 + $0x322] sm:$0xff]
  %4970 = vrot.lane.b32.xlu0 %v4842, 32
  %v4971 = vpop.permute.xlu0 %4970
  %4972 = vrot.lane.b32.xlu0 %v4843, 32
  %v4973 = vpop.permute.xlu0 %4972
  %4974 = vrot.lane.b32.xlu0 %v4844, 32
  %v4975 = vpop.permute.xlu0 %4974
  %4976 = vrot.lane.b32.xlu0 %v4845, 32
  %v4977 = vpop.permute.xlu0 %4976
  %4978 = vrot.lane.b32.xlu0 %v4846, 32
  %v4979 = vpop.permute.xlu0 %4978
  %4980 = vrot.lane.b32.xlu0 %v4847, 32
  %v4981 = vpop.permute.xlu0 %4980
  %4982 = vrot.lane.b32.xlu0 %v4848, 32
  %v4983 = vpop.permute.xlu0 %4982
  %4984 = vrot.lane.b32.xlu0 %v4849, 32
  %v4985 = vpop.permute.xlu0 %4984
  %4986 = vrot.lane.b32.xlu0 %v4850, 32
  %v4987 = vpop.permute.xlu0 %4986
  %4988 = vrot.lane.b32.xlu0 %v4851, 32
  %v4989 = vpop.permute.xlu0 %4988
  %4990 = vrot.lane.b32.xlu0 %v4852, 32
  %v4991 = vpop.permute.xlu0 %4990
  %4992 = vrot.lane.b32.xlu0 %v4853, 32
  %v4993 = vpop.permute.xlu0 %4992
  %4994 = vrot.lane.b32.xlu0 %v4854, 32
  %v4995 = vpop.permute.xlu0 %4994
  %4996 = vrot.lane.b32.xlu0 %v4855, 32
  %v4997 = vpop.permute.xlu0 %4996
  %4998 = vrot.lane.b32.xlu0 %v4856, 32
  %v4999 = vpop.permute.xlu0 %4998
  %5000 = vrot.lane.b32.xlu0 %v4857, 32
  %v5001 = vpop.permute.xlu0 %5000
  %5002 = vrot.lane.b32.xlu0 %v4858, 32
  %v5003 = vpop.permute.xlu0 %5002
  %5004 = vrot.lane.b32.xlu0 %v4859, 32
  %v5005 = vpop.permute.xlu0 %5004
  %5006 = vrot.lane.b32.xlu0 %v4860, 32
  %v5007 = vpop.permute.xlu0 %5006
  %5008 = vrot.lane.b32.xlu0 %v4861, 32
  %v5009 = vpop.permute.xlu0 %5008
  %5010 = vrot.lane.b32.xlu0 %v4862, 32
  %v5011 = vpop.permute.xlu0 %5010
  %5012 = vrot.lane.b32.xlu0 %v4863, 32
  %v5013 = vpop.permute.xlu0 %5012
  %5014 = vrot.lane.b32.xlu0 %v4864, 32
  %v5015 = vpop.permute.xlu0 %5014
  %5016 = vrot.lane.b32.xlu0 %v4865, 32
  %v5017 = vpop.permute.xlu0 %5016
  %5018 = vrot.lane.b32.xlu0 %v4866, 32
  %v5019 = vpop.permute.xlu0 %5018
  %5020 = vrot.lane.b32.xlu0 %v4867, 32
  %v5021 = vpop.permute.xlu0 %5020
  %5022 = vrot.lane.b32.xlu0 %v4868, 32
  %v5023 = vpop.permute.xlu0 %5022
  %5024 = vrot.lane.b32.xlu0 %v4869, 32
  %v5025 = vpop.permute.xlu0 %5024
  %5026 = vrot.lane.b32.xlu0 %v4870, 32
  %v5027 = vpop.permute.xlu0 %5026
  %5028 = vrot.lane.b32.xlu0 %v4871, 32
  %v5029 = vpop.permute.xlu0 %5028
  %5030 = vrot.lane.b32.xlu0 %v4872, 32
  %v5031 = vpop.permute.xlu0 %5030
  %5032 = vrot.lane.b32.xlu0 %v4873, 32
  %v5033 = vpop.permute.xlu0 %5032
  %5034 = vrot.lane.b32.xlu0 %v4874, 32
  %v5035 = vpop.permute.xlu0 %5034
  %5036 = vrot.lane.b32.xlu0 %v4875, 32
  %v5037 = vpop.permute.xlu0 %5036
  %5038 = vrot.lane.b32.xlu0 %v4876, 32
  %v5039 = vpop.permute.xlu0 %5038
  %5040 = vrot.lane.b32.xlu0 %v4877, 32
  %v5041 = vpop.permute.xlu0 %5040
  %5042 = vrot.lane.b32.xlu0 %v4878, 32
  %v5043 = vpop.permute.xlu0 %5042
  %5044 = vrot.lane.b32.xlu0 %v4879, 32
  %v5045 = vpop.permute.xlu0 %5044
  %5046 = vrot.lane.b32.xlu0 %v4880, 32
  %v5047 = vpop.permute.xlu0 %5046
  %5048 = vrot.lane.b32.xlu0 %v4881, 32
  %v5049 = vpop.permute.xlu0 %5048
  %5050 = vrot.lane.b32.xlu0 %v4882, 32
  %v5051 = vpop.permute.xlu0 %5050
  %5052 = vrot.lane.b32.xlu0 %v4883, 32
  %v5053 = vpop.permute.xlu0 %5052
  %5054 = vrot.lane.b32.xlu0 %v4884, 32
  %v5055 = vpop.permute.xlu0 %5054
  %5056 = vrot.lane.b32.xlu0 %v4885, 32
  %v5057 = vpop.permute.xlu0 %5056
  %5058 = vrot.lane.b32.xlu0 %v4886, 32
  %v5059 = vpop.permute.xlu0 %5058
  %5060 = vrot.lane.b32.xlu0 %v4887, 32
  %v5061 = vpop.permute.xlu0 %5060
  %5062 = vrot.lane.b32.xlu0 %v4888, 32
  %v5063 = vpop.permute.xlu0 %5062
  %5064 = vrot.lane.b32.xlu0 %v4889, 32
  %v5065 = vpop.permute.xlu0 %5064
  %5066 = vrot.lane.b32.xlu0 %v4890, 32
  %v5067 = vpop.permute.xlu0 %5066
  %5068 = vrot.lane.b32.xlu0 %v4891, 32
  %v5069 = vpop.permute.xlu0 %5068
  %5070 = vrot.lane.b32.xlu0 %v4892, 32
  %v5071 = vpop.permute.xlu0 %5070
  %5072 = vrot.lane.b32.xlu0 %v4893, 32
  %v5073 = vpop.permute.xlu0 %5072
  %5074 = vrot.lane.b32.xlu0 %v4894, 32
  %v5075 = vpop.permute.xlu0 %5074
  %5076 = vrot.lane.b32.xlu0 %v4895, 32
  %v5077 = vpop.permute.xlu0 %5076
  %5078 = vrot.lane.b32.xlu0 %v4896, 32
  %v5079 = vpop.permute.xlu0 %5078
  %5080 = vrot.lane.b32.xlu0 %v4897, 32
  %v5081 = vpop.permute.xlu0 %5080
  %5082 = vrot.lane.b32.xlu0 %v4898, 32
  %v5083 = vpop.permute.xlu0 %5082
  %5084 = vrot.lane.b32.xlu0 %v4899, 32
  %v5085 = vpop.permute.xlu0 %5084
  %5086 = vrot.lane.b32.xlu0 %v4900, 32
  %v5087 = vpop.permute.xlu0 %5086
  %5088 = vrot.lane.b32.xlu0 %v4901, 32
  %v5089 = vpop.permute.xlu0 %5088
  %5090 = vrot.lane.b32.xlu0 %v4902, 32
  %v5091 = vpop.permute.xlu0 %5090
  %5092 = vrot.lane.b32.xlu0 %v4903, 32
  %v5093 = vpop.permute.xlu0 %5092
  %5094 = vrot.lane.b32.xlu0 %v4904, 32
  %v5095 = vpop.permute.xlu0 %5094
  %5096 = vrot.lane.b32.xlu0 %v4905, 32
  %v5097 = vpop.permute.xlu0 %5096
  %5162 = vst.msk [vmem:[#allocation4] sm:$0xff] %vm864, %v4971
  %5163 = vst.msk [vmem:[#allocation4 + $0x10] sm:$0xff] %vm864, %v4973
  %5164 = vst.msk [vmem:[#allocation4 + $0x20] sm:$0xff] %vm864, %v4975
  %5165 = vst.msk [vmem:[#allocation4 + $0x30] sm:$0xff] %vm864, %v4977
  %5166 = vst.msk [vmem:[#allocation4 + $0x40] sm:$0xff] %vm864, %v4979
  %5167 = vst.msk [vmem:[#allocation4 + $0x50] sm:$0xff] %vm864, %v4981
  %5168 = vst.msk [vmem:[#allocation4 + $0x60] sm:$0xff] %vm864, %v4983
  %5169 = vst.msk [vmem:[#allocation4 + $0x70] sm:$0xff] %vm864, %v4985
  %5170 = vst.msk [vmem:[#allocation4 + $0x80] sm:$0xff] %vm864, %v4987
  %5171 = vst.msk [vmem:[#allocation4 + $0x90] sm:$0xff] %vm864, %v4989
  %5172 = vst.msk [vmem:[#allocation4 + $0xa0] sm:$0xff] %vm864, %v4991
  %5173 = vst.msk [vmem:[#allocation4 + $0xb0] sm:$0xff] %vm864, %v4993
  %5174 = vst.msk [vmem:[#allocation4 + $0xc0] sm:$0xff] %vm864, %v4995
  %5175 = vst.msk [vmem:[#allocation4 + $0xd0] sm:$0xff] %vm864, %v4997
  %5176 = vst.msk [vmem:[#allocation4 + $0xe0] sm:$0xff] %vm864, %v4999
  %5177 = vst.msk [vmem:[#allocation4 + $0xf0] sm:$0xff] %vm864, %v5001
  %5178 = vst.msk [vmem:[#allocation4 + $0x100] sm:$0xff] %vm864, %v5003
  %5179 = vst.msk [vmem:[#allocation4 + $0x110] sm:$0xff] %vm864, %v5005
  %5180 = vst.msk [vmem:[#allocation4 + $0x120] sm:$0xff] %vm864, %v5007
  %5181 = vst.msk [vmem:[#allocation4 + $0x130] sm:$0xff] %vm864, %v5009
  %5182 = vst.msk [vmem:[#allocation4 + $0x140] sm:$0xff] %vm864, %v5011
  %5183 = vst.msk [vmem:[#allocation4 + $0x150] sm:$0xff] %vm864, %v5013
  %5184 = vst.msk [vmem:[#allocation4 + $0x160] sm:$0xff] %vm864, %v5015
  %5185 = vst.msk [vmem:[#allocation4 + $0x170] sm:$0xff] %vm864, %v5017
  %5186 = vst.msk [vmem:[#allocation4 + $0x180] sm:$0xff] %vm864, %v5019
  %5187 = vst.msk [vmem:[#allocation4 + $0x190] sm:$0xff] %vm864, %v5021
  %5188 = vst.msk [vmem:[#allocation4 + $0x1a0] sm:$0xff] %vm864, %v5023
  %5189 = vst.msk [vmem:[#allocation4 + $0x1b0] sm:$0xff] %vm864, %v5025
  %5190 = vst.msk [vmem:[#allocation4 + $0x1c0] sm:$0xff] %vm864, %v5027
  %5191 = vst.msk [vmem:[#allocation4 + $0x1d0] sm:$0xff] %vm864, %v5029
  %5192 = vst.msk [vmem:[#allocation4 + $0x1e0] sm:$0xff] %vm864, %v5031
  %5193 = vst.msk [vmem:[#allocation4 + $0x1f0] sm:$0xff] %vm864, %v5033
  %5194 = vst.msk [vmem:[#allocation4 + $0x200] sm:$0xff] %vm864, %v5035
  %5195 = vst.msk [vmem:[#allocation4 + $0x210] sm:$0xff] %vm864, %v5037
  %5196 = vst.msk [vmem:[#allocation4 + $0x220] sm:$0xff] %vm864, %v5039
  %5197 = vst.msk [vmem:[#allocation4 + $0x230] sm:$0xff] %vm864, %v5041
  %5198 = vst.msk [vmem:[#allocation4 + $0x240] sm:$0xff] %vm864, %v5043
  %5199 = vst.msk [vmem:[#allocation4 + $0x250] sm:$0xff] %vm864, %v5045
  %5200 = vst.msk [vmem:[#allocation4 + $0x260] sm:$0xff] %vm864, %v5047
  %5201 = vst.msk [vmem:[#allocation4 + $0x270] sm:$0xff] %vm864, %v5049
  %5202 = vst.msk [vmem:[#allocation4 + $0x280] sm:$0xff] %vm864, %v5051
  %5203 = vst.msk [vmem:[#allocation4 + $0x290] sm:$0xff] %vm864, %v5053
  %5204 = vst.msk [vmem:[#allocation4 + $0x2a0] sm:$0xff] %vm864, %v5055
  %5205 = vst.msk [vmem:[#allocation4 + $0x2b0] sm:$0xff] %vm864, %v5057
  %5206 = vst.msk [vmem:[#allocation4 + $0x2c0] sm:$0xff] %vm864, %v5059
  %5207 = vst.msk [vmem:[#allocation4 + $0x2d0] sm:$0xff] %vm864, %v5061
  %5208 = vst.msk [vmem:[#allocation4 + $0x2e0] sm:$0xff] %vm864, %v5063
  %5209 = vst.msk [vmem:[#allocation4 + $0x2f0] sm:$0xff] %vm864, %v5065
  %5210 = vst.msk [vmem:[#allocation4 + $0x300] sm:$0xff] %vm864, %v5067
  %5211 = vst.msk [vmem:[#allocation4 + $0x310] sm:$0xff] %vm864, %v5069
  %5212 = vst.msk [vmem:[#allocation4 + $0x320] sm:$0xff] %vm864, %v5071
  %5213 = vst.msk [vmem:[#allocation4 + $0x330] sm:$0xff] %vm864, %v5073
  %5214 = vst.msk [vmem:[#allocation4 + $0x340] sm:$0xff] %vm864, %v5075
  %5215 = vst.msk [vmem:[#allocation4 + $0x350] sm:$0xff] %vm864, %v5077
  %5216 = vst.msk [vmem:[#allocation4 + $0x360] sm:$0xff] %vm864, %v5079
  %5217 = vst.msk [vmem:[#allocation4 + $0x370] sm:$0xff] %vm864, %v5081
  %5218 = vst.msk [vmem:[#allocation4 + $0x380] sm:$0xff] %vm864, %v5083
  %5219 = vst.msk [vmem:[#allocation4 + $0x390] sm:$0xff] %vm864, %v5085
  %5220 = vst.msk [vmem:[#allocation4 + $0x3a0] sm:$0xff] %vm864, %v5087
  %5221 = vst.msk [vmem:[#allocation4 + $0x3b0] sm:$0xff] %vm864, %v5089
  %5222 = vst.msk [vmem:[#allocation4 + $0x3c0] sm:$0xff] %vm864, %v5091
  %5223 = vst.msk [vmem:[#allocation4 + $0x3d0] sm:$0xff] %vm864, %v5093
  %5224 = vst.msk [vmem:[#allocation4 + $0x3e0] sm:$0xff] %vm864, %v5095
  %5225 = vst.msk [vmem:[#allocation4 + $0x3f0] sm:$0xff] %vm864, %v5097
  %v5226 = vld [vmem:[%s4178] sm:$0xff]
  %v5227 = vld [vmem:[%s4178 + $0x8] sm:$0xff]
  %v5228 = vld [vmem:[%s4178 + $0x18] sm:$0xff]
  %v5229 = vld [vmem:[%s4178 + $0x20] sm:$0xff]
  %v5230 = vld [vmem:[%s4178 + $0x30] sm:$0xff]
  %v5231 = vld [vmem:[%s4178 + $0x38] sm:$0xff]
  %v5232 = vld [vmem:[%s4178 + $0x48] sm:$0xff]
  %v5233 = vld [vmem:[%s4178 + $0x50] sm:$0xff]
  %v5234 = vld [vmem:[%s4178 + $0x60] sm:$0xff]
  %v5235 = vld [vmem:[%s4178 + $0x68] sm:$0xff]
  %v5236 = vld [vmem:[%s4178 + $0x78] sm:$0xff]
  %v5237 = vld [vmem:[%s4178 + $0x80] sm:$0xff]
  %v5238 = vld [vmem:[%s4178 + $0x90] sm:$0xff]
  %v5239 = vld [vmem:[%s4178 + $0x98] sm:$0xff]
  %v5240 = vld [vmem:[%s4178 + $0xa8] sm:$0xff]
  %v5241 = vld [vmem:[%s4178 + $0xb0] sm:$0xff]
  %v5242 = vld [vmem:[%s4178 + $0xc0] sm:$0xff]
  %v5243 = vld [vmem:[%s4178 + $0xc8] sm:$0xff]
  %v5244 = vld [vmem:[%s4178 + $0xd8] sm:$0xff]
  %v5245 = vld [vmem:[%s4178 + $0xe0] sm:$0xff]
  %v5246 = vld [vmem:[%s4178 + $0xf0] sm:$0xff]
  %v5247 = vld [vmem:[%s4178 + $0xf8] sm:$0xff]
  %v5248 = vld [vmem:[%s4178 + $0x108] sm:$0xff]
  %v5249 = vld [vmem:[%s4178 + $0x110] sm:$0xff]
  %v5250 = vld [vmem:[%s4178 + $0x120] sm:$0xff]
  %v5251 = vld [vmem:[%s4178 + $0x128] sm:$0xff]
  %v5252 = vld [vmem:[%s4178 + $0x138] sm:$0xff]
  %v5253 = vld [vmem:[%s4178 + $0x140] sm:$0xff]
  %v5254 = vld [vmem:[%s4178 + $0x150] sm:$0xff]
  %v5255 = vld [vmem:[%s4178 + $0x158] sm:$0xff]
  %v5256 = vld [vmem:[%s4178 + $0x168] sm:$0xff]
  %v5257 = vld [vmem:[%s4178 + $0x170] sm:$0xff]
  %v5258 = vld [vmem:[%s4178 + $0x1b0] sm:$0xff]
  %v5259 = vld [vmem:[%s4178 + $0x1b8] sm:$0xff]
  %v5260 = vld [vmem:[%s4178 + $0x1c8] sm:$0xff]
  %v5261 = vld [vmem:[%s4178 + $0x1d0] sm:$0xff]
  %v5262 = vld [vmem:[%s4178 + $0x1e0] sm:$0xff]
  %v5263 = vld [vmem:[%s4178 + $0x1e8] sm:$0xff]
  %v5264 = vld [vmem:[%s4178 + $0x1f8] sm:$0xff]
  %v5265 = vld [vmem:[%s4178 + $0x200] sm:$0xff]
  %v5266 = vld [vmem:[%s4178 + $0x210] sm:$0xff]
  %v5267 = vld [vmem:[%s4178 + $0x218] sm:$0xff]
  %v5268 = vld [vmem:[%s4178 + $0x228] sm:$0xff]
  %v5269 = vld [vmem:[%s4178 + $0x230] sm:$0xff]
  %v5270 = vld [vmem:[%s4178 + $0x240] sm:$0xff]
  %v5271 = vld [vmem:[%s4178 + $0x248] sm:$0xff]
  %v5272 = vld [vmem:[%s4178 + $0x258] sm:$0xff]
  %v5273 = vld [vmem:[%s4178 + $0x260] sm:$0xff]
  %v5274 = vld [vmem:[%s4178 + $0x270] sm:$0xff]
  %v5275 = vld [vmem:[%s4178 + $0x278] sm:$0xff]
  %v5276 = vld [vmem:[%s4178 + $0x288] sm:$0xff]
  %v5277 = vld [vmem:[%s4178 + $0x290] sm:$0xff]
  %v5278 = vld [vmem:[%s4178 + $0x2a0] sm:$0xff]
  %v5279 = vld [vmem:[%s4178 + $0x2a8] sm:$0xff]
  %v5280 = vld [vmem:[%s4178 + $0x2b8] sm:$0xff]
  %v5281 = vld [vmem:[%s4178 + $0x2c0] sm:$0xff]
  %v5282 = vld [vmem:[%s4178 + $0x2d0] sm:$0xff]
  %v5283 = vld [vmem:[%s4178 + $0x2d8] sm:$0xff]
  %v5284 = vld [vmem:[%s4178 + $0x2e8] sm:$0xff]
  %v5285 = vld [vmem:[%s4178 + $0x2f0] sm:$0xff]
  %v5286 = vld [vmem:[%s4178 + $0x300] sm:$0xff]
  %v5287 = vld [vmem:[%s4178 + $0x308] sm:$0xff]
  %v5288 = vld [vmem:[%s4178 + $0x318] sm:$0xff]
  %v5289 = vld [vmem:[%s4178 + $0x320] sm:$0xff]
  %5354 = vrot.lane.b32.xlu0 %v5226, 48
  %v5355 = vpop.permute.xlu0 %5354
  %5356 = vrot.lane.b32.xlu0 %v5227, 48
  %v5357 = vpop.permute.xlu0 %5356
  %5358 = vrot.lane.b32.xlu0 %v5228, 48
  %v5359 = vpop.permute.xlu0 %5358
  %5360 = vrot.lane.b32.xlu0 %v5229, 48
  %v5361 = vpop.permute.xlu0 %5360
  %5362 = vrot.lane.b32.xlu0 %v5230, 48
  %v5363 = vpop.permute.xlu0 %5362
  %5364 = vrot.lane.b32.xlu0 %v5231, 48
  %v5365 = vpop.permute.xlu0 %5364
  %5366 = vrot.lane.b32.xlu0 %v5232, 48
  %v5367 = vpop.permute.xlu0 %5366
  %5368 = vrot.lane.b32.xlu0 %v5233, 48
  %v5369 = vpop.permute.xlu0 %5368
  %5370 = vrot.lane.b32.xlu0 %v5234, 48
  %v5371 = vpop.permute.xlu0 %5370
  %5372 = vrot.lane.b32.xlu0 %v5235, 48
  %v5373 = vpop.permute.xlu0 %5372
  %5374 = vrot.lane.b32.xlu0 %v5236, 48
  %v5375 = vpop.permute.xlu0 %5374
  %5376 = vrot.lane.b32.xlu0 %v5237, 48
  %v5377 = vpop.permute.xlu0 %5376
  %5378 = vrot.lane.b32.xlu0 %v5238, 48
  %v5379 = vpop.permute.xlu0 %5378
  %5380 = vrot.lane.b32.xlu0 %v5239, 48
  %v5381 = vpop.permute.xlu0 %5380
  %5382 = vrot.lane.b32.xlu0 %v5240, 48
  %v5383 = vpop.permute.xlu0 %5382
  %5384 = vrot.lane.b32.xlu0 %v5241, 48
  %v5385 = vpop.permute.xlu0 %5384
  %5386 = vrot.lane.b32.xlu0 %v5242, 48
  %v5387 = vpop.permute.xlu0 %5386
  %5388 = vrot.lane.b32.xlu0 %v5243, 48
  %v5389 = vpop.permute.xlu0 %5388
  %5390 = vrot.lane.b32.xlu0 %v5244, 48
  %v5391 = vpop.permute.xlu0 %5390
  %5392 = vrot.lane.b32.xlu0 %v5245, 48
  %v5393 = vpop.permute.xlu0 %5392
  %5394 = vrot.lane.b32.xlu0 %v5246, 48
  %v5395 = vpop.permute.xlu0 %5394
  %5396 = vrot.lane.b32.xlu0 %v5247, 48
  %v5397 = vpop.permute.xlu0 %5396
  %5398 = vrot.lane.b32.xlu0 %v5248, 48
  %v5399 = vpop.permute.xlu0 %5398
  %5400 = vrot.lane.b32.xlu0 %v5249, 48
  %v5401 = vpop.permute.xlu0 %5400
  %5402 = vrot.lane.b32.xlu0 %v5250, 48
  %v5403 = vpop.permute.xlu0 %5402
  %5404 = vrot.lane.b32.xlu0 %v5251, 48
  %v5405 = vpop.permute.xlu0 %5404
  %5406 = vrot.lane.b32.xlu0 %v5252, 48
  %v5407 = vpop.permute.xlu0 %5406
  %5408 = vrot.lane.b32.xlu0 %v5253, 48
  %v5409 = vpop.permute.xlu0 %5408
  %5410 = vrot.lane.b32.xlu0 %v5254, 48
  %v5411 = vpop.permute.xlu0 %5410
  %5412 = vrot.lane.b32.xlu0 %v5255, 48
  %v5413 = vpop.permute.xlu0 %5412
  %5414 = vrot.lane.b32.xlu0 %v5256, 48
  %v5415 = vpop.permute.xlu0 %5414
  %5416 = vrot.lane.b32.xlu0 %v5257, 48
  %v5417 = vpop.permute.xlu0 %5416
  %5418 = vrot.lane.b32.xlu0 %v5258, 48
  %v5419 = vpop.permute.xlu0 %5418
  %5420 = vrot.lane.b32.xlu0 %v5259, 48
  %v5421 = vpop.permute.xlu0 %5420
  %5422 = vrot.lane.b32.xlu0 %v5260, 48
  %v5423 = vpop.permute.xlu0 %5422
  %5424 = vrot.lane.b32.xlu0 %v5261, 48
  %v5425 = vpop.permute.xlu0 %5424
  %5426 = vrot.lane.b32.xlu0 %v5262, 48
  %v5427 = vpop.permute.xlu0 %5426
  %5428 = vrot.lane.b32.xlu0 %v5263, 48
  %v5429 = vpop.permute.xlu0 %5428
  %5430 = vrot.lane.b32.xlu0 %v5264, 48
  %v5431 = vpop.permute.xlu0 %5430
  %5432 = vrot.lane.b32.xlu0 %v5265, 48
  %v5433 = vpop.permute.xlu0 %5432
  %5434 = vrot.lane.b32.xlu0 %v5266, 48
  %v5435 = vpop.permute.xlu0 %5434
  %5436 = vrot.lane.b32.xlu0 %v5267, 48
  %v5437 = vpop.permute.xlu0 %5436
  %5438 = vrot.lane.b32.xlu0 %v5268, 48
  %v5439 = vpop.permute.xlu0 %5438
  %5440 = vrot.lane.b32.xlu0 %v5269, 48
  %v5441 = vpop.permute.xlu0 %5440
  %5442 = vrot.lane.b32.xlu0 %v5270, 48
  %v5443 = vpop.permute.xlu0 %5442
  %5444 = vrot.lane.b32.xlu0 %v5271, 48
  %v5445 = vpop.permute.xlu0 %5444
  %5446 = vrot.lane.b32.xlu0 %v5272, 48
  %v5447 = vpop.permute.xlu0 %5446
  %5448 = vrot.lane.b32.xlu0 %v5273, 48
  %v5449 = vpop.permute.xlu0 %5448
  %5450 = vrot.lane.b32.xlu0 %v5274, 48
  %v5451 = vpop.permute.xlu0 %5450
  %5452 = vrot.lane.b32.xlu0 %v5275, 48
  %v5453 = vpop.permute.xlu0 %5452
  %5454 = vrot.lane.b32.xlu0 %v5276, 48
  %v5455 = vpop.permute.xlu0 %5454
  %5456 = vrot.lane.b32.xlu0 %v5277, 48
  %v5457 = vpop.permute.xlu0 %5456
  %5458 = vrot.lane.b32.xlu0 %v5278, 48
  %v5459 = vpop.permute.xlu0 %5458
  %5460 = vrot.lane.b32.xlu0 %v5279, 48
  %v5461 = vpop.permute.xlu0 %5460
  %5462 = vrot.lane.b32.xlu0 %v5280, 48
  %v5463 = vpop.permute.xlu0 %5462
  %5464 = vrot.lane.b32.xlu0 %v5281, 48
  %v5465 = vpop.permute.xlu0 %5464
  %5466 = vrot.lane.b32.xlu0 %v5282, 48
  %v5467 = vpop.permute.xlu0 %5466
  %5468 = vrot.lane.b32.xlu0 %v5283, 48
  %v5469 = vpop.permute.xlu0 %5468
  %5470 = vrot.lane.b32.xlu0 %v5284, 48
  %v5471 = vpop.permute.xlu0 %5470
  %5472 = vrot.lane.b32.xlu0 %v5285, 48
  %v5473 = vpop.permute.xlu0 %5472
  %5474 = vrot.lane.b32.xlu0 %v5286, 48
  %v5475 = vpop.permute.xlu0 %5474
  %5476 = vrot.lane.b32.xlu0 %v5287, 48
  %v5477 = vpop.permute.xlu0 %5476
  %5478 = vrot.lane.b32.xlu0 %v5288, 48
  %v5479 = vpop.permute.xlu0 %5478
  %5480 = vrot.lane.b32.xlu0 %v5289, 48
  %v5481 = vpop.permute.xlu0 %5480
  %5546 = vst.msk [vmem:[#allocation4] sm:$0xff] %vm1250, %v5355
  %5547 = vst.msk [vmem:[#allocation4 + $0x10] sm:$0xff] %vm1250, %v5357
  %5548 = vst.msk [vmem:[#allocation4 + $0x20] sm:$0xff] %vm1250, %v5359
  %5549 = vst.msk [vmem:[#allocation4 + $0x30] sm:$0xff] %vm1250, %v5361
  %5550 = vst.msk [vmem:[#allocation4 + $0x40] sm:$0xff] %vm1250, %v5363
  %5551 = vst.msk [vmem:[#allocation4 + $0x50] sm:$0xff] %vm1250, %v5365
  %5552 = vst.msk [vmem:[#allocation4 + $0x60] sm:$0xff] %vm1250, %v5367
  %5553 = vst.msk [vmem:[#allocation4 + $0x70] sm:$0xff] %vm1250, %v5369
  %5554 = vst.msk [vmem:[#allocation4 + $0x80] sm:$0xff] %vm1250, %v5371
  %5555 = vst.msk [vmem:[#allocation4 + $0x90] sm:$0xff] %vm1250, %v5373
  %5556 = vst.msk [vmem:[#allocation4 + $0xa0] sm:$0xff] %vm1250, %v5375
  %5557 = vst.msk [vmem:[#allocation4 + $0xb0] sm:$0xff] %vm1250, %v5377
  %5558 = vst.msk [vmem:[#allocation4 + $0xc0] sm:$0xff] %vm1250, %v5379
  %5559 = vst.msk [vmem:[#allocation4 + $0xd0] sm:$0xff] %vm1250, %v5381
  %5560 = vst.msk [vmem:[#allocation4 + $0xe0] sm:$0xff] %vm1250, %v5383
  %5561 = vst.msk [vmem:[#allocation4 + $0xf0] sm:$0xff] %vm1250, %v5385
  %5562 = vst.msk [vmem:[#allocation4 + $0x100] sm:$0xff] %vm1250, %v5387
  %5563 = vst.msk [vmem:[#allocation4 + $0x110] sm:$0xff] %vm1250, %v5389
  %5564 = vst.msk [vmem:[#allocation4 + $0x120] sm:$0xff] %vm1250, %v5391
  %5565 = vst.msk [vmem:[#allocation4 + $0x130] sm:$0xff] %vm1250, %v5393
  %5566 = vst.msk [vmem:[#allocation4 + $0x140] sm:$0xff] %vm1250, %v5395
  %5567 = vst.msk [vmem:[#allocation4 + $0x150] sm:$0xff] %vm1250, %v5397
  %5568 = vst.msk [vmem:[#allocation4 + $0x160] sm:$0xff] %vm1250, %v5399
  %5569 = vst.msk [vmem:[#allocation4 + $0x170] sm:$0xff] %vm1250, %v5401
  %5570 = vst.msk [vmem:[#allocation4 + $0x180] sm:$0xff] %vm1250, %v5403
  %5571 = vst.msk [vmem:[#allocation4 + $0x190] sm:$0xff] %vm1250, %v5405
  %5572 = vst.msk [vmem:[#allocation4 + $0x1a0] sm:$0xff] %vm1250, %v5407
  %5573 = vst.msk [vmem:[#allocation4 + $0x1b0] sm:$0xff] %vm1250, %v5409
  %5574 = vst.msk [vmem:[#allocation4 + $0x1c0] sm:$0xff] %vm1250, %v5411
  %5575 = vst.msk [vmem:[#allocation4 + $0x1d0] sm:$0xff] %vm1250, %v5413
  %5576 = vst.msk [vmem:[#allocation4 + $0x1e0] sm:$0xff] %vm1250, %v5415
  %5577 = vst.msk [vmem:[#allocation4 + $0x1f0] sm:$0xff] %vm1250, %v5417
  %5578 = vst.msk [vmem:[#allocation4 + $0x200] sm:$0xff] %vm1250, %v5419
  %5579 = vst.msk [vmem:[#allocation4 + $0x210] sm:$0xff] %vm1250, %v5421
  %5580 = vst.msk [vmem:[#allocation4 + $0x220] sm:$0xff] %vm1250, %v5423
  %5581 = vst.msk [vmem:[#allocation4 + $0x230] sm:$0xff] %vm1250, %v5425
  %5582 = vst.msk [vmem:[#allocation4 + $0x240] sm:$0xff] %vm1250, %v5427
  %5583 = vst.msk [vmem:[#allocation4 + $0x250] sm:$0xff] %vm1250, %v5429
  %5584 = vst.msk [vmem:[#allocation4 + $0x260] sm:$0xff] %vm1250, %v5431
  %5585 = vst.msk [vmem:[#allocation4 + $0x270] sm:$0xff] %vm1250, %v5433
  %5586 = vst.msk [vmem:[#allocation4 + $0x280] sm:$0xff] %vm1250, %v5435
  %5587 = vst.msk [vmem:[#allocation4 + $0x290] sm:$0xff] %vm1250, %v5437
  %5588 = vst.msk [vmem:[#allocation4 + $0x2a0] sm:$0xff] %vm1250, %v5439
  %5589 = vst.msk [vmem:[#allocation4 + $0x2b0] sm:$0xff] %vm1250, %v5441
  %5590 = vst.msk [vmem:[#allocation4 + $0x2c0] sm:$0xff] %vm1250, %v5443
  %5591 = vst.msk [vmem:[#allocation4 + $0x2d0] sm:$0xff] %vm1250, %v5445
  %5592 = vst.msk [vmem:[#allocation4 + $0x2e0] sm:$0xff] %vm1250, %v5447
  %5593 = vst.msk [vmem:[#allocation4 + $0x2f0] sm:$0xff] %vm1250, %v5449
  %5594 = vst.msk [vmem:[#allocation4 + $0x300] sm:$0xff] %vm1250, %v5451
  %5595 = vst.msk [vmem:[#allocation4 + $0x310] sm:$0xff] %vm1250, %v5453
  %5596 = vst.msk [vmem:[#allocation4 + $0x320] sm:$0xff] %vm1250, %v5455
  %5597 = vst.msk [vmem:[#allocation4 + $0x330] sm:$0xff] %vm1250, %v5457
  %5598 = vst.msk [vmem:[#allocation4 + $0x340] sm:$0xff] %vm1250, %v5459
  %5599 = vst.msk [vmem:[#allocation4 + $0x350] sm:$0xff] %vm1250, %v5461
  %5600 = vst.msk [vmem:[#allocation4 + $0x360] sm:$0xff] %vm1250, %v5463
  %5601 = vst.msk [vmem:[#allocation4 + $0x370] sm:$0xff] %vm1250, %v5465
  %5602 = vst.msk [vmem:[#allocation4 + $0x380] sm:$0xff] %vm1250, %v5467
  %5603 = vst.msk [vmem:[#allocation4 + $0x390] sm:$0xff] %vm1250, %v5469
  %5604 = vst.msk [vmem:[#allocation4 + $0x3a0] sm:$0xff] %vm1250, %v5471
  %5605 = vst.msk [vmem:[#allocation4 + $0x3b0] sm:$0xff] %vm1250, %v5473
  %5606 = vst.msk [vmem:[#allocation4 + $0x3c0] sm:$0xff] %vm1250, %v5475
  %5607 = vst.msk [vmem:[#allocation4 + $0x3d0] sm:$0xff] %vm1250, %v5477
  %5608 = vst.msk [vmem:[#allocation4 + $0x3e0] sm:$0xff] %vm1250, %v5479
  %5609 = vst.msk [vmem:[#allocation4 + $0x3f0] sm:$0xff] %vm1250, %v5481
  %v5610 = vld [vmem:[%s4178 + $0x1] sm:$0xff]
  %v5611 = vld [vmem:[%s4178 + $0x9] sm:$0xff]
  %v5612 = vld [vmem:[%s4178 + $0x19] sm:$0xff]
  %v5613 = vld [vmem:[%s4178 + $0x21] sm:$0xff]
  %v5614 = vld [vmem:[%s4178 + $0x31] sm:$0xff]
  %v5615 = vld [vmem:[%s4178 + $0x39] sm:$0xff]
  %v5616 = vld [vmem:[%s4178 + $0x49] sm:$0xff]
  %v5617 = vld [vmem:[%s4178 + $0x51] sm:$0xff]
  %v5618 = vld [vmem:[%s4178 + $0x61] sm:$0xff]
  %v5619 = vld [vmem:[%s4178 + $0x69] sm:$0xff]
  %v5620 = vld [vmem:[%s4178 + $0x79] sm:$0xff]
  %v5621 = vld [vmem:[%s4178 + $0x81] sm:$0xff]
  %v5622 = vld [vmem:[%s4178 + $0x91] sm:$0xff]
  %v5623 = vld [vmem:[%s4178 + $0x99] sm:$0xff]
  %v5624 = vld [vmem:[%s4178 + $0xa9] sm:$0xff]
  %v5625 = vld [vmem:[%s4178 + $0xb1] sm:$0xff]
  %v5626 = vld [vmem:[%s4178 + $0xc1] sm:$0xff]
  %v5627 = vld [vmem:[%s4178 + $0xc9] sm:$0xff]
  %v5628 = vld [vmem:[%s4178 + $0xd9] sm:$0xff]
  %v5629 = vld [vmem:[%s4178 + $0xe1] sm:$0xff]
  %v5630 = vld [vmem:[%s4178 + $0xf1] sm:$0xff]
  %v5631 = vld [vmem:[%s4178 + $0xf9] sm:$0xff]
  %v5632 = vld [vmem:[%s4178 + $0x109] sm:$0xff]
  %v5633 = vld [vmem:[%s4178 + $0x111] sm:$0xff]
  %v5634 = vld [vmem:[%s4178 + $0x121] sm:$0xff]
  %v5635 = vld [vmem:[%s4178 + $0x129] sm:$0xff]
  %v5636 = vld [vmem:[%s4178 + $0x139] sm:$0xff]
  %v5637 = vld [vmem:[%s4178 + $0x141] sm:$0xff]
  %v5638 = vld [vmem:[%s4178 + $0x151] sm:$0xff]
  %v5639 = vld [vmem:[%s4178 + $0x159] sm:$0xff]
  %v5640 = vld [vmem:[%s4178 + $0x169] sm:$0xff]
  %v5641 = vld [vmem:[%s4178 + $0x171] sm:$0xff]
  %v5642 = vld [vmem:[%s4178 + $0x1b1] sm:$0xff]
  %v5643 = vld [vmem:[%s4178 + $0x1b9] sm:$0xff]
  %v5644 = vld [vmem:[%s4178 + $0x1c9] sm:$0xff]
  %v5645 = vld [vmem:[%s4178 + $0x1d1] sm:$0xff]
  %v5646 = vld [vmem:[%s4178 + $0x1e1] sm:$0xff]
  %v5647 = vld [vmem:[%s4178 + $0x1e9] sm:$0xff]
  %v5648 = vld [vmem:[%s4178 + $0x1f9] sm:$0xff]
  %v5649 = vld [vmem:[%s4178 + $0x201] sm:$0xff]
  %v5650 = vld [vmem:[%s4178 + $0x211] sm:$0xff]
  %v5651 = vld [vmem:[%s4178 + $0x219] sm:$0xff]
  %v5652 = vld [vmem:[%s4178 + $0x229] sm:$0xff]
  %v5653 = vld [vmem:[%s4178 + $0x231] sm:$0xff]
  %v5654 = vld [vmem:[%s4178 + $0x241] sm:$0xff]
  %v5655 = vld [vmem:[%s4178 + $0x249] sm:$0xff]
  %v5656 = vld [vmem:[%s4178 + $0x259] sm:$0xff]
  %v5657 = vld [vmem:[%s4178 + $0x261] sm:$0xff]
  %v5658 = vld [vmem:[%s4178 + $0x271] sm:$0xff]
  %v5659 = vld [vmem:[%s4178 + $0x279] sm:$0xff]
  %v5660 = vld [vmem:[%s4178 + $0x289] sm:$0xff]
  %v5661 = vld [vmem:[%s4178 + $0x291] sm:$0xff]
  %v5662 = vld [vmem:[%s4178 + $0x2a1] sm:$0xff]
  %v5663 = vld [vmem:[%s4178 + $0x2a9] sm:$0xff]
  %v5664 = vld [vmem:[%s4178 + $0x2b9] sm:$0xff]
  %v5665 = vld [vmem:[%s4178 + $0x2c1] sm:$0xff]
  %v5666 = vld [vmem:[%s4178 + $0x2d1] sm:$0xff]
  %v5667 = vld [vmem:[%s4178 + $0x2d9] sm:$0xff]
  %v5668 = vld [vmem:[%s4178 + $0x2e9] sm:$0xff]
  %v5669 = vld [vmem:[%s4178 + $0x2f1] sm:$0xff]
  %v5670 = vld [vmem:[%s4178 + $0x301] sm:$0xff]
  %v5671 = vld [vmem:[%s4178 + $0x309] sm:$0xff]
  %v5672 = vld [vmem:[%s4178 + $0x319] sm:$0xff]
  %v5673 = vld [vmem:[%s4178 + $0x321] sm:$0xff]
  %5738 = vrot.lane.b32.xlu0 %v5610, 64
  %v5739 = vpop.permute.xlu0 %5738
  %5740 = vrot.lane.b32.xlu0 %v5611, 64
  %v5741 = vpop.permute.xlu0 %5740
  %5742 = vrot.lane.b32.xlu0 %v5612, 64
  %v5743 = vpop.permute.xlu0 %5742
  %5744 = vrot.lane.b32.xlu0 %v5613, 64
  %v5745 = vpop.permute.xlu0 %5744
  %5746 = vrot.lane.b32.xlu0 %v5614, 64
  %v5747 = vpop.permute.xlu0 %5746
  %5748 = vrot.lane.b32.xlu0 %v5615, 64
  %v5749 = vpop.permute.xlu0 %5748
  %5750 = vrot.lane.b32.xlu0 %v5616, 64
  %v5751 = vpop.permute.xlu0 %5750
  %5752 = vrot.lane.b32.xlu0 %v5617, 64
  %v5753 = vpop.permute.xlu0 %5752
  %5754 = vrot.lane.b32.xlu0 %v5618, 64
  %v5755 = vpop.permute.xlu0 %5754
  %5756 = vrot.lane.b32.xlu0 %v5619, 64
  %v5757 = vpop.permute.xlu0 %5756
  %5758 = vrot.lane.b32.xlu0 %v5620, 64
  %v5759 = vpop.permute.xlu0 %5758
  %5760 = vrot.lane.b32.xlu0 %v5621, 64
  %v5761 = vpop.permute.xlu0 %5760
  %5762 = vrot.lane.b32.xlu0 %v5622, 64
  %v5763 = vpop.permute.xlu0 %5762
  %5764 = vrot.lane.b32.xlu0 %v5623, 64
  %v5765 = vpop.permute.xlu0 %5764
  %5766 = vrot.lane.b32.xlu0 %v5624, 64
  %v5767 = vpop.permute.xlu0 %5766
  %5768 = vrot.lane.b32.xlu0 %v5625, 64
  %v5769 = vpop.permute.xlu0 %5768
  %5770 = vrot.lane.b32.xlu0 %v5626, 64
  %v5771 = vpop.permute.xlu0 %5770
  %5772 = vrot.lane.b32.xlu0 %v5627, 64
  %v5773 = vpop.permute.xlu0 %5772
  %5774 = vrot.lane.b32.xlu0 %v5628, 64
  %v5775 = vpop.permute.xlu0 %5774
  %5776 = vrot.lane.b32.xlu0 %v5629, 64
  %v5777 = vpop.permute.xlu0 %5776
  %5778 = vrot.lane.b32.xlu0 %v5630, 64
  %v5779 = vpop.permute.xlu0 %5778
  %5780 = vrot.lane.b32.xlu0 %v5631, 64
  %v5781 = vpop.permute.xlu0 %5780
  %5782 = vrot.lane.b32.xlu0 %v5632, 64
  %v5783 = vpop.permute.xlu0 %5782
  %5784 = vrot.lane.b32.xlu0 %v5633, 64
  %v5785 = vpop.permute.xlu0 %5784
  %5786 = vrot.lane.b32.xlu0 %v5634, 64
  %v5787 = vpop.permute.xlu0 %5786
  %5788 = vrot.lane.b32.xlu0 %v5635, 64
  %v5789 = vpop.permute.xlu0 %5788
  %5790 = vrot.lane.b32.xlu0 %v5636, 64
  %v5791 = vpop.permute.xlu0 %5790
  %5792 = vrot.lane.b32.xlu0 %v5637, 64
  %v5793 = vpop.permute.xlu0 %5792
  %5794 = vrot.lane.b32.xlu0 %v5638, 64
  %v5795 = vpop.permute.xlu0 %5794
  %5796 = vrot.lane.b32.xlu0 %v5639, 64
  %v5797 = vpop.permute.xlu0 %5796
  %5798 = vrot.lane.b32.xlu0 %v5640, 64
  %v5799 = vpop.permute.xlu0 %5798
  %5800 = vrot.lane.b32.xlu0 %v5641, 64
  %v5801 = vpop.permute.xlu0 %5800
  %5802 = vrot.lane.b32.xlu0 %v5642, 64
  %v5803 = vpop.permute.xlu0 %5802
  %5804 = vrot.lane.b32.xlu0 %v5643, 64
  %v5805 = vpop.permute.xlu0 %5804
  %5806 = vrot.lane.b32.xlu0 %v5644, 64
  %v5807 = vpop.permute.xlu0 %5806
  %5808 = vrot.lane.b32.xlu0 %v5645, 64
  %v5809 = vpop.permute.xlu0 %5808
  %5810 = vrot.lane.b32.xlu0 %v5646, 64
  %v5811 = vpop.permute.xlu0 %5810
  %5812 = vrot.lane.b32.xlu0 %v5647, 64
  %v5813 = vpop.permute.xlu0 %5812
  %5814 = vrot.lane.b32.xlu0 %v5648, 64
  %v5815 = vpop.permute.xlu0 %5814
  %5816 = vrot.lane.b32.xlu0 %v5649, 64
  %v5817 = vpop.permute.xlu0 %5816
  %5818 = vrot.lane.b32.xlu0 %v5650, 64
  %v5819 = vpop.permute.xlu0 %5818
  %5820 = vrot.lane.b32.xlu0 %v5651, 64
  %v5821 = vpop.permute.xlu0 %5820
  %5822 = vrot.lane.b32.xlu0 %v5652, 64
  %v5823 = vpop.permute.xlu0 %5822
  %5824 = vrot.lane.b32.xlu0 %v5653, 64
  %v5825 = vpop.permute.xlu0 %5824
  %5826 = vrot.lane.b32.xlu0 %v5654, 64
  %v5827 = vpop.permute.xlu0 %5826
  %5828 = vrot.lane.b32.xlu0 %v5655, 64
  %v5829 = vpop.permute.xlu0 %5828
  %5830 = vrot.lane.b32.xlu0 %v5656, 64
  %v5831 = vpop.permute.xlu0 %5830
  %5832 = vrot.lane.b32.xlu0 %v5657, 64
  %v5833 = vpop.permute.xlu0 %5832
  %5834 = vrot.lane.b32.xlu0 %v5658, 64
  %v5835 = vpop.permute.xlu0 %5834
  %5836 = vrot.lane.b32.xlu0 %v5659, 64
  %v5837 = vpop.permute.xlu0 %5836
  %5838 = vrot.lane.b32.xlu0 %v5660, 64
  %v5839 = vpop.permute.xlu0 %5838
  %5840 = vrot.lane.b32.xlu0 %v5661, 64
  %v5841 = vpop.permute.xlu0 %5840
  %5842 = vrot.lane.b32.xlu0 %v5662, 64
  %v5843 = vpop.permute.xlu0 %5842
  %5844 = vrot.lane.b32.xlu0 %v5663, 64
  %v5845 = vpop.permute.xlu0 %5844
  %5846 = vrot.lane.b32.xlu0 %v5664, 64
  %v5847 = vpop.permute.xlu0 %5846
  %5848 = vrot.lane.b32.xlu0 %v5665, 64
  %v5849 = vpop.permute.xlu0 %5848
  %5850 = vrot.lane.b32.xlu0 %v5666, 64
  %v5851 = vpop.permute.xlu0 %5850
  %5852 = vrot.lane.b32.xlu0 %v5667, 64
  %v5853 = vpop.permute.xlu0 %5852
  %5854 = vrot.lane.b32.xlu0 %v5668, 64
  %v5855 = vpop.permute.xlu0 %5854
  %5856 = vrot.lane.b32.xlu0 %v5669, 64
  %v5857 = vpop.permute.xlu0 %5856
  %5858 = vrot.lane.b32.xlu0 %v5670, 64
  %v5859 = vpop.permute.xlu0 %5858
  %5860 = vrot.lane.b32.xlu0 %v5671, 64
  %v5861 = vpop.permute.xlu0 %5860
  %5862 = vrot.lane.b32.xlu0 %v5672, 64
  %v5863 = vpop.permute.xlu0 %5862
  %5864 = vrot.lane.b32.xlu0 %v5673, 64
  %v5865 = vpop.permute.xlu0 %5864
  %5930 = vst.msk [vmem:[#allocation4] sm:$0xff] %vm1635, %v5739
  %5931 = vst.msk [vmem:[#allocation4 + $0x10] sm:$0xff] %vm1635, %v5741
  %5932 = vst.msk [vmem:[#allocation4 + $0x20] sm:$0xff] %vm1635, %v5743
  %5933 = vst.msk [vmem:[#allocation4 + $0x30] sm:$0xff] %vm1635, %v5745
  %5934 = vst.msk [vmem:[#allocation4 + $0x40] sm:$0xff] %vm1635, %v5747
  %5935 = vst.msk [vmem:[#allocation4 + $0x50] sm:$0xff] %vm1635, %v5749
  %5936 = vst.msk [vmem:[#allocation4 + $0x60] sm:$0xff] %vm1635, %v5751
  %5937 = vst.msk [vmem:[#allocation4 + $0x70] sm:$0xff] %vm1635, %v5753
  %5938 = vst.msk [vmem:[#allocation4 + $0x80] sm:$0xff] %vm1635, %v5755
  %5939 = vst.msk [vmem:[#allocation4 + $0x90] sm:$0xff] %vm1635, %v5757
  %5940 = vst.msk [vmem:[#allocation4 + $0xa0] sm:$0xff] %vm1635, %v5759
  %5941 = vst.msk [vmem:[#allocation4 + $0xb0] sm:$0xff] %vm1635, %v5761
  %5942 = vst.msk [vmem:[#allocation4 + $0xc0] sm:$0xff] %vm1635, %v5763
  %5943 = vst.msk [vmem:[#allocation4 + $0xd0] sm:$0xff] %vm1635, %v5765
  %5944 = vst.msk [vmem:[#allocation4 + $0xe0] sm:$0xff] %vm1635, %v5767
  %5945 = vst.msk [vmem:[#allocation4 + $0xf0] sm:$0xff] %vm1635, %v5769
  %5946 = vst.msk [vmem:[#allocation4 + $0x100] sm:$0xff] %vm1635, %v5771
  %5947 = vst.msk [vmem:[#allocation4 + $0x110] sm:$0xff] %vm1635, %v5773
  %5948 = vst.msk [vmem:[#allocation4 + $0x120] sm:$0xff] %vm1635, %v5775
  %5949 = vst.msk [vmem:[#allocation4 + $0x130] sm:$0xff] %vm1635, %v5777
  %5950 = vst.msk [vmem:[#allocation4 + $0x140] sm:$0xff] %vm1635, %v5779
  %5951 = vst.msk [vmem:[#allocation4 + $0x150] sm:$0xff] %vm1635, %v5781
  %5952 = vst.msk [vmem:[#allocation4 + $0x160] sm:$0xff] %vm1635, %v5783
  %5953 = vst.msk [vmem:[#allocation4 + $0x170] sm:$0xff] %vm1635, %v5785
  %5954 = vst.msk [vmem:[#allocation4 + $0x180] sm:$0xff] %vm1635, %v5787
  %5955 = vst.msk [vmem:[#allocation4 + $0x190] sm:$0xff] %vm1635, %v5789
  %5956 = vst.msk [vmem:[#allocation4 + $0x1a0] sm:$0xff] %vm1635, %v5791
  %5957 = vst.msk [vmem:[#allocation4 + $0x1b0] sm:$0xff] %vm1635, %v5793
  %5958 = vst.msk [vmem:[#allocation4 + $0x1c0] sm:$0xff] %vm1635, %v5795
  %5959 = vst.msk [vmem:[#allocation4 + $0x1d0] sm:$0xff] %vm1635, %v5797
  %5960 = vst.msk [vmem:[#allocation4 + $0x1e0] sm:$0xff] %vm1635, %v5799
  %5961 = vst.msk [vmem:[#allocation4 + $0x1f0] sm:$0xff] %vm1635, %v5801
  %5962 = vst.msk [vmem:[#allocation4 + $0x200] sm:$0xff] %vm1635, %v5803
  %5963 = vst.msk [vmem:[#allocation4 + $0x210] sm:$0xff] %vm1635, %v5805
  %5964 = vst.msk [vmem:[#allocation4 + $0x220] sm:$0xff] %vm1635, %v5807
  %5965 = vst.msk [vmem:[#allocation4 + $0x230] sm:$0xff] %vm1635, %v5809
  %5966 = vst.msk [vmem:[#allocation4 + $0x240] sm:$0xff] %vm1635, %v5811
  %5967 = vst.msk [vmem:[#allocation4 + $0x250] sm:$0xff] %vm1635, %v5813
  %5968 = vst.msk [vmem:[#allocation4 + $0x260] sm:$0xff] %vm1635, %v5815
  %5969 = vst.msk [vmem:[#allocation4 + $0x270] sm:$0xff] %vm1635, %v5817
  %5970 = vst.msk [vmem:[#allocation4 + $0x280] sm:$0xff] %vm1635, %v5819
  %5971 = vst.msk [vmem:[#allocation4 + $0x290] sm:$0xff] %vm1635, %v5821
  %5972 = vst.msk [vmem:[#allocation4 + $0x2a0] sm:$0xff] %vm1635, %v5823
  %5973 = vst.msk [vmem:[#allocation4 + $0x2b0] sm:$0xff] %vm1635, %v5825
  %5974 = vst.msk [vmem:[#allocation4 + $0x2c0] sm:$0xff] %vm1635, %v5827
  %5975 = vst.msk [vmem:[#allocation4 + $0x2d0] sm:$0xff] %vm1635, %v5829
  %5976 = vst.msk [vmem:[#allocation4 + $0x2e0] sm:$0xff] %vm1635, %v5831
  %5977 = vst.msk [vmem:[#allocation4 + $0x2f0] sm:$0xff] %vm1635, %v5833
  %5978 = vst.msk [vmem:[#allocation4 + $0x300] sm:$0xff] %vm1635, %v5835
  %5979 = vst.msk [vmem:[#allocation4 + $0x310] sm:$0xff] %vm1635, %v5837
  %5980 = vst.msk [vmem:[#allocation4 + $0x320] sm:$0xff] %vm1635, %v5839
  %5981 = vst.msk [vmem:[#allocation4 + $0x330] sm:$0xff] %vm1635, %v5841
  %5982 = vst.msk [vmem:[#allocation4 + $0x340] sm:$0xff] %vm1635, %v5843
  %5983 = vst.msk [vmem:[#allocation4 + $0x350] sm:$0xff] %vm1635, %v5845
  %5984 = vst.msk [vmem:[#allocation4 + $0x360] sm:$0xff] %vm1635, %v5847
  %5985 = vst.msk [vmem:[#allocation4 + $0x370] sm:$0xff] %vm1635, %v5849
  %5986 = vst.msk [vmem:[#allocation4 + $0x380] sm:$0xff] %vm1635, %v5851
  %5987 = vst.msk [vmem:[#allocation4 + $0x390] sm:$0xff] %vm1635, %v5853
  %5988 = vst.msk [vmem:[#allocation4 + $0x3a0] sm:$0xff] %vm1635, %v5855
  %5989 = vst.msk [vmem:[#allocation4 + $0x3b0] sm:$0xff] %vm1635, %v5857
  %5990 = vst.msk [vmem:[#allocation4 + $0x3c0] sm:$0xff] %vm1635, %v5859
  %5991 = vst.msk [vmem:[#allocation4 + $0x3d0] sm:$0xff] %vm1635, %v5861
  %5992 = vst.msk [vmem:[#allocation4 + $0x3e0] sm:$0xff] %vm1635, %v5863
  %5993 = vst.msk [vmem:[#allocation4 + $0x3f0] sm:$0xff] %vm1635, %v5865
  %v5994 = vld [vmem:[%s4178 + $0x2] sm:$0xff]
  %v5995 = vld [vmem:[%s4178 + $0xa] sm:$0xff]
  %v5996 = vld [vmem:[%s4178 + $0x1a] sm:$0xff]
  %v5997 = vld [vmem:[%s4178 + $0x22] sm:$0xff]
  %v5998 = vld [vmem:[%s4178 + $0x32] sm:$0xff]
  %v5999 = vld [vmem:[%s4178 + $0x3a] sm:$0xff]
  %v6000 = vld [vmem:[%s4178 + $0x4a] sm:$0xff]
  %v6001 = vld [vmem:[%s4178 + $0x52] sm:$0xff]
  %v6002 = vld [vmem:[%s4178 + $0x62] sm:$0xff]
  %v6003 = vld [vmem:[%s4178 + $0x6a] sm:$0xff]
  %v6004 = vld [vmem:[%s4178 + $0x7a] sm:$0xff]
  %v6005 = vld [vmem:[%s4178 + $0x82] sm:$0xff]
  %v6006 = vld [vmem:[%s4178 + $0x92] sm:$0xff]
  %v6007 = vld [vmem:[%s4178 + $0x9a] sm:$0xff]
  %v6008 = vld [vmem:[%s4178 + $0xaa] sm:$0xff]
  %v6009 = vld [vmem:[%s4178 + $0xb2] sm:$0xff]
  %v6010 = vld [vmem:[%s4178 + $0xc2] sm:$0xff]
  %v6011 = vld [vmem:[%s4178 + $0xca] sm:$0xff]
  %v6012 = vld [vmem:[%s4178 + $0xda] sm:$0xff]
  %v6013 = vld [vmem:[%s4178 + $0xe2] sm:$0xff]
  %v6014 = vld [vmem:[%s4178 + $0xf2] sm:$0xff]
  %v6015 = vld [vmem:[%s4178 + $0xfa] sm:$0xff]
  %v6016 = vld [vmem:[%s4178 + $0x10a] sm:$0xff]
  %v6017 = vld [vmem:[%s4178 + $0x112] sm:$0xff]
  %v6018 = vld [vmem:[%s4178 + $0x122] sm:$0xff]
  %v6019 = vld [vmem:[%s4178 + $0x12a] sm:$0xff]
  %v6020 = vld [vmem:[%s4178 + $0x13a] sm:$0xff]
  %v6021 = vld [vmem:[%s4178 + $0x142] sm:$0xff]
  %v6022 = vld [vmem:[%s4178 + $0x152] sm:$0xff]
  %v6023 = vld [vmem:[%s4178 + $0x15a] sm:$0xff]
  %v6024 = vld [vmem:[%s4178 + $0x16a] sm:$0xff]
  %v6025 = vld [vmem:[%s4178 + $0x172] sm:$0xff]
  %v6026 = vld [vmem:[%s4178 + $0x1b2] sm:$0xff]
  %v6027 = vld [vmem:[%s4178 + $0x1ba] sm:$0xff]
  %v6028 = vld [vmem:[%s4178 + $0x1ca] sm:$0xff]
  %v6029 = vld [vmem:[%s4178 + $0x1d2] sm:$0xff]
  %v6030 = vld [vmem:[%s4178 + $0x1e2] sm:$0xff]
  %v6031 = vld [vmem:[%s4178 + $0x1ea] sm:$0xff]
  %v6032 = vld [vmem:[%s4178 + $0x1fa] sm:$0xff]
  %v6033 = vld [vmem:[%s4178 + $0x202] sm:$0xff]
  %v6034 = vld [vmem:[%s4178 + $0x212] sm:$0xff]
  %v6035 = vld [vmem:[%s4178 + $0x21a] sm:$0xff]
  %v6036 = vld [vmem:[%s4178 + $0x22a] sm:$0xff]
  %v6037 = vld [vmem:[%s4178 + $0x232] sm:$0xff]
  %v6038 = vld [vmem:[%s4178 + $0x242] sm:$0xff]
  %v6039 = vld [vmem:[%s4178 + $0x24a] sm:$0xff]
  %v6040 = vld [vmem:[%s4178 + $0x25a] sm:$0xff]
  %v6041 = vld [vmem:[%s4178 + $0x262] sm:$0xff]
  %v6042 = vld [vmem:[%s4178 + $0x272] sm:$0xff]
  %v6043 = vld [vmem:[%s4178 + $0x27a] sm:$0xff]
  %v6044 = vld [vmem:[%s4178 + $0x28a] sm:$0xff]
  %v6045 = vld [vmem:[%s4178 + $0x292] sm:$0xff]
  %v6046 = vld [vmem:[%s4178 + $0x2a2] sm:$0xff]
  %v6047 = vld [vmem:[%s4178 + $0x2aa] sm:$0xff]
  %v6048 = vld [vmem:[%s4178 + $0x2ba] sm:$0xff]
  %v6049 = vld [vmem:[%s4178 + $0x2c2] sm:$0xff]
  %v6050 = vld [vmem:[%s4178 + $0x2d2] sm:$0xff]
  %v6051 = vld [vmem:[%s4178 + $0x2da] sm:$0xff]
  %v6052 = vld [vmem:[%s4178 + $0x2ea] sm:$0xff]
  %v6053 = vld [vmem:[%s4178 + $0x2f2] sm:$0xff]
  %v6054 = vld [vmem:[%s4178 + $0x302] sm:$0xff]
  %v6055 = vld [vmem:[%s4178 + $0x30a] sm:$0xff]
  %v6056 = vld [vmem:[%s4178 + $0x31a] sm:$0xff]
  %v6057 = vld [vmem:[%s4178 + $0x322] sm:$0xff]
  %6122 = vrot.lane.b32.xlu0 %v5994, 80
  %v6123 = vpop.permute.xlu0 %6122
  %6124 = vrot.lane.b32.xlu0 %v5995, 80
  %v6125 = vpop.permute.xlu0 %6124
  %6126 = vrot.lane.b32.xlu0 %v5996, 80
  %v6127 = vpop.permute.xlu0 %6126
  %6128 = vrot.lane.b32.xlu0 %v5997, 80
  %v6129 = vpop.permute.xlu0 %6128
  %6130 = vrot.lane.b32.xlu0 %v5998, 80
  %v6131 = vpop.permute.xlu0 %6130
  %6132 = vrot.lane.b32.xlu0 %v5999, 80
  %v6133 = vpop.permute.xlu0 %6132
  %6134 = vrot.lane.b32.xlu0 %v6000, 80
  %v6135 = vpop.permute.xlu0 %6134
  %6136 = vrot.lane.b32.xlu0 %v6001, 80
  %v6137 = vpop.permute.xlu0 %6136
  %6138 = vrot.lane.b32.xlu0 %v6002, 80
  %v6139 = vpop.permute.xlu0 %6138
  %6140 = vrot.lane.b32.xlu0 %v6003, 80
  %v6141 = vpop.permute.xlu0 %6140
  %6142 = vrot.lane.b32.xlu0 %v6004, 80
  %v6143 = vpop.permute.xlu0 %6142
  %6144 = vrot.lane.b32.xlu0 %v6005, 80
  %v6145 = vpop.permute.xlu0 %6144
  %6146 = vrot.lane.b32.xlu0 %v6006, 80
  %v6147 = vpop.permute.xlu0 %6146
  %6148 = vrot.lane.b32.xlu0 %v6007, 80
  %v6149 = vpop.permute.xlu0 %6148
  %6150 = vrot.lane.b32.xlu0 %v6008, 80
  %v6151 = vpop.permute.xlu0 %6150
  %6152 = vrot.lane.b32.xlu0 %v6009, 80
  %v6153 = vpop.permute.xlu0 %6152
  %6154 = vrot.lane.b32.xlu0 %v6010, 80
  %v6155 = vpop.permute.xlu0 %6154
  %6156 = vrot.lane.b32.xlu0 %v6011, 80
  %v6157 = vpop.permute.xlu0 %6156
  %6158 = vrot.lane.b32.xlu0 %v6012, 80
  %v6159 = vpop.permute.xlu0 %6158
  %6160 = vrot.lane.b32.xlu0 %v6013, 80
  %v6161 = vpop.permute.xlu0 %6160
  %6162 = vrot.lane.b32.xlu0 %v6014, 80
  %v6163 = vpop.permute.xlu0 %6162
  %6164 = vrot.lane.b32.xlu0 %v6015, 80
  %v6165 = vpop.permute.xlu0 %6164
  %6166 = vrot.lane.b32.xlu0 %v6016, 80
  %v6167 = vpop.permute.xlu0 %6166
  %6168 = vrot.lane.b32.xlu0 %v6017, 80
  %v6169 = vpop.permute.xlu0 %6168
  %6170 = vrot.lane.b32.xlu0 %v6018, 80
  %v6171 = vpop.permute.xlu0 %6170
  %6172 = vrot.lane.b32.xlu0 %v6019, 80
  %v6173 = vpop.permute.xlu0 %6172
  %6174 = vrot.lane.b32.xlu0 %v6020, 80
  %v6175 = vpop.permute.xlu0 %6174
  %6176 = vrot.lane.b32.xlu0 %v6021, 80
  %v6177 = vpop.permute.xlu0 %6176
  %6178 = vrot.lane.b32.xlu0 %v6022, 80
  %v6179 = vpop.permute.xlu0 %6178
  %6180 = vrot.lane.b32.xlu0 %v6023, 80
  %v6181 = vpop.permute.xlu0 %6180
  %6182 = vrot.lane.b32.xlu0 %v6024, 80
  %v6183 = vpop.permute.xlu0 %6182
  %6184 = vrot.lane.b32.xlu0 %v6025, 80
  %v6185 = vpop.permute.xlu0 %6184
  %6186 = vrot.lane.b32.xlu0 %v6026, 80
  %v6187 = vpop.permute.xlu0 %6186
  %6188 = vrot.lane.b32.xlu0 %v6027, 80
  %v6189 = vpop.permute.xlu0 %6188
  %6190 = vrot.lane.b32.xlu0 %v6028, 80
  %v6191 = vpop.permute.xlu0 %6190
  %6192 = vrot.lane.b32.xlu0 %v6029, 80
  %v6193 = vpop.permute.xlu0 %6192
  %6194 = vrot.lane.b32.xlu0 %v6030, 80
  %v6195 = vpop.permute.xlu0 %6194
  %6196 = vrot.lane.b32.xlu0 %v6031, 80
  %v6197 = vpop.permute.xlu0 %6196
  %6198 = vrot.lane.b32.xlu0 %v6032, 80
  %v6199 = vpop.permute.xlu0 %6198
  %6200 = vrot.lane.b32.xlu0 %v6033, 80
  %v6201 = vpop.permute.xlu0 %6200
  %6202 = vrot.lane.b32.xlu0 %v6034, 80
  %v6203 = vpop.permute.xlu0 %6202
  %6204 = vrot.lane.b32.xlu0 %v6035, 80
  %v6205 = vpop.permute.xlu0 %6204
  %6206 = vrot.lane.b32.xlu0 %v6036, 80
  %v6207 = vpop.permute.xlu0 %6206
  %6208 = vrot.lane.b32.xlu0 %v6037, 80
  %v6209 = vpop.permute.xlu0 %6208
  %6210 = vrot.lane.b32.xlu0 %v6038, 80
  %v6211 = vpop.permute.xlu0 %6210
  %6212 = vrot.lane.b32.xlu0 %v6039, 80
  %v6213 = vpop.permute.xlu0 %6212
  %6214 = vrot.lane.b32.xlu0 %v6040, 80
  %v6215 = vpop.permute.xlu0 %6214
  %6216 = vrot.lane.b32.xlu0 %v6041, 80
  %v6217 = vpop.permute.xlu0 %6216
  %6218 = vrot.lane.b32.xlu0 %v6042, 80
  %v6219 = vpop.permute.xlu0 %6218
  %6220 = vrot.lane.b32.xlu0 %v6043, 80
  %v6221 = vpop.permute.xlu0 %6220
  %6222 = vrot.lane.b32.xlu0 %v6044, 80
  %v6223 = vpop.permute.xlu0 %6222
  %6224 = vrot.lane.b32.xlu0 %v6045, 80
  %v6225 = vpop.permute.xlu0 %6224
  %6226 = vrot.lane.b32.xlu0 %v6046, 80
  %v6227 = vpop.permute.xlu0 %6226
  %6228 = vrot.lane.b32.xlu0 %v6047, 80
  %v6229 = vpop.permute.xlu0 %6228
  %6230 = vrot.lane.b32.xlu0 %v6048, 80
  %v6231 = vpop.permute.xlu0 %6230
  %6232 = vrot.lane.b32.xlu0 %v6049, 80
  %v6233 = vpop.permute.xlu0 %6232
  %6234 = vrot.lane.b32.xlu0 %v6050, 80
  %v6235 = vpop.permute.xlu0 %6234
  %6236 = vrot.lane.b32.xlu0 %v6051, 80
  %v6237 = vpop.permute.xlu0 %6236
  %6238 = vrot.lane.b32.xlu0 %v6052, 80
  %v6239 = vpop.permute.xlu0 %6238
  %6240 = vrot.lane.b32.xlu0 %v6053, 80
  %v6241 = vpop.permute.xlu0 %6240
  %6242 = vrot.lane.b32.xlu0 %v6054, 80
  %v6243 = vpop.permute.xlu0 %6242
  %6244 = vrot.lane.b32.xlu0 %v6055, 80
  %v6245 = vpop.permute.xlu0 %6244
  %6246 = vrot.lane.b32.xlu0 %v6056, 80
  %v6247 = vpop.permute.xlu0 %6246
  %6248 = vrot.lane.b32.xlu0 %v6057, 80
  %v6249 = vpop.permute.xlu0 %6248
  %6314 = vst.msk [vmem:[#allocation4] sm:$0xff] %vm2020, %v6123
  %6315 = vst.msk [vmem:[#allocation4 + $0x10] sm:$0xff] %vm2020, %v6125
  %6316 = vst.msk [vmem:[#allocation4 + $0x20] sm:$0xff] %vm2020, %v6127
  %6317 = vst.msk [vmem:[#allocation4 + $0x30] sm:$0xff] %vm2020, %v6129
  %6318 = vst.msk [vmem:[#allocation4 + $0x40] sm:$0xff] %vm2020, %v6131
  %6319 = vst.msk [vmem:[#allocation4 + $0x50] sm:$0xff] %vm2020, %v6133
  %6320 = vst.msk [vmem:[#allocation4 + $0x60] sm:$0xff] %vm2020, %v6135
  %6321 = vst.msk [vmem:[#allocation4 + $0x70] sm:$0xff] %vm2020, %v6137
  %6322 = vst.msk [vmem:[#allocation4 + $0x80] sm:$0xff] %vm2020, %v6139
  %6323 = vst.msk [vmem:[#allocation4 + $0x90] sm:$0xff] %vm2020, %v6141
  %6324 = vst.msk [vmem:[#allocation4 + $0xa0] sm:$0xff] %vm2020, %v6143
  %6325 = vst.msk [vmem:[#allocation4 + $0xb0] sm:$0xff] %vm2020, %v6145
  %6326 = vst.msk [vmem:[#allocation4 + $0xc0] sm:$0xff] %vm2020, %v6147
  %6327 = vst.msk [vmem:[#allocation4 + $0xd0] sm:$0xff] %vm2020, %v6149
  %6328 = vst.msk [vmem:[#allocation4 + $0xe0] sm:$0xff] %vm2020, %v6151
  %6329 = vst.msk [vmem:[#allocation4 + $0xf0] sm:$0xff] %vm2020, %v6153
  %6330 = vst.msk [vmem:[#allocation4 + $0x100] sm:$0xff] %vm2020, %v6155
  %6331 = vst.msk [vmem:[#allocation4 + $0x110] sm:$0xff] %vm2020, %v6157
  %6332 = vst.msk [vmem:[#allocation4 + $0x120] sm:$0xff] %vm2020, %v6159
  %6333 = vst.msk [vmem:[#allocation4 + $0x130] sm:$0xff] %vm2020, %v6161
  %6334 = vst.msk [vmem:[#allocation4 + $0x140] sm:$0xff] %vm2020, %v6163
  %6335 = vst.msk [vmem:[#allocation4 + $0x150] sm:$0xff] %vm2020, %v6165
  %6336 = vst.msk [vmem:[#allocation4 + $0x160] sm:$0xff] %vm2020, %v6167
  %6337 = vst.msk [vmem:[#allocation4 + $0x170] sm:$0xff] %vm2020, %v6169
  %6338 = vst.msk [vmem:[#allocation4 + $0x180] sm:$0xff] %vm2020, %v6171
  %6339 = vst.msk [vmem:[#allocation4 + $0x190] sm:$0xff] %vm2020, %v6173
  %6340 = vst.msk [vmem:[#allocation4 + $0x1a0] sm:$0xff] %vm2020, %v6175
  %6341 = vst.msk [vmem:[#allocation4 + $0x1b0] sm:$0xff] %vm2020, %v6177
  %6342 = vst.msk [vmem:[#allocation4 + $0x1c0] sm:$0xff] %vm2020, %v6179
  %6343 = vst.msk [vmem:[#allocation4 + $0x1d0] sm:$0xff] %vm2020, %v6181
  %6344 = vst.msk [vmem:[#allocation4 + $0x1e0] sm:$0xff] %vm2020, %v6183
  %6345 = vst.msk [vmem:[#allocation4 + $0x1f0] sm:$0xff] %vm2020, %v6185
  %6346 = vst.msk [vmem:[#allocation4 + $0x200] sm:$0xff] %vm2020, %v6187
  %6347 = vst.msk [vmem:[#allocation4 + $0x210] sm:$0xff] %vm2020, %v6189
  %6348 = vst.msk [vmem:[#allocation4 + $0x220] sm:$0xff] %vm2020, %v6191
  %6349 = vst.msk [vmem:[#allocation4 + $0x230] sm:$0xff] %vm2020, %v6193
  %6350 = vst.msk [vmem:[#allocation4 + $0x240] sm:$0xff] %vm2020, %v6195
  %6351 = vst.msk [vmem:[#allocation4 + $0x250] sm:$0xff] %vm2020, %v6197
  %6352 = vst.msk [vmem:[#allocation4 + $0x260] sm:$0xff] %vm2020, %v6199
  %6353 = vst.msk [vmem:[#allocation4 + $0x270] sm:$0xff] %vm2020, %v6201
  %6354 = vst.msk [vmem:[#allocation4 + $0x280] sm:$0xff] %vm2020, %v6203
  %6355 = vst.msk [vmem:[#allocation4 + $0x290] sm:$0xff] %vm2020, %v6205
  %6356 = vst.msk [vmem:[#allocation4 + $0x2a0] sm:$0xff] %vm2020, %v6207
  %6357 = vst.msk [vmem:[#allocation4 + $0x2b0] sm:$0xff] %vm2020, %v6209
  %6358 = vst.msk [vmem:[#allocation4 + $0x2c0] sm:$0xff] %vm2020, %v6211
  %6359 = vst.msk [vmem:[#allocation4 + $0x2d0] sm:$0xff] %vm2020, %v6213
  %6360 = vst.msk [vmem:[#allocation4 + $0x2e0] sm:$0xff] %vm2020, %v6215
  %6361 = vst.msk [vmem:[#allocation4 + $0x2f0] sm:$0xff] %vm2020, %v6217
  %6362 = vst.msk [vmem:[#allocation4 + $0x300] sm:$0xff] %vm2020, %v6219
  %6363 = vst.msk [vmem:[#allocation4 + $0x310] sm:$0xff] %vm2020, %v6221
  %6364 = vst.msk [vmem:[#allocation4 + $0x320] sm:$0xff] %vm2020, %v6223
  %6365 = vst.msk [vmem:[#allocation4 + $0x330] sm:$0xff] %vm2020, %v6225
  %6366 = vst.msk [vmem:[#allocation4 + $0x340] sm:$0xff] %vm2020, %v6227
  %6367 = vst.msk [vmem:[#allocation4 + $0x350] sm:$0xff] %vm2020, %v6229
  %6368 = vst.msk [vmem:[#allocation4 + $0x360] sm:$0xff] %vm2020, %v6231
  %6369 = vst.msk [vmem:[#allocation4 + $0x370] sm:$0xff] %vm2020, %v6233
  %6370 = vst.msk [vmem:[#allocation4 + $0x380] sm:$0xff] %vm2020, %v6235
  %6371 = vst.msk [vmem:[#allocation4 + $0x390] sm:$0xff] %vm2020, %v6237
  %6372 = vst.msk [vmem:[#allocation4 + $0x3a0] sm:$0xff] %vm2020, %v6239
  %6373 = vst.msk [vmem:[#allocation4 + $0x3b0] sm:$0xff] %vm2020, %v6241
  %6374 = vst.msk [vmem:[#allocation4 + $0x3c0] sm:$0xff] %vm2020, %v6243
  %6375 = vst.msk [vmem:[#allocation4 + $0x3d0] sm:$0xff] %vm2020, %v6245
  %6376 = vst.msk [vmem:[#allocation4 + $0x3e0] sm:$0xff] %vm2020, %v6247
  %6377 = vst.msk [vmem:[#allocation4 + $0x3f0] sm:$0xff] %vm2020, %v6249
  %s6378 = scalar_lea.vmem [#allocation2], 48
  %v6379 = vld [vmem:[%s6378] sm:$0xff]
  %v6380 = vld [vmem:[%s6378 + $0x8] sm:$0xff]
  %v6381 = vld [vmem:[%s6378 + $0x18] sm:$0xff]
  %v6382 = vld [vmem:[%s6378 + $0x20] sm:$0xff]
  %v6383 = vld [vmem:[%s6378 + $0x30] sm:$0xff]
  %v6384 = vld [vmem:[%s6378 + $0x38] sm:$0xff]
  %v6385 = vld [vmem:[%s6378 + $0x48] sm:$0xff]
  %v6386 = vld [vmem:[%s6378 + $0x50] sm:$0xff]
  %v6387 = vld [vmem:[%s6378 + $0x60] sm:$0xff]
  %v6388 = vld [vmem:[%s6378 + $0x68] sm:$0xff]
  %v6389 = vld [vmem:[%s6378 + $0x78] sm:$0xff]
  %v6390 = vld [vmem:[%s6378 + $0x80] sm:$0xff]
  %v6391 = vld [vmem:[%s6378 + $0x90] sm:$0xff]
  %v6392 = vld [vmem:[%s6378 + $0x98] sm:$0xff]
  %v6393 = vld [vmem:[%s6378 + $0xa8] sm:$0xff]
  %v6394 = vld [vmem:[%s6378 + $0xb0] sm:$0xff]
  %v6395 = vld [vmem:[%s6378 + $0xc0] sm:$0xff]
  %v6396 = vld [vmem:[%s6378 + $0xc8] sm:$0xff]
  %v6397 = vld [vmem:[%s6378 + $0xd8] sm:$0xff]
  %v6398 = vld [vmem:[%s6378 + $0xe0] sm:$0xff]
  %v6399 = vld [vmem:[%s6378 + $0xf0] sm:$0xff]
  %v6400 = vld [vmem:[%s6378 + $0xf8] sm:$0xff]
  %v6401 = vld [vmem:[%s6378 + $0x108] sm:$0xff]
  %v6402 = vld [vmem:[%s6378 + $0x110] sm:$0xff]
  %v6403 = vld [vmem:[%s6378 + $0x120] sm:$0xff]
  %v6404 = vld [vmem:[%s6378 + $0x128] sm:$0xff]
  %v6405 = vld [vmem:[%s6378 + $0x138] sm:$0xff]
  %v6406 = vld [vmem:[%s6378 + $0x140] sm:$0xff]
  %v6407 = vld [vmem:[%s6378 + $0x150] sm:$0xff]
  %v6408 = vld [vmem:[%s6378 + $0x158] sm:$0xff]
  %v6409 = vld [vmem:[%s6378 + $0x168] sm:$0xff]
  %v6410 = vld [vmem:[%s6378 + $0x170] sm:$0xff]
  %v6411 = vld [vmem:[%s6378 + $0x1b0] sm:$0xff]
  %v6412 = vld [vmem:[%s6378 + $0x1b8] sm:$0xff]
  %v6413 = vld [vmem:[%s6378 + $0x1c8] sm:$0xff]
  %v6414 = vld [vmem:[%s6378 + $0x1d0] sm:$0xff]
  %v6415 = vld [vmem:[%s6378 + $0x1e0] sm:$0xff]
  %v6416 = vld [vmem:[%s6378 + $0x1e8] sm:$0xff]
  %v6417 = vld [vmem:[%s6378 + $0x1f8] sm:$0xff]
  %v6418 = vld [vmem:[%s6378 + $0x200] sm:$0xff]
  %v6419 = vld [vmem:[%s6378 + $0x210] sm:$0xff]
  %v6420 = vld [vmem:[%s6378 + $0x218] sm:$0xff]
  %v6421 = vld [vmem:[%s6378 + $0x228] sm:$0xff]
  %v6422 = vld [vmem:[%s6378 + $0x230] sm:$0xff]
  %v6423 = vld [vmem:[%s6378 + $0x240] sm:$0xff]
  %v6424 = vld [vmem:[%s6378 + $0x248] sm:$0xff]
  %v6425 = vld [vmem:[%s6378 + $0x258] sm:$0xff]
  %v6426 = vld [vmem:[%s6378 + $0x260] sm:$0xff]
  %v6427 = vld [vmem:[%s6378 + $0x270] sm:$0xff]
  %v6428 = vld [vmem:[%s6378 + $0x278] sm:$0xff]
  %v6429 = vld [vmem:[%s6378 + $0x288] sm:$0xff]
  %v6430 = vld [vmem:[%s6378 + $0x290] sm:$0xff]
  %v6431 = vld [vmem:[%s6378 + $0x2a0] sm:$0xff]
  %v6432 = vld [vmem:[%s6378 + $0x2a8] sm:$0xff]
  %v6433 = vld [vmem:[%s6378 + $0x2b8] sm:$0xff]
  %v6434 = vld [vmem:[%s6378 + $0x2c0] sm:$0xff]
  %v6435 = vld [vmem:[%s6378 + $0x2d0] sm:$0xff]
  %v6436 = vld [vmem:[%s6378 + $0x2d8] sm:$0xff]
  %v6437 = vld [vmem:[%s6378 + $0x2e8] sm:$0xff]
  %v6438 = vld [vmem:[%s6378 + $0x2f0] sm:$0xff]
  %v6439 = vld [vmem:[%s6378 + $0x300] sm:$0xff]
  %v6440 = vld [vmem:[%s6378 + $0x308] sm:$0xff]
  %v6441 = vld [vmem:[%s6378 + $0x318] sm:$0xff]
  %v6442 = vld [vmem:[%s6378 + $0x320] sm:$0xff]
  %6507 = vrot.lane.b32.xlu0 %v6379, 96
  %v6508 = vpop.permute.xlu0 %6507
  %6509 = vrot.lane.b32.xlu0 %v6380, 96
  %v6510 = vpop.permute.xlu0 %6509
  %6511 = vrot.lane.b32.xlu0 %v6381, 96
  %v6512 = vpop.permute.xlu0 %6511
  %6513 = vrot.lane.b32.xlu0 %v6382, 96
  %v6514 = vpop.permute.xlu0 %6513
  %6515 = vrot.lane.b32.xlu0 %v6383, 96
  %v6516 = vpop.permute.xlu0 %6515
  %6517 = vrot.lane.b32.xlu0 %v6384, 96
  %v6518 = vpop.permute.xlu0 %6517
  %6519 = vrot.lane.b32.xlu0 %v6385, 96
  %v6520 = vpop.permute.xlu0 %6519
  %6521 = vrot.lane.b32.xlu0 %v6386, 96
  %v6522 = vpop.permute.xlu0 %6521
  %6523 = vrot.lane.b32.xlu0 %v6387, 96
  %v6524 = vpop.permute.xlu0 %6523
  %6525 = vrot.lane.b32.xlu0 %v6388, 96
  %v6526 = vpop.permute.xlu0 %6525
  %6527 = vrot.lane.b32.xlu0 %v6389, 96
  %v6528 = vpop.permute.xlu0 %6527
  %6529 = vrot.lane.b32.xlu0 %v6390, 96
  %v6530 = vpop.permute.xlu0 %6529
  %6531 = vrot.lane.b32.xlu0 %v6391, 96
  %v6532 = vpop.permute.xlu0 %6531
  %6533 = vrot.lane.b32.xlu0 %v6392, 96
  %v6534 = vpop.permute.xlu0 %6533
  %6535 = vrot.lane.b32.xlu0 %v6393, 96
  %v6536 = vpop.permute.xlu0 %6535
  %6537 = vrot.lane.b32.xlu0 %v6394, 96
  %v6538 = vpop.permute.xlu0 %6537
  %6539 = vrot.lane.b32.xlu0 %v6395, 96
  %v6540 = vpop.permute.xlu0 %6539
  %6541 = vrot.lane.b32.xlu0 %v6396, 96
  %v6542 = vpop.permute.xlu0 %6541
  %6543 = vrot.lane.b32.xlu0 %v6397, 96
  %v6544 = vpop.permute.xlu0 %6543
  %6545 = vrot.lane.b32.xlu0 %v6398, 96
  %v6546 = vpop.permute.xlu0 %6545
  %6547 = vrot.lane.b32.xlu0 %v6399, 96
  %v6548 = vpop.permute.xlu0 %6547
  %6549 = vrot.lane.b32.xlu0 %v6400, 96
  %v6550 = vpop.permute.xlu0 %6549
  %6551 = vrot.lane.b32.xlu0 %v6401, 96
  %v6552 = vpop.permute.xlu0 %6551
  %6553 = vrot.lane.b32.xlu0 %v6402, 96
  %v6554 = vpop.permute.xlu0 %6553
  %6555 = vrot.lane.b32.xlu0 %v6403, 96
  %v6556 = vpop.permute.xlu0 %6555
  %6557 = vrot.lane.b32.xlu0 %v6404, 96
  %v6558 = vpop.permute.xlu0 %6557
  %6559 = vrot.lane.b32.xlu0 %v6405, 96
  %v6560 = vpop.permute.xlu0 %6559
  %6561 = vrot.lane.b32.xlu0 %v6406, 96
  %v6562 = vpop.permute.xlu0 %6561
  %6563 = vrot.lane.b32.xlu0 %v6407, 96
  %v6564 = vpop.permute.xlu0 %6563
  %6565 = vrot.lane.b32.xlu0 %v6408, 96
  %v6566 = vpop.permute.xlu0 %6565
  %6567 = vrot.lane.b32.xlu0 %v6409, 96
  %v6568 = vpop.permute.xlu0 %6567
  %6569 = vrot.lane.b32.xlu0 %v6410, 96
  %v6570 = vpop.permute.xlu0 %6569
  %6571 = vrot.lane.b32.xlu0 %v6411, 96
  %v6572 = vpop.permute.xlu0 %6571
  %6573 = vrot.lane.b32.xlu0 %v6412, 96
  %v6574 = vpop.permute.xlu0 %6573
  %6575 = vrot.lane.b32.xlu0 %v6413, 96
  %v6576 = vpop.permute.xlu0 %6575
  %6577 = vrot.lane.b32.xlu0 %v6414, 96
  %v6578 = vpop.permute.xlu0 %6577
  %6579 = vrot.lane.b32.xlu0 %v6415, 96
  %v6580 = vpop.permute.xlu0 %6579
  %6581 = vrot.lane.b32.xlu0 %v6416, 96
  %v6582 = vpop.permute.xlu0 %6581
  %6583 = vrot.lane.b32.xlu0 %v6417, 96
  %v6584 = vpop.permute.xlu0 %6583
  %6585 = vrot.lane.b32.xlu0 %v6418, 96
  %v6586 = vpop.permute.xlu0 %6585
  %6587 = vrot.lane.b32.xlu0 %v6419, 96
  %v6588 = vpop.permute.xlu0 %6587
  %6589 = vrot.lane.b32.xlu0 %v6420, 96
  %v6590 = vpop.permute.xlu0 %6589
  %6591 = vrot.lane.b32.xlu0 %v6421, 96
  %v6592 = vpop.permute.xlu0 %6591
  %6593 = vrot.lane.b32.xlu0 %v6422, 96
  %v6594 = vpop.permute.xlu0 %6593
  %6595 = vrot.lane.b32.xlu0 %v6423, 96
  %v6596 = vpop.permute.xlu0 %6595
  %6597 = vrot.lane.b32.xlu0 %v6424, 96
  %v6598 = vpop.permute.xlu0 %6597
  %6599 = vrot.lane.b32.xlu0 %v6425, 96
  %v6600 = vpop.permute.xlu0 %6599
  %6601 = vrot.lane.b32.xlu0 %v6426, 96
  %v6602 = vpop.permute.xlu0 %6601
  %6603 = vrot.lane.b32.xlu0 %v6427, 96
  %v6604 = vpop.permute.xlu0 %6603
  %6605 = vrot.lane.b32.xlu0 %v6428, 96
  %v6606 = vpop.permute.xlu0 %6605
  %6607 = vrot.lane.b32.xlu0 %v6429, 96
  %v6608 = vpop.permute.xlu0 %6607
  %6609 = vrot.lane.b32.xlu0 %v6430, 96
  %v6610 = vpop.permute.xlu0 %6609
  %6611 = vrot.lane.b32.xlu0 %v6431, 96
  %v6612 = vpop.permute.xlu0 %6611
  %6613 = vrot.lane.b32.xlu0 %v6432, 96
  %v6614 = vpop.permute.xlu0 %6613
  %6615 = vrot.lane.b32.xlu0 %v6433, 96
  %v6616 = vpop.permute.xlu0 %6615
  %6617 = vrot.lane.b32.xlu0 %v6434, 96
  %v6618 = vpop.permute.xlu0 %6617
  %6619 = vrot.lane.b32.xlu0 %v6435, 96
  %v6620 = vpop.permute.xlu0 %6619
  %6621 = vrot.lane.b32.xlu0 %v6436, 96
  %v6622 = vpop.permute.xlu0 %6621
  %6623 = vrot.lane.b32.xlu0 %v6437, 96
  %v6624 = vpop.permute.xlu0 %6623
  %6625 = vrot.lane.b32.xlu0 %v6438, 96
  %v6626 = vpop.permute.xlu0 %6625
  %6627 = vrot.lane.b32.xlu0 %v6439, 96
  %v6628 = vpop.permute.xlu0 %6627
  %6629 = vrot.lane.b32.xlu0 %v6440, 96
  %v6630 = vpop.permute.xlu0 %6629
  %6631 = vrot.lane.b32.xlu0 %v6441, 96
  %v6632 = vpop.permute.xlu0 %6631
  %6633 = vrot.lane.b32.xlu0 %v6442, 96
  %v6634 = vpop.permute.xlu0 %6633
  %6699 = vst.msk [vmem:[#allocation4] sm:$0xff] %vm2406, %v6508
  %6700 = vst.msk [vmem:[#allocation4 + $0x10] sm:$0xff] %vm2406, %v6510
  %6701 = vst.msk [vmem:[#allocation4 + $0x20] sm:$0xff] %vm2406, %v6512
  %6702 = vst.msk [vmem:[#allocation4 + $0x30] sm:$0xff] %vm2406, %v6514
  %6703 = vst.msk [vmem:[#allocation4 + $0x40] sm:$0xff] %vm2406, %v6516
  %6704 = vst.msk [vmem:[#allocation4 + $0x50] sm:$0xff] %vm2406, %v6518
  %6705 = vst.msk [vmem:[#allocation4 + $0x60] sm:$0xff] %vm2406, %v6520
  %6706 = vst.msk [vmem:[#allocation4 + $0x70] sm:$0xff] %vm2406, %v6522
  %6707 = vst.msk [vmem:[#allocation4 + $0x80] sm:$0xff] %vm2406, %v6524
  %6708 = vst.msk [vmem:[#allocation4 + $0x90] sm:$0xff] %vm2406, %v6526
  %6709 = vst.msk [vmem:[#allocation4 + $0xa0] sm:$0xff] %vm2406, %v6528
  %6710 = vst.msk [vmem:[#allocation4 + $0xb0] sm:$0xff] %vm2406, %v6530
  %6711 = vst.msk [vmem:[#allocation4 + $0xc0] sm:$0xff] %vm2406, %v6532
  %6712 = vst.msk [vmem:[#allocation4 + $0xd0] sm:$0xff] %vm2406, %v6534
  %6713 = vst.msk [vmem:[#allocation4 + $0xe0] sm:$0xff] %vm2406, %v6536
  %6714 = vst.msk [vmem:[#allocation4 + $0xf0] sm:$0xff] %vm2406, %v6538
  %6715 = vst.msk [vmem:[#allocation4 + $0x100] sm:$0xff] %vm2406, %v6540
  %6716 = vst.msk [vmem:[#allocation4 + $0x110] sm:$0xff] %vm2406, %v6542
  %6717 = vst.msk [vmem:[#allocation4 + $0x120] sm:$0xff] %vm2406, %v6544
  %6718 = vst.msk [vmem:[#allocation4 + $0x130] sm:$0xff] %vm2406, %v6546
  %6719 = vst.msk [vmem:[#allocation4 + $0x140] sm:$0xff] %vm2406, %v6548
  %6720 = vst.msk [vmem:[#allocation4 + $0x150] sm:$0xff] %vm2406, %v6550
  %6721 = vst.msk [vmem:[#allocation4 + $0x160] sm:$0xff] %vm2406, %v6552
  %6722 = vst.msk [vmem:[#allocation4 + $0x170] sm:$0xff] %vm2406, %v6554
  %6723 = vst.msk [vmem:[#allocation4 + $0x180] sm:$0xff] %vm2406, %v6556
  %6724 = vst.msk [vmem:[#allocation4 + $0x190] sm:$0xff] %vm2406, %v6558
  %6725 = vst.msk [vmem:[#allocation4 + $0x1a0] sm:$0xff] %vm2406, %v6560
  %6726 = vst.msk [vmem:[#allocation4 + $0x1b0] sm:$0xff] %vm2406, %v6562
  %6727 = vst.msk [vmem:[#allocation4 + $0x1c0] sm:$0xff] %vm2406, %v6564
  %6728 = vst.msk [vmem:[#allocation4 + $0x1d0] sm:$0xff] %vm2406, %v6566
  %6729 = vst.msk [vmem:[#allocation4 + $0x1e0] sm:$0xff] %vm2406, %v6568
  %6730 = vst.msk [vmem:[#allocation4 + $0x1f0] sm:$0xff] %vm2406, %v6570
  %6731 = vst.msk [vmem:[#allocation4 + $0x200] sm:$0xff] %vm2406, %v6572
  %6732 = vst.msk [vmem:[#allocation4 + $0x210] sm:$0xff] %vm2406, %v6574
  %6733 = vst.msk [vmem:[#allocation4 + $0x220] sm:$0xff] %vm2406, %v6576
  %6734 = vst.msk [vmem:[#allocation4 + $0x230] sm:$0xff] %vm2406, %v6578
  %6735 = vst.msk [vmem:[#allocation4 + $0x240] sm:$0xff] %vm2406, %v6580
  %6736 = vst.msk [vmem:[#allocation4 + $0x250] sm:$0xff] %vm2406, %v6582
  %6737 = vst.msk [vmem:[#allocation4 + $0x260] sm:$0xff] %vm2406, %v6584
  %6738 = vst.msk [vmem:[#allocation4 + $0x270] sm:$0xff] %vm2406, %v6586
  %6739 = vst.msk [vmem:[#allocation4 + $0x280] sm:$0xff] %vm2406, %v6588
  %6740 = vst.msk [vmem:[#allocation4 + $0x290] sm:$0xff] %vm2406, %v6590
  %6741 = vst.msk [vmem:[#allocation4 + $0x2a0] sm:$0xff] %vm2406, %v6592
  %6742 = vst.msk [vmem:[#allocation4 + $0x2b0] sm:$0xff] %vm2406, %v6594
  %6743 = vst.msk [vmem:[#allocation4 + $0x2c0] sm:$0xff] %vm2406, %v6596
  %6744 = vst.msk [vmem:[#allocation4 + $0x2d0] sm:$0xff] %vm2406, %v6598
  %6745 = vst.msk [vmem:[#allocation4 + $0x2e0] sm:$0xff] %vm2406, %v6600
  %6746 = vst.msk [vmem:[#allocation4 + $0x2f0] sm:$0xff] %vm2406, %v6602
  %6747 = vst.msk [vmem:[#allocation4 + $0x300] sm:$0xff] %vm2406, %v6604
  %6748 = vst.msk [vmem:[#allocation4 + $0x310] sm:$0xff] %vm2406, %v6606
  %6749 = vst.msk [vmem:[#allocation4 + $0x320] sm:$0xff] %vm2406, %v6608
  %6750 = vst.msk [vmem:[#allocation4 + $0x330] sm:$0xff] %vm2406, %v6610
  %6751 = vst.msk [vmem:[#allocation4 + $0x340] sm:$0xff] %vm2406, %v6612
  %6752 = vst.msk [vmem:[#allocation4 + $0x350] sm:$0xff] %vm2406, %v6614
  %6753 = vst.msk [vmem:[#allocation4 + $0x360] sm:$0xff] %vm2406, %v6616
  %6754 = vst.msk [vmem:[#allocation4 + $0x370] sm:$0xff] %vm2406, %v6618
  %6755 = vst.msk [vmem:[#allocation4 + $0x380] sm:$0xff] %vm2406, %v6620
  %6756 = vst.msk [vmem:[#allocation4 + $0x390] sm:$0xff] %vm2406, %v6622
  %6757 = vst.msk [vmem:[#allocation4 + $0x3a0] sm:$0xff] %vm2406, %v6624
  %6758 = vst.msk [vmem:[#allocation4 + $0x3b0] sm:$0xff] %vm2406, %v6626
  %6759 = vst.msk [vmem:[#allocation4 + $0x3c0] sm:$0xff] %vm2406, %v6628
  %6760 = vst.msk [vmem:[#allocation4 + $0x3d0] sm:$0xff] %vm2406, %v6630
  %6761 = vst.msk [vmem:[#allocation4 + $0x3e0] sm:$0xff] %vm2406, %v6632
  %6762 = vst.msk [vmem:[#allocation4 + $0x3f0] sm:$0xff] %vm2406, %v6634
  %v6763 = vld [vmem:[%s6378 + $0x1] sm:$0xff]
  %v6764 = vld [vmem:[%s6378 + $0x9] sm:$0xff]
  %v6765 = vld [vmem:[%s6378 + $0x19] sm:$0xff]
  %v6766 = vld [vmem:[%s6378 + $0x21] sm:$0xff]
  %v6767 = vld [vmem:[%s6378 + $0x31] sm:$0xff]
  %v6768 = vld [vmem:[%s6378 + $0x39] sm:$0xff]
  %v6769 = vld [vmem:[%s6378 + $0x49] sm:$0xff]
  %v6770 = vld [vmem:[%s6378 + $0x51] sm:$0xff]
  %v6771 = vld [vmem:[%s6378 + $0x61] sm:$0xff]
  %v6772 = vld [vmem:[%s6378 + $0x69] sm:$0xff]
  %v6773 = vld [vmem:[%s6378 + $0x79] sm:$0xff]
  %v6774 = vld [vmem:[%s6378 + $0x81] sm:$0xff]
  %v6775 = vld [vmem:[%s6378 + $0x91] sm:$0xff]
  %v6776 = vld [vmem:[%s6378 + $0x99] sm:$0xff]
  %v6777 = vld [vmem:[%s6378 + $0xa9] sm:$0xff]
  %v6778 = vld [vmem:[%s6378 + $0xb1] sm:$0xff]
  %v6779 = vld [vmem:[%s6378 + $0xc1] sm:$0xff]
  %v6780 = vld [vmem:[%s6378 + $0xc9] sm:$0xff]
  %v6781 = vld [vmem:[%s6378 + $0xd9] sm:$0xff]
  %v6782 = vld [vmem:[%s6378 + $0xe1] sm:$0xff]
  %v6783 = vld [vmem:[%s6378 + $0xf1] sm:$0xff]
  %v6784 = vld [vmem:[%s6378 + $0xf9] sm:$0xff]
  %v6785 = vld [vmem:[%s6378 + $0x109] sm:$0xff]
  %v6786 = vld [vmem:[%s6378 + $0x111] sm:$0xff]
  %v6787 = vld [vmem:[%s6378 + $0x121] sm:$0xff]
  %v6788 = vld [vmem:[%s6378 + $0x129] sm:$0xff]
  %v6789 = vld [vmem:[%s6378 + $0x139] sm:$0xff]
  %v6790 = vld [vmem:[%s6378 + $0x141] sm:$0xff]
  %v6791 = vld [vmem:[%s6378 + $0x151] sm:$0xff]
  %v6792 = vld [vmem:[%s6378 + $0x159] sm:$0xff]
  %v6793 = vld [vmem:[%s6378 + $0x169] sm:$0xff]
  %v6794 = vld [vmem:[%s6378 + $0x171] sm:$0xff]
  %v6795 = vld [vmem:[%s6378 + $0x1b1] sm:$0xff]
  %v6796 = vld [vmem:[%s6378 + $0x1b9] sm:$0xff]
  %v6797 = vld [vmem:[%s6378 + $0x1c9] sm:$0xff]
  %v6798 = vld [vmem:[%s6378 + $0x1d1] sm:$0xff]
  %v6799 = vld [vmem:[%s6378 + $0x1e1] sm:$0xff]
  %v6800 = vld [vmem:[%s6378 + $0x1e9] sm:$0xff]
  %v6801 = vld [vmem:[%s6378 + $0x1f9] sm:$0xff]
  %v6802 = vld [vmem:[%s6378 + $0x201] sm:$0xff]
  %v6803 = vld [vmem:[%s6378 + $0x211] sm:$0xff]
  %v6804 = vld [vmem:[%s6378 + $0x219] sm:$0xff]
  %v6805 = vld [vmem:[%s6378 + $0x229] sm:$0xff]
  %v6806 = vld [vmem:[%s6378 + $0x231] sm:$0xff]
  %v6807 = vld [vmem:[%s6378 + $0x241] sm:$0xff]
  %v6808 = vld [vmem:[%s6378 + $0x249] sm:$0xff]
  %v6809 = vld [vmem:[%s6378 + $0x259] sm:$0xff]
  %v6810 = vld [vmem:[%s6378 + $0x261] sm:$0xff]
  %v6811 = vld [vmem:[%s6378 + $0x271] sm:$0xff]
  %v6812 = vld [vmem:[%s6378 + $0x279] sm:$0xff]
  %v6813 = vld [vmem:[%s6378 + $0x289] sm:$0xff]
  %v6814 = vld [vmem:[%s6378 + $0x291] sm:$0xff]
  %v6815 = vld [vmem:[%s6378 + $0x2a1] sm:$0xff]
  %v6816 = vld [vmem:[%s6378 + $0x2a9] sm:$0xff]
  %v6817 = vld [vmem:[%s6378 + $0x2b9] sm:$0xff]
  %v6818 = vld [vmem:[%s6378 + $0x2c1] sm:$0xff]
  %v6819 = vld [vmem:[%s6378 + $0x2d1] sm:$0xff]
  %v6820 = vld [vmem:[%s6378 + $0x2d9] sm:$0xff]
  %v6821 = vld [vmem:[%s6378 + $0x2e9] sm:$0xff]
  %v6822 = vld [vmem:[%s6378 + $0x2f1] sm:$0xff]
  %v6823 = vld [vmem:[%s6378 + $0x301] sm:$0xff]
  %v6824 = vld [vmem:[%s6378 + $0x309] sm:$0xff]
  %v6825 = vld [vmem:[%s6378 + $0x319] sm:$0xff]
  %v6826 = vld [vmem:[%s6378 + $0x321] sm:$0xff]
  %6891 = vrot.lane.b32.xlu0 %v6763, 112
  %v6892 = vpop.permute.xlu0 %6891
  %6893 = vrot.lane.b32.xlu0 %v6764, 112
  %v6894 = vpop.permute.xlu0 %6893
  %6895 = vrot.lane.b32.xlu0 %v6765, 112
  %v6896 = vpop.permute.xlu0 %6895
  %6897 = vrot.lane.b32.xlu0 %v6766, 112
  %v6898 = vpop.permute.xlu0 %6897
  %6899 = vrot.lane.b32.xlu0 %v6767, 112
  %v6900 = vpop.permute.xlu0 %6899
  %6901 = vrot.lane.b32.xlu0 %v6768, 112
  %v6902 = vpop.permute.xlu0 %6901
  %6903 = vrot.lane.b32.xlu0 %v6769, 112
  %v6904 = vpop.permute.xlu0 %6903
  %6905 = vrot.lane.b32.xlu0 %v6770, 112
  %v6906 = vpop.permute.xlu0 %6905
  %6907 = vrot.lane.b32.xlu0 %v6771, 112
  %v6908 = vpop.permute.xlu0 %6907
  %6909 = vrot.lane.b32.xlu0 %v6772, 112
  %v6910 = vpop.permute.xlu0 %6909
  %6911 = vrot.lane.b32.xlu0 %v6773, 112
  %v6912 = vpop.permute.xlu0 %6911
  %6913 = vrot.lane.b32.xlu0 %v6774, 112
  %v6914 = vpop.permute.xlu0 %6913
  %6915 = vrot.lane.b32.xlu0 %v6775, 112
  %v6916 = vpop.permute.xlu0 %6915
  %6917 = vrot.lane.b32.xlu0 %v6776, 112
  %v6918 = vpop.permute.xlu0 %6917
  %6919 = vrot.lane.b32.xlu0 %v6777, 112
  %v6920 = vpop.permute.xlu0 %6919
  %6921 = vrot.lane.b32.xlu0 %v6778, 112
  %v6922 = vpop.permute.xlu0 %6921
  %6923 = vrot.lane.b32.xlu0 %v6779, 112
  %v6924 = vpop.permute.xlu0 %6923
  %6925 = vrot.lane.b32.xlu0 %v6780, 112
  %v6926 = vpop.permute.xlu0 %6925
  %6927 = vrot.lane.b32.xlu0 %v6781, 112
  %v6928 = vpop.permute.xlu0 %6927
  %6929 = vrot.lane.b32.xlu0 %v6782, 112
  %v6930 = vpop.permute.xlu0 %6929
  %6931 = vrot.lane.b32.xlu0 %v6783, 112
  %v6932 = vpop.permute.xlu0 %6931
  %6933 = vrot.lane.b32.xlu0 %v6784, 112
  %v6934 = vpop.permute.xlu0 %6933
  %6935 = vrot.lane.b32.xlu0 %v6785, 112
  %v6936 = vpop.permute.xlu0 %6935
  %6937 = vrot.lane.b32.xlu0 %v6786, 112
  %v6938 = vpop.permute.xlu0 %6937
  %6939 = vrot.lane.b32.xlu0 %v6787, 112
  %v6940 = vpop.permute.xlu0 %6939
  %6941 = vrot.lane.b32.xlu0 %v6788, 112
  %v6942 = vpop.permute.xlu0 %6941
  %6943 = vrot.lane.b32.xlu0 %v6789, 112
  %v6944 = vpop.permute.xlu0 %6943
  %6945 = vrot.lane.b32.xlu0 %v6790, 112
  %v6946 = vpop.permute.xlu0 %6945
  %6947 = vrot.lane.b32.xlu0 %v6791, 112
  %v6948 = vpop.permute.xlu0 %6947
  %6949 = vrot.lane.b32.xlu0 %v6792, 112
  %v6950 = vpop.permute.xlu0 %6949
  %6951 = vrot.lane.b32.xlu0 %v6793, 112
  %v6952 = vpop.permute.xlu0 %6951
  %6953 = vrot.lane.b32.xlu0 %v6794, 112
  %v6954 = vpop.permute.xlu0 %6953
  %6955 = vrot.lane.b32.xlu0 %v6795, 112
  %v6956 = vpop.permute.xlu0 %6955
  %6957 = vrot.lane.b32.xlu0 %v6796, 112
  %v6958 = vpop.permute.xlu0 %6957
  %6959 = vrot.lane.b32.xlu0 %v6797, 112
  %v6960 = vpop.permute.xlu0 %6959
  %6961 = vrot.lane.b32.xlu0 %v6798, 112
  %v6962 = vpop.permute.xlu0 %6961
  %6963 = vrot.lane.b32.xlu0 %v6799, 112
  %v6964 = vpop.permute.xlu0 %6963
  %6965 = vrot.lane.b32.xlu0 %v6800, 112
  %v6966 = vpop.permute.xlu0 %6965
  %6967 = vrot.lane.b32.xlu0 %v6801, 112
  %v6968 = vpop.permute.xlu0 %6967
  %6969 = vrot.lane.b32.xlu0 %v6802, 112
  %v6970 = vpop.permute.xlu0 %6969
  %6971 = vrot.lane.b32.xlu0 %v6803, 112
  %v6972 = vpop.permute.xlu0 %6971
  %6973 = vrot.lane.b32.xlu0 %v6804, 112
  %v6974 = vpop.permute.xlu0 %6973
  %6975 = vrot.lane.b32.xlu0 %v6805, 112
  %v6976 = vpop.permute.xlu0 %6975
  %6977 = vrot.lane.b32.xlu0 %v6806, 112
  %v6978 = vpop.permute.xlu0 %6977
  %6979 = vrot.lane.b32.xlu0 %v6807, 112
  %v6980 = vpop.permute.xlu0 %6979
  %6981 = vrot.lane.b32.xlu0 %v6808, 112
  %v6982 = vpop.permute.xlu0 %6981
  %6983 = vrot.lane.b32.xlu0 %v6809, 112
  %v6984 = vpop.permute.xlu0 %6983
  %6985 = vrot.lane.b32.xlu0 %v6810, 112
  %v6986 = vpop.permute.xlu0 %6985
  %6987 = vrot.lane.b32.xlu0 %v6811, 112
  %v6988 = vpop.permute.xlu0 %6987
  %6989 = vrot.lane.b32.xlu0 %v6812, 112
  %v6990 = vpop.permute.xlu0 %6989
  %6991 = vrot.lane.b32.xlu0 %v6813, 112
  %v6992 = vpop.permute.xlu0 %6991
  %6993 = vrot.lane.b32.xlu0 %v6814, 112
  %v6994 = vpop.permute.xlu0 %6993
  %6995 = vrot.lane.b32.xlu0 %v6815, 112
  %v6996 = vpop.permute.xlu0 %6995
  %6997 = vrot.lane.b32.xlu0 %v6816, 112
  %v6998 = vpop.permute.xlu0 %6997
  %6999 = vrot.lane.b32.xlu0 %v6817, 112
  %v7000 = vpop.permute.xlu0 %6999
  %7001 = vrot.lane.b32.xlu0 %v6818, 112
  %v7002 = vpop.permute.xlu0 %7001
  %7003 = vrot.lane.b32.xlu0 %v6819, 112
  %v7004 = vpop.permute.xlu0 %7003
  %7005 = vrot.lane.b32.xlu0 %v6820, 112
  %v7006 = vpop.permute.xlu0 %7005
  %7007 = vrot.lane.b32.xlu0 %v6821, 112
  %v7008 = vpop.permute.xlu0 %7007
  %7009 = vrot.lane.b32.xlu0 %v6822, 112
  %v7010 = vpop.permute.xlu0 %7009
  %7011 = vrot.lane.b32.xlu0 %v6823, 112
  %v7012 = vpop.permute.xlu0 %7011
  %7013 = vrot.lane.b32.xlu0 %v6824, 112
  %v7014 = vpop.permute.xlu0 %7013
  %7015 = vrot.lane.b32.xlu0 %v6825, 112
  %v7016 = vpop.permute.xlu0 %7015
  %7017 = vrot.lane.b32.xlu0 %v6826, 112
  %v7018 = vpop.permute.xlu0 %7017
  %7083 = vst.msk [vmem:[#allocation4] sm:$0xff] %vm2791, %v6892
  %7084 = vst.msk [vmem:[#allocation4 + $0x10] sm:$0xff] %vm2791, %v6894
  %7085 = vst.msk [vmem:[#allocation4 + $0x20] sm:$0xff] %vm2791, %v6896
  %7086 = vst.msk [vmem:[#allocation4 + $0x30] sm:$0xff] %vm2791, %v6898
  %7087 = vst.msk [vmem:[#allocation4 + $0x40] sm:$0xff] %vm2791, %v6900
  %7088 = vst.msk [vmem:[#allocation4 + $0x50] sm:$0xff] %vm2791, %v6902
  %7089 = vst.msk [vmem:[#allocation4 + $0x60] sm:$0xff] %vm2791, %v6904
  %7090 = vst.msk [vmem:[#allocation4 + $0x70] sm:$0xff] %vm2791, %v6906
  %7091 = vst.msk [vmem:[#allocation4 + $0x80] sm:$0xff] %vm2791, %v6908
  %7092 = vst.msk [vmem:[#allocation4 + $0x90] sm:$0xff] %vm2791, %v6910
  %7093 = vst.msk [vmem:[#allocation4 + $0xa0] sm:$0xff] %vm2791, %v6912
  %7094 = vst.msk [vmem:[#allocation4 + $0xb0] sm:$0xff] %vm2791, %v6914
  %7095 = vst.msk [vmem:[#allocation4 + $0xc0] sm:$0xff] %vm2791, %v6916
  %7096 = vst.msk [vmem:[#allocation4 + $0xd0] sm:$0xff] %vm2791, %v6918
  %7097 = vst.msk [vmem:[#allocation4 + $0xe0] sm:$0xff] %vm2791, %v6920
  %7098 = vst.msk [vmem:[#allocation4 + $0xf0] sm:$0xff] %vm2791, %v6922
  %7099 = vst.msk [vmem:[#allocation4 + $0x100] sm:$0xff] %vm2791, %v6924
  %7100 = vst.msk [vmem:[#allocation4 + $0x110] sm:$0xff] %vm2791, %v6926
  %7101 = vst.msk [vmem:[#allocation4 + $0x120] sm:$0xff] %vm2791, %v6928
  %7102 = vst.msk [vmem:[#allocation4 + $0x130] sm:$0xff] %vm2791, %v6930
  %7103 = vst.msk [vmem:[#allocation4 + $0x140] sm:$0xff] %vm2791, %v6932
  %7104 = vst.msk [vmem:[#allocation4 + $0x150] sm:$0xff] %vm2791, %v6934
  %7105 = vst.msk [vmem:[#allocation4 + $0x160] sm:$0xff] %vm2791, %v6936
  %7106 = vst.msk [vmem:[#allocation4 + $0x170] sm:$0xff] %vm2791, %v6938
  %7107 = vst.msk [vmem:[#allocation4 + $0x180] sm:$0xff] %vm2791, %v6940
  %7108 = vst.msk [vmem:[#allocation4 + $0x190] sm:$0xff] %vm2791, %v6942
  %7109 = vst.msk [vmem:[#allocation4 + $0x1a0] sm:$0xff] %vm2791, %v6944
  %7110 = vst.msk [vmem:[#allocation4 + $0x1b0] sm:$0xff] %vm2791, %v6946
  %7111 = vst.msk [vmem:[#allocation4 + $0x1c0] sm:$0xff] %vm2791, %v6948
  %7112 = vst.msk [vmem:[#allocation4 + $0x1d0] sm:$0xff] %vm2791, %v6950
  %7113 = vst.msk [vmem:[#allocation4 + $0x1e0] sm:$0xff] %vm2791, %v6952
  %7114 = vst.msk [vmem:[#allocation4 + $0x1f0] sm:$0xff] %vm2791, %v6954
  %7115 = vst.msk [vmem:[#allocation4 + $0x200] sm:$0xff] %vm2791, %v6956
  %7116 = vst.msk [vmem:[#allocation4 + $0x210] sm:$0xff] %vm2791, %v6958
  %7117 = vst.msk [vmem:[#allocation4 + $0x220] sm:$0xff] %vm2791, %v6960
  %7118 = vst.msk [vmem:[#allocation4 + $0x230] sm:$0xff] %vm2791, %v6962
  %7119 = vst.msk [vmem:[#allocation4 + $0x240] sm:$0xff] %vm2791, %v6964
  %7120 = vst.msk [vmem:[#allocation4 + $0x250] sm:$0xff] %vm2791, %v6966
  %7121 = vst.msk [vmem:[#allocation4 + $0x260] sm:$0xff] %vm2791, %v6968
  %7122 = vst.msk [vmem:[#allocation4 + $0x270] sm:$0xff] %vm2791, %v6970
  %7123 = vst.msk [vmem:[#allocation4 + $0x280] sm:$0xff] %vm2791, %v6972
  %7124 = vst.msk [vmem:[#allocation4 + $0x290] sm:$0xff] %vm2791, %v6974
  %7125 = vst.msk [vmem:[#allocation4 + $0x2a0] sm:$0xff] %vm2791, %v6976
  %7126 = vst.msk [vmem:[#allocation4 + $0x2b0] sm:$0xff] %vm2791, %v6978
  %7127 = vst.msk [vmem:[#allocation4 + $0x2c0] sm:$0xff] %vm2791, %v6980
  %7128 = vst.msk [vmem:[#allocation4 + $0x2d0] sm:$0xff] %vm2791, %v6982
  %7129 = vst.msk [vmem:[#allocation4 + $0x2e0] sm:$0xff] %vm2791, %v6984
  %7130 = vst.msk [vmem:[#allocation4 + $0x2f0] sm:$0xff] %vm2791, %v6986
  %7131 = vst.msk [vmem:[#allocation4 + $0x300] sm:$0xff] %vm2791, %v6988
  %7132 = vst.msk [vmem:[#allocation4 + $0x310] sm:$0xff] %vm2791, %v6990
  %7133 = vst.msk [vmem:[#allocation4 + $0x320] sm:$0xff] %vm2791, %v6992
  %7134 = vst.msk [vmem:[#allocation4 + $0x330] sm:$0xff] %vm2791, %v6994
  %7135 = vst.msk [vmem:[#allocation4 + $0x340] sm:$0xff] %vm2791, %v6996
  %7136 = vst.msk [vmem:[#allocation4 + $0x350] sm:$0xff] %vm2791, %v6998
  %7137 = vst.msk [vmem:[#allocation4 + $0x360] sm:$0xff] %vm2791, %v7000
  %7138 = vst.msk [vmem:[#allocation4 + $0x370] sm:$0xff] %vm2791, %v7002
  %7139 = vst.msk [vmem:[#allocation4 + $0x380] sm:$0xff] %vm2791, %v7004
  %7140 = vst.msk [vmem:[#allocation4 + $0x390] sm:$0xff] %vm2791, %v7006
  %7141 = vst.msk [vmem:[#allocation4 + $0x3a0] sm:$0xff] %vm2791, %v7008
  %7142 = vst.msk [vmem:[#allocation4 + $0x3b0] sm:$0xff] %vm2791, %v7010
  %7143 = vst.msk [vmem:[#allocation4 + $0x3c0] sm:$0xff] %vm2791, %v7012
  %7144 = vst.msk [vmem:[#allocation4 + $0x3d0] sm:$0xff] %vm2791, %v7014
  %7145 = vst.msk [vmem:[#allocation4 + $0x3e0] sm:$0xff] %vm2791, %v7016
  %7146 = vst.msk [vmem:[#allocation4 + $0x3f0] sm:$0xff] %vm2791, %v7018
  %v7147 = vld [vmem:[%s6378 + $0x2] sm:$0xff]
  %v7148 = vld [vmem:[%s6378 + $0xa] sm:$0xff]
  %v7149 = vld [vmem:[%s6378 + $0x1a] sm:$0xff]
  %v7150 = vld [vmem:[%s6378 + $0x22] sm:$0xff]
  %v7151 = vld [vmem:[%s6378 + $0x32] sm:$0xff]
  %v7152 = vld [vmem:[%s6378 + $0x3a] sm:$0xff]
  %v7153 = vld [vmem:[%s6378 + $0x4a] sm:$0xff]
  %v7154 = vld [vmem:[%s6378 + $0x52] sm:$0xff]
  %v7155 = vld [vmem:[%s6378 + $0x62] sm:$0xff]
  %v7156 = vld [vmem:[%s6378 + $0x6a] sm:$0xff]
  %v7157 = vld [vmem:[%s6378 + $0x7a] sm:$0xff]
  %v7158 = vld [vmem:[%s6378 + $0x82] sm:$0xff]
  %v7159 = vld [vmem:[%s6378 + $0x92] sm:$0xff]
  %v7160 = vld [vmem:[%s6378 + $0x9a] sm:$0xff]
  %v7161 = vld [vmem:[%s6378 + $0xaa] sm:$0xff]
  %v7162 = vld [vmem:[%s6378 + $0xb2] sm:$0xff]
  %v7163 = vld [vmem:[%s6378 + $0xc2] sm:$0xff]
  %v7164 = vld [vmem:[%s6378 + $0xca] sm:$0xff]
  %v7165 = vld [vmem:[%s6378 + $0xda] sm:$0xff]
  %v7166 = vld [vmem:[%s6378 + $0xe2] sm:$0xff]
  %v7167 = vld [vmem:[%s6378 + $0xf2] sm:$0xff]
  %v7168 = vld [vmem:[%s6378 + $0xfa] sm:$0xff]
  %v7169 = vld [vmem:[%s6378 + $0x10a] sm:$0xff]
  %v7170 = vld [vmem:[%s6378 + $0x112] sm:$0xff]
  %v7171 = vld [vmem:[%s6378 + $0x122] sm:$0xff]
  %v7172 = vld [vmem:[%s6378 + $0x12a] sm:$0xff]
  %v7173 = vld [vmem:[%s6378 + $0x13a] sm:$0xff]
  %v7174 = vld [vmem:[%s6378 + $0x142] sm:$0xff]
  %v7175 = vld [vmem:[%s6378 + $0x152] sm:$0xff]
  %v7176 = vld [vmem:[%s6378 + $0x15a] sm:$0xff]
  %v7177 = vld [vmem:[%s6378 + $0x16a] sm:$0xff]
  %v7178 = vld [vmem:[%s6378 + $0x172] sm:$0xff]
  %v7179 = vld [vmem:[%s6378 + $0x1b2] sm:$0xff]
  %v7180 = vld [vmem:[%s6378 + $0x1ba] sm:$0xff]
  %v7181 = vld [vmem:[%s6378 + $0x1ca] sm:$0xff]
  %v7182 = vld [vmem:[%s6378 + $0x1d2] sm:$0xff]
  %v7183 = vld [vmem:[%s6378 + $0x1e2] sm:$0xff]
  %v7184 = vld [vmem:[%s6378 + $0x1ea] sm:$0xff]
  %v7185 = vld [vmem:[%s6378 + $0x1fa] sm:$0xff]
  %v7186 = vld [vmem:[%s6378 + $0x202] sm:$0xff]
  %v7187 = vld [vmem:[%s6378 + $0x212] sm:$0xff]
  %v7188 = vld [vmem:[%s6378 + $0x21a] sm:$0xff]
  %v7189 = vld [vmem:[%s6378 + $0x22a] sm:$0xff]
  %v7190 = vld [vmem:[%s6378 + $0x232] sm:$0xff]
  %v7191 = vld [vmem:[%s6378 + $0x242] sm:$0xff]
  %v7192 = vld [vmem:[%s6378 + $0x24a] sm:$0xff]
  %v7193 = vld [vmem:[%s6378 + $0x25a] sm:$0xff]
  %v7194 = vld [vmem:[%s6378 + $0x262] sm:$0xff]
  %v7195 = vld [vmem:[%s6378 + $0x272] sm:$0xff]
  %v7196 = vld [vmem:[%s6378 + $0x27a] sm:$0xff]
  %v7197 = vld [vmem:[%s6378 + $0x28a] sm:$0xff]
  %v7198 = vld [vmem:[%s6378 + $0x292] sm:$0xff]
  %v7199 = vld [vmem:[%s6378 + $0x2a2] sm:$0xff]
  %v7200 = vld [vmem:[%s6378 + $0x2aa] sm:$0xff]
  %v7201 = vld [vmem:[%s6378 + $0x2ba] sm:$0xff]
  %v7202 = vld [vmem:[%s6378 + $0x2c2] sm:$0xff]
  %v7203 = vld [vmem:[%s6378 + $0x2d2] sm:$0xff]
  %v7204 = vld [vmem:[%s6378 + $0x2da] sm:$0xff]
  %v7205 = vld [vmem:[%s6378 + $0x2ea] sm:$0xff]
  %v7206 = vld [vmem:[%s6378 + $0x2f2] sm:$0xff]
  %v7207 = vld [vmem:[%s6378 + $0x302] sm:$0xff]
  %v7208 = vld [vmem:[%s6378 + $0x30a] sm:$0xff]
  %v7209 = vld [vmem:[%s6378 + $0x31a] sm:$0xff]
  %v7210 = vld [vmem:[%s6378 + $0x322] sm:$0xff]
  %7211 = vst.msk [vmem:[#allocation4 + $0x8] sm:$0xff] %vm94, %v7147
  %7212 = vst.msk [vmem:[#allocation4 + $0x18] sm:$0xff] %vm94, %v7148
  %7213 = vst.msk [vmem:[#allocation4 + $0x28] sm:$0xff] %vm94, %v7149
  %7214 = vst.msk [vmem:[#allocation4 + $0x38] sm:$0xff] %vm94, %v7150
  %7215 = vst.msk [vmem:[#allocation4 + $0x48] sm:$0xff] %vm94, %v7151
  %7216 = vst.msk [vmem:[#allocation4 + $0x58] sm:$0xff] %vm94, %v7152
  %7217 = vst.msk [vmem:[#allocation4 + $0x68] sm:$0xff] %vm94, %v7153
  %7218 = vst.msk [vmem:[#allocation4 + $0x78] sm:$0xff] %vm94, %v7154
  %7219 = vst.msk [vmem:[#allocation4 + $0x88] sm:$0xff] %vm94, %v7155
  %7220 = vst.msk [vmem:[#allocation4 + $0x98] sm:$0xff] %vm94, %v7156
  %7221 = vst.msk [vmem:[#allocation4 + $0xa8] sm:$0xff] %vm94, %v7157
  %7222 = vst.msk [vmem:[#allocation4 + $0xb8] sm:$0xff] %vm94, %v7158
  %7223 = vst.msk [vmem:[#allocation4 + $0xc8] sm:$0xff] %vm94, %v7159
  %7224 = vst.msk [vmem:[#allocation4 + $0xd8] sm:$0xff] %vm94, %v7160
  %7225 = vst.msk [vmem:[#allocation4 + $0xe8] sm:$0xff] %vm94, %v7161
  %7226 = vst.msk [vmem:[#allocation4 + $0xf8] sm:$0xff] %vm94, %v7162
  %7227 = vst.msk [vmem:[#allocation4 + $0x108] sm:$0xff] %vm94, %v7163
  %7228 = vst.msk [vmem:[#allocation4 + $0x118] sm:$0xff] %vm94, %v7164
  %7229 = vst.msk [vmem:[#allocation4 + $0x128] sm:$0xff] %vm94, %v7165
  %7230 = vst.msk [vmem:[#allocation4 + $0x138] sm:$0xff] %vm94, %v7166
  %7231 = vst.msk [vmem:[#allocation4 + $0x148] sm:$0xff] %vm94, %v7167
  %7232 = vst.msk [vmem:[#allocation4 + $0x158] sm:$0xff] %vm94, %v7168
  %7233 = vst.msk [vmem:[#allocation4 + $0x168] sm:$0xff] %vm94, %v7169
  %7234 = vst.msk [vmem:[#allocation4 + $0x178] sm:$0xff] %vm94, %v7170
  %7235 = vst.msk [vmem:[#allocation4 + $0x188] sm:$0xff] %vm94, %v7171
  %7236 = vst.msk [vmem:[#allocation4 + $0x198] sm:$0xff] %vm94, %v7172
  %7237 = vst.msk [vmem:[#allocation4 + $0x1a8] sm:$0xff] %vm94, %v7173
  %7238 = vst.msk [vmem:[#allocation4 + $0x1b8] sm:$0xff] %vm94, %v7174
  %7239 = vst.msk [vmem:[#allocation4 + $0x1c8] sm:$0xff] %vm94, %v7175
  %7240 = vst.msk [vmem:[#allocation4 + $0x1d8] sm:$0xff] %vm94, %v7176
  %7241 = vst.msk [vmem:[#allocation4 + $0x1e8] sm:$0xff] %vm94, %v7177
  %7242 = vst.msk [vmem:[#allocation4 + $0x1f8] sm:$0xff] %vm94, %v7178
  %7243 = vst.msk [vmem:[#allocation4 + $0x208] sm:$0xff] %vm94, %v7179
  %7244 = vst.msk [vmem:[#allocation4 + $0x218] sm:$0xff] %vm94, %v7180
  %7245 = vst.msk [vmem:[#allocation4 + $0x228] sm:$0xff] %vm94, %v7181
  %7246 = vst.msk [vmem:[#allocation4 + $0x238] sm:$0xff] %vm94, %v7182
  %7247 = vst.msk [vmem:[#allocation4 + $0x248] sm:$0xff] %vm94, %v7183
  %7248 = vst.msk [vmem:[#allocation4 + $0x258] sm:$0xff] %vm94, %v7184
  %7249 = vst.msk [vmem:[#allocation4 + $0x268] sm:$0xff] %vm94, %v7185
  %7250 = vst.msk [vmem:[#allocation4 + $0x278] sm:$0xff] %vm94, %v7186
  %7251 = vst.msk [vmem:[#allocation4 + $0x288] sm:$0xff] %vm94, %v7187
  %7252 = vst.msk [vmem:[#allocation4 + $0x298] sm:$0xff] %vm94, %v7188
  %7253 = vst.msk [vmem:[#allocation4 + $0x2a8] sm:$0xff] %vm94, %v7189
  %7254 = vst.msk [vmem:[#allocation4 + $0x2b8] sm:$0xff] %vm94, %v7190
  %7255 = vst.msk [vmem:[#allocation4 + $0x2c8] sm:$0xff] %vm94, %v7191
  %7256 = vst.msk [vmem:[#allocation4 + $0x2d8] sm:$0xff] %vm94, %v7192
  %7257 = vst.msk [vmem:[#allocation4 + $0x2e8] sm:$0xff] %vm94, %v7193
  %7258 = vst.msk [vmem:[#allocation4 + $0x2f8] sm:$0xff] %vm94, %v7194
  %7259 = vst.msk [vmem:[#allocation4 + $0x308] sm:$0xff] %vm94, %v7195
  %7260 = vst.msk [vmem:[#allocation4 + $0x318] sm:$0xff] %vm94, %v7196
  %7261 = vst.msk [vmem:[#allocation4 + $0x328] sm:$0xff] %vm94, %v7197
  %7262 = vst.msk [vmem:[#allocation4 + $0x338] sm:$0xff] %vm94, %v7198
  %7263 = vst.msk [vmem:[#allocation4 + $0x348] sm:$0xff] %vm94, %v7199
  %7264 = vst.msk [vmem:[#allocation4 + $0x358] sm:$0xff] %vm94, %v7200
  %7265 = vst.msk [vmem:[#allocation4 + $0x368] sm:$0xff] %vm94, %v7201
  %7266 = vst.msk [vmem:[#allocation4 + $0x378] sm:$0xff] %vm94, %v7202
  %7267 = vst.msk [vmem:[#allocation4 + $0x388] sm:$0xff] %vm94, %v7203
  %7268 = vst.msk [vmem:[#allocation4 + $0x398] sm:$0xff] %vm94, %v7204
  %7269 = vst.msk [vmem:[#allocation4 + $0x3a8] sm:$0xff] %vm94, %v7205
  %7270 = vst.msk [vmem:[#allocation4 + $0x3b8] sm:$0xff] %vm94, %v7206
  %7271 = vst.msk [vmem:[#allocation4 + $0x3c8] sm:$0xff] %vm94, %v7207
  %7272 = vst.msk [vmem:[#allocation4 + $0x3d8] sm:$0xff] %vm94, %v7208
  %7273 = vst.msk [vmem:[#allocation4 + $0x3e8] sm:$0xff] %vm94, %v7209
  %7274 = vst.msk [vmem:[#allocation4 + $0x3f8] sm:$0xff] %vm94, %v7210
  %v7275 = vld [vmem:[#allocation4] sm:$0xff]
  %v7276 = vld [vmem:[#allocation4 + $0x8] sm:$0xff]
  %v7277 = vld [vmem:[#allocation4 + $0x10] sm:$0xff]
  %v7278 = vld [vmem:[#allocation4 + $0x18] sm:$0xff]
  %v7279 = vld [vmem:[#allocation4 + $0x20] sm:$0xff]
  %v7280 = vld [vmem:[#allocation4 + $0x28] sm:$0xff]
  %v7281 = vld [vmem:[#allocation4 + $0x30] sm:$0xff]
  %v7282 = vld [vmem:[#allocation4 + $0x38] sm:$0xff]
  %v7283 = vld [vmem:[#allocation4 + $0x40] sm:$0xff]
  %v7284 = vld [vmem:[#allocation4 + $0x48] sm:$0xff]
  %v7285 = vld [vmem:[#allocation4 + $0x50] sm:$0xff]
  %v7286 = vld [vmem:[#allocation4 + $0x58] sm:$0xff]
  %v7287 = vld [vmem:[#allocation4 + $0x60] sm:$0xff]
  %v7288 = vld [vmem:[#allocation4 + $0x68] sm:$0xff]
  %v7289 = vld [vmem:[#allocation4 + $0x70] sm:$0xff]
  %v7290 = vld [vmem:[#allocation4 + $0x78] sm:$0xff]
  %v7291 = vld [vmem:[#allocation4 + $0x80] sm:$0xff]
  %v7292 = vld [vmem:[#allocation4 + $0x88] sm:$0xff]
  %v7293 = vld [vmem:[#allocation4 + $0x90] sm:$0xff]
  %v7294 = vld [vmem:[#allocation4 + $0x98] sm:$0xff]
  %v7295 = vld [vmem:[#allocation4 + $0xa0] sm:$0xff]
  %v7296 = vld [vmem:[#allocation4 + $0xa8] sm:$0xff]
  %v7297 = vld [vmem:[#allocation4 + $0xb0] sm:$0xff]
  %v7298 = vld [vmem:[#allocation4 + $0xb8] sm:$0xff]
  %v7299 = vld [vmem:[#allocation4 + $0xc0] sm:$0xff]
  %v7300 = vld [vmem:[#allocation4 + $0xc8] sm:$0xff]
  %v7301 = vld [vmem:[#allocation4 + $0xd0] sm:$0xff]
  %v7302 = vld [vmem:[#allocation4 + $0xd8] sm:$0xff]
  %v7303 = vld [vmem:[#allocation4 + $0xe0] sm:$0xff]
  %v7304 = vld [vmem:[#allocation4 + $0xe8] sm:$0xff]
  %v7305 = vld [vmem:[#allocation4 + $0xf0] sm:$0xff]
  %v7306 = vld [vmem:[#allocation4 + $0xf8] sm:$0xff]
  %v7307 = vld [vmem:[#allocation4 + $0x100] sm:$0xff]
  %v7308 = vld [vmem:[#allocation4 + $0x108] sm:$0xff]
  %v7309 = vld [vmem:[#allocation4 + $0x110] sm:$0xff]
  %v7310 = vld [vmem:[#allocation4 + $0x118] sm:$0xff]
  %v7311 = vld [vmem:[#allocation4 + $0x120] sm:$0xff]
  %v7312 = vld [vmem:[#allocation4 + $0x128] sm:$0xff]
  %v7313 = vld [vmem:[#allocation4 + $0x130] sm:$0xff]
  %v7314 = vld [vmem:[#allocation4 + $0x138] sm:$0xff]
  %v7315 = vld [vmem:[#allocation4 + $0x140] sm:$0xff]
  %v7316 = vld [vmem:[#allocation4 + $0x148] sm:$0xff]
  %v7317 = vld [vmem:[#allocation4 + $0x150] sm:$0xff]
  %v7318 = vld [vmem:[#allocation4 + $0x158] sm:$0xff]
  %v7319 = vld [vmem:[#allocation4 + $0x160] sm:$0xff]
  %v7320 = vld [vmem:[#allocation4 + $0x168] sm:$0xff]
  %v7321 = vld [vmem:[#allocation4 + $0x170] sm:$0xff]
  %v7322 = vld [vmem:[#allocation4 + $0x178] sm:$0xff]
  %v7323 = vld [vmem:[#allocation4 + $0x180] sm:$0xff]
  %v7324 = vld [vmem:[#allocation4 + $0x188] sm:$0xff]
  %v7325 = vld [vmem:[#allocation4 + $0x190] sm:$0xff]
  %v7326 = vld [vmem:[#allocation4 + $0x198] sm:$0xff]
  %v7327 = vld [vmem:[#allocation4 + $0x1a0] sm:$0xff]
  %v7328 = vld [vmem:[#allocation4 + $0x1a8] sm:$0xff]
  %v7329 = vld [vmem:[#allocation4 + $0x1b0] sm:$0xff]
  %v7330 = vld [vmem:[#allocation4 + $0x1b8] sm:$0xff]
  %v7331 = vld [vmem:[#allocation4 + $0x1c0] sm:$0xff]
  %v7332 = vld [vmem:[#allocation4 + $0x1c8] sm:$0xff]
  %v7333 = vld [vmem:[#allocation4 + $0x1d0] sm:$0xff]
  %v7334 = vld [vmem:[#allocation4 + $0x1d8] sm:$0xff]
  %v7335 = vld [vmem:[#allocation4 + $0x1e0] sm:$0xff]
  %v7336 = vld [vmem:[#allocation4 + $0x1e8] sm:$0xff]
  %v7337 = vld [vmem:[#allocation4 + $0x1f0] sm:$0xff]
  %v7338 = vld [vmem:[#allocation4 + $0x1f8] sm:$0xff]
  %v7339 = vld [vmem:[#allocation4 + $0x200] sm:$0xff]
  %v7340 = vld [vmem:[#allocation4 + $0x208] sm:$0xff]
  %v7341 = vld [vmem:[#allocation4 + $0x210] sm:$0xff]
  %v7342 = vld [vmem:[#allocation4 + $0x218] sm:$0xff]
  %v7343 = vld [vmem:[#allocation4 + $0x220] sm:$0xff]
  %v7344 = vld [vmem:[#allocation4 + $0x228] sm:$0xff]
  %v7345 = vld [vmem:[#allocation4 + $0x230] sm:$0xff]
  %v7346 = vld [vmem:[#allocation4 + $0x238] sm:$0xff]
  %v7347 = vld [vmem:[#allocation4 + $0x240] sm:$0xff]
  %v7348 = vld [vmem:[#allocation4 + $0x248] sm:$0xff]
  %v7349 = vld [vmem:[#allocation4 + $0x250] sm:$0xff]
  %v7350 = vld [vmem:[#allocation4 + $0x258] sm:$0xff]
  %v7351 = vld [vmem:[#allocation4 + $0x260] sm:$0xff]
  %v7352 = vld [vmem:[#allocation4 + $0x268] sm:$0xff]
  %v7353 = vld [vmem:[#allocation4 + $0x270] sm:$0xff]
  %v7354 = vld [vmem:[#allocation4 + $0x278] sm:$0xff]
  %v7355 = vld [vmem:[#allocation4 + $0x280] sm:$0xff]
  %v7356 = vld [vmem:[#allocation4 + $0x288] sm:$0xff]
  %v7357 = vld [vmem:[#allocation4 + $0x290] sm:$0xff]
  %v7358 = vld [vmem:[#allocation4 + $0x298] sm:$0xff]
  %v7359 = vld [vmem:[#allocation4 + $0x2a0] sm:$0xff]
  %v7360 = vld [vmem:[#allocation4 + $0x2a8] sm:$0xff]
  %v7361 = vld [vmem:[#allocation4 + $0x2b0] sm:$0xff]
  %v7362 = vld [vmem:[#allocation4 + $0x2b8] sm:$0xff]
  %v7363 = vld [vmem:[#allocation4 + $0x2c0] sm:$0xff]
  %v7364 = vld [vmem:[#allocation4 + $0x2c8] sm:$0xff]
  %v7365 = vld [vmem:[#allocation4 + $0x2d0] sm:$0xff]
  %v7366 = vld [vmem:[#allocation4 + $0x2d8] sm:$0xff]
  %v7367 = vld [vmem:[#allocation4 + $0x2e0] sm:$0xff]
  %v7368 = vld [vmem:[#allocation4 + $0x2e8] sm:$0xff]
  %v7369 = vld [vmem:[#allocation4 + $0x2f0] sm:$0xff]
  %v7370 = vld [vmem:[#allocation4 + $0x2f8] sm:$0xff]
  %v7371 = vld [vmem:[#allocation4 + $0x300] sm:$0xff]
  %v7372 = vld [vmem:[#allocation4 + $0x308] sm:$0xff]
  %v7373 = vld [vmem:[#allocation4 + $0x310] sm:$0xff]
  %v7374 = vld [vmem:[#allocation4 + $0x318] sm:$0xff]
  %v7375 = vld [vmem:[#allocation4 + $0x320] sm:$0xff]
  %v7376 = vld [vmem:[#allocation4 + $0x328] sm:$0xff]
  %v7377 = vld [vmem:[#allocation4 + $0x330] sm:$0xff]
  %v7378 = vld [vmem:[#allocation4 + $0x338] sm:$0xff]
  %v7379 = vld [vmem:[#allocation4 + $0x340] sm:$0xff]
  %v7380 = vld [vmem:[#allocation4 + $0x348] sm:$0xff]
  %v7381 = vld [vmem:[#allocation4 + $0x350] sm:$0xff]
  %v7382 = vld [vmem:[#allocation4 + $0x358] sm:$0xff]
  %v7383 = vld [vmem:[#allocation4 + $0x360] sm:$0xff]
  %v7384 = vld [vmem:[#allocation4 + $0x368] sm:$0xff]
  %v7385 = vld [vmem:[#allocation4 + $0x370] sm:$0xff]
  %v7386 = vld [vmem:[#allocation4 + $0x378] sm:$0xff]
  %v7387 = vld [vmem:[#allocation4 + $0x380] sm:$0xff]
  %v7388 = vld [vmem:[#allocation4 + $0x388] sm:$0xff]
  %v7389 = vld [vmem:[#allocation4 + $0x390] sm:$0xff]
  %v7390 = vld [vmem:[#allocation4 + $0x398] sm:$0xff]
  %v7391 = vld [vmem:[#allocation4 + $0x3a0] sm:$0xff]
  %v7392 = vld [vmem:[#allocation4 + $0x3a8] sm:$0xff]
  %v7393 = vld [vmem:[#allocation4 + $0x3b0] sm:$0xff]
  %v7394 = vld [vmem:[#allocation4 + $0x3b8] sm:$0xff]
  %v7395 = vld [vmem:[#allocation4 + $0x3c0] sm:$0xff]
  %v7396 = vld [vmem:[#allocation4 + $0x3c8] sm:$0xff]
  %v7397 = vld [vmem:[#allocation4 + $0x3d0] sm:$0xff]
  %v7398 = vld [vmem:[#allocation4 + $0x3d8] sm:$0xff]
  %v7399 = vld [vmem:[#allocation4 + $0x3e0] sm:$0xff]
  %v7400 = vld [vmem:[#allocation4 + $0x3e8] sm:$0xff]
  %v7401 = vld [vmem:[#allocation4 + $0x3f0] sm:$0xff]
  %v7402 = vld [vmem:[#allocation4 + $0x3f8] sm:$0xff]
  %v7403 = vpack.c.bf16 %v7277, %v7275
  %v7404 = vpack.c.bf16 %v7278, %v7276
  %v7405 = vpack.c.bf16 %v7281, %v7279
  %v7406 = vpack.c.bf16 %v7282, %v7280
  %v7407 = vpack.c.bf16 %v7285, %v7283
  %v7408 = vpack.c.bf16 %v7286, %v7284
  %v7409 = vpack.c.bf16 %v7289, %v7287
  %v7410 = vpack.c.bf16 %v7290, %v7288
  %v7411 = vpack.c.bf16 %v7293, %v7291
  %v7412 = vpack.c.bf16 %v7294, %v7292
  %v7413 = vpack.c.bf16 %v7297, %v7295
  %v7414 = vpack.c.bf16 %v7298, %v7296
  %v7415 = vpack.c.bf16 %v7301, %v7299
  %v7416 = vpack.c.bf16 %v7302, %v7300
  %v7417 = vpack.c.bf16 %v7305, %v7303
  %v7418 = vpack.c.bf16 %v7306, %v7304
  %v7419 = vpack.c.bf16 %v7309, %v7307
  %v7420 = vpack.c.bf16 %v7310, %v7308
  %v7421 = vpack.c.bf16 %v7313, %v7311
  %v7422 = vpack.c.bf16 %v7314, %v7312
  %v7423 = vpack.c.bf16 %v7317, %v7315
  %v7424 = vpack.c.bf16 %v7318, %v7316
  %v7425 = vpack.c.bf16 %v7321, %v7319
  %v7426 = vpack.c.bf16 %v7322, %v7320
  %v7427 = vpack.c.bf16 %v7325, %v7323
  %v7428 = vpack.c.bf16 %v7326, %v7324
  %v7429 = vpack.c.bf16 %v7329, %v7327
  %v7430 = vpack.c.bf16 %v7330, %v7328
  %v7431 = vpack.c.bf16 %v7333, %v7331
  %v7432 = vpack.c.bf16 %v7334, %v7332
  %v7433 = vpack.c.bf16 %v7337, %v7335
  %v7434 = vpack.c.bf16 %v7338, %v7336
  %v7435 = vpack.c.bf16 %v7341, %v7339
  %v7436 = vpack.c.bf16 %v7342, %v7340
  %v7437 = vpack.c.bf16 %v7345, %v7343
  %v7438 = vpack.c.bf16 %v7346, %v7344
  %v7439 = vpack.c.bf16 %v7349, %v7347
  %v7440 = vpack.c.bf16 %v7350, %v7348
  %v7441 = vpack.c.bf16 %v7353, %v7351
  %v7442 = vpack.c.bf16 %v7354, %v7352
  %v7443 = vpack.c.bf16 %v7357, %v7355
  %v7444 = vpack.c.bf16 %v7358, %v7356
  %v7445 = vpack.c.bf16 %v7361, %v7359
  %v7446 = vpack.c.bf16 %v7362, %v7360
  %v7447 = vpack.c.bf16 %v7365, %v7363
  %v7448 = vpack.c.bf16 %v7366, %v7364
  %v7449 = vpack.c.bf16 %v7369, %v7367
  %v7450 = vpack.c.bf16 %v7370, %v7368
  %v7451 = vpack.c.bf16 %v7373, %v7371
  %v7452 = vpack.c.bf16 %v7374, %v7372
  %v7453 = vpack.c.bf16 %v7377, %v7375
  %v7454 = vpack.c.bf16 %v7378, %v7376
  %v7455 = vpack.c.bf16 %v7381, %v7379
  %v7456 = vpack.c.bf16 %v7382, %v7380
  %v7457 = vpack.c.bf16 %v7385, %v7383
  %v7458 = vpack.c.bf16 %v7386, %v7384
  %v7459 = vpack.c.bf16 %v7389, %v7387
  %v7460 = vpack.c.bf16 %v7390, %v7388
  %v7461 = vpack.c.bf16 %v7393, %v7391
  %v7462 = vpack.c.bf16 %v7394, %v7392
  %v7463 = vpack.c.bf16 %v7397, %v7395
  %v7464 = vpack.c.bf16 %v7398, %v7396
  %v7465 = vpack.c.bf16 %v7401, %v7399
  %v7466 = vpack.c.bf16 %v7402, %v7400
  %v7467 = vld [vmem:[%s4] sm:$0xf]
  %v7468 = vld [vmem:[%s4 + $0x4] sm:$0xf]
  %v7469 = vld [vmem:[%s4 + $0x8] sm:$0xf]
  %v7470 = vld [vmem:[%s4 + $0xc] sm:$0xf]
  %v7471 = vld [vmem:[%s4 + $0x10] sm:$0xf]
  %v7472 = vld [vmem:[%s4 + $0x14] sm:$0xf]
  %v7473 = vld [vmem:[%s4 + $0x18] sm:$0xf]
  %v7474 = vld [vmem:[%s4 + $0x1c] sm:$0xf]
  %v7475 = vld [vmem:[%s4 + $0x20] sm:$0xf]
  %v7476 = vld [vmem:[%s4 + $0x24] sm:$0xf]
  %v7477 = vld [vmem:[%s4 + $0x28] sm:$0xf]
  %v7478 = vld [vmem:[%s4 + $0x2c] sm:$0xf]
  %v7479 = vld [vmem:[%s4 + $0x30] sm:$0xf]
  %v7480 = vld [vmem:[%s4 + $0x34] sm:$0xf]
  %v7481 = vld [vmem:[%s4 + $0x38] sm:$0xf]
  %v7482 = vld [vmem:[%s4 + $0x3c] sm:$0xf]
  %v7483 = vld [vmem:[%s4 + $0x40] sm:$0xf]
  %v7484 = vld [vmem:[%s4 + $0x44] sm:$0xf]
  %v7503 = vunpack.c.l.b16 %v7467
  %v7504 = vunpack.c.l.b16 %v7468
  %v7505 = vunpack.c.l.b16 %v7469
  %v7506 = vunpack.c.l.b16 %v7470
  %v7507 = vunpack.c.l.b16 %v7471
  %v7508 = vunpack.c.l.b16 %v7472
  %v7509 = vunpack.c.l.b16 %v7473
  %v7510 = vunpack.c.l.b16 %v7474
  %v7511 = vunpack.c.l.b16 %v7475
  %v7512 = vunpack.c.l.b16 %v7476
  %v7513 = vunpack.c.l.b16 %v7477
  %v7514 = vunpack.c.l.b16 %v7478
  %v7515 = vunpack.c.l.b16 %v7479
  %v7516 = vunpack.c.l.b16 %v7480
  %v7517 = vunpack.c.l.b16 %v7481
  %v7518 = vunpack.c.l.b16 %v7482
  %v7519 = vunpack.c.l.b16 %v7483
  %v7520 = vunpack.c.l.b16 %v7484
  %v7521 = vpack.c.b16 %v7504, %v7503
  %v7522 = vpack.c.b16 %v7506, %v7505
  %v7523 = vpack.c.b16 %v7508, %v7507
  %v7524 = vpack.c.b16 %v7510, %v7509
  %v7525 = vpack.c.b16 %v7512, %v7511
  %v7526 = vpack.c.b16 %v7514, %v7513
  %v7527 = vpack.c.b16 %v7516, %v7515
  %v7528 = vpack.c.b16 %v7518, %v7517
  %v7529 = vpack.c.b16 %v7520, %v7519
  %v7540 = vsel %vm94, %v7404, 0
  %v7543 = vsel %vm94, %v7406, 0
  %v7546 = vsel %vm94, %v7408, 0
  %v7549 = vsel %vm94, %v7410, 0
  %v7552 = vsel %vm94, %v7412, 0
  %v7555 = vsel %vm94, %v7414, 0
  %v7558 = vsel %vm94, %v7416, 0
  %v7561 = vsel %vm94, %v7418, 0
  %v7564 = vsel %vm94, %v7420, 0
  %v7567 = vsel %vm94, %v7422, 0
  %v7570 = vsel %vm94, %v7424, 0
  %v7573 = vsel %vm94, %v7426, 0
  %v7576 = vsel %vm94, %v7428, 0
  %v7579 = vsel %vm94, %v7430, 0
  %v7582 = vsel %vm94, %v7432, 0
  %v7585 = vsel %vm94, %v7434, 0
  %v7588 = vsel %vm94, %v7436, 0
  %v7591 = vsel %vm94, %v7438, 0
  %v7594 = vsel %vm94, %v7440, 0
  %v7597 = vsel %vm94, %v7442, 0
  %v7600 = vsel %vm94, %v7444, 0
  %v7603 = vsel %vm94, %v7446, 0
  %v7606 = vsel %vm94, %v7448, 0
  %v7609 = vsel %vm94, %v7450, 0
  %v7612 = vsel %vm94, %v7452, 0
  %v7615 = vsel %vm94, %v7454, 0
  %v7618 = vsel %vm94, %v7456, 0
  %v7621 = vsel %vm94, %v7458, 0
  %v7624 = vsel %vm94, %v7460, 0
  %v7627 = vsel %vm94, %v7462, 0
  %v7630 = vsel %vm94, %v7464, 0
  %v7633 = vsel %vm94, %v7466, 0
  %7635 = vmatprep.subr.bf16.mxu0 0
  %7636 = vmatpush1.bf16.msra.mxu0 %v7521
  %7637 = vmatprep.subr.bf16.mxu0 0
  %7638 = vmatpush1.bf16.msra.mxu0 %v7522
  %7639 = vmatprep.subr.bf16.mxu0 0
  %7640 = vmatpush1.bf16.msra.mxu0 %v7523
  %7641 = vmatprep.subr.bf16.mxu0 0
  %7642 = vmatpush1.bf16.msra.mxu0 %v7524
  %7643 = vmatprep.subr.bf16.mxu0 0
  %7644 = vmatpush1.bf16.msra.mxu0 %v7525
  %7645 = vmatprep.subr.bf16.mxu0 0
  %7646 = vmatpush1.bf16.msra.mxu0 %v7526
  %7647 = vmatprep.subr.bf16.mxu0 0
  %7648 = vmatpush1.bf16.msra.mxu0 %v7527
  %7649 = vmatprep.subr.bf16.mxu0 0
  %7650 = vmatpush1.bf16.msra.mxu0 %v7528
  %7651 = vmatprep.subr.bf16.mxu0 0
  %7652 = vmatpush1.bf16.msra.mxu0 %v7529
  %7653 = vmatprep.subr.bf16.mxu0 0
  %7654 = vmatpush1.bf16.msra.mxu0 0
  %7655 = vmatprep.subr.bf16.mxu0 0
  %7656 = vmatpush1.bf16.msra.mxu0 0
  %7657 = vmatprep.subr.bf16.mxu0 0
  %7658 = vmatpush1.bf16.msra.mxu0 0
  %7659 = vmatprep.subr.bf16.mxu0 0
  %7660 = vmatpush1.bf16.msra.mxu0 0
  %7661 = vmatprep.subr.bf16.mxu0 0
  %7662 = vmatpush1.bf16.msra.mxu0 0
  %7663 = vmatprep.subr.bf16.mxu0 0
  %7664 = vmatpush1.bf16.msra.mxu0 0
  %7665 = vmatprep.subr.bf16.mxu0 0
  %7666 = vmatpush1.bf16.msra.mxu0 0
  %7667 = vmatprep.mubr.bf16.mxu0 %v7540
  %7668 = vmatmul.mubr.bf16.gmra.mrb[0].mxu0 %v7403
  %v7669 = vpop.f32.mrb[0].mxu0
  %v7670 = vadd.f32 0.0, %v7669
  %v7671 = vpop.f32.mrb[0].mxu0
  %v7672 = vpop.f32.mrb[0].mxu0
  %v7673 = vadd.f32 0.0, %v7672
  %v7674 = vpop.f32.mrb[0].mxu0
  %7675 = vmatprep.mubr.bf16.mxu0 %v7543
  %7676 = vmatmul.mubr.bf16.gmra.mrb[0].mxu0 %v7405
  %v7677 = vpop.f32.mrb[0].mxu0
  %v7678 = vadd.f32 0.0, %v7677
  %v7679 = vpop.f32.mrb[0].mxu0
  %v7680 = vpop.f32.mrb[0].mxu0
  %v7681 = vadd.f32 0.0, %v7680
  %v7682 = vpop.f32.mrb[0].mxu0
  %7683 = vmatprep.mubr.bf16.mxu0 %v7546
  %7684 = vmatmul.mubr.bf16.gmra.mrb[0].mxu0 %v7407
  %v7685 = vpop.f32.mrb[0].mxu0
  %v7686 = vadd.f32 0.0, %v7685
  %v7687 = vpop.f32.mrb[0].mxu0
  %v7688 = vpop.f32.mrb[0].mxu0
  %v7689 = vadd.f32 0.0, %v7688
  %v7690 = vpop.f32.mrb[0].mxu0
  %7691 = vmatprep.mubr.bf16.mxu0 %v7549
  %7692 = vmatmul.mubr.bf16.gmra.mrb[0].mxu0 %v7409
  %v7693 = vpop.f32.mrb[0].mxu0
  %v7694 = vadd.f32 0.0, %v7693
  %v7695 = vpop.f32.mrb[0].mxu0
  %v7696 = vpop.f32.mrb[0].mxu0
  %v7697 = vadd.f32 0.0, %v7696
  %v7698 = vpop.f32.mrb[0].mxu0
  %7699 = vmatprep.mubr.bf16.mxu0 %v7552
  %7700 = vmatmul.mubr.bf16.gmra.mrb[0].mxu0 %v7411
  %v7701 = vpop.f32.mrb[0].mxu0
  %v7702 = vadd.f32 0.0, %v7701
  %v7703 = vpop.f32.mrb[0].mxu0
  %v7704 = vpop.f32.mrb[0].mxu0
  %v7705 = vadd.f32 0.0, %v7704
  %v7706 = vpop.f32.mrb[0].mxu0
  %7707 = vmatprep.mubr.bf16.mxu0 %v7555
  %7708 = vmatmul.mubr.bf16.gmra.mrb[0].mxu0 %v7413
  %v7709 = vpop.f32.mrb[0].mxu0
  %v7710 = vadd.f32 0.0, %v7709
  %v7711 = vpop.f32.mrb[0].mxu0
  %v7712 = vpop.f32.mrb[0].mxu0
  %v7713 = vadd.f32 0.0, %v7712
  %v7714 = vpop.f32.mrb[0].mxu0
  %7715 = vmatprep.mubr.bf16.mxu0 %v7558
  %7716 = vmatmul.mubr.bf16.gmra.mrb[0].mxu0 %v7415
  %v7717 = vpop.f32.mrb[0].mxu0
  %v7718 = vadd.f32 0.0, %v7717
  %v7719 = vpop.f32.mrb[0].mxu0
  %v7720 = vpop.f32.mrb[0].mxu0
  %v7721 = vadd.f32 0.0, %v7720
  %v7722 = vpop.f32.mrb[0].mxu0
  %7723 = vmatprep.mubr.bf16.mxu0 %v7561
  %7724 = vmatmul.mubr.bf16.gmra.mrb[0].mxu0 %v7417
  %v7725 = vpop.f32.mrb[0].mxu0
  %v7726 = vadd.f32 0.0, %v7725
  %v7727 = vpop.f32.mrb[0].mxu0
  %v7728 = vpop.f32.mrb[0].mxu0
  %v7729 = vadd.f32 0.0, %v7728
  %v7730 = vpop.f32.mrb[0].mxu0
  %7731 = vmatprep.mubr.bf16.mxu0 %v7564
  %7732 = vmatmul.mubr.bf16.gmra.mrb[0].mxu0 %v7419
  %v7733 = vpop.f32.mrb[0].mxu0
  %v7734 = vadd.f32 0.0, %v7733
  %v7735 = vpop.f32.mrb[0].mxu0
  %v7736 = vpop.f32.mrb[0].mxu0
  %v7737 = vadd.f32 0.0, %v7736
  %v7738 = vpop.f32.mrb[0].mxu0
  %7739 = vmatprep.mubr.bf16.mxu0 %v7567
  %7740 = vmatmul.mubr.bf16.gmra.mrb[0].mxu0 %v7421
  %v7741 = vpop.f32.mrb[0].mxu0
  %v7742 = vadd.f32 0.0, %v7741
  %v7743 = vpop.f32.mrb[0].mxu0
  %v7744 = vpop.f32.mrb[0].mxu0
  %v7745 = vadd.f32 0.0, %v7744
  %v7746 = vpop.f32.mrb[0].mxu0
  %7747 = vmatprep.mubr.bf16.mxu0 %v7570
  %7748 = vmatmul.mubr.bf16.gmra.mrb[0].mxu0 %v7423
  %v7749 = vpop.f32.mrb[0].mxu0
  %v7750 = vadd.f32 0.0, %v7749
  %v7751 = vpop.f32.mrb[0].mxu0
  %v7752 = vpop.f32.mrb[0].mxu0
  %v7753 = vadd.f32 0.0, %v7752
  %v7754 = vpop.f32.mrb[0].mxu0
  %7755 = vmatprep.mubr.bf16.mxu0 %v7573
  %7756 = vmatmul.mubr.bf16.gmra.mrb[0].mxu0 %v7425
  %v7757 = vpop.f32.mrb[0].mxu0
  %v7758 = vadd.f32 0.0, %v7757
  %v7759 = vpop.f32.mrb[0].mxu0
  %v7760 = vpop.f32.mrb[0].mxu0
  %v7761 = vadd.f32 0.0, %v7760
  %v7762 = vpop.f32.mrb[0].mxu0
  %7763 = vmatprep.mubr.bf16.mxu0 %v7576
  %7764 = vmatmul.mubr.bf16.gmra.mrb[0].mxu0 %v7427
  %v7765 = vpop.f32.mrb[0].mxu0
  %v7766 = vadd.f32 0.0, %v7765
  %v7767 = vpop.f32.mrb[0].mxu0
  %v7768 = vpop.f32.mrb[0].mxu0
  %v7769 = vadd.f32 0.0, %v7768
  %v7770 = vpop.f32.mrb[0].mxu0
  %7771 = vmatprep.mubr.bf16.mxu0 %v7579
  %7772 = vmatmul.mubr.bf16.gmra.mrb[0].mxu0 %v7429
  %v7773 = vpop.f32.mrb[0].mxu0
  %v7774 = vadd.f32 0.0, %v7773
  %v7775 = vpop.f32.mrb[0].mxu0
  %v7776 = vpop.f32.mrb[0].mxu0
  %v7777 = vadd.f32 0.0, %v7776
  %v7778 = vpop.f32.mrb[0].mxu0
  %7779 = vmatprep.mubr.bf16.mxu0 %v7582
  %7780 = vmatmul.mubr.bf16.gmra.mrb[0].mxu0 %v7431
  %v7781 = vpop.f32.mrb[0].mxu0
  %v7782 = vadd.f32 0.0, %v7781
  %v7783 = vpop.f32.mrb[0].mxu0
  %v7784 = vpop.f32.mrb[0].mxu0
  %v7785 = vadd.f32 0.0, %v7784
  %v7786 = vpop.f32.mrb[0].mxu0
  %7787 = vmatprep.mubr.bf16.mxu0 %v7585
  %7788 = vmatmul.mubr.bf16.gmra.mrb[0].mxu0 %v7433
  %v7789 = vpop.f32.mrb[0].mxu0
  %v7790 = vadd.f32 0.0, %v7789
  %v7791 = vpop.f32.mrb[0].mxu0
  %v7792 = vpop.f32.mrb[0].mxu0
  %v7793 = vadd.f32 0.0, %v7792
  %v7794 = vpop.f32.mrb[0].mxu0
  %7795 = vmatprep.mubr.bf16.mxu0 %v7588
  %7796 = vmatmul.mubr.bf16.gmra.mrb[0].mxu0 %v7435
  %v7797 = vpop.f32.mrb[0].mxu0
  %v7798 = vadd.f32 0.0, %v7797
  %v7799 = vpop.f32.mrb[0].mxu0
  %v7800 = vpop.f32.mrb[0].mxu0
  %v7801 = vadd.f32 0.0, %v7800
  %v7802 = vpop.f32.mrb[0].mxu0
  %7803 = vmatprep.mubr.bf16.mxu0 %v7591
  %7804 = vmatmul.mubr.bf16.gmra.mrb[0].mxu0 %v7437
  %v7805 = vpop.f32.mrb[0].mxu0
  %v7806 = vadd.f32 0.0, %v7805
  %v7807 = vpop.f32.mrb[0].mxu0
  %v7808 = vpop.f32.mrb[0].mxu0
  %v7809 = vadd.f32 0.0, %v7808
  %v7810 = vpop.f32.mrb[0].mxu0
  %7811 = vmatprep.mubr.bf16.mxu0 %v7594
  %7812 = vmatmul.mubr.bf16.gmra.mrb[0].mxu0 %v7439
  %v7813 = vpop.f32.mrb[0].mxu0
  %v7814 = vadd.f32 0.0, %v7813
  %v7815 = vpop.f32.mrb[0].mxu0
  %v7816 = vpop.f32.mrb[0].mxu0
  %v7817 = vadd.f32 0.0, %v7816
  %v7818 = vpop.f32.mrb[0].mxu0
  %7819 = vmatprep.mubr.bf16.mxu0 %v7597
  %7820 = vmatmul.mubr.bf16.gmra.mrb[0].mxu0 %v7441
  %v7821 = vpop.f32.mrb[0].mxu0
  %v7822 = vadd.f32 0.0, %v7821
  %v7823 = vpop.f32.mrb[0].mxu0
  %v7824 = vpop.f32.mrb[0].mxu0
  %v7825 = vadd.f32 0.0, %v7824
  %v7826 = vpop.f32.mrb[0].mxu0
  %7827 = vmatprep.mubr.bf16.mxu0 %v7600
  %7828 = vmatmul.mubr.bf16.gmra.mrb[0].mxu0 %v7443
  %v7829 = vpop.f32.mrb[0].mxu0
  %v7830 = vadd.f32 0.0, %v7829
  %v7831 = vpop.f32.mrb[0].mxu0
  %v7832 = vpop.f32.mrb[0].mxu0
  %v7833 = vadd.f32 0.0, %v7832
  %v7834 = vpop.f32.mrb[0].mxu0
  %7835 = vmatprep.mubr.bf16.mxu0 %v7603
  %7836 = vmatmul.mubr.bf16.gmra.mrb[0].mxu0 %v7445
  %v7837 = vpop.f32.mrb[0].mxu0
  %v7838 = vadd.f32 0.0, %v7837
  %v7839 = vpop.f32.mrb[0].mxu0
  %v7840 = vpop.f32.mrb[0].mxu0
  %v7841 = vadd.f32 0.0, %v7840
  %v7842 = vpop.f32.mrb[0].mxu0
  %7843 = vmatprep.mubr.bf16.mxu0 %v7606
  %7844 = vmatmul.mubr.bf16.gmra.mrb[0].mxu0 %v7447
  %v7845 = vpop.f32.mrb[0].mxu0
  %v7846 = vadd.f32 0.0, %v7845
  %v7847 = vpop.f32.mrb[0].mxu0
  %v7848 = vpop.f32.mrb[0].mxu0
  %v7849 = vadd.f32 0.0, %v7848
  %v7850 = vpop.f32.mrb[0].mxu0
  %7851 = vmatprep.mubr.bf16.mxu0 %v7609
  %7852 = vmatmul.mubr.bf16.gmra.mrb[0].mxu0 %v7449
  %v7853 = vpop.f32.mrb[0].mxu0
  %v7854 = vadd.f32 0.0, %v7853
  %v7855 = vpop.f32.mrb[0].mxu0
  %v7856 = vpop.f32.mrb[0].mxu0
  %v7857 = vadd.f32 0.0, %v7856
  %v7858 = vpop.f32.mrb[0].mxu0
  %7859 = vmatprep.mubr.bf16.mxu0 %v7612
  %7860 = vmatmul.mubr.bf16.gmra.mrb[0].mxu0 %v7451
  %v7861 = vpop.f32.mrb[0].mxu0
  %v7862 = vadd.f32 0.0, %v7861
  %v7863 = vpop.f32.mrb[0].mxu0
  %v7864 = vpop.f32.mrb[0].mxu0
  %v7865 = vadd.f32 0.0, %v7864
  %v7866 = vpop.f32.mrb[0].mxu0
  %7867 = vmatprep.mubr.bf16.mxu0 %v7615
  %7868 = vmatmul.mubr.bf16.gmra.mrb[0].mxu0 %v7453
  %v7869 = vpop.f32.mrb[0].mxu0
  %v7870 = vadd.f32 0.0, %v7869
  %v7871 = vpop.f32.mrb[0].mxu0
  %v7872 = vpop.f32.mrb[0].mxu0
  %v7873 = vadd.f32 0.0, %v7872
  %v7874 = vpop.f32.mrb[0].mxu0
  %7875 = vmatprep.mubr.bf16.mxu0 %v7618
  %7876 = vmatmul.mubr.bf16.gmra.mrb[0].mxu0 %v7455
  %v7877 = vpop.f32.mrb[0].mxu0
  %v7878 = vadd.f32 0.0, %v7877
  %v7879 = vpop.f32.mrb[0].mxu0
  %v7880 = vpop.f32.mrb[0].mxu0
  %v7881 = vadd.f32 0.0, %v7880
  %v7882 = vpop.f32.mrb[0].mxu0
  %7883 = vmatprep.mubr.bf16.mxu0 %v7621
  %7884 = vmatmul.mubr.bf16.gmra.mrb[0].mxu0 %v7457
  %v7885 = vpop.f32.mrb[0].mxu0
  %v7886 = vadd.f32 0.0, %v7885
  %v7887 = vpop.f32.mrb[0].mxu0
  %v7888 = vpop.f32.mrb[0].mxu0
  %v7889 = vadd.f32 0.0, %v7888
  %v7890 = vpop.f32.mrb[0].mxu0
  %7891 = vmatprep.mubr.bf16.mxu0 %v7624
  %7892 = vmatmul.mubr.bf16.gmra.mrb[0].mxu0 %v7459
  %v7893 = vpop.f32.mrb[0].mxu0
  %v7894 = vadd.f32 0.0, %v7893
  %v7895 = vpop.f32.mrb[0].mxu0
  %v7896 = vpop.f32.mrb[0].mxu0
  %v7897 = vadd.f32 0.0, %v7896
  %v7898 = vpop.f32.mrb[0].mxu0
  %7899 = vmatprep.mubr.bf16.mxu0 %v7627
  %7900 = vmatmul.mubr.bf16.gmra.mrb[0].mxu0 %v7461
  %v7901 = vpop.f32.mrb[0].mxu0
  %v7902 = vadd.f32 0.0, %v7901
  %v7903 = vpop.f32.mrb[0].mxu0
  %v7904 = vpop.f32.mrb[0].mxu0
  %v7905 = vadd.f32 0.0, %v7904
  %v7906 = vpop.f32.mrb[0].mxu0
  %7907 = vmatprep.mubr.bf16.mxu0 %v7630
  %7908 = vmatmul.mubr.bf16.gmra.mrb[0].mxu0 %v7463
  %v7909 = vpop.f32.mrb[0].mxu0
  %v7910 = vadd.f32 0.0, %v7909
  %v7911 = vpop.f32.mrb[0].mxu0
  %v7912 = vpop.f32.mrb[0].mxu0
  %v7913 = vadd.f32 0.0, %v7912
  %v7914 = vpop.f32.mrb[0].mxu0
  %7915 = vmatprep.mubr.bf16.mxu0 %v7633
  %7916 = vmatmul.mubr.bf16.gmra.mrb[0].mxu0 %v7465
  %v7917 = vpop.f32.mrb[0].mxu0
  %v7918 = vadd.f32 0.0, %v7917
  %v7919 = vpop.f32.mrb[0].mxu0
  %v7920 = vpop.f32.mrb[0].mxu0
  %v7921 = vadd.f32 0.0, %v7920
  %v7922 = vpop.f32.mrb[0].mxu0
  %7923 = vdwg.mxu0
  %v7924 = vsel %vm94, %v7670, 0.0
  %v7925 = vsel %vm94, %v7673, 0.0
  %v7926 = vadd.f32 %v7924, %v7925
  %v7927 = vsel %vm94, %v7678, 0.0
  %v7928 = vadd.f32 %v7926, %v7927
  %v7929 = vsel %vm94, %v7681, 0.0
  %v7930 = vadd.f32 %v7928, %v7929
  %v7931 = vsel %vm94, %v7686, 0.0
  %v7932 = vadd.f32 %v7930, %v7931
  %v7933 = vsel %vm94, %v7689, 0.0
  %v7934 = vadd.f32 %v7932, %v7933
  %v7935 = vsel %vm94, %v7694, 0.0
  %v7936 = vadd.f32 %v7934, %v7935
  %v7937 = vsel %vm94, %v7697, 0.0
  %v7938 = vadd.f32 %v7936, %v7937
  %v7939 = vsel %vm94, %v7702, 0.0
  %v7940 = vadd.f32 %v7938, %v7939
  %v7941 = vsel %vm94, %v7705, 0.0
  %v7942 = vadd.f32 %v7940, %v7941
  %v7943 = vsel %vm94, %v7710, 0.0
  %v7944 = vadd.f32 %v7942, %v7943
  %v7945 = vsel %vm94, %v7713, 0.0
  %v7946 = vadd.f32 %v7944, %v7945
  %v7947 = vsel %vm94, %v7718, 0.0
  %v7948 = vadd.f32 %v7946, %v7947
  %v7949 = vsel %vm94, %v7721, 0.0
  %v7950 = vadd.f32 %v7948, %v7949
  %v7951 = vsel %vm94, %v7726, 0.0
  %v7952 = vadd.f32 %v7950, %v7951
  %v7953 = vsel %vm94, %v7729, 0.0
  %v7954 = vadd.f32 %v7952, %v7953
  %v7955 = vsel %vm94, %v7734, 0.0
  %v7956 = vadd.f32 %v7954, %v7955
  %v7957 = vsel %vm94, %v7737, 0.0
  %v7958 = vadd.f32 %v7956, %v7957
  %v7959 = vsel %vm94, %v7742, 0.0
  %v7960 = vadd.f32 %v7958, %v7959
  %v7961 = vsel %vm94, %v7745, 0.0
  %v7962 = vadd.f32 %v7960, %v7961
  %v7963 = vsel %vm94, %v7750, 0.0
  %v7964 = vadd.f32 %v7962, %v7963
  %v7965 = vsel %vm94, %v7753, 0.0
  %v7966 = vadd.f32 %v7964, %v7965
  %v7967 = vsel %vm94, %v7758, 0.0
  %v7968 = vadd.f32 %v7966, %v7967
  %v7969 = vsel %vm94, %v7761, 0.0
  %v7970 = vadd.f32 %v7968, %v7969
  %v7971 = vsel %vm94, %v7766, 0.0
  %v7972 = vadd.f32 %v7970, %v7971
  %v7973 = vsel %vm94, %v7769, 0.0
  %v7974 = vadd.f32 %v7972, %v7973
  %v7975 = vsel %vm94, %v7774, 0.0
  %v7976 = vadd.f32 %v7974, %v7975
  %v7977 = vsel %vm94, %v7777, 0.0
  %v7978 = vadd.f32 %v7976, %v7977
  %v7979 = vsel %vm94, %v7782, 0.0
  %v7980 = vadd.f32 %v7978, %v7979
  %v7981 = vsel %vm94, %v7785, 0.0
  %v7982 = vadd.f32 %v7980, %v7981
  %v7983 = vsel %vm94, %v7790, 0.0
  %v7984 = vadd.f32 %v7982, %v7983
  %v7985 = vsel %vm94, %v7793, 0.0
  %v7986 = vadd.f32 %v7984, %v7985
  %v7987 = vsel %vm94, %v7798, 0.0
  %v7988 = vadd.f32 %v7986, %v7987
  %v7989 = vsel %vm94, %v7801, 0.0
  %v7990 = vadd.f32 %v7988, %v7989
  %v7991 = vsel %vm94, %v7806, 0.0
  %v7992 = vadd.f32 %v7990, %v7991
  %v7993 = vsel %vm94, %v7809, 0.0
  %v7994 = vadd.f32 %v7992, %v7993
  %v7995 = vsel %vm94, %v7814, 0.0
  %v7996 = vadd.f32 %v7994, %v7995
  %v7997 = vsel %vm94, %v7817, 0.0
  %v7998 = vadd.f32 %v7996, %v7997
  %v7999 = vsel %vm94, %v7822, 0.0
  %v8000 = vadd.f32 %v7998, %v7999
  %v8001 = vsel %vm94, %v7825, 0.0
  %v8002 = vadd.f32 %v8000, %v8001
  %v8003 = vsel %vm94, %v7830, 0.0
  %v8004 = vadd.f32 %v8002, %v8003
  %v8005 = vsel %vm94, %v7833, 0.0
  %v8006 = vadd.f32 %v8004, %v8005
  %v8007 = vsel %vm94, %v7838, 0.0
  %v8008 = vadd.f32 %v8006, %v8007
  %v8009 = vsel %vm94, %v7841, 0.0
  %v8010 = vadd.f32 %v8008, %v8009
  %v8011 = vsel %vm94, %v7846, 0.0
  %v8012 = vadd.f32 %v8010, %v8011
  %v8013 = vsel %vm94, %v7849, 0.0
  %v8014 = vadd.f32 %v8012, %v8013
  %v8015 = vsel %vm94, %v7854, 0.0
  %v8016 = vadd.f32 %v8014, %v8015
  %v8017 = vsel %vm94, %v7857, 0.0
  %v8018 = vadd.f32 %v8016, %v8017
  %v8019 = vsel %vm94, %v7862, 0.0
  %v8020 = vadd.f32 %v8018, %v8019
  %v8021 = vsel %vm94, %v7865, 0.0
  %v8022 = vadd.f32 %v8020, %v8021
  %v8023 = vsel %vm94, %v7870, 0.0
  %v8024 = vadd.f32 %v8022, %v8023
  %v8025 = vsel %vm94, %v7873, 0.0
  %v8026 = vadd.f32 %v8024, %v8025
  %v8027 = vsel %vm94, %v7878, 0.0
  %v8028 = vadd.f32 %v8026, %v8027
  %v8029 = vsel %vm94, %v7881, 0.0
  %v8030 = vadd.f32 %v8028, %v8029
  %v8031 = vsel %vm94, %v7886, 0.0
  %v8032 = vadd.f32 %v8030, %v8031
  %v8033 = vsel %vm94, %v7889, 0.0
  %v8034 = vadd.f32 %v8032, %v8033
  %v8035 = vsel %vm94, %v7894, 0.0
  %v8036 = vadd.f32 %v8034, %v8035
  %v8037 = vsel %vm94, %v7897, 0.0
  %v8038 = vadd.f32 %v8036, %v8037
  %v8039 = vsel %vm94, %v7902, 0.0
  %v8040 = vadd.f32 %v8038, %v8039
  %v8041 = vsel %vm94, %v7905, 0.0
  %v8042 = vadd.f32 %v8040, %v8041
  %v8043 = vsel %vm94, %v7910, 0.0
  %v8044 = vadd.f32 %v8042, %v8043
  %v8045 = vsel %vm94, %v7913, 0.0
  %v8046 = vadd.f32 %v8044, %v8045
  %v8047 = vsel %vm94, %v7918, 0.0
  %v8048 = vadd.f32 %v8046, %v8047
  %v8049 = vsel %vm94, %v7921, 0.0
  %v8050 = vadd.f32 %v8048, %v8049
  %v8051 = vrot.slane %v8050, 4
  %v8052 = vadd.f32 %v8050, %v8051
  %v8053 = vrot.slane %v8052, 2
  %v8054 = vadd.f32 %v8052, %v8053
  %v8055 = vrot.slane %v8054, 1
  %v8056 = vadd.f32 %v8054, %v8055
  %v8057 = vmul.f32 %v7670, %v7670
  %v8058 = vmul.f32 %v7673, %v7673
  %v8059 = vmul.f32 %v7678, %v7678
  %v8060 = vmul.f32 %v7681, %v7681
  %v8061 = vmul.f32 %v7686, %v7686
  %v8062 = vmul.f32 %v7689, %v7689
  %v8063 = vmul.f32 %v7694, %v7694
  %v8064 = vmul.f32 %v7697, %v7697
  %v8065 = vmul.f32 %v7702, %v7702
  %v8066 = vmul.f32 %v7705, %v7705
  %v8067 = vmul.f32 %v7710, %v7710
  %v8068 = vmul.f32 %v7713, %v7713
  %v8069 = vmul.f32 %v7718, %v7718
  %v8070 = vmul.f32 %v7721, %v7721
  %v8071 = vmul.f32 %v7726, %v7726
  %v8072 = vmul.f32 %v7729, %v7729
  %v8073 = vmul.f32 %v7734, %v7734
  %v8074 = vmul.f32 %v7737, %v7737
  %v8075 = vmul.f32 %v7742, %v7742
  %v8076 = vmul.f32 %v7745, %v7745
  %v8077 = vmul.f32 %v7750, %v7750
  %v8078 = vmul.f32 %v7753, %v7753
  %v8079 = vmul.f32 %v7758, %v7758
  %v8080 = vmul.f32 %v7761, %v7761
  %v8081 = vmul.f32 %v7766, %v7766
  %v8082 = vmul.f32 %v7769, %v7769
  %v8083 = vmul.f32 %v7774, %v7774
  %v8084 = vmul.f32 %v7777, %v7777
  %v8085 = vmul.f32 %v7782, %v7782
  %v8086 = vmul.f32 %v7785, %v7785
  %v8087 = vmul.f32 %v7790, %v7790
  %v8088 = vmul.f32 %v7793, %v7793
  %v8089 = vmul.f32 %v7798, %v7798
  %v8090 = vmul.f32 %v7801, %v7801
  %v8091 = vmul.f32 %v7806, %v7806
  %v8092 = vmul.f32 %v7809, %v7809
  %v8093 = vmul.f32 %v7814, %v7814
  %v8094 = vmul.f32 %v7817, %v7817
  %v8095 = vmul.f32 %v7822, %v7822
  %v8096 = vmul.f32 %v7825, %v7825
  %v8097 = vmul.f32 %v7830, %v7830
  %v8098 = vmul.f32 %v7833, %v7833
  %v8099 = vmul.f32 %v7838, %v7838
  %v8100 = vmul.f32 %v7841, %v7841
  %v8101 = vmul.f32 %v7846, %v7846
  %v8102 = vmul.f32 %v7849, %v7849
  %v8103 = vmul.f32 %v7854, %v7854
  %v8104 = vmul.f32 %v7857, %v7857
  %v8105 = vmul.f32 %v7862, %v7862
  %v8106 = vmul.f32 %v7865, %v7865
  %v8107 = vmul.f32 %v7870, %v7870
  %v8108 = vmul.f32 %v7873, %v7873
  %v8109 = vmul.f32 %v7878, %v7878
  %v8110 = vmul.f32 %v7881, %v7881
  %v8111 = vmul.f32 %v7886, %v7886
  %v8112 = vmul.f32 %v7889, %v7889
  %v8113 = vmul.f32 %v7894, %v7894
  %v8114 = vmul.f32 %v7897, %v7897
  %v8115 = vmul.f32 %v7902, %v7902
  %v8116 = vmul.f32 %v7905, %v7905
  %v8117 = vmul.f32 %v7910, %v7910
  %v8118 = vmul.f32 %v7913, %v7913
  %v8119 = vmul.f32 %v7918, %v7918
  %v8120 = vmul.f32 %v7921, %v7921
  %v8121 = vsel %vm94, %v8057, 0.0
  %v8122 = vsel %vm94, %v8058, 0.0
  %v8123 = vadd.f32 %v8121, %v8122
  %v8124 = vsel %vm94, %v8059, 0.0
  %v8125 = vadd.f32 %v8123, %v8124
  %v8126 = vsel %vm94, %v8060, 0.0
  %v8127 = vadd.f32 %v8125, %v8126
  %v8128 = vsel %vm94, %v8061, 0.0
  %v8129 = vadd.f32 %v8127, %v8128
  %v8130 = vsel %vm94, %v8062, 0.0
  %v8131 = vadd.f32 %v8129, %v8130
  %v8132 = vsel %vm94, %v8063, 0.0
  %v8133 = vadd.f32 %v8131, %v8132
  %v8134 = vsel %vm94, %v8064, 0.0
  %v8135 = vadd.f32 %v8133, %v8134
  %v8136 = vsel %vm94, %v8065, 0.0
  %v8137 = vadd.f32 %v8135, %v8136
  %v8138 = vsel %vm94, %v8066, 0.0
  %v8139 = vadd.f32 %v8137, %v8138
  %v8140 = vsel %vm94, %v8067, 0.0
  %v8141 = vadd.f32 %v8139, %v8140
  %v8142 = vsel %vm94, %v8068, 0.0
  %v8143 = vadd.f32 %v8141, %v8142
  %v8144 = vsel %vm94, %v8069, 0.0
  %v8145 = vadd.f32 %v8143, %v8144
  %v8146 = vsel %vm94, %v8070, 0.0
  %v8147 = vadd.f32 %v8145, %v8146
  %v8148 = vsel %vm94, %v8071, 0.0
  %v8149 = vadd.f32 %v8147, %v8148
  %v8150 = vsel %vm94, %v8072, 0.0
  %v8151 = vadd.f32 %v8149, %v8150
  %v8152 = vsel %vm94, %v8073, 0.0
  %v8153 = vadd.f32 %v8151, %v8152
  %v8154 = vsel %vm94, %v8074, 0.0
  %v8155 = vadd.f32 %v8153, %v8154
  %v8156 = vsel %vm94, %v8075, 0.0
  %v8157 = vadd.f32 %v8155, %v8156
  %v8158 = vsel %vm94, %v8076, 0.0
  %v8159 = vadd.f32 %v8157, %v8158
  %v8160 = vsel %vm94, %v8077, 0.0
  %v8161 = vadd.f32 %v8159, %v8160
  %v8162 = vsel %vm94, %v8078, 0.0
  %v8163 = vadd.f32 %v8161, %v8162
  %v8164 = vsel %vm94, %v8079, 0.0
  %v8165 = vadd.f32 %v8163, %v8164
  %v8166 = vsel %vm94, %v8080, 0.0
  %v8167 = vadd.f32 %v8165, %v8166
  %v8168 = vsel %vm94, %v8081, 0.0
  %v8169 = vadd.f32 %v8167, %v8168
  %v8170 = vsel %vm94, %v8082, 0.0
  %v8171 = vadd.f32 %v8169, %v8170
  %v8172 = vsel %vm94, %v8083, 0.0
  %v8173 = vadd.f32 %v8171, %v8172
  %v8174 = vsel %vm94, %v8084, 0.0
  %v8175 = vadd.f32 %v8173, %v8174
  %v8176 = vsel %vm94, %v8085, 0.0
  %v8177 = vadd.f32 %v8175, %v8176
  %v8178 = vsel %vm94, %v8086, 0.0
  %v8179 = vadd.f32 %v8177, %v8178
  %v8180 = vsel %vm94, %v8087, 0.0
  %v8181 = vadd.f32 %v8179, %v8180
  %v8182 = vsel %vm94, %v8088, 0.0
  %v8183 = vadd.f32 %v8181, %v8182
  %v8184 = vsel %vm94, %v8089, 0.0
  %v8185 = vadd.f32 %v8183, %v8184
  %v8186 = vsel %vm94, %v8090, 0.0
  %v8187 = vadd.f32 %v8185, %v8186
  %v8188 = vsel %vm94, %v8091, 0.0
  %v8189 = vadd.f32 %v8187, %v8188
  %v8190 = vsel %vm94, %v8092, 0.0
  %v8191 = vadd.f32 %v8189, %v8190
  %v8192 = vsel %vm94, %v8093, 0.0
  %v8193 = vadd.f32 %v8191, %v8192
  %v8194 = vsel %vm94, %v8094, 0.0
  %v8195 = vadd.f32 %v8193, %v8194
  %v8196 = vsel %vm94, %v8095, 0.0
  %v8197 = vadd.f32 %v8195, %v8196
  %v8198 = vsel %vm94, %v8096, 0.0
  %v8199 = vadd.f32 %v8197, %v8198
  %v8200 = vsel %vm94, %v8097, 0.0
  %v8201 = vadd.f32 %v8199, %v8200
  %v8202 = vsel %vm94, %v8098, 0.0
  %v8203 = vadd.f32 %v8201, %v8202
  %v8204 = vsel %vm94, %v8099, 0.0
  %v8205 = vadd.f32 %v8203, %v8204
  %v8206 = vsel %vm94, %v8100, 0.0
  %v8207 = vadd.f32 %v8205, %v8206
  %v8208 = vsel %vm94, %v8101, 0.0
  %v8209 = vadd.f32 %v8207, %v8208
  %v8210 = vsel %vm94, %v8102, 0.0
  %v8211 = vadd.f32 %v8209, %v8210
  %v8212 = vsel %vm94, %v8103, 0.0
  %v8213 = vadd.f32 %v8211, %v8212
  %v8214 = vsel %vm94, %v8104, 0.0
  %v8215 = vadd.f32 %v8213, %v8214
  %v8216 = vsel %vm94, %v8105, 0.0
  %v8217 = vadd.f32 %v8215, %v8216
  %v8218 = vsel %vm94, %v8106, 0.0
  %v8219 = vadd.f32 %v8217, %v8218
  %v8220 = vsel %vm94, %v8107, 0.0
  %v8221 = vadd.f32 %v8219, %v8220
  %v8222 = vsel %vm94, %v8108, 0.0
  %v8223 = vadd.f32 %v8221, %v8222
  %v8224 = vsel %vm94, %v8109, 0.0
  %v8225 = vadd.f32 %v8223, %v8224
  %v8226 = vsel %vm94, %v8110, 0.0
  %v8227 = vadd.f32 %v8225, %v8226
  %v8228 = vsel %vm94, %v8111, 0.0
  %v8229 = vadd.f32 %v8227, %v8228
  %v8230 = vsel %vm94, %v8112, 0.0
  %v8231 = vadd.f32 %v8229, %v8230
  %v8232 = vsel %vm94, %v8113, 0.0
  %v8233 = vadd.f32 %v8231, %v8232
  %v8234 = vsel %vm94, %v8114, 0.0
  %v8235 = vadd.f32 %v8233, %v8234
  %v8236 = vsel %vm94, %v8115, 0.0
  %v8237 = vadd.f32 %v8235, %v8236
  %v8238 = vsel %vm94, %v8116, 0.0
  %v8239 = vadd.f32 %v8237, %v8238
  %v8240 = vsel %vm94, %v8117, 0.0
  %v8241 = vadd.f32 %v8239, %v8240
  %v8242 = vsel %vm94, %v8118, 0.0
  %v8243 = vadd.f32 %v8241, %v8242
  %v8244 = vsel %vm94, %v8119, 0.0
  %v8245 = vadd.f32 %v8243, %v8244
  %v8246 = vsel %vm94, %v8120, 0.0
  %v8247 = vadd.f32 %v8245, %v8246
  %v8248 = vrot.slane %v8247, 4
  %v8249 = vadd.f32 %v8247, %v8248
  %v8250 = vrot.slane %v8249, 2
  %v8251 = vadd.f32 %v8249, %v8250
  %v8252 = vrot.slane %v8251, 1
  %v8253 = vadd.f32 %v8251, %v8252
  %v8254 = vmul.f32 %v8056, 0.001953125
  %v8255 = vmul.f32 %v8253, 0.001953125
  %v8256 = vmul.f32 %v8254, %v8254
  %v8257 = vsub.f32 %v8255, %v8256
  %v8258 = vld [vmem:[%s5] sm:$0x1]
  %v8259 = vadd.f32 %v8257, 1e-05
  %v8260 = vrsqrt.pop %v8259
  %v8261 = vmul.f32 %v8258, %v8260
  %v8263 = vlaneseq
  %v8264 = vshrl.u32 %v8263, 7
  %v8265 = vsub.s32 0, %v8264
  %v8266 = vrot.slane %v8261, %v8265
  %v8268 = vmul.f32 %v7670, %v8266
  %v8269 = vmul.f32 %v7673, %v8266
  %v8270 = vmul.f32 %v7678, %v8266
  %v8271 = vmul.f32 %v7681, %v8266
  %v8272 = vmul.f32 %v7686, %v8266
  %v8273 = vmul.f32 %v7689, %v8266
  %v8274 = vmul.f32 %v7694, %v8266
  %v8275 = vmul.f32 %v7697, %v8266
  %v8276 = vmul.f32 %v7702, %v8266
  %v8277 = vmul.f32 %v7705, %v8266
  %v8278 = vmul.f32 %v7710, %v8266
  %v8279 = vmul.f32 %v7713, %v8266
  %v8280 = vmul.f32 %v7718, %v8266
  %v8281 = vmul.f32 %v7721, %v8266
  %v8282 = vmul.f32 %v7726, %v8266
  %v8283 = vmul.f32 %v7729, %v8266
  %v8284 = vmul.f32 %v7734, %v8266
  %v8285 = vmul.f32 %v7737, %v8266
  %v8286 = vmul.f32 %v7742, %v8266
  %v8287 = vmul.f32 %v7745, %v8266
  %v8288 = vmul.f32 %v7750, %v8266
  %v8289 = vmul.f32 %v7753, %v8266
  %v8290 = vmul.f32 %v7758, %v8266
  %v8291 = vmul.f32 %v7761, %v8266
  %v8292 = vmul.f32 %v7766, %v8266
  %v8293 = vmul.f32 %v7769, %v8266
  %v8294 = vmul.f32 %v7774, %v8266
  %v8295 = vmul.f32 %v7777, %v8266
  %v8296 = vmul.f32 %v7782, %v8266
  %v8297 = vmul.f32 %v7785, %v8266
  %v8298 = vmul.f32 %v7790, %v8266
  %v8299 = vmul.f32 %v7793, %v8266
  %v8300 = vmul.f32 %v7798, %v8266
  %v8301 = vmul.f32 %v7801, %v8266
  %v8302 = vmul.f32 %v7806, %v8266
  %v8303 = vmul.f32 %v7809, %v8266
  %v8304 = vmul.f32 %v7814, %v8266
  %v8305 = vmul.f32 %v7817, %v8266
  %v8306 = vmul.f32 %v7822, %v8266
  %v8307 = vmul.f32 %v7825, %v8266
  %v8308 = vmul.f32 %v7830, %v8266
  %v8309 = vmul.f32 %v7833, %v8266
  %v8310 = vmul.f32 %v7838, %v8266
  %v8311 = vmul.f32 %v7841, %v8266
  %v8312 = vmul.f32 %v7846, %v8266
  %v8313 = vmul.f32 %v7849, %v8266
  %v8314 = vmul.f32 %v7854, %v8266
  %v8315 = vmul.f32 %v7857, %v8266
  %v8316 = vmul.f32 %v7862, %v8266
  %v8317 = vmul.f32 %v7865, %v8266
  %v8318 = vmul.f32 %v7870, %v8266
  %v8319 = vmul.f32 %v7873, %v8266
  %v8320 = vmul.f32 %v7878, %v8266
  %v8321 = vmul.f32 %v7881, %v8266
  %v8322 = vmul.f32 %v7886, %v8266
  %v8323 = vmul.f32 %v7889, %v8266
  %v8324 = vmul.f32 %v7894, %v8266
  %v8325 = vmul.f32 %v7897, %v8266
  %v8326 = vmul.f32 %v7902, %v8266
  %v8327 = vmul.f32 %v7905, %v8266
  %v8328 = vmul.f32 %v7910, %v8266
  %v8329 = vmul.f32 %v7913, %v8266
  %v8330 = vmul.f32 %v7918, %v8266
  %v8331 = vmul.f32 %v7921, %v8266
  %v8332 = vld [vmem:[%s6] sm:$0x1]
  %v8333 = vmul.f32 %v8254, %v8261
  %v8334 = vsub.f32 %v8332, %v8333
  %v8336 = vlaneseq
  %v8337 = vshrl.u32 %v8336, 7
  %v8338 = vsub.s32 0, %v8337
  %v8339 = vrot.slane %v8334, %v8338
  %v8341 = vadd.f32 %v8268, %v8339
  %v8342 = vadd.f32 %v8269, %v8339
  %v8343 = vadd.f32 %v8270, %v8339
  %v8344 = vadd.f32 %v8271, %v8339
  %v8345 = vadd.f32 %v8272, %v8339
  %v8346 = vadd.f32 %v8273, %v8339
  %v8347 = vadd.f32 %v8274, %v8339
  %v8348 = vadd.f32 %v8275, %v8339
  %v8349 = vadd.f32 %v8276, %v8339
  %v8350 = vadd.f32 %v8277, %v8339
  %v8351 = vadd.f32 %v8278, %v8339
  %v8352 = vadd.f32 %v8279, %v8339
  %v8353 = vadd.f32 %v8280, %v8339
  %v8354 = vadd.f32 %v8281, %v8339
  %v8355 = vadd.f32 %v8282, %v8339
  %v8356 = vadd.f32 %v8283, %v8339
  %v8357 = vadd.f32 %v8284, %v8339
  %v8358 = vadd.f32 %v8285, %v8339
  %v8359 = vadd.f32 %v8286, %v8339
  %v8360 = vadd.f32 %v8287, %v8339
  %v8361 = vadd.f32 %v8288, %v8339
  %v8362 = vadd.f32 %v8289, %v8339
  %v8363 = vadd.f32 %v8290, %v8339
  %v8364 = vadd.f32 %v8291, %v8339
  %v8365 = vadd.f32 %v8292, %v8339
  %v8366 = vadd.f32 %v8293, %v8339
  %v8367 = vadd.f32 %v8294, %v8339
  %v8368 = vadd.f32 %v8295, %v8339
  %v8369 = vadd.f32 %v8296, %v8339
  %v8370 = vadd.f32 %v8297, %v8339
  %v8371 = vadd.f32 %v8298, %v8339
  %v8372 = vadd.f32 %v8299, %v8339
  %v8373 = vadd.f32 %v8300, %v8339
  %v8374 = vadd.f32 %v8301, %v8339
  %v8375 = vadd.f32 %v8302, %v8339
  %v8376 = vadd.f32 %v8303, %v8339
  %v8377 = vadd.f32 %v8304, %v8339
  %v8378 = vadd.f32 %v8305, %v8339
  %v8379 = vadd.f32 %v8306, %v8339
  %v8380 = vadd.f32 %v8307, %v8339
  %v8381 = vadd.f32 %v8308, %v8339
  %v8382 = vadd.f32 %v8309, %v8339
  %v8383 = vadd.f32 %v8310, %v8339
  %v8384 = vadd.f32 %v8311, %v8339
  %v8385 = vadd.f32 %v8312, %v8339
  %v8386 = vadd.f32 %v8313, %v8339
  %v8387 = vadd.f32 %v8314, %v8339
  %v8388 = vadd.f32 %v8315, %v8339
  %v8389 = vadd.f32 %v8316, %v8339
  %v8390 = vadd.f32 %v8317, %v8339
  %v8391 = vadd.f32 %v8318, %v8339
  %v8392 = vadd.f32 %v8319, %v8339
  %v8393 = vadd.f32 %v8320, %v8339
  %v8394 = vadd.f32 %v8321, %v8339
  %v8395 = vadd.f32 %v8322, %v8339
  %v8396 = vadd.f32 %v8323, %v8339
  %v8397 = vadd.f32 %v8324, %v8339
  %v8398 = vadd.f32 %v8325, %v8339
  %v8399 = vadd.f32 %v8326, %v8339
  %v8400 = vadd.f32 %v8327, %v8339
  %v8401 = vadd.f32 %v8328, %v8339
  %v8402 = vadd.f32 %v8329, %v8339
  %v8403 = vadd.f32 %v8330, %v8339
  %v8404 = vadd.f32 %v8331, %v8339
  %v8405 = vld [vmem:[%s7] sm:$0xff]
  %v8406 = vld [vmem:[%s7 + $0x8] sm:$0xff]
  %v8407 = vld [vmem:[%s7 + $0x10] sm:$0xff]
  %v8408 = vld [vmem:[%s7 + $0x18] sm:$0xff]
  %v8409 = vld [vmem:[%s7 + $0x20] sm:$0xff]
  %v8410 = vld [vmem:[%s7 + $0x28] sm:$0xff]
  %v8411 = vld [vmem:[%s7 + $0x30] sm:$0xff]
  %v8412 = vld [vmem:[%s7 + $0x38] sm:$0xff]
  %v8413 = vld [vmem:[%s7 + $0x40] sm:$0xff]
  %v8414 = vld [vmem:[%s7 + $0x48] sm:$0xff]
  %v8415 = vld [vmem:[%s7 + $0x50] sm:$0xff]
  %v8416 = vld [vmem:[%s7 + $0x58] sm:$0xff]
  %v8417 = vld [vmem:[%s7 + $0x60] sm:$0xff]
  %v8418 = vld [vmem:[%s7 + $0x68] sm:$0xff]
  %v8419 = vld [vmem:[%s7 + $0x70] sm:$0xff]
  %v8420 = vld [vmem:[%s7 + $0x78] sm:$0xff]
  %v8421 = vld [vmem:[%s7 + $0x80] sm:$0xff]
  %v8422 = vld [vmem:[%s7 + $0x88] sm:$0xff]
  %v8423 = vld [vmem:[%s7 + $0x90] sm:$0xff]
  %v8424 = vld [vmem:[%s7 + $0x98] sm:$0xff]
  %v8425 = vld [vmem:[%s7 + $0xa0] sm:$0xff]
  %v8426 = vld [vmem:[%s7 + $0xa8] sm:$0xff]
  %v8427 = vld [vmem:[%s7 + $0xb0] sm:$0xff]
  %v8428 = vld [vmem:[%s7 + $0xb8] sm:$0xff]
  %v8429 = vld [vmem:[%s7 + $0xc0] sm:$0xff]
  %v8430 = vld [vmem:[%s7 + $0xc8] sm:$0xff]
  %v8431 = vld [vmem:[%s7 + $0xd0] sm:$0xff]
  %v8432 = vld [vmem:[%s7 + $0xd8] sm:$0xff]
  %v8433 = vld [vmem:[%s7 + $0xe0] sm:$0xff]
  %v8434 = vld [vmem:[%s7 + $0xe8] sm:$0xff]
  %v8435 = vld [vmem:[%s7 + $0xf0] sm:$0xff]
  %v8436 = vld [vmem:[%s7 + $0xf8] sm:$0xff]
  %v8437 = vld [vmem:[%s7 + $0x100] sm:$0xff]
  %v8438 = vld [vmem:[%s7 + $0x108] sm:$0xff]
  %v8439 = vld [vmem:[%s7 + $0x110] sm:$0xff]
  %v8440 = vld [vmem:[%s7 + $0x118] sm:$0xff]
  %v8441 = vld [vmem:[%s7 + $0x120] sm:$0xff]
  %v8442 = vld [vmem:[%s7 + $0x128] sm:$0xff]
  %v8443 = vld [vmem:[%s7 + $0x130] sm:$0xff]
  %v8444 = vld [vmem:[%s7 + $0x138] sm:$0xff]
  %v8445 = vld [vmem:[%s7 + $0x140] sm:$0xff]
  %v8446 = vld [vmem:[%s7 + $0x148] sm:$0xff]
  %v8447 = vld [vmem:[%s7 + $0x150] sm:$0xff]
  %v8448 = vld [vmem:[%s7 + $0x158] sm:$0xff]
  %v8449 = vld [vmem:[%s7 + $0x160] sm:$0xff]
  %v8450 = vld [vmem:[%s7 + $0x168] sm:$0xff]
  %v8451 = vld [vmem:[%s7 + $0x170] sm:$0xff]
  %v8452 = vld [vmem:[%s7 + $0x178] sm:$0xff]
  %v8453 = vld [vmem:[%s7 + $0x180] sm:$0xff]
  %v8454 = vld [vmem:[%s7 + $0x188] sm:$0xff]
  %v8455 = vld [vmem:[%s7 + $0x190] sm:$0xff]
  %v8456 = vld [vmem:[%s7 + $0x198] sm:$0xff]
  %v8457 = vld [vmem:[%s7 + $0x1a0] sm:$0xff]
  %v8458 = vld [vmem:[%s7 + $0x1a8] sm:$0xff]
  %v8459 = vld [vmem:[%s7 + $0x1b0] sm:$0xff]
  %v8460 = vld [vmem:[%s7 + $0x1b8] sm:$0xff]
  %v8461 = vld [vmem:[%s7 + $0x1c0] sm:$0xff]
  %v8462 = vld [vmem:[%s7 + $0x1c8] sm:$0xff]
  %v8463 = vld [vmem:[%s7 + $0x1d0] sm:$0xff]
  %v8464 = vld [vmem:[%s7 + $0x1d8] sm:$0xff]
  %v8465 = vld [vmem:[%s7 + $0x1e0] sm:$0xff]
  %v8466 = vld [vmem:[%s7 + $0x1e8] sm:$0xff]
  %v8467 = vld [vmem:[%s7 + $0x1f0] sm:$0xff]
  %v8468 = vld [vmem:[%s7 + $0x1f8] sm:$0xff]
  %v8469 = vadd.f32 %v8341, %v8405
  %v8470 = vadd.f32 %v8342, %v8406
  %v8471 = vadd.f32 %v8343, %v8407
  %v8472 = vadd.f32 %v8344, %v8408
  %v8473 = vadd.f32 %v8345, %v8409
  %v8474 = vadd.f32 %v8346, %v8410
  %v8475 = vadd.f32 %v8347, %v8411
  %v8476 = vadd.f32 %v8348, %v8412
  %v8477 = vadd.f32 %v8349, %v8413
  %v8478 = vadd.f32 %v8350, %v8414
  %v8479 = vadd.f32 %v8351, %v8415
  %v8480 = vadd.f32 %v8352, %v8416
  %v8481 = vadd.f32 %v8353, %v8417
  %v8482 = vadd.f32 %v8354, %v8418
  %v8483 = vadd.f32 %v8355, %v8419
  %v8484 = vadd.f32 %v8356, %v8420
  %v8485 = vadd.f32 %v8357, %v8421
  %v8486 = vadd.f32 %v8358, %v8422
  %v8487 = vadd.f32 %v8359, %v8423
  %v8488 = vadd.f32 %v8360, %v8424
  %v8489 = vadd.f32 %v8361, %v8425
  %v8490 = vadd.f32 %v8362, %v8426
  %v8491 = vadd.f32 %v8363, %v8427
  %v8492 = vadd.f32 %v8364, %v8428
  %v8493 = vadd.f32 %v8365, %v8429
  %v8494 = vadd.f32 %v8366, %v8430
  %v8495 = vadd.f32 %v8367, %v8431
  %v8496 = vadd.f32 %v8368, %v8432
  %v8497 = vadd.f32 %v8369, %v8433
  %v8498 = vadd.f32 %v8370, %v8434
  %v8499 = vadd.f32 %v8371, %v8435
  %v8500 = vadd.f32 %v8372, %v8436
  %v8501 = vadd.f32 %v8373, %v8437
  %v8502 = vadd.f32 %v8374, %v8438
  %v8503 = vadd.f32 %v8375, %v8439
  %v8504 = vadd.f32 %v8376, %v8440
  %v8505 = vadd.f32 %v8377, %v8441
  %v8506 = vadd.f32 %v8378, %v8442
  %v8507 = vadd.f32 %v8379, %v8443
  %v8508 = vadd.f32 %v8380, %v8444
  %v8509 = vadd.f32 %v8381, %v8445
  %v8510 = vadd.f32 %v8382, %v8446
  %v8511 = vadd.f32 %v8383, %v8447
  %v8512 = vadd.f32 %v8384, %v8448
  %v8513 = vadd.f32 %v8385, %v8449
  %v8514 = vadd.f32 %v8386, %v8450
  %v8515 = vadd.f32 %v8387, %v8451
  %v8516 = vadd.f32 %v8388, %v8452
  %v8517 = vadd.f32 %v8389, %v8453
  %v8518 = vadd.f32 %v8390, %v8454
  %v8519 = vadd.f32 %v8391, %v8455
  %v8520 = vadd.f32 %v8392, %v8456
  %v8521 = vadd.f32 %v8393, %v8457
  %v8522 = vadd.f32 %v8394, %v8458
  %v8523 = vadd.f32 %v8395, %v8459
  %v8524 = vadd.f32 %v8396, %v8460
  %v8525 = vadd.f32 %v8397, %v8461
  %v8526 = vadd.f32 %v8398, %v8462
  %v8527 = vadd.f32 %v8399, %v8463
  %v8528 = vadd.f32 %v8400, %v8464
  %v8529 = vadd.f32 %v8401, %v8465
  %v8530 = vadd.f32 %v8402, %v8466
  %v8531 = vadd.f32 %v8403, %v8467
  %v8532 = vadd.f32 %v8404, %v8468
  %v8533 = vmax.f32 %v8469, 0.0
  %v8534 = vmax.f32 %v8470, 0.0
  %v8535 = vmax.f32 %v8471, 0.0
  %v8536 = vmax.f32 %v8472, 0.0
  %v8537 = vmax.f32 %v8473, 0.0
  %v8538 = vmax.f32 %v8474, 0.0
  %v8539 = vmax.f32 %v8475, 0.0
  %v8540 = vmax.f32 %v8476, 0.0
  %v8541 = vmax.f32 %v8477, 0.0
  %v8542 = vmax.f32 %v8478, 0.0
  %v8543 = vmax.f32 %v8479, 0.0
  %v8544 = vmax.f32 %v8480, 0.0
  %v8545 = vmax.f32 %v8481, 0.0
  %v8546 = vmax.f32 %v8482, 0.0
  %v8547 = vmax.f32 %v8483, 0.0
  %v8548 = vmax.f32 %v8484, 0.0
  %v8549 = vmax.f32 %v8485, 0.0
  %v8550 = vmax.f32 %v8486, 0.0
  %v8551 = vmax.f32 %v8487, 0.0
  %v8552 = vmax.f32 %v8488, 0.0
  %v8553 = vmax.f32 %v8489, 0.0
  %v8554 = vmax.f32 %v8490, 0.0
  %v8555 = vmax.f32 %v8491, 0.0
  %v8556 = vmax.f32 %v8492, 0.0
  %v8557 = vmax.f32 %v8493, 0.0
  %v8558 = vmax.f32 %v8494, 0.0
  %v8559 = vmax.f32 %v8495, 0.0
  %v8560 = vmax.f32 %v8496, 0.0
  %v8561 = vmax.f32 %v8497, 0.0
  %v8562 = vmax.f32 %v8498, 0.0
  %v8563 = vmax.f32 %v8499, 0.0
  %v8564 = vmax.f32 %v8500, 0.0
  %v8565 = vmax.f32 %v8501, 0.0
  %v8566 = vmax.f32 %v8502, 0.0
  %v8567 = vmax.f32 %v8503, 0.0
  %v8568 = vmax.f32 %v8504, 0.0
  %v8569 = vmax.f32 %v8505, 0.0
  %v8570 = vmax.f32 %v8506, 0.0
  %v8571 = vmax.f32 %v8507, 0.0
  %v8572 = vmax.f32 %v8508, 0.0
  %v8573 = vmax.f32 %v8509, 0.0
  %v8574 = vmax.f32 %v8510, 0.0
  %v8575 = vmax.f32 %v8511, 0.0
  %v8576 = vmax.f32 %v8512, 0.0
  %v8577 = vmax.f32 %v8513, 0.0
  %v8578 = vmax.f32 %v8514, 0.0
  %v8579 = vmax.f32 %v8515, 0.0
  %v8580 = vmax.f32 %v8516, 0.0
  %v8581 = vmax.f32 %v8517, 0.0
  %v8582 = vmax.f32 %v8518, 0.0
  %v8583 = vmax.f32 %v8519, 0.0
  %v8584 = vmax.f32 %v8520, 0.0
  %v8585 = vmax.f32 %v8521, 0.0
  %v8586 = vmax.f32 %v8522, 0.0
  %v8587 = vmax.f32 %v8523, 0.0
  %v8588 = vmax.f32 %v8524, 0.0
  %v8589 = vmax.f32 %v8525, 0.0
  %v8590 = vmax.f32 %v8526, 0.0
  %v8591 = vmax.f32 %v8527, 0.0
  %v8592 = vmax.f32 %v8528, 0.0
  %v8593 = vmax.f32 %v8529, 0.0
  %v8594 = vmax.f32 %v8530, 0.0
  %v8595 = vmax.f32 %v8531, 0.0
  %v8596 = vmax.f32 %v8532, 0.0
  %8597 = vst.msk [vmem:[%s8] sm:$0xff] %vm94, %v8533
  %8598 = vst.msk [vmem:[%s8 + $0x8] sm:$0xff] %vm94, %v8534
  %8599 = vst.msk [vmem:[%s8 + $0x10] sm:$0xff] %vm94, %v8535
  %8600 = vst.msk [vmem:[%s8 + $0x18] sm:$0xff] %vm94, %v8536
  %8601 = vst.msk [vmem:[%s8 + $0x20] sm:$0xff] %vm94, %v8537
  %8602 = vst.msk [vmem:[%s8 + $0x28] sm:$0xff] %vm94, %v8538
  %8603 = vst.msk [vmem:[%s8 + $0x30] sm:$0xff] %vm94, %v8539
  %8604 = vst.msk [vmem:[%s8 + $0x38] sm:$0xff] %vm94, %v8540
  %8605 = vst.msk [vmem:[%s8 + $0x40] sm:$0xff] %vm94, %v8541
  %8606 = vst.msk [vmem:[%s8 + $0x48] sm:$0xff] %vm94, %v8542
  %8607 = vst.msk [vmem:[%s8 + $0x50] sm:$0xff] %vm94, %v8543
  %8608 = vst.msk [vmem:[%s8 + $0x58] sm:$0xff] %vm94, %v8544
  %8609 = vst.msk [vmem:[%s8 + $0x60] sm:$0xff] %vm94, %v8545
  %8610 = vst.msk [vmem:[%s8 + $0x68] sm:$0xff] %vm94, %v8546
  %8611 = vst.msk [vmem:[%s8 + $0x70] sm:$0xff] %vm94, %v8547
  %8612 = vst.msk [vmem:[%s8 + $0x78] sm:$0xff] %vm94, %v8548
  %8613 = vst.msk [vmem:[%s8 + $0x80] sm:$0xff] %vm94, %v8549
  %8614 = vst.msk [vmem:[%s8 + $0x88] sm:$0xff] %vm94, %v8550
  %8615 = vst.msk [vmem:[%s8 + $0x90] sm:$0xff] %vm94, %v8551
  %8616 = vst.msk [vmem:[%s8 + $0x98] sm:$0xff] %vm94, %v8552
  %8617 = vst.msk [vmem:[%s8 + $0xa0] sm:$0xff] %vm94, %v8553
  %8618 = vst.msk [vmem:[%s8 + $0xa8] sm:$0xff] %vm94, %v8554
  %8619 = vst.msk [vmem:[%s8 + $0xb0] sm:$0xff] %vm94, %v8555
  %8620 = vst.msk [vmem:[%s8 + $0xb8] sm:$0xff] %vm94, %v8556
  %8621 = vst.msk [vmem:[%s8 + $0xc0] sm:$0xff] %vm94, %v8557
  %8622 = vst.msk [vmem:[%s8 + $0xc8] sm:$0xff] %vm94, %v8558
  %8623 = vst.msk [vmem:[%s8 + $0xd0] sm:$0xff] %vm94, %v8559
  %8624 = vst.msk [vmem:[%s8 + $0xd8] sm:$0xff] %vm94, %v8560
  %8625 = vst.msk [vmem:[%s8 + $0xe0] sm:$0xff] %vm94, %v8561
  %8626 = vst.msk [vmem:[%s8 + $0xe8] sm:$0xff] %vm94, %v8562
  %8627 = vst.msk [vmem:[%s8 + $0xf0] sm:$0xff] %vm94, %v8563
  %8628 = vst.msk [vmem:[%s8 + $0xf8] sm:$0xff] %vm94, %v8564
  %8629 = vst.msk [vmem:[%s8 + $0x100] sm:$0xff] %vm94, %v8565
  %8630 = vst.msk [vmem:[%s8 + $0x108] sm:$0xff] %vm94, %v8566
  %8631 = vst.msk [vmem:[%s8 + $0x110] sm:$0xff] %vm94, %v8567
  %8632 = vst.msk [vmem:[%s8 + $0x118] sm:$0xff] %vm94, %v8568
  %8633 = vst.msk [vmem:[%s8 + $0x120] sm:$0xff] %vm94, %v8569
  %8634 = vst.msk [vmem:[%s8 + $0x128] sm:$0xff] %vm94, %v8570
  %8635 = vst.msk [vmem:[%s8 + $0x130] sm:$0xff] %vm94, %v8571
  %8636 = vst.msk [vmem:[%s8 + $0x138] sm:$0xff] %vm94, %v8572
  %8637 = vst.msk [vmem:[%s8 + $0x140] sm:$0xff] %vm94, %v8573
  %8638 = vst.msk [vmem:[%s8 + $0x148] sm:$0xff] %vm94, %v8574
  %8639 = vst.msk [vmem:[%s8 + $0x150] sm:$0xff] %vm94, %v8575
  %8640 = vst.msk [vmem:[%s8 + $0x158] sm:$0xff] %vm94, %v8576
  %8641 = vst.msk [vmem:[%s8 + $0x160] sm:$0xff] %vm94, %v8577
  %8642 = vst.msk [vmem:[%s8 + $0x168] sm:$0xff] %vm94, %v8578
  %8643 = vst.msk [vmem:[%s8 + $0x170] sm:$0xff] %vm94, %v8579
  %8644 = vst.msk [vmem:[%s8 + $0x178] sm:$0xff] %vm94, %v8580
  %8645 = vst.msk [vmem:[%s8 + $0x180] sm:$0xff] %vm94, %v8581
  %8646 = vst.msk [vmem:[%s8 + $0x188] sm:$0xff] %vm94, %v8582
  %8647 = vst.msk [vmem:[%s8 + $0x190] sm:$0xff] %vm94, %v8583
  %8648 = vst.msk [vmem:[%s8 + $0x198] sm:$0xff] %vm94, %v8584
  %8649 = vst.msk [vmem:[%s8 + $0x1a0] sm:$0xff] %vm94, %v8585
  %8650 = vst.msk [vmem:[%s8 + $0x1a8] sm:$0xff] %vm94, %v8586
  %8651 = vst.msk [vmem:[%s8 + $0x1b0] sm:$0xff] %vm94, %v8587
  %8652 = vst.msk [vmem:[%s8 + $0x1b8] sm:$0xff] %vm94, %v8588
  %8653 = vst.msk [vmem:[%s8 + $0x1c0] sm:$0xff] %vm94, %v8589
  %8654 = vst.msk [vmem:[%s8 + $0x1c8] sm:$0xff] %vm94, %v8590
  %8655 = vst.msk [vmem:[%s8 + $0x1d0] sm:$0xff] %vm94, %v8591
  %8656 = vst.msk [vmem:[%s8 + $0x1d8] sm:$0xff] %vm94, %v8592
  %8657 = vst.msk [vmem:[%s8 + $0x1e0] sm:$0xff] %vm94, %v8593
  %8658 = vst.msk [vmem:[%s8 + $0x1e8] sm:$0xff] %vm94, %v8594
  %8659 = vst.msk [vmem:[%s8 + $0x1f0] sm:$0xff] %vm94, %v8595
  %8660 = vst.msk [vmem:[%s8 + $0x1f8] sm:$0xff] %vm94, %v8596
  // Predicated region
  $region34: #{tpu_custom_call.1} parent=0 // pred_check
    _
  $region35: #{tpu_custom_call.1} parent=0 // pred_check_branch
    %8662 = sbr.rel (0) target = $region37
  $region36: #{tpu_custom_call.1} parent=0 // pred_region
    _
  $region37: #{tpu_custom_call.1} parent=0 // pred_fallthru
    _
  // Predicated region
  $region38: #{tpu_custom_call.1} parent=0 // pred_check
    _
  $region39: #{tpu_custom_call.1} parent=0 // pred_check_branch
    %8664 = sbr.rel (0) target = $region41
  $region40: #{tpu_custom_call.1} parent=0 // pred_region
    _
  $region41: #{tpu_custom_call.1} parent=0 // pred_fallthru
    _

</llo_original>
